<compile_context>
chip_gen: v7x
topology: tpu7x:2x2x1
jax: 0.10.0
libtpu: 0.0.40
codegen_flags: <defaults>
</compile_context>

<pallas_src>
import jax
import jax.numpy as jnp
from jax.experimental import pallas as pl
from jax.experimental.pallas import tpu as pltpu

EPS = 1e-5  # BatchNorm eps (PyTorch default)


# ----------------------------------------------------------------------------
# Fused kernel (one grid step = Nb images, whole DilateBlock)
# ----------------------------------------------------------------------------
def _make_kernel(Nb, H2, W2, C):
    WL = W2 * C          # lane width of every activation slab
    R = H2 + 2           # padded rows per image (1-row zero halo top/bottom)
    L = Nb * R           # stacked padded rows per grid step
    M = L - 2            # working row count (valid rows + inter-image seams)

    def kernel(x_ref, dww_ref, vec_ref, pw_ref, cw_ref, cb_ref,
               out_ref, hpad_ref, keep_ref):

        def shift_w(v, sx):
            """Shift a (rows, W2*C) slab by sx half-res columns, zero fill.

            Columns live on the lane axis in groups of C, so a +-1 column
            shift is a +-C lane shift; the concatenated zero block supplies
            the conv zero padding (lane rotate + select, off the VALU MACs).
            """
            if sx == 0:
                return v
            z = jnp.zeros((v.shape[0], C), v.dtype)
            if sx > 0:
                return jnp.concatenate([v[:, C:], z], axis=1)
            return jnp.concatenate([z, v[:, :WL - C]], axis=1)

        def bn_prelu_pointwise(acc, s):
            """Stage tail: folded (dw-bias + BN1) affine -> PReLU1 ->
            1x1 conv (BN2 folded, block-diagonal weights on the MXU) -> PReLU2."""
            y = acc * vec_ref[s, 0:1, :] + vec_ref[s, 1:2, :]
            y = jnp.where(y > 0, y, y * vec_ref[s, 2:3, :])
            z = jnp.dot(y, pw_ref[s], preferred_element_type=jnp.float32)
            z = z + vec_ref[s, 3:4, :]
            return jnp.where(z > 0, z, z * vec_ref[s, 4:5, :])

        def cmm(a, piece):
            """One C-wide group of a compress 1x1: the channel concat is
            distributed into the matmuls (cat(a, b) @ W == a @ Wa + b @ Wb)."""
            return jnp.dot(a, cw_ref[piece], preferred_element_type=jnp.float32)

        def dwconv_stage(t, s):
            """sconv_s: depthwise 3x3 (stride 1, pad 1) + DWConv tail on the
            stacked (M, WL) slab t.  Row taps come from the halo scratch,
            column taps from lane shifts."""
            for m in range(Nb):
                hpad_ref[m * R + 1:m * R + 1 + H2, :] = t[m * R:m * R + H2, :]
            acc = jnp.zeros((M, WL), jnp.float32)
            for dy in range(3):
                base = hpad_ref[dy:dy + M, :]          # row shift dy-1
                for dx in range(3):
                    acc = acc + (shift_w(base, dx - 1)
                                 * dww_ref[s, 3 * dy + dx:3 * dy + dx + 1, :])
            return bn_prelu_pointwise(acc, s)

        # ------------------------------------------------------------------
        # Zero only the 2*Nb halo rows of the half-res scratch (interiors are
        # fully rewritten every stage; the conv1 input halos arrive
        # pre-zeroed from the host packing, so no other zeroing is needed).
        zrow = jnp.zeros((1, WL), jnp.float32)
        for m in range(Nb):
            hpad_ref[m * R:m * R + 1, :] = zrow
            hpad_ref[m * R + H2 + 1:m * R + H2 + 2, :] = zrow

        # ------------------------------------------------------------------
        # conv1 in polyphase form: evaluate the whole DWConv directly on each
        # output parity (== pool1..pool4 of conv1(x)).  Tap (dy, dx) of the
        # output parity (py, px) reads input parity ((py+dy-1)%2, (px+dx-1)%2)
        # at half-resolution shift ((py+dy-1)//2, (px+dx-1)//2); the per-image
        # zero row halos / zero column fill reproduce the full-res zero pad.
        c1 = None
        for idx, (py, px) in enumerate(((0, 0), (1, 0), (0, 1), (1, 1))):  # c1..c4
            acc = jnp.zeros((M, WL), jnp.float32)
            for dy in range(3):
                ay = py + dy - 1
                qy, sy = ay % 2, ay // 2
                for dx in range(3):
                    ax = px + dx - 1
                    qx, sx = ax % 2, ax // 2
                    src = x_ref[0, 2 * qy + qx, 1 + sy:1 + sy + M, :]
                    acc = acc + (shift_w(src, sx)
                                 * dww_ref[0, 3 * dy + dx:3 * dy + dx + 1, :])
            c = bn_prelu_pointwise(acc, 0)
            if idx == 0:
                c1 = c                        # consumed immediately by compress
            else:
                keep_ref[idx - 1, :, :] = c   # park c2, c3, c4 (bound vreg live ranges)

        # ------------------------------------------------------------------
        # compress(cat(c1..c4)) -> sconv1 -> compress1(cat(sc1,c2)) -> ... -> sconv4
        t = (cmm(c1, 0) + cmm(keep_ref[0], 1) + cmm(keep_ref[1], 2)
             + cmm(keep_ref[2], 3) + cb_ref[0:1, :])
        sc1 = dwconv_stage(t, 1)
        t = cmm(sc1, 4) + cmm(keep_ref[0], 5) + cb_ref[1:2, :]
        sc2 = dwconv_stage(t, 2)
        t = cmm(sc2, 6) + cmm(keep_ref[1], 7) + cb_ref[2:3, :]
        sc3 = dwconv_stage(t, 3)
        t = cmm(sc3, 8) + cmm(keep_ref[2], 9) + cb_ref[3:4, :]
        sc4 = dwconv_stage(t, 4)

        # Lane-dense (full 128-lane) output stores, one (H2, WL) slab per image.
        for m in range(Nb):
            out_ref[0, m * H2:(m + 1) * H2, :] = (
                sc4[m * R:m * R + H2, :].astype(out_ref.dtype))

    return kernel


# ----------------------------------------------------------------------------
# Wrapper: host-side layout plumbing + pallas_call
# ----------------------------------------------------------------------------
def dilate_block(x_nhwc, packed, *, images_per_step=4):
    """DilateBlock forward.  x_nhwc: (N, H, W, C), even H and W.
    Returns (N, H//2, W//2, C) float32."""
    N, H, W, C = x_nhwc.shape
    if H % 2 or W % 2:
        raise ValueError("DilateBlock requires even H and W.")
    H2, W2 = H // 2, W // 2
    WL = W2 * C

    # Pick the per-step batch so there are >=2 parallel grid steps (megacore).
    Nb = max(1, min(images_per_step, N // 2 if N >= 2 else 1))
    G = pl.cdiv(N, Nb)
    Npad = G * Nb
    L = Nb * (H2 + 2)

    x = x_nhwc.astype(jnp.float32)
    if Npad != N:
        x = jnp.pad(x, ((0, Npad - N), (0, 0), (0, 0), (0, 0)))

    # Layout plumbing (no compute): parity-deinterleave, fold (W2, C) into one
    # lane axis, add per-image zero halo rows, stack Nb images per grid step.
    par = jnp.stack([x[:, py::2, px::2, :].reshape(Npad, H2, WL)
                     for py in (0, 1) for px in (0, 1)], axis=1)   # (Npad,4,H2,WL)
    par = jnp.pad(par, ((0, 0), (0, 0), (1, 1), (0, 0)))           # zero row halos
    par = (par.reshape(G, Nb, 4, H2 + 2, WL)
              .transpose(0, 2, 1, 3, 4)
              .reshape(G, 4, L, WL))

    kernel = _make_kernel(Nb, H2, W2, C)
    out = pl.pallas_call(
        kernel,
        out_shape=jax.ShapeDtypeStruct((G, Nb * H2, WL), jnp.float32),
        grid=(G,),
        in_specs=[
            pl.BlockSpec((1, 4, L, WL), lambda g: (g, 0, 0, 0)),   # packed input
            pl.BlockSpec((5, 9, WL), lambda g: (0, 0, 0)),         # dw taps (lane-tiled)
            pl.BlockSpec((5, 5, WL), lambda g: (0, 0, 0)),         # folded BN/PReLU vectors
            pl.BlockSpec((5, WL, WL), lambda g: (0, 0, 0)),        # pointwise 1x1 (block-diag)
            pl.BlockSpec((10, WL, WL), lambda g: (0, 0, 0)),       # compress 1x1 (block-diag)
            pl.BlockSpec((4, WL), lambda g: (0, 0)),               # compress biases
        ],
        out_specs=pl.BlockSpec((1, Nb * H2, WL), lambda g: (g, 0, 0)),
        scratch_shapes=[
            pltpu.VMEM((L, WL), jnp.float32),            # row-halo scratch (sconv1..4)
            pltpu.VMEM((3, L - 2, WL), jnp.float32),     # parked c2, c3, c4
        ],
        compiler_params=pltpu.CompilerParams(
            dimension_semantics=("parallel",),
            vmem_limit_bytes=32 * 1024 * 1024),
    )(par, packed["dww"], packed["vec"], packed["pw"],
      packed["cmpw"], packed["cmpb"])

    return out.reshape(Npad, H2, W2, C)[:N]


# ----------------------------------------------------------------------------
# Parameters: raw (PyTorch layout, eval-mode BN stats) + kernel packing
# ----------------------------------------------------------------------------
def init_raw_params(key, c):
    """Random parameters with the PyTorch module's shapes: depthwise (3,3)
    kernels flattened row-major to (9, C); 1x1 weights in (in, out) matmul
    orientation; BatchNorm running stats for eval mode; PReLU slope 0.25."""

    def dwconv_params(k):
        ks = jax.random.split(k, 12)
        return dict(
            w_dw=0.3 * jax.random.normal(ks[0], (9, c), jnp.float32),
            b_dw=0.1 * jax.random.normal(ks[1], (c,), jnp.float32),
            gamma1=1.0 + 0.1 * jax.random.normal(ks[2], (c,), jnp.float32),
            beta1=0.1 * jax.random.normal(ks[3], (c,), jnp.float32),
            mean1=0.1 * jax.random.normal(ks[4], (c,), jnp.float32),
            var1=1.0 + 0.1 * jax.random.uniform(ks[5], (c,), jnp.float32),
            alpha1=jnp.full((c,), 0.25, jnp.float32),
            w_pw=0.3 * jax.random.normal(ks[6], (c, c), jnp.float32),
            b_pw=0.1 * jax.random.normal(ks[7], (c,), jnp.float32),
            gamma2=1.0 + 0.1 * jax.random.normal(ks[8], (c,), jnp.float32),
            beta2=0.1 * jax.random.normal(ks[9], (c,), jnp.float32),
            mean2=0.1 * jax.random.normal(ks[10], (c,), jnp.float32),
            var2=1.0 + 0.1 * jax.random.uniform(ks[11], (c,), jnp.float32),
            alpha2=jnp.full((c,), 0.25, jnp.float32),
        )

    ks = jax.random.split(key, 9)
    raw = {}
    for i, name in enumerate(("conv1", "sconv1", "sconv2", "sconv3", "sconv4")):
        raw[name] = dwconv_params(ks[i])
    for i, (name, nin) in enumerate((("compress", 4 * c), ("compress1", 2 * c),
                                     ("compress2", 2 * c), ("compress3", 2 * c))):
        k1, k2 = jax.random.split(ks[5 + i])
        raw[name] = dict(w=0.15 * jax.random.normal(k1, (nin, c), jnp.float32),
                         b=0.1 * jax.random.normal(k2, (c,), jnp.float32))
    return raw


def pack_params(raw, W2, c):
    """Fold eval-mode BN into per-channel scale/shift, tile per-channel
    vectors across W2 (lane layout is (w2, c)), and expand every 1x1 conv to
    a block-diagonal (W2*C, W2*C) matmul matrix so the kernel never has to
    relayout activations into a lane-sparse (pixels, C) shape."""
    WL = W2 * c
    eye = jnp.eye(W2, dtype=jnp.float32)

    def tile_row(v):                                  # lane l = w2*C + ch -> v[ch]
        return jnp.tile(v, W2)

    dww, vec, pw = [], [], []
    for name in ("conv1", "sconv1", "sconv2", "sconv3", "sconv4"):
        p = raw[name]
        s1 = p["gamma1"] * jax.lax.rsqrt(p["var1"] + EPS)
        t1 = p["beta1"] + (p["b_dw"] - p["mean1"]) * s1
        s2 = p["gamma2"] * jax.lax.rsqrt(p["var2"] + EPS)
        t2 = p["beta2"] + (p["b_pw"] - p["mean2"]) * s2
        dww.append(jnp.stack([tile_row(p["w_dw"][k]) for k in range(9)]))
        vec.append(jnp.stack([tile_row(s1), tile_row(t1), tile_row(p["alpha1"]),
                              tile_row(t2), tile_row(p["alpha2"])]))
        pw.append(jnp.kron(eye, p["w_pw"] * s2[None, :]))

    cw, cb = [], []
    for name, n_groups in (("compress", 4), ("compress1", 2),
                           ("compress2", 2), ("compress3", 2)):
        w = raw[name]["w"]
        for i in range(n_groups):
            cw.append(jnp.kron(eye, w[i * c:(i + 1) * c, :]))
        cb.append(tile_row(raw[name]["b"]))

    return dict(dww=jnp.stack(dww),      # (5, 9, WL)
                vec=jnp.stack(vec),      # (5, 5, WL)
                pw=jnp.stack(pw),        # (5, WL, WL)
                cmpw=jnp.stack(cw),      # (10, WL, WL)
                cmpb=jnp.stack(cb))      # (4, WL)


# ----------------------------------------------------------------------------
# Pure-JAX reference of the PyTorch module (eval mode), for validation
# ----------------------------------------------------------------------------
def _dwconv_ref(x, p):
    n, h, w, c = x.shape
    xp = jnp.pad(x, ((0, 0), (1, 1), (1, 1), (0, 0)))
    acc = jnp.zeros_like(x)
    for dy in range(3):
        for dx in range(3):
            acc = acc + xp[:, dy:dy + h, dx:dx + w, :] * p["w_dw"][3 * dy + dx]
    y = acc + p["b_dw"]
    y = (y - p["mean1"]) * p["gamma1"] * jax.lax.rsqrt(p["var1"] + EPS) + p["beta1"]
    y = jnp.where(y > 0, y, y * p["alpha1"])
    z = jnp.einsum("nhwc,cd->nhwd", y, p["w_pw"]) + p["b_pw"]
    z = (z - p["mean2"]) * p["gamma2"] * jax.lax.rsqrt(p["var2"] + EPS) + p["beta2"]
    return jnp.where(z > 0, z, z * p["alpha2"])


def dilate_block_ref(x, raw):
    def conv1x1(name, a):
        return jnp.einsum("nhwc,cd->nhwd", a, raw[name]["w"]) + raw[name]["b"]

    y = _dwconv_ref(x, raw["conv1"])
    c1 = y[:, 0::2, 0::2, :]
    c2 = y[:, 1::2, 0::2, :]
    c3 = y[:, 0::2, 1::2, :]
    c4 = y[:, 1::2, 1::2, :]
    sc1 = _dwconv_ref(conv1x1("compress", jnp.concatenate([c1, c2, c3, c4], -1)),
                      raw["sconv1"])
    sc2 = _dwconv_ref(conv1x1("compress1", jnp.concatenate([sc1, c2], -1)), raw["sconv2"])
    sc3 = _dwconv_ref(conv1x1("compress2", jnp.concatenate([sc2, c3], -1)), raw["sconv3"])
    sc4 = _dwconv_ref(conv1x1("compress3", jnp.concatenate([sc3, c4], -1)), raw["sconv4"])
    return sc4


# ----------------------------------------------------------------------------
if __name__ == "__main__":
    N, C, H, W = 8, 16, 16, 16   # DilateBlock default in_c=16; even H, W

    # Deterministic input, PyTorch-style NCHW; NHWC at the kernel boundary.
    x_nchw = jax.random.normal(jax.random.PRNGKey(0), (N, C, H, W), jnp.float32)
    x_nhwc = jnp.transpose(x_nchw, (0, 2, 3, 1))

    raw = init_raw_params(jax.random.PRNGKey(42), C)
    packed = pack_params(raw, W // 2, C)

    out_nhwc = jax.block_until_ready(dilate_block(x_nhwc, packed, images_per_step=4))

    # Validate against a plain-JAX implementation of the PyTorch forward pass.
    ref_nhwc = jax.block_until_ready(dilate_block_ref(x_nhwc, raw))
    max_ref = float(jnp.max(jnp.abs(ref_nhwc)))
    max_err = float(jnp.max(jnp.abs(out_nhwc - ref_nhwc)))
    assert max_err <= 0.03 * max(1.0, max_ref), (max_err, max_ref)

    out_nchw = jnp.transpose(out_nhwc, (0, 3, 1, 2))
    assert out_nchw.shape == (N, C, H // 2, W // 2), out_nchw.shape
    assert bool(jnp.all(jnp.isfinite(out_nchw)))

    print("KERNEL_OK")
</pallas_src>

<mosaic_0001>
module attributes {stable_mosaic.version = 11 : i64} {
  func.func @kernel(%arg0: i32, %arg1: memref<1x4x40x128xf32, #tpu.memory_space<vmem>>, %arg2: memref<5x9x128xf32, #tpu.memory_space<vmem>>, %arg3: memref<5x5x128xf32, #tpu.memory_space<vmem>>, %arg4: memref<5x128x128xf32, #tpu.memory_space<vmem>>, %arg5: memref<10x128x128xf32, #tpu.memory_space<vmem>>, %arg6: memref<4x128xf32, #tpu.memory_space<vmem>>, %arg7: memref<1x32x128xf32, #tpu.memory_space<vmem>>, %arg8: memref<40x128xf32, #tpu.memory_space<vmem>>, %arg9: memref<3x38x128xf32, #tpu.memory_space<vmem>>) attributes {dimension_semantics = [#tpu.dimension_semantics<parallel>], iteration_bounds = array<i64: 2>, scalar_prefetch = 0 : i64, scratch_operands = 2 : i64, tpu.core_type = #tpu.core_type<tc>, window_params = [{transform_indices = @transform_0, window_bounds = array<i64: 1, 4, 40, 128>}, {pipeline_mode = #tpu.pipeline_mode<synchronous>, transform_indices = @transform_1, window_bounds = array<i64: 5, 9, 128>}, {pipeline_mode = #tpu.pipeline_mode<synchronous>, transform_indices = @transform_2, window_bounds = array<i64: 5, 5, 128>}, {pipeline_mode = #tpu.pipeline_mode<synchronous>, transform_indices = @transform_3, window_bounds = array<i64: 5, 128, 128>}, {pipeline_mode = #tpu.pipeline_mode<synchronous>, transform_indices = @transform_4, window_bounds = array<i64: 10, 128, 128>}, {pipeline_mode = #tpu.pipeline_mode<synchronous>, transform_indices = @transform_5, window_bounds = array<i64: 4, 128>}, {transform_indices = @transform_6, window_bounds = array<i64: 1, 32, 128>}]} {
    %cst = arith.constant 0.000000e+00 : f32
    %0 = vector.broadcast %cst : f32 to vector<1x128xf32>
    %c0 = arith.constant 0 : index
    %c0_0 = arith.constant 0 : index
    %1 = vector.load %arg8[%c0, %c0_0] : memref<40x128xf32, #tpu.memory_space<vmem>>, vector<1x128xf32>
    tpu.vector_store %arg8[%c0, %c0_0], %0 {strides = array<i32>} : memref<40x128xf32, #tpu.memory_space<vmem>>, vector<1x128xf32>,
    %c9 = arith.constant 9 : index
    %c0_1 = arith.constant 0 : index
    %2 = vector.load %arg8[%c9, %c0_1] : memref<40x128xf32, #tpu.memory_space<vmem>>, vector<1x128xf32>
    tpu.vector_store %arg8[%c9, %c0_1], %0 {strides = array<i32>} : memref<40x128xf32, #tpu.memory_space<vmem>>, vector<1x128xf32>,
    %c10 = arith.constant 10 : index
    %c0_2 = arith.constant 0 : index
    %3 = vector.load %arg8[%c10, %c0_2] : memref<40x128xf32, #tpu.memory_space<vmem>>, vector<1x128xf32>
    tpu.vector_store %arg8[%c10, %c0_2], %0 {strides = array<i32>} : memref<40x128xf32, #tpu.memory_space<vmem>>, vector<1x128xf32>,
    %c19 = arith.constant 19 : index
    %c0_3 = arith.constant 0 : index
    %4 = vector.load %arg8[%c19, %c0_3] : memref<40x128xf32, #tpu.memory_space<vmem>>, vector<1x128xf32>
    tpu.vector_store %arg8[%c19, %c0_3], %0 {strides = array<i32>} : memref<40x128xf32, #tpu.memory_space<vmem>>, vector<1x128xf32>,
    %c20 = arith.constant 20 : index
    %c0_4 = arith.constant 0 : index
    %5 = vector.load %arg8[%c20, %c0_4] : memref<40x128xf32, #tpu.memory_space<vmem>>, vector<1x128xf32>
    tpu.vector_store %arg8[%c20, %c0_4], %0 {strides = array<i32>} : memref<40x128xf32, #tpu.memory_space<vmem>>, vector<1x128xf32>,
    %c29 = arith.constant 29 : index
    %c0_5 = arith.constant 0 : index
    %6 = vector.load %arg8[%c29, %c0_5] : memref<40x128xf32, #tpu.memory_space<vmem>>, vector<1x128xf32>
    tpu.vector_store %arg8[%c29, %c0_5], %0 {strides = array<i32>} : memref<40x128xf32, #tpu.memory_space<vmem>>, vector<1x128xf32>,
    %c30 = arith.constant 30 : index
    %c0_6 = arith.constant 0 : index
    %7 = vector.load %arg8[%c30, %c0_6] : memref<40x128xf32, #tpu.memory_space<vmem>>, vector<1x128xf32>
    tpu.vector_store %arg8[%c30, %c0_6], %0 {strides = array<i32>} : memref<40x128xf32, #tpu.memory_space<vmem>>, vector<1x128xf32>,
    %c39 = arith.constant 39 : index
    %c0_7 = arith.constant 0 : index
    %8 = vector.load %arg8[%c39, %c0_7] : memref<40x128xf32, #tpu.memory_space<vmem>>, vector<1x128xf32>
    tpu.vector_store %arg8[%c39, %c0_7], %0 {strides = array<i32>} : memref<40x128xf32, #tpu.memory_space<vmem>>, vector<1x128xf32>,
    %cst_8 = arith.constant 0.000000e+00 : f32
    %9 = vector.broadcast %cst_8 : f32 to vector<38x128xf32>
    %c0_9 = arith.constant 0 : index
    %c3 = arith.constant 3 : index
    %c0_10 = arith.constant 0 : index
    %c0_11 = arith.constant 0 : index
    %10 = vector.load %arg1[%c0_9, %c3, %c0_10, %c0_11] : memref<1x4x40x128xf32, #tpu.memory_space<vmem>>, vector<1x1x38x128xf32>
    %11 = vector.shape_cast %10 : vector<1x1x38x128xf32> to vector<38x128xf32>
    %cst_12 = arith.constant 0.000000e+00 : f32
    %12 = vector.broadcast %cst_12 : f32 to vector<38x16xf32>
    %13 = vector.extract_strided_slice %11 {offsets = [0, 0], sizes = [38, 112], strides = [1, 1]} : vector<38x128xf32> to vector<38x112xf32>
    %14 = tpu.concatenate %12, %13 in 1 : vector<38x16xf32>, vector<38x112xf32> -> vector<38x128xf32>
    %c0_13 = arith.constant 0 : index
    %c0_14 = arith.constant 0 : index
    %c0_15 = arith.constant 0 : index
    %15 = vector.load %arg2[%c0_13, %c0_14, %c0_15] : memref<5x9x128xf32, #tpu.memory_space<vmem>>, vector<1x1x128xf32>
    %16 = vector.shape_cast %15 : vector<1x1x128xf32> to vector<1x128xf32>
    %17 = vector.broadcast %16 : vector<1x128xf32> to vector<38x128xf32>
    %18 = arith.mulf %14, %17 : vector<38x128xf32>
    %19 = arith.addf %9, %18 : vector<38x128xf32>
    %c0_16 = arith.constant 0 : index
    %c2 = arith.constant 2 : index
    %c0_17 = arith.constant 0 : index
    %c0_18 = arith.constant 0 : index
    %20 = vector.load %arg1[%c0_16, %c2, %c0_17, %c0_18] : memref<1x4x40x128xf32, #tpu.memory_space<vmem>>, vector<1x1x38x128xf32>
    %21 = vector.shape_cast %20 : vector<1x1x38x128xf32> to vector<38x128xf32>
    %c0_19 = arith.constant 0 : index
    %c1 = arith.constant 1 : index
    %c0_20 = arith.constant 0 : index
    %22 = vector.load %arg2[%c0_19, %c1, %c0_20] : memref<5x9x128xf32, #tpu.memory_space<vmem>>, vector<1x1x128xf32>
    %23 = vector.shape_cast %22 : vector<1x1x128xf32> to vector<1x128xf32>
    %24 = vector.broadcast %23 : vector<1x128xf32> to vector<38x128xf32>
    %25 = arith.mulf %21, %24 : vector<38x128xf32>
    %26 = arith.addf %19, %25 : vector<38x128xf32>
    %c0_21 = arith.constant 0 : index
    %c3_22 = arith.constant 3 : index
    %c0_23 = arith.constant 0 : index
    %c0_24 = arith.constant 0 : index
    %27 = vector.load %arg1[%c0_21, %c3_22, %c0_23, %c0_24] : memref<1x4x40x128xf32, #tpu.memory_space<vmem>>, vector<1x1x38x128xf32>
    %28 = vector.shape_cast %27 : vector<1x1x38x128xf32> to vector<38x128xf32>
    %c0_25 = arith.constant 0 : index
    %c2_26 = arith.constant 2 : index
    %c0_27 = arith.constant 0 : index
    %29 = vector.load %arg2[%c0_25, %c2_26, %c0_27] : memref<5x9x128xf32, #tpu.memory_space<vmem>>, vector<1x1x128xf32>
    %30 = vector.shape_cast %29 : vector<1x1x128xf32> to vector<1x128xf32>
    %31 = vector.broadcast %30 : vector<1x128xf32> to vector<38x128xf32>
    %32 = arith.mulf %28, %31 : vector<38x128xf32>
    %33 = arith.addf %26, %32 : vector<38x128xf32>
    %c0_28 = arith.constant 0 : index
    %c1_29 = arith.constant 1 : index
    %c1_30 = arith.constant 1 : index
    %c0_31 = arith.constant 0 : index
    %34 = vector.load %arg1[%c0_28, %c1_29, %c1_30, %c0_31] : memref<1x4x40x128xf32, #tpu.memory_space<vmem>>, vector<1x1x38x128xf32>
    %35 = vector.shape_cast %34 : vector<1x1x38x128xf32> to vector<38x128xf32>
    %cst_32 = arith.constant 0.000000e+00 : f32
    %36 = vector.broadcast %cst_32 : f32 to vector<38x16xf32>
    %37 = vector.extract_strided_slice %35 {offsets = [0, 0], sizes = [38, 112], strides = [1, 1]} : vector<38x128xf32> to vector<38x112xf32>
    %38 = tpu.concatenate %36, %37 in 1 : vector<38x16xf32>, vector<38x112xf32> -> vector<38x128xf32>
    %c0_33 = arith.constant 0 : index
    %c3_34 = arith.constant 3 : index
    %c0_35 = arith.constant 0 : index
    %39 = vector.load %arg2[%c0_33, %c3_34, %c0_35] : memref<5x9x128xf32, #tpu.memory_space<vmem>>, vector<1x1x128xf32>
    %40 = vector.shape_cast %39 : vector<1x1x128xf32> to vector<1x128xf32>
    %41 = vector.broadcast %40 : vector<1x128xf32> to vector<38x128xf32>
    %42 = arith.mulf %38, %41 : vector<38x128xf32>
    %43 = arith.addf %33, %42 : vector<38x128xf32>
    %c0_36 = arith.constant 0 : index
    %c0_37 = arith.constant 0 : index
    %c1_38 = arith.constant 1 : index
    %c0_39 = arith.constant 0 : index
    %44 = vector.load %arg1[%c0_36, %c0_37, %c1_38, %c0_39] : memref<1x4x40x128xf32, #tpu.memory_space<vmem>>, vector<1x1x38x128xf32>
    %45 = vector.shape_cast %44 : vector<1x1x38x128xf32> to vector<38x128xf32>
    %c0_40 = arith.constant 0 : index
    %c4 = arith.constant 4 : index
    %c0_41 = arith.constant 0 : index
    %46 = vector.load %arg2[%c0_40, %c4, %c0_41] : memref<5x9x128xf32, #tpu.memory_space<vmem>>, vector<1x1x128xf32>
    %47 = vector.shape_cast %46 : vector<1x1x128xf32> to vector<1x128xf32>
    %48 = vector.broadcast %47 : vector<1x128xf32> to vector<38x128xf32>
    %49 = arith.mulf %45, %48 : vector<38x128xf32>
    %50 = arith.addf %43, %49 : vector<38x128xf32>
    %c0_42 = arith.constant 0 : index
    %c1_43 = arith.constant 1 : index
    %c1_44 = arith.constant 1 : index
    %c0_45 = arith.constant 0 : index
    %51 = vector.load %arg1[%c0_42, %c1_43, %c1_44, %c0_45] : memref<1x4x40x128xf32, #tpu.memory_space<vmem>>, vector<1x1x38x128xf32>
    %52 = vector.shape_cast %51 : vector<1x1x38x128xf32> to vector<38x128xf32>
    %c0_46 = arith.constant 0 : index
    %c5 = arith.constant 5 : index
    %c0_47 = arith.constant 0 : index
    %53 = vector.load %arg2[%c0_46, %c5, %c0_47] : memref<5x9x128xf32, #tpu.memory_space<vmem>>, vector<1x1x128xf32>
    %54 = vector.shape_cast %53 : vector<1x1x128xf32> to vector<1x128xf32>
    %55 = vector.broadcast %54 : vector<1x128xf32> to vector<38x128xf32>
    %56 = arith.mulf %52, %55 : vector<38x128xf32>
    %57 = arith.addf %50, %56 : vector<38x128xf32>
    %c0_48 = arith.constant 0 : index
    %c3_49 = arith.constant 3 : index
    %c1_50 = arith.constant 1 : index
    %c0_51 = arith.constant 0 : index
    %58 = vector.load %arg1[%c0_48, %c3_49, %c1_50, %c0_51] : memref<1x4x40x128xf32, #tpu.memory_space<vmem>>, vector<1x1x38x128xf32>
    %59 = vector.shape_cast %58 : vector<1x1x38x128xf32> to vector<38x128xf32>
    %cst_52 = arith.constant 0.000000e+00 : f32
    %60 = vector.broadcast %cst_52 : f32 to vector<38x16xf32>
    %61 = vector.extract_strided_slice %59 {offsets = [0, 0], sizes = [38, 112], strides = [1, 1]} : vector<38x128xf32> to vector<38x112xf32>
    %62 = tpu.concatenate %60, %61 in 1 : vector<38x16xf32>, vector<38x112xf32> -> vector<38x128xf32>
    %c0_53 = arith.constant 0 : index
    %c6 = arith.constant 6 : index
    %c0_54 = arith.constant 0 : index
    %63 = vector.load %arg2[%c0_53, %c6, %c0_54] : memref<5x9x128xf32, #tpu.memory_space<vmem>>, vector<1x1x128xf32>
    %64 = vector.shape_cast %63 : vector<1x1x128xf32> to vector<1x128xf32>
    %65 = vector.broadcast %64 : vector<1x128xf32> to vector<38x128xf32>
    %66 = arith.mulf %62, %65 : vector<38x128xf32>
    %67 = arith.addf %57, %66 : vector<38x128xf32>
    %c0_55 = arith.constant 0 : index
    %c2_56 = arith.constant 2 : index
    %c1_57 = arith.constant 1 : index
    %c0_58 = arith.constant 0 : index
    %68 = vector.load %arg1[%c0_55, %c2_56, %c1_57, %c0_58] : memref<1x4x40x128xf32, #tpu.memory_space<vmem>>, vector<1x1x38x128xf32>
    %69 = vector.shape_cast %68 : vector<1x1x38x128xf32> to vector<38x128xf32>
    %c0_59 = arith.constant 0 : index
    %c7 = arith.constant 7 : index
    %c0_60 = arith.constant 0 : index
    %70 = vector.load %arg2[%c0_59, %c7, %c0_60] : memref<5x9x128xf32, #tpu.memory_space<vmem>>, vector<1x1x128xf32>
    %71 = vector.shape_cast %70 : vector<1x1x128xf32> to vector<1x128xf32>
    %72 = vector.broadcast %71 : vector<1x128xf32> to vector<38x128xf32>
    %73 = arith.mulf %69, %72 : vector<38x128xf32>
    %74 = arith.addf %67, %73 : vector<38x128xf32>
    %c0_61 = arith.constant 0 : index
    %c3_62 = arith.constant 3 : index
    %c1_63 = arith.constant 1 : index
    %c0_64 = arith.constant 0 : index
    %75 = vector.load %arg1[%c0_61, %c3_62, %c1_63, %c0_64] : memref<1x4x40x128xf32, #tpu.memory_space<vmem>>, vector<1x1x38x128xf32>
    %76 = vector.shape_cast %75 : vector<1x1x38x128xf32> to vector<38x128xf32>
    %c0_65 = arith.constant 0 : index
    %c8 = arith.constant 8 : index
    %c0_66 = arith.constant 0 : index
    %77 = vector.load %arg2[%c0_65, %c8, %c0_66] : memref<5x9x128xf32, #tpu.memory_space<vmem>>, vector<1x1x128xf32>
    %78 = vector.shape_cast %77 : vector<1x1x128xf32> to vector<1x128xf32>
    %79 = vector.broadcast %78 : vector<1x128xf32> to vector<38x128xf32>
    %80 = arith.mulf %76, %79 : vector<38x128xf32>
    %81 = arith.addf %74, %80 : vector<38x128xf32>
    %c0_67 = arith.constant 0 : index
    %c0_68 = arith.constant 0 : index
    %c0_69 = arith.constant 0 : index
    %82 = vector.load %arg3[%c0_67, %c0_68, %c0_69] : memref<5x5x128xf32, #tpu.memory_space<vmem>>, vector<1x1x128xf32>
    %83 = vector.shape_cast %82 : vector<1x1x128xf32> to vector<1x128xf32>
    %84 = vector.broadcast %83 : vector<1x128xf32> to vector<38x128xf32>
    %85 = arith.mulf %81, %84 : vector<38x128xf32>
    %c0_70 = arith.constant 0 : index
    %c1_71 = arith.constant 1 : index
    %c0_72 = arith.constant 0 : index
    %86 = vector.load %arg3[%c0_70, %c1_71, %c0_72] : memref<5x5x128xf32, #tpu.memory_space<vmem>>, vector<1x1x128xf32>
    %87 = vector.shape_cast %86 : vector<1x1x128xf32> to vector<1x128xf32>
    %88 = vector.broadcast %87 : vector<1x128xf32> to vector<38x128xf32>
    %89 = arith.addf %85, %88 : vector<38x128xf32>
    %cst_73 = arith.constant 0.000000e+00 : f32
    %90 = vector.broadcast %cst_73 : f32 to vector<38x128xf32>
    %91 = arith.cmpf ogt, %89, %90 : vector<38x128xf32>
    %c0_74 = arith.constant 0 : index
    %c2_75 = arith.constant 2 : index
    %c0_76 = arith.constant 0 : index
    %92 = vector.load %arg3[%c0_74, %c2_75, %c0_76] : memref<5x5x128xf32, #tpu.memory_space<vmem>>, vector<1x1x128xf32>
    %93 = vector.shape_cast %92 : vector<1x1x128xf32> to vector<1x128xf32>
    %94 = vector.broadcast %93 : vector<1x128xf32> to vector<38x128xf32>
    %95 = arith.mulf %89, %94 : vector<38x128xf32>
    %96 = arith.select %91, %89, %95 : vector<38x128xi1>, vector<38x128xf32>
    %c0_77 = arith.constant 0 : index
    %c0_78 = arith.constant 0 : index
    %c0_79 = arith.constant 0 : index
    %97 = vector.load %arg4[%c0_77, %c0_78, %c0_79] : memref<5x128x128xf32, #tpu.memory_space<vmem>>, vector<1x128x128xf32>
    %98 = vector.shape_cast %97 : vector<1x128x128xf32> to vector<128x128xf32>
    %cst_80 = arith.constant dense<0.000000e+00> : vector<38x128xf32>
    %99 = tpu.matmul %96, %98, %cst_80 {dimension_numbers = #tpu.dot_dimension_numbers<[1], [0], [0], [1], [0, 0, 1, 1], [], []>} : vector<38x128xf32>, vector<128x128xf32>, vector<38x128xf32> -> vector<38x128xf32>
    %c0_81 = arith.constant 0 : index
    %c3_82 = arith.constant 3 : index
    %c0_83 = arith.constant 0 : index
    %100 = vector.load %arg3[%c0_81, %c3_82, %c0_83] : memref<5x5x128xf32, #tpu.memory_space<vmem>>, vector<1x1x128xf32>
    %101 = vector.shape_cast %100 : vector<1x1x128xf32> to vector<1x128xf32>
    %102 = vector.broadcast %101 : vector<1x128xf32> to vector<38x128xf32>
    %103 = arith.addf %99, %102 : vector<38x128xf32>
    %cst_84 = arith.constant 0.000000e+00 : f32
    %104 = vector.broadcast %cst_84 : f32 to vector<38x128xf32>
    %105 = arith.cmpf ogt, %103, %104 : vector<38x128xf32>
    %c0_85 = arith.constant 0 : index
    %c4_86 = arith.constant 4 : index
    %c0_87 = arith.constant 0 : index
    %106 = vector.load %arg3[%c0_85, %c4_86, %c0_87] : memref<5x5x128xf32, #tpu.memory_space<vmem>>, vector<1x1x128xf32>
    %107 = vector.shape_cast %106 : vector<1x1x128xf32> to vector<1x128xf32>
    %108 = vector.broadcast %107 : vector<1x128xf32> to vector<38x128xf32>
    %109 = arith.mulf %103, %108 : vector<38x128xf32>
    %110 = arith.select %105, %103, %109 : vector<38x128xi1>, vector<38x128xf32>
    %cst_88 = arith.constant 0.000000e+00 : f32
    %111 = vector.broadcast %cst_88 : f32 to vector<38x128xf32>
    %c0_89 = arith.constant 0 : index
    %c1_90 = arith.constant 1 : index
    %c1_91 = arith.constant 1 : index
    %c0_92 = arith.constant 0 : index
    %112 = vector.load %arg1[%c0_89, %c1_90, %c1_91, %c0_92] : memref<1x4x40x128xf32, #tpu.memory_space<vmem>>, vector<1x1x38x128xf32>
    %113 = vector.shape_cast %112 : vector<1x1x38x128xf32> to vector<38x128xf32>
    %cst_93 = arith.constant 0.000000e+00 : f32
    %114 = vector.broadcast %cst_93 : f32 to vector<38x16xf32>
    %115 = vector.extract_strided_slice %113 {offsets = [0, 0], sizes = [38, 112], strides = [1, 1]} : vector<38x128xf32> to vector<38x112xf32>
    %116 = tpu.concatenate %114, %115 in 1 : vector<38x16xf32>, vector<38x112xf32> -> vector<38x128xf32>
    %c0_94 = arith.constant 0 : index
    %c0_95 = arith.constant 0 : index
    %c0_96 = arith.constant 0 : index
    %117 = vector.load %arg2[%c0_94, %c0_95, %c0_96] : memref<5x9x128xf32, #tpu.memory_space<vmem>>, vector<1x1x128xf32>
    %118 = vector.shape_cast %117 : vector<1x1x128xf32> to vector<1x128xf32>
    %119 = vector.broadcast %118 : vector<1x128xf32> to vector<38x128xf32>
    %120 = arith.mulf %116, %119 : vector<38x128xf32>
    %121 = arith.addf %111, %120 : vector<38x128xf32>
    %c0_97 = arith.constant 0 : index
    %c0_98 = arith.constant 0 : index
    %c1_99 = arith.constant 1 : index
    %c0_100 = arith.constant 0 : index
    %122 = vector.load %arg1[%c0_97, %c0_98, %c1_99, %c0_100] : memref<1x4x40x128xf32, #tpu.memory_space<vmem>>, vector<1x1x38x128xf32>
    %123 = vector.shape_cast %122 : vector<1x1x38x128xf32> to vector<38x128xf32>
    %c0_101 = arith.constant 0 : index
    %c1_102 = arith.constant 1 : index
    %c0_103 = arith.constant 0 : index
    %124 = vector.load %arg2[%c0_101, %c1_102, %c0_103] : memref<5x9x128xf32, #tpu.memory_space<vmem>>, vector<1x1x128xf32>
    %125 = vector.shape_cast %124 : vector<1x1x128xf32> to vector<1x128xf32>
    %126 = vector.broadcast %125 : vector<1x128xf32> to vector<38x128xf32>
    %127 = arith.mulf %123, %126 : vector<38x128xf32>
    %128 = arith.addf %121, %127 : vector<38x128xf32>
    %c0_104 = arith.constant 0 : index
    %c1_105 = arith.constant 1 : index
    %c1_106 = arith.constant 1 : index
    %c0_107 = arith.constant 0 : index
    %129 = vector.load %arg1[%c0_104, %c1_105, %c1_106, %c0_107] : memref<1x4x40x128xf32, #tpu.memory_space<vmem>>, vector<1x1x38x128xf32>
    %130 = vector.shape_cast %129 : vector<1x1x38x128xf32> to vector<38x128xf32>
    %c0_108 = arith.constant 0 : index
    %c2_109 = arith.constant 2 : index
    %c0_110 = arith.constant 0 : index
    %131 = vector.load %arg2[%c0_108, %c2_109, %c0_110] : memref<5x9x128xf32, #tpu.memory_space<vmem>>, vector<1x1x128xf32>
    %132 = vector.shape_cast %131 : vector<1x1x128xf32> to vector<1x128xf32>
    %133 = vector.broadcast %132 : vector<1x128xf32> to vector<38x128xf32>
    %134 = arith.mulf %130, %133 : vector<38x128xf32>
    %135 = arith.addf %128, %134 : vector<38x128xf32>
    %c0_111 = arith.constant 0 : index
    %c3_112 = arith.constant 3 : index
    %c1_113 = arith.constant 1 : index
    %c0_114 = arith.constant 0 : index
    %136 = vector.load %arg1[%c0_111, %c3_112, %c1_113, %c0_114] : memref<1x4x40x128xf32, #tpu.memory_space<vmem>>, vector<1x1x38x128xf32>
    %137 = vector.shape_cast %136 : vector<1x1x38x128xf32> to vector<38x128xf32>
    %cst_115 = arith.constant 0.000000e+00 : f32
    %138 = vector.broadcast %cst_115 : f32 to vector<38x16xf32>
    %139 = vector.extract_strided_slice %137 {offsets = [0, 0], sizes = [38, 112], strides = [1, 1]} : vector<38x128xf32> to vector<38x112xf32>
    %140 = tpu.concatenate %138, %139 in 1 : vector<38x16xf32>, vector<38x112xf32> -> vector<38x128xf32>
    %c0_116 = arith.constant 0 : index
    %c3_117 = arith.constant 3 : index
    %c0_118 = arith.constant 0 : index
    %141 = vector.load %arg2[%c0_116, %c3_117, %c0_118] : memref<5x9x128xf32, #tpu.memory_space<vmem>>, vector<1x1x128xf32>
    %142 = vector.shape_cast %141 : vector<1x1x128xf32> to vector<1x128xf32>
    %143 = vector.broadcast %142 : vector<1x128xf32> to vector<38x128xf32>
    %144 = arith.mulf %140, %143 : vector<38x128xf32>
    %145 = arith.addf %135, %144 : vector<38x128xf32>
    %c0_119 = arith.constant 0 : index
    %c2_120 = arith.constant 2 : index
    %c1_121 = arith.constant 1 : index
    %c0_122 = arith.constant 0 : index
    %146 = vector.load %arg1[%c0_119, %c2_120, %c1_121, %c0_122] : memref<1x4x40x128xf32, #tpu.memory_space<vmem>>, vector<1x1x38x128xf32>
    %147 = vector.shape_cast %146 : vector<1x1x38x128xf32> to vector<38x128xf32>
    %c0_123 = arith.constant 0 : index
    %c4_124 = arith.constant 4 : index
    %c0_125 = arith.constant 0 : index
    %148 = vector.load %arg2[%c0_123, %c4_124, %c0_125] : memref<5x9x128xf32, #tpu.memory_space<vmem>>, vector<1x1x128xf32>
    %149 = vector.shape_cast %148 : vector<1x1x128xf32> to vector<1x128xf32>
    %150 = vector.broadcast %149 : vector<1x128xf32> to vector<38x128xf32>
    %151 = arith.mulf %147, %150 : vector<38x128xf32>
    %152 = arith.addf %145, %151 : vector<38x128xf32>
    %c0_126 = arith.constant 0 : index
    %c3_127 = arith.constant 3 : index
    %c1_128 = arith.constant 1 : index
    %c0_129 = arith.constant 0 : index
    %153 = vector.load %arg1[%c0_126, %c3_127, %c1_128, %c0_129] : memref<1x4x40x128xf32, #tpu.memory_space<vmem>>, vector<1x1x38x128xf32>
    %154 = vector.shape_cast %153 : vector<1x1x38x128xf32> to vector<38x128xf32>
    %c0_130 = arith.constant 0 : index
    %c5_131 = arith.constant 5 : index
    %c0_132 = arith.constant 0 : index
    %155 = vector.load %arg2[%c0_130, %c5_131, %c0_132] : memref<5x9x128xf32, #tpu.memory_space<vmem>>, vector<1x1x128xf32>
    %156 = vector.shape_cast %155 : vector<1x1x128xf32> to vector<1x128xf32>
    %157 = vector.broadcast %156 : vector<1x128xf32> to vector<38x128xf32>
    %158 = arith.mulf %154, %157 : vector<38x128xf32>
    %159 = arith.addf %152, %158 : vector<38x128xf32>
    %c0_133 = arith.constant 0 : index
    %c1_134 = arith.constant 1 : index
    %c2_135 = arith.constant 2 : index
    %c0_136 = arith.constant 0 : index
    %160 = vector.load %arg1[%c0_133, %c1_134, %c2_135, %c0_136] : memref<1x4x40x128xf32, #tpu.memory_space<vmem>>, vector<1x1x38x128xf32>
    %161 = vector.shape_cast %160 : vector<1x1x38x128xf32> to vector<38x128xf32>
    %cst_137 = arith.constant 0.000000e+00 : f32
    %162 = vector.broadcast %cst_137 : f32 to vector<38x16xf32>
    %163 = vector.extract_strided_slice %161 {offsets = [0, 0], sizes = [38, 112], strides = [1, 1]} : vector<38x128xf32> to vector<38x112xf32>
    %164 = tpu.concatenate %162, %163 in 1 : vector<38x16xf32>, vector<38x112xf32> -> vector<38x128xf32>
    %c0_138 = arith.constant 0 : index
    %c6_139 = arith.constant 6 : index
    %c0_140 = arith.constant 0 : index
    %165 = vector.load %arg2[%c0_138, %c6_139, %c0_140] : memref<5x9x128xf32, #tpu.memory_space<vmem>>, vector<1x1x128xf32>
    %166 = vector.shape_cast %165 : vector<1x1x128xf32> to vector<1x128xf32>
    %167 = vector.broadcast %166 : vector<1x128xf32> to vector<38x128xf32>
    %168 = arith.mulf %164, %167 : vector<38x128xf32>
    %169 = arith.addf %159, %168 : vector<38x128xf32>
    %c0_141 = arith.constant 0 : index
    %c0_142 = arith.constant 0 : index
    %c2_143 = arith.constant 2 : index
    %c0_144 = arith.constant 0 : index
    %170 = vector.load %arg1[%c0_141, %c0_142, %c2_143, %c0_144] : memref<1x4x40x128xf32, #tpu.memory_space<vmem>>, vector<1x1x38x128xf32>
    %171 = vector.shape_cast %170 : vector<1x1x38x128xf32> to vector<38x128xf32>
    %c0_145 = arith.constant 0 : index
    %c7_146 = arith.constant 7 : index
    %c0_147 = arith.constant 0 : index
    %172 = vector.load %arg2[%c0_145, %c7_146, %c0_147] : memref<5x9x128xf32, #tpu.memory_space<vmem>>, vector<1x1x128xf32>
    %173 = vector.shape_cast %172 : vector<1x1x128xf32> to vector<1x128xf32>
    %174 = vector.broadcast %173 : vector<1x128xf32> to vector<38x128xf32>
    %175 = arith.mulf %171, %174 : vector<38x128xf32>
    %176 = arith.addf %169, %175 : vector<38x128xf32>
    %c0_148 = arith.constant 0 : index
    %c1_149 = arith.constant 1 : index
    %c2_150 = arith.constant 2 : index
    %c0_151 = arith.constant 0 : index
    %177 = vector.load %arg1[%c0_148, %c1_149, %c2_150, %c0_151] : memref<1x4x40x128xf32, #tpu.memory_space<vmem>>, vector<1x1x38x128xf32>
    %178 = vector.shape_cast %177 : vector<1x1x38x128xf32> to vector<38x128xf32>
    %c0_152 = arith.constant 0 : index
    %c8_153 = arith.constant 8 : index
    %c0_154 = arith.constant 0 : index
    %179 = vector.load %arg2[%c0_152, %c8_153, %c0_154] : memref<5x9x128xf32, #tpu.memory_space<vmem>>, vector<1x1x128xf32>
    %180 = vector.shape_cast %179 : vector<1x1x128xf32> to vector<1x128xf32>
    %181 = vector.broadcast %180 : vector<1x128xf32> to vector<38x128xf32>
    %182 = arith.mulf %178, %181 : vector<38x128xf32>
    %183 = arith.addf %176, %182 : vector<38x128xf32>
    %c0_155 = arith.constant 0 : index
    %c0_156 = arith.constant 0 : index
    %c0_157 = arith.constant 0 : index
    %184 = vector.load %arg3[%c0_155, %c0_156, %c0_157] : memref<5x5x128xf32, #tpu.memory_space<vmem>>, vector<1x1x128xf32>
    %185 = vector.shape_cast %184 : vector<1x1x128xf32> to vector<1x128xf32>
    %186 = vector.broadcast %185 : vector<1x128xf32> to vector<38x128xf32>
    %187 = arith.mulf %183, %186 : vector<38x128xf32>
    %c0_158 = arith.constant 0 : index
    %c1_159 = arith.constant 1 : index
    %c0_160 = arith.constant 0 : index
    %188 = vector.load %arg3[%c0_158, %c1_159, %c0_160] : memref<5x5x128xf32, #tpu.memory_space<vmem>>, vector<1x1x128xf32>
    %189 = vector.shape_cast %188 : vector<1x1x128xf32> to vector<1x128xf32>
    %190 = vector.broadcast %189 : vector<1x128xf32> to vector<38x128xf32>
    %191 = arith.addf %187, %190 : vector<38x128xf32>
    %cst_161 = arith.constant 0.000000e+00 : f32
    %192 = vector.broadcast %cst_161 : f32 to vector<38x128xf32>
    %193 = arith.cmpf ogt, %191, %192 : vector<38x128xf32>
    %c0_162 = arith.constant 0 : index
    %c2_163 = arith.constant 2 : index
    %c0_164 = arith.constant 0 : index
    %194 = vector.load %arg3[%c0_162, %c2_163, %c0_164] : memref<5x5x128xf32, #tpu.memory_space<vmem>>, vector<1x1x128xf32>
    %195 = vector.shape_cast %194 : vector<1x1x128xf32> to vector<1x128xf32>
    %196 = vector.broadcast %195 : vector<1x128xf32> to vector<38x128xf32>
    %197 = arith.mulf %191, %196 : vector<38x128xf32>
    %198 = arith.select %193, %191, %197 : vector<38x128xi1>, vector<38x128xf32>
    %c0_165 = arith.constant 0 : index
    %c0_166 = arith.constant 0 : index
    %c0_167 = arith.constant 0 : index
    %199 = vector.load %arg4[%c0_165, %c0_166, %c0_167] : memref<5x128x128xf32, #tpu.memory_space<vmem>>, vector<1x128x128xf32>
    %200 = vector.shape_cast %199 : vector<1x128x128xf32> to vector<128x128xf32>
    %cst_168 = arith.constant dense<0.000000e+00> : vector<38x128xf32>
    %201 = tpu.matmul %198, %200, %cst_168 {dimension_numbers = #tpu.dot_dimension_numbers<[1], [0], [0], [1], [0, 0, 1, 1], [], []>} : vector<38x128xf32>, vector<128x128xf32>, vector<38x128xf32> -> vector<38x128xf32>
    %c0_169 = arith.constant 0 : index
    %c3_170 = arith.constant 3 : index
    %c0_171 = arith.constant 0 : index
    %202 = vector.load %arg3[%c0_169, %c3_170, %c0_171] : memref<5x5x128xf32, #tpu.memory_space<vmem>>, vector<1x1x128xf32>
    %203 = vector.shape_cast %202 : vector<1x1x128xf32> to vector<1x128xf32>
    %204 = vector.broadcast %203 : vector<1x128xf32> to vector<38x128xf32>
    %205 = arith.addf %201, %204 : vector<38x128xf32>
    %cst_172 = arith.constant 0.000000e+00 : f32
    %206 = vector.broadcast %cst_172 : f32 to vector<38x128xf32>
    %207 = arith.cmpf ogt, %205, %206 : vector<38x128xf32>
    %c0_173 = arith.constant 0 : index
    %c4_174 = arith.constant 4 : index
    %c0_175 = arith.constant 0 : index
    %208 = vector.load %arg3[%c0_173, %c4_174, %c0_175] : memref<5x5x128xf32, #tpu.memory_space<vmem>>, vector<1x1x128xf32>
    %209 = vector.shape_cast %208 : vector<1x1x128xf32> to vector<1x128xf32>
    %210 = vector.broadcast %209 : vector<1x128xf32> to vector<38x128xf32>
    %211 = arith.mulf %205, %210 : vector<38x128xf32>
    %212 = arith.select %207, %205, %211 : vector<38x128xi1>, vector<38x128xf32>
    %c0_176 = arith.constant 0 : index
    %c0_177 = arith.constant 0 : index
    %c0_178 = arith.constant 0 : index
    %213 = vector.load %arg9[%c0_176, %c0_177, %c0_178] : memref<3x38x128xf32, #tpu.memory_space<vmem>>, vector<1x38x128xf32>
    %214 = vector.shape_cast %213 : vector<1x38x128xf32> to vector<38x128xf32>
    %215 = vector.shape_cast %212 : vector<38x128xf32> to vector<1x38x128xf32>
    tpu.vector_store %arg9[%c0_176, %c0_177, %c0_178], %215 {strides = array<i32>} : memref<3x38x128xf32, #tpu.memory_space<vmem>>, vector<1x38x128xf32>,
    %cst_179 = arith.constant 0.000000e+00 : f32
    %216 = vector.broadcast %cst_179 : f32 to vector<38x128xf32>
    %c0_180 = arith.constant 0 : index
    %c2_181 = arith.constant 2 : index
    %c0_182 = arith.constant 0 : index
    %c0_183 = arith.constant 0 : index
    %217 = vector.load %arg1[%c0_180, %c2_181, %c0_182, %c0_183] : memref<1x4x40x128xf32, #tpu.memory_space<vmem>>, vector<1x1x38x128xf32>
    %218 = vector.shape_cast %217 : vector<1x1x38x128xf32> to vector<38x128xf32>
    %c0_184 = arith.constant 0 : index
    %c0_185 = arith.constant 0 : index
    %c0_186 = arith.constant 0 : index
    %219 = vector.load %arg2[%c0_184, %c0_185, %c0_186] : memref<5x9x128xf32, #tpu.memory_space<vmem>>, vector<1x1x128xf32>
    %220 = vector.shape_cast %219 : vector<1x1x128xf32> to vector<1x128xf32>
    %221 = vector.broadcast %220 : vector<1x128xf32> to vector<38x128xf32>
    %222 = arith.mulf %218, %221 : vector<38x128xf32>
    %223 = arith.addf %216, %222 : vector<38x128xf32>
    %c0_187 = arith.constant 0 : index
    %c3_188 = arith.constant 3 : index
    %c0_189 = arith.constant 0 : index
    %c0_190 = arith.constant 0 : index
    %224 = vector.load %arg1[%c0_187, %c3_188, %c0_189, %c0_190] : memref<1x4x40x128xf32, #tpu.memory_space<vmem>>, vector<1x1x38x128xf32>
    %225 = vector.shape_cast %224 : vector<1x1x38x128xf32> to vector<38x128xf32>
    %c0_191 = arith.constant 0 : index
    %c1_192 = arith.constant 1 : index
    %c0_193 = arith.constant 0 : index
    %226 = vector.load %arg2[%c0_191, %c1_192, %c0_193] : memref<5x9x128xf32, #tpu.memory_space<vmem>>, vector<1x1x128xf32>
    %227 = vector.shape_cast %226 : vector<1x1x128xf32> to vector<1x128xf32>
    %228 = vector.broadcast %227 : vector<1x128xf32> to vector<38x128xf32>
    %229 = arith.mulf %225, %228 : vector<38x128xf32>
    %230 = arith.addf %223, %229 : vector<38x128xf32>
    %c0_194 = arith.constant 0 : index
    %c2_195 = arith.constant 2 : index
    %c0_196 = arith.constant 0 : index
    %c0_197 = arith.constant 0 : index
    %231 = vector.load %arg1[%c0_194, %c2_195, %c0_196, %c0_197] : memref<1x4x40x128xf32, #tpu.memory_space<vmem>>, vector<1x1x38x128xf32>
    %232 = vector.shape_cast %231 : vector<1x1x38x128xf32> to vector<38x128xf32>
    %cst_198 = arith.constant 0.000000e+00 : f32
    %233 = vector.broadcast %cst_198 : f32 to vector<38x16xf32>
    %234 = vector.extract_strided_slice %232 {offsets = [0, 16], sizes = [38, 112], strides = [1, 1]} : vector<38x128xf32> to vector<38x112xf32>
    %235 = tpu.concatenate %234, %233 in 1 : vector<38x112xf32>, vector<38x16xf32> -> vector<38x128xf32>
    %c0_199 = arith.constant 0 : index
    %c2_200 = arith.constant 2 : index
    %c0_201 = arith.constant 0 : index
    %236 = vector.load %arg2[%c0_199, %c2_200, %c0_201] : memref<5x9x128xf32, #tpu.memory_space<vmem>>, vector<1x1x128xf32>
    %237 = vector.shape_cast %236 : vector<1x1x128xf32> to vector<1x128xf32>
    %238 = vector.broadcast %237 : vector<1x128xf32> to vector<38x128xf32>
    %239 = arith.mulf %235, %238 : vector<38x128xf32>
    %240 = arith.addf %230, %239 : vector<38x128xf32>
    %c0_202 = arith.constant 0 : index
    %c0_203 = arith.constant 0 : index
    %c1_204 = arith.constant 1 : index
    %c0_205 = arith.constant 0 : index
    %241 = vector.load %arg1[%c0_202, %c0_203, %c1_204, %c0_205] : memref<1x4x40x128xf32, #tpu.memory_space<vmem>>, vector<1x1x38x128xf32>
    %242 = vector.shape_cast %241 : vector<1x1x38x128xf32> to vector<38x128xf32>
    %c0_206 = arith.constant 0 : index
    %c3_207 = arith.constant 3 : index
    %c0_208 = arith.constant 0 : index
    %243 = vector.load %arg2[%c0_206, %c3_207, %c0_208] : memref<5x9x128xf32, #tpu.memory_space<vmem>>, vector<1x1x128xf32>
    %244 = vector.shape_cast %243 : vector<1x1x128xf32> to vector<1x128xf32>
    %245 = vector.broadcast %244 : vector<1x128xf32> to vector<38x128xf32>
    %246 = arith.mulf %242, %245 : vector<38x128xf32>
    %247 = arith.addf %240, %246 : vector<38x128xf32>
    %c0_209 = arith.constant 0 : index
    %c1_210 = arith.constant 1 : index
    %c1_211 = arith.constant 1 : index
    %c0_212 = arith.constant 0 : index
    %248 = vector.load %arg1[%c0_209, %c1_210, %c1_211, %c0_212] : memref<1x4x40x128xf32, #tpu.memory_space<vmem>>, vector<1x1x38x128xf32>
    %249 = vector.shape_cast %248 : vector<1x1x38x128xf32> to vector<38x128xf32>
    %c0_213 = arith.constant 0 : index
    %c4_214 = arith.constant 4 : index
    %c0_215 = arith.constant 0 : index
    %250 = vector.load %arg2[%c0_213, %c4_214, %c0_215] : memref<5x9x128xf32, #tpu.memory_space<vmem>>, vector<1x1x128xf32>
    %251 = vector.shape_cast %250 : vector<1x1x128xf32> to vector<1x128xf32>
    %252 = vector.broadcast %251 : vector<1x128xf32> to vector<38x128xf32>
    %253 = arith.mulf %249, %252 : vector<38x128xf32>
    %254 = arith.addf %247, %253 : vector<38x128xf32>
    %c0_216 = arith.constant 0 : index
    %c0_217 = arith.constant 0 : index
    %c1_218 = arith.constant 1 : index
    %c0_219 = arith.constant 0 : index
    %255 = vector.load %arg1[%c0_216, %c0_217, %c1_218, %c0_219] : memref<1x4x40x128xf32, #tpu.memory_space<vmem>>, vector<1x1x38x128xf32>
    %256 = vector.shape_cast %255 : vector<1x1x38x128xf32> to vector<38x128xf32>
    %cst_220 = arith.constant 0.000000e+00 : f32
    %257 = vector.broadcast %cst_220 : f32 to vector<38x16xf32>
    %258 = vector.extract_strided_slice %256 {offsets = [0, 16], sizes = [38, 112], strides = [1, 1]} : vector<38x128xf32> to vector<38x112xf32>
    %259 = tpu.concatenate %258, %257 in 1 : vector<38x112xf32>, vector<38x16xf32> -> vector<38x128xf32>
    %c0_221 = arith.constant 0 : index
    %c5_222 = arith.constant 5 : index
    %c0_223 = arith.constant 0 : index
    %260 = vector.load %arg2[%c0_221, %c5_222, %c0_223] : memref<5x9x128xf32, #tpu.memory_space<vmem>>, vector<1x1x128xf32>
    %261 = vector.shape_cast %260 : vector<1x1x128xf32> to vector<1x128xf32>
    %262 = vector.broadcast %261 : vector<1x128xf32> to vector<38x128xf32>
    %263 = arith.mulf %259, %262 : vector<38x128xf32>
    %264 = arith.addf %254, %263 : vector<38x128xf32>
    %c0_224 = arith.constant 0 : index
    %c2_225 = arith.constant 2 : index
    %c1_226 = arith.constant 1 : index
    %c0_227 = arith.constant 0 : index
    %265 = vector.load %arg1[%c0_224, %c2_225, %c1_226, %c0_227] : memref<1x4x40x128xf32, #tpu.memory_space<vmem>>, vector<1x1x38x128xf32>
    %266 = vector.shape_cast %265 : vector<1x1x38x128xf32> to vector<38x128xf32>
    %c0_228 = arith.constant 0 : index
    %c6_229 = arith.constant 6 : index
    %c0_230 = arith.constant 0 : index
    %267 = vector.load %arg2[%c0_228, %c6_229, %c0_230] : memref<5x9x128xf32, #tpu.memory_space<vmem>>, vector<1x1x128xf32>
    %268 = vector.shape_cast %267 : vector<1x1x128xf32> to vector<1x128xf32>
    %269 = vector.broadcast %268 : vector<1x128xf32> to vector<38x128xf32>
    %270 = arith.mulf %266, %269 : vector<38x128xf32>
    %271 = arith.addf %264, %270 : vector<38x128xf32>
    %c0_231 = arith.constant 0 : index
    %c3_232 = arith.constant 3 : index
    %c1_233 = arith.constant 1 : index
    %c0_234 = arith.constant 0 : index
    %272 = vector.load %arg1[%c0_231, %c3_232, %c1_233, %c0_234] : memref<1x4x40x128xf32, #tpu.memory_space<vmem>>, vector<1x1x38x128xf32>
    %273 = vector.shape_cast %272 : vector<1x1x38x128xf32> to vector<38x128xf32>
    %c0_235 = arith.constant 0 : index
    %c7_236 = arith.constant 7 : index
    %c0_237 = arith.constant 0 : index
    %274 = vector.load %arg2[%c0_235, %c7_236, %c0_237] : memref<5x9x128xf32, #tpu.memory_space<vmem>>, vector<1x1x128xf32>
    %275 = vector.shape_cast %274 : vector<1x1x128xf32> to vector<1x128xf32>
    %276 = vector.broadcast %275 : vector<1x128xf32> to vector<38x128xf32>
    %277 = arith.mulf %273, %276 : vector<38x128xf32>
    %278 = arith.addf %271, %277 : vector<38x128xf32>
    %c0_238 = arith.constant 0 : index
    %c2_239 = arith.constant 2 : index
    %c1_240 = arith.constant 1 : index
    %c0_241 = arith.constant 0 : index
    %279 = vector.load %arg1[%c0_238, %c2_239, %c1_240, %c0_241] : memref<1x4x40x128xf32, #tpu.memory_space<vmem>>, vector<1x1x38x128xf32>
    %280 = vector.shape_cast %279 : vector<1x1x38x128xf32> to vector<38x128xf32>
    %cst_242 = arith.constant 0.000000e+00 : f32
    %281 = vector.broadcast %cst_242 : f32 to vector<38x16xf32>
    %282 = vector.extract_strided_slice %280 {offsets = [0, 16], sizes = [38, 112], strides = [1, 1]} : vector<38x128xf32> to vector<38x112xf32>
    %283 = tpu.concatenate %282, %281 in 1 : vector<38x112xf32>, vector<38x16xf32> -> vector<38x128xf32>
    %c0_243 = arith.constant 0 : index
    %c8_244 = arith.constant 8 : index
    %c0_245 = arith.constant 0 : index
    %284 = vector.load %arg2[%c0_243, %c8_244, %c0_245] : memref<5x9x128xf32, #tpu.memory_space<vmem>>, vector<1x1x128xf32>
    %285 = vector.shape_cast %284 : vector<1x1x128xf32> to vector<1x128xf32>
    %286 = vector.broadcast %285 : vector<1x128xf32> to vector<38x128xf32>
    %287 = arith.mulf %283, %286 : vector<38x128xf32>
    %288 = arith.addf %278, %287 : vector<38x128xf32>
    %c0_246 = arith.constant 0 : index
    %c0_247 = arith.constant 0 : index
    %c0_248 = arith.constant 0 : index
    %289 = vector.load %arg3[%c0_246, %c0_247, %c0_248] : memref<5x5x128xf32, #tpu.memory_space<vmem>>, vector<1x1x128xf32>
    %290 = vector.shape_cast %289 : vector<1x1x128xf32> to vector<1x128xf32>
    %291 = vector.broadcast %290 : vector<1x128xf32> to vector<38x128xf32>
    %292 = arith.mulf %288, %291 : vector<38x128xf32>
    %c0_249 = arith.constant 0 : index
    %c1_250 = arith.constant 1 : index
    %c0_251 = arith.constant 0 : index
    %293 = vector.load %arg3[%c0_249, %c1_250, %c0_251] : memref<5x5x128xf32, #tpu.memory_space<vmem>>, vector<1x1x128xf32>
    %294 = vector.shape_cast %293 : vector<1x1x128xf32> to vector<1x128xf32>
    %295 = vector.broadcast %294 : vector<1x128xf32> to vector<38x128xf32>
    %296 = arith.addf %292, %295 : vector<38x128xf32>
    %cst_252 = arith.constant 0.000000e+00 : f32
    %297 = vector.broadcast %cst_252 : f32 to vector<38x128xf32>
    %298 = arith.cmpf ogt, %296, %297 : vector<38x128xf32>
    %c0_253 = arith.constant 0 : index
    %c2_254 = arith.constant 2 : index
    %c0_255 = arith.constant 0 : index
    %299 = vector.load %arg3[%c0_253, %c2_254, %c0_255] : memref<5x5x128xf32, #tpu.memory_space<vmem>>, vector<1x1x128xf32>
    %300 = vector.shape_cast %299 : vector<1x1x128xf32> to vector<1x128xf32>
    %301 = vector.broadcast %300 : vector<1x128xf32> to vector<38x128xf32>
    %302 = arith.mulf %296, %301 : vector<38x128xf32>
    %303 = arith.select %298, %296, %302 : vector<38x128xi1>, vector<38x128xf32>
    %c0_256 = arith.constant 0 : index
    %c0_257 = arith.constant 0 : index
    %c0_258 = arith.constant 0 : index
    %304 = vector.load %arg4[%c0_256, %c0_257, %c0_258] : memref<5x128x128xf32, #tpu.memory_space<vmem>>, vector<1x128x128xf32>
    %305 = vector.shape_cast %304 : vector<1x128x128xf32> to vector<128x128xf32>
    %cst_259 = arith.constant dense<0.000000e+00> : vector<38x128xf32>
    %306 = tpu.matmul %303, %305, %cst_259 {dimension_numbers = #tpu.dot_dimension_numbers<[1], [0], [0], [1], [0, 0, 1, 1], [], []>} : vector<38x128xf32>, vector<128x128xf32>, vector<38x128xf32> -> vector<38x128xf32>
    %c0_260 = arith.constant 0 : index
    %c3_261 = arith.constant 3 : index
    %c0_262 = arith.constant 0 : index
    %307 = vector.load %arg3[%c0_260, %c3_261, %c0_262] : memref<5x5x128xf32, #tpu.memory_space<vmem>>, vector<1x1x128xf32>
    %308 = vector.shape_cast %307 : vector<1x1x128xf32> to vector<1x128xf32>
    %309 = vector.broadcast %308 : vector<1x128xf32> to vector<38x128xf32>
    %310 = arith.addf %306, %309 : vector<38x128xf32>
    %cst_263 = arith.constant 0.000000e+00 : f32
    %311 = vector.broadcast %cst_263 : f32 to vector<38x128xf32>
    %312 = arith.cmpf ogt, %310, %311 : vector<38x128xf32>
    %c0_264 = arith.constant 0 : index
    %c4_265 = arith.constant 4 : index
    %c0_266 = arith.constant 0 : index
    %313 = vector.load %arg3[%c0_264, %c4_265, %c0_266] : memref<5x5x128xf32, #tpu.memory_space<vmem>>, vector<1x1x128xf32>
    %314 = vector.shape_cast %313 : vector<1x1x128xf32> to vector<1x128xf32>
    %315 = vector.broadcast %314 : vector<1x128xf32> to vector<38x128xf32>
    %316 = arith.mulf %310, %315 : vector<38x128xf32>
    %317 = arith.select %312, %310, %316 : vector<38x128xi1>, vector<38x128xf32>
    %c1_267 = arith.constant 1 : index
    %c0_268 = arith.constant 0 : index
    %c0_269 = arith.constant 0 : index
    %318 = vector.load %arg9[%c1_267, %c0_268, %c0_269] : memref<3x38x128xf32, #tpu.memory_space<vmem>>, vector<1x38x128xf32>
    %319 = vector.shape_cast %318 : vector<1x38x128xf32> to vector<38x128xf32>
    %320 = vector.shape_cast %317 : vector<38x128xf32> to vector<1x38x128xf32>
    tpu.vector_store %arg9[%c1_267, %c0_268, %c0_269], %320 {strides = array<i32>} : memref<3x38x128xf32, #tpu.memory_space<vmem>>, vector<1x38x128xf32>,
    %cst_270 = arith.constant 0.000000e+00 : f32
    %321 = vector.broadcast %cst_270 : f32 to vector<38x128xf32>
    %c0_271 = arith.constant 0 : index
    %c0_272 = arith.constant 0 : index
    %c1_273 = arith.constant 1 : index
    %c0_274 = arith.constant 0 : index
    %322 = vector.load %arg1[%c0_271, %c0_272, %c1_273, %c0_274] : memref<1x4x40x128xf32, #tpu.memory_space<vmem>>, vector<1x1x38x128xf32>
    %323 = vector.shape_cast %322 : vector<1x1x38x128xf32> to vector<38x128xf32>
    %c0_275 = arith.constant 0 : index
    %c0_276 = arith.constant 0 : index
    %c0_277 = arith.constant 0 : index
    %324 = vector.load %arg2[%c0_275, %c0_276, %c0_277] : memref<5x9x128xf32, #tpu.memory_space<vmem>>, vector<1x1x128xf32>
    %325 = vector.shape_cast %324 : vector<1x1x128xf32> to vector<1x128xf32>
    %326 = vector.broadcast %325 : vector<1x128xf32> to vector<38x128xf32>
    %327 = arith.mulf %323, %326 : vector<38x128xf32>
    %328 = arith.addf %321, %327 : vector<38x128xf32>
    %c0_278 = arith.constant 0 : index
    %c1_279 = arith.constant 1 : index
    %c1_280 = arith.constant 1 : index
    %c0_281 = arith.constant 0 : index
    %329 = vector.load %arg1[%c0_278, %c1_279, %c1_280, %c0_281] : memref<1x4x40x128xf32, #tpu.memory_space<vmem>>, vector<1x1x38x128xf32>
    %330 = vector.shape_cast %329 : vector<1x1x38x128xf32> to vector<38x128xf32>
    %c0_282 = arith.constant 0 : index
    %c1_283 = arith.constant 1 : index
    %c0_284 = arith.constant 0 : index
    %331 = vector.load %arg2[%c0_282, %c1_283, %c0_284] : memref<5x9x128xf32, #tpu.memory_space<vmem>>, vector<1x1x128xf32>
    %332 = vector.shape_cast %331 : vector<1x1x128xf32> to vector<1x128xf32>
    %333 = vector.broadcast %332 : vector<1x128xf32> to vector<38x128xf32>
    %334 = arith.mulf %330, %333 : vector<38x128xf32>
    %335 = arith.addf %328, %334 : vector<38x128xf32>
    %c0_285 = arith.constant 0 : index
    %c0_286 = arith.constant 0 : index
    %c1_287 = arith.constant 1 : index
    %c0_288 = arith.constant 0 : index
    %336 = vector.load %arg1[%c0_285, %c0_286, %c1_287, %c0_288] : memref<1x4x40x128xf32, #tpu.memory_space<vmem>>, vector<1x1x38x128xf32>
    %337 = vector.shape_cast %336 : vector<1x1x38x128xf32> to vector<38x128xf32>
    %cst_289 = arith.constant 0.000000e+00 : f32
    %338 = vector.broadcast %cst_289 : f32 to vector<38x16xf32>
    %339 = vector.extract_strided_slice %337 {offsets = [0, 16], sizes = [38, 112], strides = [1, 1]} : vector<38x128xf32> to vector<38x112xf32>
    %340 = tpu.concatenate %339, %338 in 1 : vector<38x112xf32>, vector<38x16xf32> -> vector<38x128xf32>
    %c0_290 = arith.constant 0 : index
    %c2_291 = arith.constant 2 : index
    %c0_292 = arith.constant 0 : index
    %341 = vector.load %arg2[%c0_290, %c2_291, %c0_292] : memref<5x9x128xf32, #tpu.memory_space<vmem>>, vector<1x1x128xf32>
    %342 = vector.shape_cast %341 : vector<1x1x128xf32> to vector<1x128xf32>
    %343 = vector.broadcast %342 : vector<1x128xf32> to vector<38x128xf32>
    %344 = arith.mulf %340, %343 : vector<38x128xf32>
    %345 = arith.addf %335, %344 : vector<38x128xf32>
    %c0_293 = arith.constant 0 : index
    %c2_294 = arith.constant 2 : index
    %c1_295 = arith.constant 1 : index
    %c0_296 = arith.constant 0 : index
    %346 = vector.load %arg1[%c0_293, %c2_294, %c1_295, %c0_296] : memref<1x4x40x128xf32, #tpu.memory_space<vmem>>, vector<1x1x38x128xf32>
    %347 = vector.shape_cast %346 : vector<1x1x38x128xf32> to vector<38x128xf32>
    %c0_297 = arith.constant 0 : index
    %c3_298 = arith.constant 3 : index
    %c0_299 = arith.constant 0 : index
    %348 = vector.load %arg2[%c0_297, %c3_298, %c0_299] : memref<5x9x128xf32, #tpu.memory_space<vmem>>, vector<1x1x128xf32>
    %349 = vector.shape_cast %348 : vector<1x1x128xf32> to vector<1x128xf32>
    %350 = vector.broadcast %349 : vector<1x128xf32> to vector<38x128xf32>
    %351 = arith.mulf %347, %350 : vector<38x128xf32>
    %352 = arith.addf %345, %351 : vector<38x128xf32>
    %c0_300 = arith.constant 0 : index
    %c3_301 = arith.constant 3 : index
    %c1_302 = arith.constant 1 : index
    %c0_303 = arith.constant 0 : index
    %353 = vector.load %arg1[%c0_300, %c3_301, %c1_302, %c0_303] : memref<1x4x40x128xf32, #tpu.memory_space<vmem>>, vector<1x1x38x128xf32>
    %354 = vector.shape_cast %353 : vector<1x1x38x128xf32> to vector<38x128xf32>
    %c0_304 = arith.constant 0 : index
    %c4_305 = arith.constant 4 : index
    %c0_306 = arith.constant 0 : index
    %355 = vector.load %arg2[%c0_304, %c4_305, %c0_306] : memref<5x9x128xf32, #tpu.memory_space<vmem>>, vector<1x1x128xf32>
    %356 = vector.shape_cast %355 : vector<1x1x128xf32> to vector<1x128xf32>
    %357 = vector.broadcast %356 : vector<1x128xf32> to vector<38x128xf32>
    %358 = arith.mulf %354, %357 : vector<38x128xf32>
    %359 = arith.addf %352, %358 : vector<38x128xf32>
    %c0_307 = arith.constant 0 : index
    %c2_308 = arith.constant 2 : index
    %c1_309 = arith.constant 1 : index
    %c0_310 = arith.constant 0 : index
    %360 = vector.load %arg1[%c0_307, %c2_308, %c1_309, %c0_310] : memref<1x4x40x128xf32, #tpu.memory_space<vmem>>, vector<1x1x38x128xf32>
    %361 = vector.shape_cast %360 : vector<1x1x38x128xf32> to vector<38x128xf32>
    %cst_311 = arith.constant 0.000000e+00 : f32
    %362 = vector.broadcast %cst_311 : f32 to vector<38x16xf32>
    %363 = vector.extract_strided_slice %361 {offsets = [0, 16], sizes = [38, 112], strides = [1, 1]} : vector<38x128xf32> to vector<38x112xf32>
    %364 = tpu.concatenate %363, %362 in 1 : vector<38x112xf32>, vector<38x16xf32> -> vector<38x128xf32>
    %c0_312 = arith.constant 0 : index
    %c5_313 = arith.constant 5 : index
    %c0_314 = arith.constant 0 : index
    %365 = vector.load %arg2[%c0_312, %c5_313, %c0_314] : memref<5x9x128xf32, #tpu.memory_space<vmem>>, vector<1x1x128xf32>
    %366 = vector.shape_cast %365 : vector<1x1x128xf32> to vector<1x128xf32>
    %367 = vector.broadcast %366 : vector<1x128xf32> to vector<38x128xf32>
    %368 = arith.mulf %364, %367 : vector<38x128xf32>
    %369 = arith.addf %359, %368 : vector<38x128xf32>
    %c0_315 = arith.constant 0 : index
    %c0_316 = arith.constant 0 : index
    %c2_317 = arith.constant 2 : index
    %c0_318 = arith.constant 0 : index
    %370 = vector.load %arg1[%c0_315, %c0_316, %c2_317, %c0_318] : memref<1x4x40x128xf32, #tpu.memory_space<vmem>>, vector<1x1x38x128xf32>
    %371 = vector.shape_cast %370 : vector<1x1x38x128xf32> to vector<38x128xf32>
    %c0_319 = arith.constant 0 : index
    %c6_320 = arith.constant 6 : index
    %c0_321 = arith.constant 0 : index
    %372 = vector.load %arg2[%c0_319, %c6_320, %c0_321] : memref<5x9x128xf32, #tpu.memory_space<vmem>>, vector<1x1x128xf32>
    %373 = vector.shape_cast %372 : vector<1x1x128xf32> to vector<1x128xf32>
    %374 = vector.broadcast %373 : vector<1x128xf32> to vector<38x128xf32>
    %375 = arith.mulf %371, %374 : vector<38x128xf32>
    %376 = arith.addf %369, %375 : vector<38x128xf32>
    %c0_322 = arith.constant 0 : index
    %c1_323 = arith.constant 1 : index
    %c2_324 = arith.constant 2 : index
    %c0_325 = arith.constant 0 : index
    %377 = vector.load %arg1[%c0_322, %c1_323, %c2_324, %c0_325] : memref<1x4x40x128xf32, #tpu.memory_space<vmem>>, vector<1x1x38x128xf32>
    %378 = vector.shape_cast %377 : vector<1x1x38x128xf32> to vector<38x128xf32>
    %c0_326 = arith.constant 0 : index
    %c7_327 = arith.constant 7 : index
    %c0_328 = arith.constant 0 : index
    %379 = vector.load %arg2[%c0_326, %c7_327, %c0_328] : memref<5x9x128xf32, #tpu.memory_space<vmem>>, vector<1x1x128xf32>
    %380 = vector.shape_cast %379 : vector<1x1x128xf32> to vector<1x128xf32>
    %381 = vector.broadcast %380 : vector<1x128xf32> to vector<38x128xf32>
    %382 = arith.mulf %378, %381 : vector<38x128xf32>
    %383 = arith.addf %376, %382 : vector<38x128xf32>
    %c0_329 = arith.constant 0 : index
    %c0_330 = arith.constant 0 : index
    %c2_331 = arith.constant 2 : index
    %c0_332 = arith.constant 0 : index
    %384 = vector.load %arg1[%c0_329, %c0_330, %c2_331, %c0_332] : memref<1x4x40x128xf32, #tpu.memory_space<vmem>>, vector<1x1x38x128xf32>
    %385 = vector.shape_cast %384 : vector<1x1x38x128xf32> to vector<38x128xf32>
    %cst_333 = arith.constant 0.000000e+00 : f32
    %386 = vector.broadcast %cst_333 : f32 to vector<38x16xf32>
    %387 = vector.extract_strided_slice %385 {offsets = [0, 16], sizes = [38, 112], strides = [1, 1]} : vector<38x128xf32> to vector<38x112xf32>
    %388 = tpu.concatenate %387, %386 in 1 : vector<38x112xf32>, vector<38x16xf32> -> vector<38x128xf32>
    %c0_334 = arith.constant 0 : index
    %c8_335 = arith.constant 8 : index
    %c0_336 = arith.constant 0 : index
    %389 = vector.load %arg2[%c0_334, %c8_335, %c0_336] : memref<5x9x128xf32, #tpu.memory_space<vmem>>, vector<1x1x128xf32>
    %390 = vector.shape_cast %389 : vector<1x1x128xf32> to vector<1x128xf32>
    %391 = vector.broadcast %390 : vector<1x128xf32> to vector<38x128xf32>
    %392 = arith.mulf %388, %391 : vector<38x128xf32>
    %393 = arith.addf %383, %392 : vector<38x128xf32>
    %c0_337 = arith.constant 0 : index
    %c0_338 = arith.constant 0 : index
    %c0_339 = arith.constant 0 : index
    %394 = vector.load %arg3[%c0_337, %c0_338, %c0_339] : memref<5x5x128xf32, #tpu.memory_space<vmem>>, vector<1x1x128xf32>
    %395 = vector.shape_cast %394 : vector<1x1x128xf32> to vector<1x128xf32>
    %396 = vector.broadcast %395 : vector<1x128xf32> to vector<38x128xf32>
    %397 = arith.mulf %393, %396 : vector<38x128xf32>
    %c0_340 = arith.constant 0 : index
    %c1_341 = arith.constant 1 : index
    %c0_342 = arith.constant 0 : index
    %398 = vector.load %arg3[%c0_340, %c1_341, %c0_342] : memref<5x5x128xf32, #tpu.memory_space<vmem>>, vector<1x1x128xf32>
    %399 = vector.shape_cast %398 : vector<1x1x128xf32> to vector<1x128xf32>
    %400 = vector.broadcast %399 : vector<1x128xf32> to vector<38x128xf32>
    %401 = arith.addf %397, %400 : vector<38x128xf32>
    %cst_343 = arith.constant 0.000000e+00 : f32
    %402 = vector.broadcast %cst_343 : f32 to vector<38x128xf32>
    %403 = arith.cmpf ogt, %401, %402 : vector<38x128xf32>
    %c0_344 = arith.constant 0 : index
    %c2_345 = arith.constant 2 : index
    %c0_346 = arith.constant 0 : index
    %404 = vector.load %arg3[%c0_344, %c2_345, %c0_346] : memref<5x5x128xf32, #tpu.memory_space<vmem>>, vector<1x1x128xf32>
    %405 = vector.shape_cast %404 : vector<1x1x128xf32> to vector<1x128xf32>
    %406 = vector.broadcast %405 : vector<1x128xf32> to vector<38x128xf32>
    %407 = arith.mulf %401, %406 : vector<38x128xf32>
    %408 = arith.select %403, %401, %407 : vector<38x128xi1>, vector<38x128xf32>
    %c0_347 = arith.constant 0 : index
    %c0_348 = arith.constant 0 : index
    %c0_349 = arith.constant 0 : index
    %409 = vector.load %arg4[%c0_347, %c0_348, %c0_349] : memref<5x128x128xf32, #tpu.memory_space<vmem>>, vector<1x128x128xf32>
    %410 = vector.shape_cast %409 : vector<1x128x128xf32> to vector<128x128xf32>
    %cst_350 = arith.constant dense<0.000000e+00> : vector<38x128xf32>
    %411 = tpu.matmul %408, %410, %cst_350 {dimension_numbers = #tpu.dot_dimension_numbers<[1], [0], [0], [1], [0, 0, 1, 1], [], []>} : vector<38x128xf32>, vector<128x128xf32>, vector<38x128xf32> -> vector<38x128xf32>
    %c0_351 = arith.constant 0 : index
    %c3_352 = arith.constant 3 : index
    %c0_353 = arith.constant 0 : index
    %412 = vector.load %arg3[%c0_351, %c3_352, %c0_353] : memref<5x5x128xf32, #tpu.memory_space<vmem>>, vector<1x1x128xf32>
    %413 = vector.shape_cast %412 : vector<1x1x128xf32> to vector<1x128xf32>
    %414 = vector.broadcast %413 : vector<1x128xf32> to vector<38x128xf32>
    %415 = arith.addf %411, %414 : vector<38x128xf32>
    %cst_354 = arith.constant 0.000000e+00 : f32
    %416 = vector.broadcast %cst_354 : f32 to vector<38x128xf32>
    %417 = arith.cmpf ogt, %415, %416 : vector<38x128xf32>
    %c0_355 = arith.constant 0 : index
    %c4_356 = arith.constant 4 : index
    %c0_357 = arith.constant 0 : index
    %418 = vector.load %arg3[%c0_355, %c4_356, %c0_357] : memref<5x5x128xf32, #tpu.memory_space<vmem>>, vector<1x1x128xf32>
    %419 = vector.shape_cast %418 : vector<1x1x128xf32> to vector<1x128xf32>
    %420 = vector.broadcast %419 : vector<1x128xf32> to vector<38x128xf32>
    %421 = arith.mulf %415, %420 : vector<38x128xf32>
    %422 = arith.select %417, %415, %421 : vector<38x128xi1>, vector<38x128xf32>
    %c2_358 = arith.constant 2 : index
    %c0_359 = arith.constant 0 : index
    %c0_360 = arith.constant 0 : index
    %423 = vector.load %arg9[%c2_358, %c0_359, %c0_360] : memref<3x38x128xf32, #tpu.memory_space<vmem>>, vector<1x38x128xf32>
    %424 = vector.shape_cast %423 : vector<1x38x128xf32> to vector<38x128xf32>
    %425 = vector.shape_cast %422 : vector<38x128xf32> to vector<1x38x128xf32>
    tpu.vector_store %arg9[%c2_358, %c0_359, %c0_360], %425 {strides = array<i32>} : memref<3x38x128xf32, #tpu.memory_space<vmem>>, vector<1x38x128xf32>,
    %c0_361 = arith.constant 0 : index
    %c0_362 = arith.constant 0 : index
    %c0_363 = arith.constant 0 : index
    %426 = vector.load %arg5[%c0_361, %c0_362, %c0_363] : memref<10x128x128xf32, #tpu.memory_space<vmem>>, vector<1x128x128xf32>
    %427 = vector.shape_cast %426 : vector<1x128x128xf32> to vector<128x128xf32>
    %cst_364 = arith.constant dense<0.000000e+00> : vector<38x128xf32>
    %428 = tpu.matmul %110, %427, %cst_364 {dimension_numbers = #tpu.dot_dimension_numbers<[1], [0], [0], [1], [0, 0, 1, 1], [], []>} : vector<38x128xf32>, vector<128x128xf32>, vector<38x128xf32> -> vector<38x128xf32>
    %c0_365 = arith.constant 0 : index
    %c0_366 = arith.constant 0 : index
    %c0_367 = arith.constant 0 : index
    %429 = vector.load %arg9[%c0_365, %c0_366, %c0_367] : memref<3x38x128xf32, #tpu.memory_space<vmem>>, vector<1x38x128xf32>
    %430 = vector.shape_cast %429 : vector<1x38x128xf32> to vector<38x128xf32>
    %c1_368 = arith.constant 1 : index
    %c0_369 = arith.constant 0 : index
    %c0_370 = arith.constant 0 : index
    %431 = vector.load %arg5[%c1_368, %c0_369, %c0_370] : memref<10x128x128xf32, #tpu.memory_space<vmem>>, vector<1x128x128xf32>
    %432 = vector.shape_cast %431 : vector<1x128x128xf32> to vector<128x128xf32>
    %cst_371 = arith.constant dense<0.000000e+00> : vector<38x128xf32>
    %433 = tpu.matmul %430, %432, %cst_371 {dimension_numbers = #tpu.dot_dimension_numbers<[1], [0], [0], [1], [0, 0, 1, 1], [], []>} : vector<38x128xf32>, vector<128x128xf32>, vector<38x128xf32> -> vector<38x128xf32>
    %434 = arith.addf %428, %433 : vector<38x128xf32>
    %c1_372 = arith.constant 1 : index
    %c0_373 = arith.constant 0 : index
    %c0_374 = arith.constant 0 : index
    %435 = vector.load %arg9[%c1_372, %c0_373, %c0_374] : memref<3x38x128xf32, #tpu.memory_space<vmem>>, vector<1x38x128xf32>
    %436 = vector.shape_cast %435 : vector<1x38x128xf32> to vector<38x128xf32>
    %c2_375 = arith.constant 2 : index
    %c0_376 = arith.constant 0 : index
    %c0_377 = arith.constant 0 : index
    %437 = vector.load %arg5[%c2_375, %c0_376, %c0_377] : memref<10x128x128xf32, #tpu.memory_space<vmem>>, vector<1x128x128xf32>
    %438 = vector.shape_cast %437 : vector<1x128x128xf32> to vector<128x128xf32>
    %cst_378 = arith.constant dense<0.000000e+00> : vector<38x128xf32>
    %439 = tpu.matmul %436, %438, %cst_378 {dimension_numbers = #tpu.dot_dimension_numbers<[1], [0], [0], [1], [0, 0, 1, 1], [], []>} : vector<38x128xf32>, vector<128x128xf32>, vector<38x128xf32> -> vector<38x128xf32>
    %440 = arith.addf %434, %439 : vector<38x128xf32>
    %c2_379 = arith.constant 2 : index
    %c0_380 = arith.constant 0 : index
    %c0_381 = arith.constant 0 : index
    %441 = vector.load %arg9[%c2_379, %c0_380, %c0_381] : memref<3x38x128xf32, #tpu.memory_space<vmem>>, vector<1x38x128xf32>
    %442 = vector.shape_cast %441 : vector<1x38x128xf32> to vector<38x128xf32>
    %c3_382 = arith.constant 3 : index
    %c0_383 = arith.constant 0 : index
    %c0_384 = arith.constant 0 : index
    %443 = vector.load %arg5[%c3_382, %c0_383, %c0_384] : memref<10x128x128xf32, #tpu.memory_space<vmem>>, vector<1x128x128xf32>
    %444 = vector.shape_cast %443 : vector<1x128x128xf32> to vector<128x128xf32>
    %cst_385 = arith.constant dense<0.000000e+00> : vector<38x128xf32>
    %445 = tpu.matmul %442, %444, %cst_385 {dimension_numbers = #tpu.dot_dimension_numbers<[1], [0], [0], [1], [0, 0, 1, 1], [], []>} : vector<38x128xf32>, vector<128x128xf32>, vector<38x128xf32> -> vector<38x128xf32>
    %446 = arith.addf %440, %445 : vector<38x128xf32>
    %c0_386 = arith.constant 0 : index
    %c0_387 = arith.constant 0 : index
    %447 = vector.load %arg6[%c0_386, %c0_387] : memref<4x128xf32, #tpu.memory_space<vmem>>, vector<1x128xf32>
    %448 = vector.broadcast %447 : vector<1x128xf32> to vector<38x128xf32>
    %449 = arith.addf %446, %448 : vector<38x128xf32>
    %450 = vector.extract_strided_slice %449 {offsets = [0, 0], sizes = [8, 128], strides = [1, 1]} : vector<38x128xf32> to vector<8x128xf32>
    %c1_388 = arith.constant 1 : index
    %c0_389 = arith.constant 0 : index
    %451 = vector.load %arg8[%c1_388, %c0_389] : memref<40x128xf32, #tpu.memory_space<vmem>>, vector<8x128xf32>
    tpu.vector_store %arg8[%c1_388, %c0_389], %450 {strides = array<i32>} : memref<40x128xf32, #tpu.memory_space<vmem>>, vector<8x128xf32>,
    %452 = vector.extract_strided_slice %449 {offsets = [10, 0], sizes = [8, 128], strides = [1, 1]} : vector<38x128xf32> to vector<8x128xf32>
    %c11 = arith.constant 11 : index
    %c0_390 = arith.constant 0 : index
    %453 = vector.load %arg8[%c11, %c0_390] : memref<40x128xf32, #tpu.memory_space<vmem>>, vector<8x128xf32>
    tpu.vector_store %arg8[%c11, %c0_390], %452 {strides = array<i32>} : memref<40x128xf32, #tpu.memory_space<vmem>>, vector<8x128xf32>,
    %454 = vector.extract_strided_slice %449 {offsets = [20, 0], sizes = [8, 128], strides = [1, 1]} : vector<38x128xf32> to vector<8x128xf32>
    %c21 = arith.constant 21 : index
    %c0_391 = arith.constant 0 : index
    %455 = vector.load %arg8[%c21, %c0_391] : memref<40x128xf32, #tpu.memory_space<vmem>>, vector<8x128xf32>
    tpu.vector_store %arg8[%c21, %c0_391], %454 {strides = array<i32>} : memref<40x128xf32, #tpu.memory_space<vmem>>, vector<8x128xf32>,
    %456 = vector.extract_strided_slice %449 {offsets = [30, 0], sizes = [8, 128], strides = [1, 1]} : vector<38x128xf32> to vector<8x128xf32>
    %c31 = arith.constant 31 : index
    %c0_392 = arith.constant 0 : index
    %457 = vector.load %arg8[%c31, %c0_392] : memref<40x128xf32, #tpu.memory_space<vmem>>, vector<8x128xf32>
    tpu.vector_store %arg8[%c31, %c0_392], %456 {strides = array<i32>} : memref<40x128xf32, #tpu.memory_space<vmem>>, vector<8x128xf32>,
    %cst_393 = arith.constant 0.000000e+00 : f32
    %458 = vector.broadcast %cst_393 : f32 to vector<38x128xf32>
    %c0_394 = arith.constant 0 : index
    %c0_395 = arith.constant 0 : index
    %459 = vector.load %arg8[%c0_394, %c0_395] : memref<40x128xf32, #tpu.memory_space<vmem>>, vector<38x128xf32>
    %cst_396 = arith.constant 0.000000e+00 : f32
    %460 = vector.broadcast %cst_396 : f32 to vector<38x16xf32>
    %461 = vector.extract_strided_slice %459 {offsets = [0, 0], sizes = [38, 112], strides = [1, 1]} : vector<38x128xf32> to vector<38x112xf32>
    %462 = tpu.concatenate %460, %461 in 1 : vector<38x16xf32>, vector<38x112xf32> -> vector<38x128xf32>
    %c1_397 = arith.constant 1 : index
    %c0_398 = arith.constant 0 : index
    %c0_399 = arith.constant 0 : index
    %463 = vector.load %arg2[%c1_397, %c0_398, %c0_399] : memref<5x9x128xf32, #tpu.memory_space<vmem>>, vector<1x1x128xf32>
    %464 = vector.shape_cast %463 : vector<1x1x128xf32> to vector<1x128xf32>
    %465 = vector.broadcast %464 : vector<1x128xf32> to vector<38x128xf32>
    %466 = arith.mulf %462, %465 : vector<38x128xf32>
    %467 = arith.addf %458, %466 : vector<38x128xf32>
    %c1_400 = arith.constant 1 : index
    %c1_401 = arith.constant 1 : index
    %c0_402 = arith.constant 0 : index
    %468 = vector.load %arg2[%c1_400, %c1_401, %c0_402] : memref<5x9x128xf32, #tpu.memory_space<vmem>>, vector<1x1x128xf32>
    %469 = vector.shape_cast %468 : vector<1x1x128xf32> to vector<1x128xf32>
    %470 = vector.broadcast %469 : vector<1x128xf32> to vector<38x128xf32>
    %471 = arith.mulf %459, %470 : vector<38x128xf32>
    %472 = arith.addf %467, %471 : vector<38x128xf32>
    %cst_403 = arith.constant 0.000000e+00 : f32
    %473 = vector.broadcast %cst_403 : f32 to vector<38x16xf32>
    %474 = vector.extract_strided_slice %459 {offsets = [0, 16], sizes = [38, 112], strides = [1, 1]} : vector<38x128xf32> to vector<38x112xf32>
    %475 = tpu.concatenate %474, %473 in 1 : vector<38x112xf32>, vector<38x16xf32> -> vector<38x128xf32>
    %c1_404 = arith.constant 1 : index
    %c2_405 = arith.constant 2 : index
    %c0_406 = arith.constant 0 : index
    %476 = vector.load %arg2[%c1_404, %c2_405, %c0_406] : memref<5x9x128xf32, #tpu.memory_space<vmem>>, vector<1x1x128xf32>
    %477 = vector.shape_cast %476 : vector<1x1x128xf32> to vector<1x128xf32>
    %478 = vector.broadcast %477 : vector<1x128xf32> to vector<38x128xf32>
    %479 = arith.mulf %475, %478 : vector<38x128xf32>
    %480 = arith.addf %472, %479 : vector<38x128xf32>
    %c1_407 = arith.constant 1 : index
    %c0_408 = arith.constant 0 : index
    %481 = vector.load %arg8[%c1_407, %c0_408] : memref<40x128xf32, #tpu.memory_space<vmem>>, vector<38x128xf32>
    %cst_409 = arith.constant 0.000000e+00 : f32
    %482 = vector.broadcast %cst_409 : f32 to vector<38x16xf32>
    %483 = vector.extract_strided_slice %481 {offsets = [0, 0], sizes = [38, 112], strides = [1, 1]} : vector<38x128xf32> to vector<38x112xf32>
    %484 = tpu.concatenate %482, %483 in 1 : vector<38x16xf32>, vector<38x112xf32> -> vector<38x128xf32>
    %c1_410 = arith.constant 1 : index
    %c3_411 = arith.constant 3 : index
    %c0_412 = arith.constant 0 : index
    %485 = vector.load %arg2[%c1_410, %c3_411, %c0_412] : memref<5x9x128xf32, #tpu.memory_space<vmem>>, vector<1x1x128xf32>
    %486 = vector.shape_cast %485 : vector<1x1x128xf32> to vector<1x128xf32>
    %487 = vector.broadcast %486 : vector<1x128xf32> to vector<38x128xf32>
    %488 = arith.mulf %484, %487 : vector<38x128xf32>
    %489 = arith.addf %480, %488 : vector<38x128xf32>
    %c1_413 = arith.constant 1 : index
    %c4_414 = arith.constant 4 : index
    %c0_415 = arith.constant 0 : index
    %490 = vector.load %arg2[%c1_413, %c4_414, %c0_415] : memref<5x9x128xf32, #tpu.memory_space<vmem>>, vector<1x1x128xf32>
    %491 = vector.shape_cast %490 : vector<1x1x128xf32> to vector<1x128xf32>
    %492 = vector.broadcast %491 : vector<1x128xf32> to vector<38x128xf32>
    %493 = arith.mulf %481, %492 : vector<38x128xf32>
    %494 = arith.addf %489, %493 : vector<38x128xf32>
    %cst_416 = arith.constant 0.000000e+00 : f32
    %495 = vector.broadcast %cst_416 : f32 to vector<38x16xf32>
    %496 = vector.extract_strided_slice %481 {offsets = [0, 16], sizes = [38, 112], strides = [1, 1]} : vector<38x128xf32> to vector<38x112xf32>
    %497 = tpu.concatenate %496, %495 in 1 : vector<38x112xf32>, vector<38x16xf32> -> vector<38x128xf32>
    %c1_417 = arith.constant 1 : index
    %c5_418 = arith.constant 5 : index
    %c0_419 = arith.constant 0 : index
    %498 = vector.load %arg2[%c1_417, %c5_418, %c0_419] : memref<5x9x128xf32, #tpu.memory_space<vmem>>, vector<1x1x128xf32>
    %499 = vector.shape_cast %498 : vector<1x1x128xf32> to vector<1x128xf32>
    %500 = vector.broadcast %499 : vector<1x128xf32> to vector<38x128xf32>
    %501 = arith.mulf %497, %500 : vector<38x128xf32>
    %502 = arith.addf %494, %501 : vector<38x128xf32>
    %c2_420 = arith.constant 2 : index
    %c0_421 = arith.constant 0 : index
    %503 = vector.load %arg8[%c2_420, %c0_421] : memref<40x128xf32, #tpu.memory_space<vmem>>, vector<38x128xf32>
    %cst_422 = arith.constant 0.000000e+00 : f32
    %504 = vector.broadcast %cst_422 : f32 to vector<38x16xf32>
    %505 = vector.extract_strided_slice %503 {offsets = [0, 0], sizes = [38, 112], strides = [1, 1]} : vector<38x128xf32> to vector<38x112xf32>
    %506 = tpu.concatenate %504, %505 in 1 : vector<38x16xf32>, vector<38x112xf32> -> vector<38x128xf32>
    %c1_423 = arith.constant 1 : index
    %c6_424 = arith.constant 6 : index
    %c0_425 = arith.constant 0 : index
    %507 = vector.load %arg2[%c1_423, %c6_424, %c0_425] : memref<5x9x128xf32, #tpu.memory_space<vmem>>, vector<1x1x128xf32>
    %508 = vector.shape_cast %507 : vector<1x1x128xf32> to vector<1x128xf32>
    %509 = vector.broadcast %508 : vector<1x128xf32> to vector<38x128xf32>
    %510 = arith.mulf %506, %509 : vector<38x128xf32>
    %511 = arith.addf %502, %510 : vector<38x128xf32>
    %c1_426 = arith.constant 1 : index
    %c7_427 = arith.constant 7 : index
    %c0_428 = arith.constant 0 : index
    %512 = vector.load %arg2[%c1_426, %c7_427, %c0_428] : memref<5x9x128xf32, #tpu.memory_space<vmem>>, vector<1x1x128xf32>
    %513 = vector.shape_cast %512 : vector<1x1x128xf32> to vector<1x128xf32>
    %514 = vector.broadcast %513 : vector<1x128xf32> to vector<38x128xf32>
    %515 = arith.mulf %503, %514 : vector<38x128xf32>
    %516 = arith.addf %511, %515 : vector<38x128xf32>
    %cst_429 = arith.constant 0.000000e+00 : f32
    %517 = vector.broadcast %cst_429 : f32 to vector<38x16xf32>
    %518 = vector.extract_strided_slice %503 {offsets = [0, 16], sizes = [38, 112], strides = [1, 1]} : vector<38x128xf32> to vector<38x112xf32>
    %519 = tpu.concatenate %518, %517 in 1 : vector<38x112xf32>, vector<38x16xf32> -> vector<38x128xf32>
    %c1_430 = arith.constant 1 : index
    %c8_431 = arith.constant 8 : index
    %c0_432 = arith.constant 0 : index
    %520 = vector.load %arg2[%c1_430, %c8_431, %c0_432] : memref<5x9x128xf32, #tpu.memory_space<vmem>>, vector<1x1x128xf32>
    %521 = vector.shape_cast %520 : vector<1x1x128xf32> to vector<1x128xf32>
    %522 = vector.broadcast %521 : vector<1x128xf32> to vector<38x128xf32>
    %523 = arith.mulf %519, %522 : vector<38x128xf32>
    %524 = arith.addf %516, %523 : vector<38x128xf32>
    %c1_433 = arith.constant 1 : index
    %c0_434 = arith.constant 0 : index
    %c0_435 = arith.constant 0 : index
    %525 = vector.load %arg3[%c1_433, %c0_434, %c0_435] : memref<5x5x128xf32, #tpu.memory_space<vmem>>, vector<1x1x128xf32>
    %526 = vector.shape_cast %525 : vector<1x1x128xf32> to vector<1x128xf32>
    %527 = vector.broadcast %526 : vector<1x128xf32> to vector<38x128xf32>
    %528 = arith.mulf %524, %527 : vector<38x128xf32>
    %c1_436 = arith.constant 1 : index
    %c1_437 = arith.constant 1 : index
    %c0_438 = arith.constant 0 : index
    %529 = vector.load %arg3[%c1_436, %c1_437, %c0_438] : memref<5x5x128xf32, #tpu.memory_space<vmem>>, vector<1x1x128xf32>
    %530 = vector.shape_cast %529 : vector<1x1x128xf32> to vector<1x128xf32>
    %531 = vector.broadcast %530 : vector<1x128xf32> to vector<38x128xf32>
    %532 = arith.addf %528, %531 : vector<38x128xf32>
    %cst_439 = arith.constant 0.000000e+00 : f32
    %533 = vector.broadcast %cst_439 : f32 to vector<38x128xf32>
    %534 = arith.cmpf ogt, %532, %533 : vector<38x128xf32>
    %c1_440 = arith.constant 1 : index
    %c2_441 = arith.constant 2 : index
    %c0_442 = arith.constant 0 : index
    %535 = vector.load %arg3[%c1_440, %c2_441, %c0_442] : memref<5x5x128xf32, #tpu.memory_space<vmem>>, vector<1x1x128xf32>
    %536 = vector.shape_cast %535 : vector<1x1x128xf32> to vector<1x128xf32>
    %537 = vector.broadcast %536 : vector<1x128xf32> to vector<38x128xf32>
    %538 = arith.mulf %532, %537 : vector<38x128xf32>
    %539 = arith.select %534, %532, %538 : vector<38x128xi1>, vector<38x128xf32>
    %c1_443 = arith.constant 1 : index
    %c0_444 = arith.constant 0 : index
    %c0_445 = arith.constant 0 : index
    %540 = vector.load %arg4[%c1_443, %c0_444, %c0_445] : memref<5x128x128xf32, #tpu.memory_space<vmem>>, vector<1x128x128xf32>
    %541 = vector.shape_cast %540 : vector<1x128x128xf32> to vector<128x128xf32>
    %cst_446 = arith.constant dense<0.000000e+00> : vector<38x128xf32>
    %542 = tpu.matmul %539, %541, %cst_446 {dimension_numbers = #tpu.dot_dimension_numbers<[1], [0], [0], [1], [0, 0, 1, 1], [], []>} : vector<38x128xf32>, vector<128x128xf32>, vector<38x128xf32> -> vector<38x128xf32>
    %c1_447 = arith.constant 1 : index
    %c3_448 = arith.constant 3 : index
    %c0_449 = arith.constant 0 : index
    %543 = vector.load %arg3[%c1_447, %c3_448, %c0_449] : memref<5x5x128xf32, #tpu.memory_space<vmem>>, vector<1x1x128xf32>
    %544 = vector.shape_cast %543 : vector<1x1x128xf32> to vector<1x128xf32>
    %545 = vector.broadcast %544 : vector<1x128xf32> to vector<38x128xf32>
    %546 = arith.addf %542, %545 : vector<38x128xf32>
    %cst_450 = arith.constant 0.000000e+00 : f32
    %547 = vector.broadcast %cst_450 : f32 to vector<38x128xf32>
    %548 = arith.cmpf ogt, %546, %547 : vector<38x128xf32>
    %c1_451 = arith.constant 1 : index
    %c4_452 = arith.constant 4 : index
    %c0_453 = arith.constant 0 : index
    %549 = vector.load %arg3[%c1_451, %c4_452, %c0_453] : memref<5x5x128xf32, #tpu.memory_space<vmem>>, vector<1x1x128xf32>
    %550 = vector.shape_cast %549 : vector<1x1x128xf32> to vector<1x128xf32>
    %551 = vector.broadcast %550 : vector<1x128xf32> to vector<38x128xf32>
    %552 = arith.mulf %546, %551 : vector<38x128xf32>
    %553 = arith.select %548, %546, %552 : vector<38x128xi1>, vector<38x128xf32>
    %c4_454 = arith.constant 4 : index
    %c0_455 = arith.constant 0 : index
    %c0_456 = arith.constant 0 : index
    %554 = vector.load %arg5[%c4_454, %c0_455, %c0_456] : memref<10x128x128xf32, #tpu.memory_space<vmem>>, vector<1x128x128xf32>
    %555 = vector.shape_cast %554 : vector<1x128x128xf32> to vector<128x128xf32>
    %cst_457 = arith.constant dense<0.000000e+00> : vector<38x128xf32>
    %556 = tpu.matmul %553, %555, %cst_457 {dimension_numbers = #tpu.dot_dimension_numbers<[1], [0], [0], [1], [0, 0, 1, 1], [], []>} : vector<38x128xf32>, vector<128x128xf32>, vector<38x128xf32> -> vector<38x128xf32>
    %c0_458 = arith.constant 0 : index
    %c0_459 = arith.constant 0 : index
    %c0_460 = arith.constant 0 : index
    %557 = vector.load %arg9[%c0_458, %c0_459, %c0_460] : memref<3x38x128xf32, #tpu.memory_space<vmem>>, vector<1x38x128xf32>
    %558 = vector.shape_cast %557 : vector<1x38x128xf32> to vector<38x128xf32>
    %c5_461 = arith.constant 5 : index
    %c0_462 = arith.constant 0 : index
    %c0_463 = arith.constant 0 : index
    %559 = vector.load %arg5[%c5_461, %c0_462, %c0_463] : memref<10x128x128xf32, #tpu.memory_space<vmem>>, vector<1x128x128xf32>
    %560 = vector.shape_cast %559 : vector<1x128x128xf32> to vector<128x128xf32>
    %cst_464 = arith.constant dense<0.000000e+00> : vector<38x128xf32>
    %561 = tpu.matmul %558, %560, %cst_464 {dimension_numbers = #tpu.dot_dimension_numbers<[1], [0], [0], [1], [0, 0, 1, 1], [], []>} : vector<38x128xf32>, vector<128x128xf32>, vector<38x128xf32> -> vector<38x128xf32>
    %562 = arith.addf %556, %561 : vector<38x128xf32>
    %c1_465 = arith.constant 1 : index
    %c0_466 = arith.constant 0 : index
    %563 = vector.load %arg6[%c1_465, %c0_466] : memref<4x128xf32, #tpu.memory_space<vmem>>, vector<1x128xf32>
    %564 = vector.broadcast %563 : vector<1x128xf32> to vector<38x128xf32>
    %565 = arith.addf %562, %564 : vector<38x128xf32>
    %566 = vector.extract_strided_slice %565 {offsets = [0, 0], sizes = [8, 128], strides = [1, 1]} : vector<38x128xf32> to vector<8x128xf32>
    %c1_467 = arith.constant 1 : index
    %c0_468 = arith.constant 0 : index
    %567 = vector.load %arg8[%c1_467, %c0_468] : memref<40x128xf32, #tpu.memory_space<vmem>>, vector<8x128xf32>
    tpu.vector_store %arg8[%c1_467, %c0_468], %566 {strides = array<i32>} : memref<40x128xf32, #tpu.memory_space<vmem>>, vector<8x128xf32>,
    %568 = vector.extract_strided_slice %565 {offsets = [10, 0], sizes = [8, 128], strides = [1, 1]} : vector<38x128xf32> to vector<8x128xf32>
    %c11_469 = arith.constant 11 : index
    %c0_470 = arith.constant 0 : index
    %569 = vector.load %arg8[%c11_469, %c0_470] : memref<40x128xf32, #tpu.memory_space<vmem>>, vector<8x128xf32>
    tpu.vector_store %arg8[%c11_469, %c0_470], %568 {strides = array<i32>} : memref<40x128xf32, #tpu.memory_space<vmem>>, vector<8x128xf32>,
    %570 = vector.extract_strided_slice %565 {offsets = [20, 0], sizes = [8, 128], strides = [1, 1]} : vector<38x128xf32> to vector<8x128xf32>
    %c21_471 = arith.constant 21 : index
    %c0_472 = arith.constant 0 : index
    %571 = vector.load %arg8[%c21_471, %c0_472] : memref<40x128xf32, #tpu.memory_space<vmem>>, vector<8x128xf32>
    tpu.vector_store %arg8[%c21_471, %c0_472], %570 {strides = array<i32>} : memref<40x128xf32, #tpu.memory_space<vmem>>, vector<8x128xf32>,
    %572 = vector.extract_strided_slice %565 {offsets = [30, 0], sizes = [8, 128], strides = [1, 1]} : vector<38x128xf32> to vector<8x128xf32>
    %c31_473 = arith.constant 31 : index
    %c0_474 = arith.constant 0 : index
    %573 = vector.load %arg8[%c31_473, %c0_474] : memref<40x128xf32, #tpu.memory_space<vmem>>, vector<8x128xf32>
    tpu.vector_store %arg8[%c31_473, %c0_474], %572 {strides = array<i32>} : memref<40x128xf32, #tpu.memory_space<vmem>>, vector<8x128xf32>,
    %cst_475 = arith.constant 0.000000e+00 : f32
    %574 = vector.broadcast %cst_475 : f32 to vector<38x128xf32>
    %c0_476 = arith.constant 0 : index
    %c0_477 = arith.constant 0 : index
    %575 = vector.load %arg8[%c0_476, %c0_477] : memref<40x128xf32, #tpu.memory_space<vmem>>, vector<38x128xf32>
    %cst_478 = arith.constant 0.000000e+00 : f32
    %576 = vector.broadcast %cst_478 : f32 to vector<38x16xf32>
    %577 = vector.extract_strided_slice %575 {offsets = [0, 0], sizes = [38, 112], strides = [1, 1]} : vector<38x128xf32> to vector<38x112xf32>
    %578 = tpu.concatenate %576, %577 in 1 : vector<38x16xf32>, vector<38x112xf32> -> vector<38x128xf32>
    %c2_479 = arith.constant 2 : index
    %c0_480 = arith.constant 0 : index
    %c0_481 = arith.constant 0 : index
    %579 = vector.load %arg2[%c2_479, %c0_480, %c0_481] : memref<5x9x128xf32, #tpu.memory_space<vmem>>, vector<1x1x128xf32>
    %580 = vector.shape_cast %579 : vector<1x1x128xf32> to vector<1x128xf32>
    %581 = vector.broadcast %580 : vector<1x128xf32> to vector<38x128xf32>
    %582 = arith.mulf %578, %581 : vector<38x128xf32>
    %583 = arith.addf %574, %582 : vector<38x128xf32>
    %c2_482 = arith.constant 2 : index
    %c1_483 = arith.constant 1 : index
    %c0_484 = arith.constant 0 : index
    %584 = vector.load %arg2[%c2_482, %c1_483, %c0_484] : memref<5x9x128xf32, #tpu.memory_space<vmem>>, vector<1x1x128xf32>
    %585 = vector.shape_cast %584 : vector<1x1x128xf32> to vector<1x128xf32>
    %586 = vector.broadcast %585 : vector<1x128xf32> to vector<38x128xf32>
    %587 = arith.mulf %575, %586 : vector<38x128xf32>
    %588 = arith.addf %583, %587 : vector<38x128xf32>
    %cst_485 = arith.constant 0.000000e+00 : f32
    %589 = vector.broadcast %cst_485 : f32 to vector<38x16xf32>
    %590 = vector.extract_strided_slice %575 {offsets = [0, 16], sizes = [38, 112], strides = [1, 1]} : vector<38x128xf32> to vector<38x112xf32>
    %591 = tpu.concatenate %590, %589 in 1 : vector<38x112xf32>, vector<38x16xf32> -> vector<38x128xf32>
    %c2_486 = arith.constant 2 : index
    %c2_487 = arith.constant 2 : index
    %c0_488 = arith.constant 0 : index
    %592 = vector.load %arg2[%c2_486, %c2_487, %c0_488] : memref<5x9x128xf32, #tpu.memory_space<vmem>>, vector<1x1x128xf32>
    %593 = vector.shape_cast %592 : vector<1x1x128xf32> to vector<1x128xf32>
    %594 = vector.broadcast %593 : vector<1x128xf32> to vector<38x128xf32>
    %595 = arith.mulf %591, %594 : vector<38x128xf32>
    %596 = arith.addf %588, %595 : vector<38x128xf32>
    %c1_489 = arith.constant 1 : index
    %c0_490 = arith.constant 0 : index
    %597 = vector.load %arg8[%c1_489, %c0_490] : memref<40x128xf32, #tpu.memory_space<vmem>>, vector<38x128xf32>
    %cst_491 = arith.constant 0.000000e+00 : f32
    %598 = vector.broadcast %cst_491 : f32 to vector<38x16xf32>
    %599 = vector.extract_strided_slice %597 {offsets = [0, 0], sizes = [38, 112], strides = [1, 1]} : vector<38x128xf32> to vector<38x112xf32>
    %600 = tpu.concatenate %598, %599 in 1 : vector<38x16xf32>, vector<38x112xf32> -> vector<38x128xf32>
    %c2_492 = arith.constant 2 : index
    %c3_493 = arith.constant 3 : index
    %c0_494 = arith.constant 0 : index
    %601 = vector.load %arg2[%c2_492, %c3_493, %c0_494] : memref<5x9x128xf32, #tpu.memory_space<vmem>>, vector<1x1x128xf32>
    %602 = vector.shape_cast %601 : vector<1x1x128xf32> to vector<1x128xf32>
    %603 = vector.broadcast %602 : vector<1x128xf32> to vector<38x128xf32>
    %604 = arith.mulf %600, %603 : vector<38x128xf32>
    %605 = arith.addf %596, %604 : vector<38x128xf32>
    %c2_495 = arith.constant 2 : index
    %c4_496 = arith.constant 4 : index
    %c0_497 = arith.constant 0 : index
    %606 = vector.load %arg2[%c2_495, %c4_496, %c0_497] : memref<5x9x128xf32, #tpu.memory_space<vmem>>, vector<1x1x128xf32>
    %607 = vector.shape_cast %606 : vector<1x1x128xf32> to vector<1x128xf32>
    %608 = vector.broadcast %607 : vector<1x128xf32> to vector<38x128xf32>
    %609 = arith.mulf %597, %608 : vector<38x128xf32>
    %610 = arith.addf %605, %609 : vector<38x128xf32>
    %cst_498 = arith.constant 0.000000e+00 : f32
    %611 = vector.broadcast %cst_498 : f32 to vector<38x16xf32>
    %612 = vector.extract_strided_slice %597 {offsets = [0, 16], sizes = [38, 112], strides = [1, 1]} : vector<38x128xf32> to vector<38x112xf32>
    %613 = tpu.concatenate %612, %611 in 1 : vector<38x112xf32>, vector<38x16xf32> -> vector<38x128xf32>
    %c2_499 = arith.constant 2 : index
    %c5_500 = arith.constant 5 : index
    %c0_501 = arith.constant 0 : index
    %614 = vector.load %arg2[%c2_499, %c5_500, %c0_501] : memref<5x9x128xf32, #tpu.memory_space<vmem>>, vector<1x1x128xf32>
    %615 = vector.shape_cast %614 : vector<1x1x128xf32> to vector<1x128xf32>
    %616 = vector.broadcast %615 : vector<1x128xf32> to vector<38x128xf32>
    %617 = arith.mulf %613, %616 : vector<38x128xf32>
    %618 = arith.addf %610, %617 : vector<38x128xf32>
    %c2_502 = arith.constant 2 : index
    %c0_503 = arith.constant 0 : index
    %619 = vector.load %arg8[%c2_502, %c0_503] : memref<40x128xf32, #tpu.memory_space<vmem>>, vector<38x128xf32>
    %cst_504 = arith.constant 0.000000e+00 : f32
    %620 = vector.broadcast %cst_504 : f32 to vector<38x16xf32>
    %621 = vector.extract_strided_slice %619 {offsets = [0, 0], sizes = [38, 112], strides = [1, 1]} : vector<38x128xf32> to vector<38x112xf32>
    %622 = tpu.concatenate %620, %621 in 1 : vector<38x16xf32>, vector<38x112xf32> -> vector<38x128xf32>
    %c2_505 = arith.constant 2 : index
    %c6_506 = arith.constant 6 : index
    %c0_507 = arith.constant 0 : index
    %623 = vector.load %arg2[%c2_505, %c6_506, %c0_507] : memref<5x9x128xf32, #tpu.memory_space<vmem>>, vector<1x1x128xf32>
    %624 = vector.shape_cast %623 : vector<1x1x128xf32> to vector<1x128xf32>
    %625 = vector.broadcast %624 : vector<1x128xf32> to vector<38x128xf32>
    %626 = arith.mulf %622, %625 : vector<38x128xf32>
    %627 = arith.addf %618, %626 : vector<38x128xf32>
    %c2_508 = arith.constant 2 : index
    %c7_509 = arith.constant 7 : index
    %c0_510 = arith.constant 0 : index
    %628 = vector.load %arg2[%c2_508, %c7_509, %c0_510] : memref<5x9x128xf32, #tpu.memory_space<vmem>>, vector<1x1x128xf32>
    %629 = vector.shape_cast %628 : vector<1x1x128xf32> to vector<1x128xf32>
    %630 = vector.broadcast %629 : vector<1x128xf32> to vector<38x128xf32>
    %631 = arith.mulf %619, %630 : vector<38x128xf32>
    %632 = arith.addf %627, %631 : vector<38x128xf32>
    %cst_511 = arith.constant 0.000000e+00 : f32
    %633 = vector.broadcast %cst_511 : f32 to vector<38x16xf32>
    %634 = vector.extract_strided_slice %619 {offsets = [0, 16], sizes = [38, 112], strides = [1, 1]} : vector<38x128xf32> to vector<38x112xf32>
    %635 = tpu.concatenate %634, %633 in 1 : vector<38x112xf32>, vector<38x16xf32> -> vector<38x128xf32>
    %c2_512 = arith.constant 2 : index
    %c8_513 = arith.constant 8 : index
    %c0_514 = arith.constant 0 : index
    %636 = vector.load %arg2[%c2_512, %c8_513, %c0_514] : memref<5x9x128xf32, #tpu.memory_space<vmem>>, vector<1x1x128xf32>
    %637 = vector.shape_cast %636 : vector<1x1x128xf32> to vector<1x128xf32>
    %638 = vector.broadcast %637 : vector<1x128xf32> to vector<38x128xf32>
    %639 = arith.mulf %635, %638 : vector<38x128xf32>
    %640 = arith.addf %632, %639 : vector<38x128xf32>
    %c2_515 = arith.constant 2 : index
    %c0_516 = arith.constant 0 : index
    %c0_517 = arith.constant 0 : index
    %641 = vector.load %arg3[%c2_515, %c0_516, %c0_517] : memref<5x5x128xf32, #tpu.memory_space<vmem>>, vector<1x1x128xf32>
    %642 = vector.shape_cast %641 : vector<1x1x128xf32> to vector<1x128xf32>
    %643 = vector.broadcast %642 : vector<1x128xf32> to vector<38x128xf32>
    %644 = arith.mulf %640, %643 : vector<38x128xf32>
    %c2_518 = arith.constant 2 : index
    %c1_519 = arith.constant 1 : index
    %c0_520 = arith.constant 0 : index
    %645 = vector.load %arg3[%c2_518, %c1_519, %c0_520] : memref<5x5x128xf32, #tpu.memory_space<vmem>>, vector<1x1x128xf32>
    %646 = vector.shape_cast %645 : vector<1x1x128xf32> to vector<1x128xf32>
    %647 = vector.broadcast %646 : vector<1x128xf32> to vector<38x128xf32>
    %648 = arith.addf %644, %647 : vector<38x128xf32>
    %cst_521 = arith.constant 0.000000e+00 : f32
    %649 = vector.broadcast %cst_521 : f32 to vector<38x128xf32>
    %650 = arith.cmpf ogt, %648, %649 : vector<38x128xf32>
    %c2_522 = arith.constant 2 : index
    %c2_523 = arith.constant 2 : index
    %c0_524 = arith.constant 0 : index
    %651 = vector.load %arg3[%c2_522, %c2_523, %c0_524] : memref<5x5x128xf32, #tpu.memory_space<vmem>>, vector<1x1x128xf32>
    %652 = vector.shape_cast %651 : vector<1x1x128xf32> to vector<1x128xf32>
    %653 = vector.broadcast %652 : vector<1x128xf32> to vector<38x128xf32>
    %654 = arith.mulf %648, %653 : vector<38x128xf32>
    %655 = arith.select %650, %648, %654 : vector<38x128xi1>, vector<38x128xf32>
    %c2_525 = arith.constant 2 : index
    %c0_526 = arith.constant 0 : index
    %c0_527 = arith.constant 0 : index
    %656 = vector.load %arg4[%c2_525, %c0_526, %c0_527] : memref<5x128x128xf32, #tpu.memory_space<vmem>>, vector<1x128x128xf32>
    %657 = vector.shape_cast %656 : vector<1x128x128xf32> to vector<128x128xf32>
    %cst_528 = arith.constant dense<0.000000e+00> : vector<38x128xf32>
    %658 = tpu.matmul %655, %657, %cst_528 {dimension_numbers = #tpu.dot_dimension_numbers<[1], [0], [0], [1], [0, 0, 1, 1], [], []>} : vector<38x128xf32>, vector<128x128xf32>, vector<38x128xf32> -> vector<38x128xf32>
    %c2_529 = arith.constant 2 : index
    %c3_530 = arith.constant 3 : index
    %c0_531 = arith.constant 0 : index
    %659 = vector.load %arg3[%c2_529, %c3_530, %c0_531] : memref<5x5x128xf32, #tpu.memory_space<vmem>>, vector<1x1x128xf32>
    %660 = vector.shape_cast %659 : vector<1x1x128xf32> to vector<1x128xf32>
    %661 = vector.broadcast %660 : vector<1x128xf32> to vector<38x128xf32>
    %662 = arith.addf %658, %661 : vector<38x128xf32>
    %cst_532 = arith.constant 0.000000e+00 : f32
    %663 = vector.broadcast %cst_532 : f32 to vector<38x128xf32>
    %664 = arith.cmpf ogt, %662, %663 : vector<38x128xf32>
    %c2_533 = arith.constant 2 : index
    %c4_534 = arith.constant 4 : index
    %c0_535 = arith.constant 0 : index
    %665 = vector.load %arg3[%c2_533, %c4_534, %c0_535] : memref<5x5x128xf32, #tpu.memory_space<vmem>>, vector<1x1x128xf32>
    %666 = vector.shape_cast %665 : vector<1x1x128xf32> to vector<1x128xf32>
    %667 = vector.broadcast %666 : vector<1x128xf32> to vector<38x128xf32>
    %668 = arith.mulf %662, %667 : vector<38x128xf32>
    %669 = arith.select %664, %662, %668 : vector<38x128xi1>, vector<38x128xf32>
    %c6_536 = arith.constant 6 : index
    %c0_537 = arith.constant 0 : index
    %c0_538 = arith.constant 0 : index
    %670 = vector.load %arg5[%c6_536, %c0_537, %c0_538] : memref<10x128x128xf32, #tpu.memory_space<vmem>>, vector<1x128x128xf32>
    %671 = vector.shape_cast %670 : vector<1x128x128xf32> to vector<128x128xf32>
    %cst_539 = arith.constant dense<0.000000e+00> : vector<38x128xf32>
    %672 = tpu.matmul %669, %671, %cst_539 {dimension_numbers = #tpu.dot_dimension_numbers<[1], [0], [0], [1], [0, 0, 1, 1], [], []>} : vector<38x128xf32>, vector<128x128xf32>, vector<38x128xf32> -> vector<38x128xf32>
    %c1_540 = arith.constant 1 : index
    %c0_541 = arith.constant 0 : index
    %c0_542 = arith.constant 0 : index
    %673 = vector.load %arg9[%c1_540, %c0_541, %c0_542] : memref<3x38x128xf32, #tpu.memory_space<vmem>>, vector<1x38x128xf32>
    %674 = vector.shape_cast %673 : vector<1x38x128xf32> to vector<38x128xf32>
    %c7_543 = arith.constant 7 : index
    %c0_544 = arith.constant 0 : index
    %c0_545 = arith.constant 0 : index
    %675 = vector.load %arg5[%c7_543, %c0_544, %c0_545] : memref<10x128x128xf32, #tpu.memory_space<vmem>>, vector<1x128x128xf32>
    %676 = vector.shape_cast %675 : vector<1x128x128xf32> to vector<128x128xf32>
    %cst_546 = arith.constant dense<0.000000e+00> : vector<38x128xf32>
    %677 = tpu.matmul %674, %676, %cst_546 {dimension_numbers = #tpu.dot_dimension_numbers<[1], [0], [0], [1], [0, 0, 1, 1], [], []>} : vector<38x128xf32>, vector<128x128xf32>, vector<38x128xf32> -> vector<38x128xf32>
    %678 = arith.addf %672, %677 : vector<38x128xf32>
    %c2_547 = arith.constant 2 : index
    %c0_548 = arith.constant 0 : index
    %679 = vector.load %arg6[%c2_547, %c0_548] : memref<4x128xf32, #tpu.memory_space<vmem>>, vector<1x128xf32>
    %680 = vector.broadcast %679 : vector<1x128xf32> to vector<38x128xf32>
    %681 = arith.addf %678, %680 : vector<38x128xf32>
    %682 = vector.extract_strided_slice %681 {offsets = [0, 0], sizes = [8, 128], strides = [1, 1]} : vector<38x128xf32> to vector<8x128xf32>
    %c1_549 = arith.constant 1 : index
    %c0_550 = arith.constant 0 : index
    %683 = vector.load %arg8[%c1_549, %c0_550] : memref<40x128xf32, #tpu.memory_space<vmem>>, vector<8x128xf32>
    tpu.vector_store %arg8[%c1_549, %c0_550], %682 {strides = array<i32>} : memref<40x128xf32, #tpu.memory_space<vmem>>, vector<8x128xf32>,
    %684 = vector.extract_strided_slice %681 {offsets = [10, 0], sizes = [8, 128], strides = [1, 1]} : vector<38x128xf32> to vector<8x128xf32>
    %c11_551 = arith.constant 11 : index
    %c0_552 = arith.constant 0 : index
    %685 = vector.load %arg8[%c11_551, %c0_552] : memref<40x128xf32, #tpu.memory_space<vmem>>, vector<8x128xf32>
    tpu.vector_store %arg8[%c11_551, %c0_552], %684 {strides = array<i32>} : memref<40x128xf32, #tpu.memory_space<vmem>>, vector<8x128xf32>,
    %686 = vector.extract_strided_slice %681 {offsets = [20, 0], sizes = [8, 128], strides = [1, 1]} : vector<38x128xf32> to vector<8x128xf32>
    %c21_553 = arith.constant 21 : index
    %c0_554 = arith.constant 0 : index
    %687 = vector.load %arg8[%c21_553, %c0_554] : memref<40x128xf32, #tpu.memory_space<vmem>>, vector<8x128xf32>
    tpu.vector_store %arg8[%c21_553, %c0_554], %686 {strides = array<i32>} : memref<40x128xf32, #tpu.memory_space<vmem>>, vector<8x128xf32>,
    %688 = vector.extract_strided_slice %681 {offsets = [30, 0], sizes = [8, 128], strides = [1, 1]} : vector<38x128xf32> to vector<8x128xf32>
    %c31_555 = arith.constant 31 : index
    %c0_556 = arith.constant 0 : index
    %689 = vector.load %arg8[%c31_555, %c0_556] : memref<40x128xf32, #tpu.memory_space<vmem>>, vector<8x128xf32>
    tpu.vector_store %arg8[%c31_555, %c0_556], %688 {strides = array<i32>} : memref<40x128xf32, #tpu.memory_space<vmem>>, vector<8x128xf32>,
    %cst_557 = arith.constant 0.000000e+00 : f32
    %690 = vector.broadcast %cst_557 : f32 to vector<38x128xf32>
    %c0_558 = arith.constant 0 : index
    %c0_559 = arith.constant 0 : index
    %691 = vector.load %arg8[%c0_558, %c0_559] : memref<40x128xf32, #tpu.memory_space<vmem>>, vector<38x128xf32>
    %cst_560 = arith.constant 0.000000e+00 : f32
    %692 = vector.broadcast %cst_560 : f32 to vector<38x16xf32>
    %693 = vector.extract_strided_slice %691 {offsets = [0, 0], sizes = [38, 112], strides = [1, 1]} : vector<38x128xf32> to vector<38x112xf32>
    %694 = tpu.concatenate %692, %693 in 1 : vector<38x16xf32>, vector<38x112xf32> -> vector<38x128xf32>
    %c3_561 = arith.constant 3 : index
    %c0_562 = arith.constant 0 : index
    %c0_563 = arith.constant 0 : index
    %695 = vector.load %arg2[%c3_561, %c0_562, %c0_563] : memref<5x9x128xf32, #tpu.memory_space<vmem>>, vector<1x1x128xf32>
    %696 = vector.shape_cast %695 : vector<1x1x128xf32> to vector<1x128xf32>
    %697 = vector.broadcast %696 : vector<1x128xf32> to vector<38x128xf32>
    %698 = arith.mulf %694, %697 : vector<38x128xf32>
    %699 = arith.addf %690, %698 : vector<38x128xf32>
    %c3_564 = arith.constant 3 : index
    %c1_565 = arith.constant 1 : index
    %c0_566 = arith.constant 0 : index
    %700 = vector.load %arg2[%c3_564, %c1_565, %c0_566] : memref<5x9x128xf32, #tpu.memory_space<vmem>>, vector<1x1x128xf32>
    %701 = vector.shape_cast %700 : vector<1x1x128xf32> to vector<1x128xf32>
    %702 = vector.broadcast %701 : vector<1x128xf32> to vector<38x128xf32>
    %703 = arith.mulf %691, %702 : vector<38x128xf32>
    %704 = arith.addf %699, %703 : vector<38x128xf32>
    %cst_567 = arith.constant 0.000000e+00 : f32
    %705 = vector.broadcast %cst_567 : f32 to vector<38x16xf32>
    %706 = vector.extract_strided_slice %691 {offsets = [0, 16], sizes = [38, 112], strides = [1, 1]} : vector<38x128xf32> to vector<38x112xf32>
    %707 = tpu.concatenate %706, %705 in 1 : vector<38x112xf32>, vector<38x16xf32> -> vector<38x128xf32>
    %c3_568 = arith.constant 3 : index
    %c2_569 = arith.constant 2 : index
    %c0_570 = arith.constant 0 : index
    %708 = vector.load %arg2[%c3_568, %c2_569, %c0_570] : memref<5x9x128xf32, #tpu.memory_space<vmem>>, vector<1x1x128xf32>
    %709 = vector.shape_cast %708 : vector<1x1x128xf32> to vector<1x128xf32>
    %710 = vector.broadcast %709 : vector<1x128xf32> to vector<38x128xf32>
    %711 = arith.mulf %707, %710 : vector<38x128xf32>
    %712 = arith.addf %704, %711 : vector<38x128xf32>
    %c1_571 = arith.constant 1 : index
    %c0_572 = arith.constant 0 : index
    %713 = vector.load %arg8[%c1_571, %c0_572] : memref<40x128xf32, #tpu.memory_space<vmem>>, vector<38x128xf32>
    %cst_573 = arith.constant 0.000000e+00 : f32
    %714 = vector.broadcast %cst_573 : f32 to vector<38x16xf32>
    %715 = vector.extract_strided_slice %713 {offsets = [0, 0], sizes = [38, 112], strides = [1, 1]} : vector<38x128xf32> to vector<38x112xf32>
    %716 = tpu.concatenate %714, %715 in 1 : vector<38x16xf32>, vector<38x112xf32> -> vector<38x128xf32>
    %c3_574 = arith.constant 3 : index
    %c3_575 = arith.constant 3 : index
    %c0_576 = arith.constant 0 : index
    %717 = vector.load %arg2[%c3_574, %c3_575, %c0_576] : memref<5x9x128xf32, #tpu.memory_space<vmem>>, vector<1x1x128xf32>
    %718 = vector.shape_cast %717 : vector<1x1x128xf32> to vector<1x128xf32>
    %719 = vector.broadcast %718 : vector<1x128xf32> to vector<38x128xf32>
    %720 = arith.mulf %716, %719 : vector<38x128xf32>
    %721 = arith.addf %712, %720 : vector<38x128xf32>
    %c3_577 = arith.constant 3 : index
    %c4_578 = arith.constant 4 : index
    %c0_579 = arith.constant 0 : index
    %722 = vector.load %arg2[%c3_577, %c4_578, %c0_579] : memref<5x9x128xf32, #tpu.memory_space<vmem>>, vector<1x1x128xf32>
    %723 = vector.shape_cast %722 : vector<1x1x128xf32> to vector<1x128xf32>
    %724 = vector.broadcast %723 : vector<1x128xf32> to vector<38x128xf32>
    %725 = arith.mulf %713, %724 : vector<38x128xf32>
    %726 = arith.addf %721, %725 : vector<38x128xf32>
    %cst_580 = arith.constant 0.000000e+00 : f32
    %727 = vector.broadcast %cst_580 : f32 to vector<38x16xf32>
    %728 = vector.extract_strided_slice %713 {offsets = [0, 16], sizes = [38, 112], strides = [1, 1]} : vector<38x128xf32> to vector<38x112xf32>
    %729 = tpu.concatenate %728, %727 in 1 : vector<38x112xf32>, vector<38x16xf32> -> vector<38x128xf32>
    %c3_581 = arith.constant 3 : index
    %c5_582 = arith.constant 5 : index
    %c0_583 = arith.constant 0 : index
    %730 = vector.load %arg2[%c3_581, %c5_582, %c0_583] : memref<5x9x128xf32, #tpu.memory_space<vmem>>, vector<1x1x128xf32>
    %731 = vector.shape_cast %730 : vector<1x1x128xf32> to vector<1x128xf32>
    %732 = vector.broadcast %731 : vector<1x128xf32> to vector<38x128xf32>
    %733 = arith.mulf %729, %732 : vector<38x128xf32>
    %734 = arith.addf %726, %733 : vector<38x128xf32>
    %c2_584 = arith.constant 2 : index
    %c0_585 = arith.constant 0 : index
    %735 = vector.load %arg8[%c2_584, %c0_585] : memref<40x128xf32, #tpu.memory_space<vmem>>, vector<38x128xf32>
    %cst_586 = arith.constant 0.000000e+00 : f32
    %736 = vector.broadcast %cst_586 : f32 to vector<38x16xf32>
    %737 = vector.extract_strided_slice %735 {offsets = [0, 0], sizes = [38, 112], strides = [1, 1]} : vector<38x128xf32> to vector<38x112xf32>
    %738 = tpu.concatenate %736, %737 in 1 : vector<38x16xf32>, vector<38x112xf32> -> vector<38x128xf32>
    %c3_587 = arith.constant 3 : index
    %c6_588 = arith.constant 6 : index
    %c0_589 = arith.constant 0 : index
    %739 = vector.load %arg2[%c3_587, %c6_588, %c0_589] : memref<5x9x128xf32, #tpu.memory_space<vmem>>, vector<1x1x128xf32>
    %740 = vector.shape_cast %739 : vector<1x1x128xf32> to vector<1x128xf32>
    %741 = vector.broadcast %740 : vector<1x128xf32> to vector<38x128xf32>
    %742 = arith.mulf %738, %741 : vector<38x128xf32>
    %743 = arith.addf %734, %742 : vector<38x128xf32>
    %c3_590 = arith.constant 3 : index
    %c7_591 = arith.constant 7 : index
    %c0_592 = arith.constant 0 : index
    %744 = vector.load %arg2[%c3_590, %c7_591, %c0_592] : memref<5x9x128xf32, #tpu.memory_space<vmem>>, vector<1x1x128xf32>
    %745 = vector.shape_cast %744 : vector<1x1x128xf32> to vector<1x128xf32>
    %746 = vector.broadcast %745 : vector<1x128xf32> to vector<38x128xf32>
    %747 = arith.mulf %735, %746 : vector<38x128xf32>
    %748 = arith.addf %743, %747 : vector<38x128xf32>
    %cst_593 = arith.constant 0.000000e+00 : f32
    %749 = vector.broadcast %cst_593 : f32 to vector<38x16xf32>
    %750 = vector.extract_strided_slice %735 {offsets = [0, 16], sizes = [38, 112], strides = [1, 1]} : vector<38x128xf32> to vector<38x112xf32>
    %751 = tpu.concatenate %750, %749 in 1 : vector<38x112xf32>, vector<38x16xf32> -> vector<38x128xf32>
    %c3_594 = arith.constant 3 : index
    %c8_595 = arith.constant 8 : index
    %c0_596 = arith.constant 0 : index
    %752 = vector.load %arg2[%c3_594, %c8_595, %c0_596] : memref<5x9x128xf32, #tpu.memory_space<vmem>>, vector<1x1x128xf32>
    %753 = vector.shape_cast %752 : vector<1x1x128xf32> to vector<1x128xf32>
    %754 = vector.broadcast %753 : vector<1x128xf32> to vector<38x128xf32>
    %755 = arith.mulf %751, %754 : vector<38x128xf32>
    %756 = arith.addf %748, %755 : vector<38x128xf32>
    %c3_597 = arith.constant 3 : index
    %c0_598 = arith.constant 0 : index
    %c0_599 = arith.constant 0 : index
    %757 = vector.load %arg3[%c3_597, %c0_598, %c0_599] : memref<5x5x128xf32, #tpu.memory_space<vmem>>, vector<1x1x128xf32>
    %758 = vector.shape_cast %757 : vector<1x1x128xf32> to vector<1x128xf32>
    %759 = vector.broadcast %758 : vector<1x128xf32> to vector<38x128xf32>
    %760 = arith.mulf %756, %759 : vector<38x128xf32>
    %c3_600 = arith.constant 3 : index
    %c1_601 = arith.constant 1 : index
    %c0_602 = arith.constant 0 : index
    %761 = vector.load %arg3[%c3_600, %c1_601, %c0_602] : memref<5x5x128xf32, #tpu.memory_space<vmem>>, vector<1x1x128xf32>
    %762 = vector.shape_cast %761 : vector<1x1x128xf32> to vector<1x128xf32>
    %763 = vector.broadcast %762 : vector<1x128xf32> to vector<38x128xf32>
    %764 = arith.addf %760, %763 : vector<38x128xf32>
    %cst_603 = arith.constant 0.000000e+00 : f32
    %765 = vector.broadcast %cst_603 : f32 to vector<38x128xf32>
    %766 = arith.cmpf ogt, %764, %765 : vector<38x128xf32>
    %c3_604 = arith.constant 3 : index
    %c2_605 = arith.constant 2 : index
    %c0_606 = arith.constant 0 : index
    %767 = vector.load %arg3[%c3_604, %c2_605, %c0_606] : memref<5x5x128xf32, #tpu.memory_space<vmem>>, vector<1x1x128xf32>
    %768 = vector.shape_cast %767 : vector<1x1x128xf32> to vector<1x128xf32>
    %769 = vector.broadcast %768 : vector<1x128xf32> to vector<38x128xf32>
    %770 = arith.mulf %764, %769 : vector<38x128xf32>
    %771 = arith.select %766, %764, %770 : vector<38x128xi1>, vector<38x128xf32>
    %c3_607 = arith.constant 3 : index
    %c0_608 = arith.constant 0 : index
    %c0_609 = arith.constant 0 : index
    %772 = vector.load %arg4[%c3_607, %c0_608, %c0_609] : memref<5x128x128xf32, #tpu.memory_space<vmem>>, vector<1x128x128xf32>
    %773 = vector.shape_cast %772 : vector<1x128x128xf32> to vector<128x128xf32>
    %cst_610 = arith.constant dense<0.000000e+00> : vector<38x128xf32>
    %774 = tpu.matmul %771, %773, %cst_610 {dimension_numbers = #tpu.dot_dimension_numbers<[1], [0], [0], [1], [0, 0, 1, 1], [], []>} : vector<38x128xf32>, vector<128x128xf32>, vector<38x128xf32> -> vector<38x128xf32>
    %c3_611 = arith.constant 3 : index
    %c3_612 = arith.constant 3 : index
    %c0_613 = arith.constant 0 : index
    %775 = vector.load %arg3[%c3_611, %c3_612, %c0_613] : memref<5x5x128xf32, #tpu.memory_space<vmem>>, vector<1x1x128xf32>
    %776 = vector.shape_cast %775 : vector<1x1x128xf32> to vector<1x128xf32>
    %777 = vector.broadcast %776 : vector<1x128xf32> to vector<38x128xf32>
    %778 = arith.addf %774, %777 : vector<38x128xf32>
    %cst_614 = arith.constant 0.000000e+00 : f32
    %779 = vector.broadcast %cst_614 : f32 to vector<38x128xf32>
    %780 = arith.cmpf ogt, %778, %779 : vector<38x128xf32>
    %c3_615 = arith.constant 3 : index
    %c4_616 = arith.constant 4 : index
    %c0_617 = arith.constant 0 : index
    %781 = vector.load %arg3[%c3_615, %c4_616, %c0_617] : memref<5x5x128xf32, #tpu.memory_space<vmem>>, vector<1x1x128xf32>
    %782 = vector.shape_cast %781 : vector<1x1x128xf32> to vector<1x128xf32>
    %783 = vector.broadcast %782 : vector<1x128xf32> to vector<38x128xf32>
    %784 = arith.mulf %778, %783 : vector<38x128xf32>
    %785 = arith.select %780, %778, %784 : vector<38x128xi1>, vector<38x128xf32>
    %c8_618 = arith.constant 8 : index
    %c0_619 = arith.constant 0 : index
    %c0_620 = arith.constant 0 : index
    %786 = vector.load %arg5[%c8_618, %c0_619, %c0_620] : memref<10x128x128xf32, #tpu.memory_space<vmem>>, vector<1x128x128xf32>
    %787 = vector.shape_cast %786 : vector<1x128x128xf32> to vector<128x128xf32>
    %cst_621 = arith.constant dense<0.000000e+00> : vector<38x128xf32>
    %788 = tpu.matmul %785, %787, %cst_621 {dimension_numbers = #tpu.dot_dimension_numbers<[1], [0], [0], [1], [0, 0, 1, 1], [], []>} : vector<38x128xf32>, vector<128x128xf32>, vector<38x128xf32> -> vector<38x128xf32>
    %c2_622 = arith.constant 2 : index
    %c0_623 = arith.constant 0 : index
    %c0_624 = arith.constant 0 : index
    %789 = vector.load %arg9[%c2_622, %c0_623, %c0_624] : memref<3x38x128xf32, #tpu.memory_space<vmem>>, vector<1x38x128xf32>
    %790 = vector.shape_cast %789 : vector<1x38x128xf32> to vector<38x128xf32>
    %c9_625 = arith.constant 9 : index
    %c0_626 = arith.constant 0 : index
    %c0_627 = arith.constant 0 : index
    %791 = vector.load %arg5[%c9_625, %c0_626, %c0_627] : memref<10x128x128xf32, #tpu.memory_space<vmem>>, vector<1x128x128xf32>
    %792 = vector.shape_cast %791 : vector<1x128x128xf32> to vector<128x128xf32>
    %cst_628 = arith.constant dense<0.000000e+00> : vector<38x128xf32>
    %793 = tpu.matmul %790, %792, %cst_628 {dimension_numbers = #tpu.dot_dimension_numbers<[1], [0], [0], [1], [0, 0, 1, 1], [], []>} : vector<38x128xf32>, vector<128x128xf32>, vector<38x128xf32> -> vector<38x128xf32>
    %794 = arith.addf %788, %793 : vector<38x128xf32>
    %c3_629 = arith.constant 3 : index
    %c0_630 = arith.constant 0 : index
    %795 = vector.load %arg6[%c3_629, %c0_630] : memref<4x128xf32, #tpu.memory_space<vmem>>, vector<1x128xf32>
    %796 = vector.broadcast %795 : vector<1x128xf32> to vector<38x128xf32>
    %797 = arith.addf %794, %796 : vector<38x128xf32>
    %798 = vector.extract_strided_slice %797 {offsets = [0, 0], sizes = [8, 128], strides = [1, 1]} : vector<38x128xf32> to vector<8x128xf32>
    %c1_631 = arith.constant 1 : index
    %c0_632 = arith.constant 0 : index
    %799 = vector.load %arg8[%c1_631, %c0_632] : memref<40x128xf32, #tpu.memory_space<vmem>>, vector<8x128xf32>
    tpu.vector_store %arg8[%c1_631, %c0_632], %798 {strides = array<i32>} : memref<40x128xf32, #tpu.memory_space<vmem>>, vector<8x128xf32>,
    %800 = vector.extract_strided_slice %797 {offsets = [10, 0], sizes = [8, 128], strides = [1, 1]} : vector<38x128xf32> to vector<8x128xf32>
    %c11_633 = arith.constant 11 : index
    %c0_634 = arith.constant 0 : index
    %801 = vector.load %arg8[%c11_633, %c0_634] : memref<40x128xf32, #tpu.memory_space<vmem>>, vector<8x128xf32>
    tpu.vector_store %arg8[%c11_633, %c0_634], %800 {strides = array<i32>} : memref<40x128xf32, #tpu.memory_space<vmem>>, vector<8x128xf32>,
    %802 = vector.extract_strided_slice %797 {offsets = [20, 0], sizes = [8, 128], strides = [1, 1]} : vector<38x128xf32> to vector<8x128xf32>
    %c21_635 = arith.constant 21 : index
    %c0_636 = arith.constant 0 : index
    %803 = vector.load %arg8[%c21_635, %c0_636] : memref<40x128xf32, #tpu.memory_space<vmem>>, vector<8x128xf32>
    tpu.vector_store %arg8[%c21_635, %c0_636], %802 {strides = array<i32>} : memref<40x128xf32, #tpu.memory_space<vmem>>, vector<8x128xf32>,
    %804 = vector.extract_strided_slice %797 {offsets = [30, 0], sizes = [8, 128], strides = [1, 1]} : vector<38x128xf32> to vector<8x128xf32>
    %c31_637 = arith.constant 31 : index
    %c0_638 = arith.constant 0 : index
    %805 = vector.load %arg8[%c31_637, %c0_638] : memref<40x128xf32, #tpu.memory_space<vmem>>, vector<8x128xf32>
    tpu.vector_store %arg8[%c31_637, %c0_638], %804 {strides = array<i32>} : memref<40x128xf32, #tpu.memory_space<vmem>>, vector<8x128xf32>,
    %cst_639 = arith.constant 0.000000e+00 : f32
    %806 = vector.broadcast %cst_639 : f32 to vector<38x128xf32>
    %c0_640 = arith.constant 0 : index
    %c0_641 = arith.constant 0 : index
    %807 = vector.load %arg8[%c0_640, %c0_641] : memref<40x128xf32, #tpu.memory_space<vmem>>, vector<38x128xf32>
    %cst_642 = arith.constant 0.000000e+00 : f32
    %808 = vector.broadcast %cst_642 : f32 to vector<38x16xf32>
    %809 = vector.extract_strided_slice %807 {offsets = [0, 0], sizes = [38, 112], strides = [1, 1]} : vector<38x128xf32> to vector<38x112xf32>
    %810 = tpu.concatenate %808, %809 in 1 : vector<38x16xf32>, vector<38x112xf32> -> vector<38x128xf32>
    %c4_643 = arith.constant 4 : index
    %c0_644 = arith.constant 0 : index
    %c0_645 = arith.constant 0 : index
    %811 = vector.load %arg2[%c4_643, %c0_644, %c0_645] : memref<5x9x128xf32, #tpu.memory_space<vmem>>, vector<1x1x128xf32>
    %812 = vector.shape_cast %811 : vector<1x1x128xf32> to vector<1x128xf32>
    %813 = vector.broadcast %812 : vector<1x128xf32> to vector<38x128xf32>
    %814 = arith.mulf %810, %813 : vector<38x128xf32>
    %815 = arith.addf %806, %814 : vector<38x128xf32>
    %c4_646 = arith.constant 4 : index
    %c1_647 = arith.constant 1 : index
    %c0_648 = arith.constant 0 : index
    %816 = vector.load %arg2[%c4_646, %c1_647, %c0_648] : memref<5x9x128xf32, #tpu.memory_space<vmem>>, vector<1x1x128xf32>
    %817 = vector.shape_cast %816 : vector<1x1x128xf32> to vector<1x128xf32>
    %818 = vector.broadcast %817 : vector<1x128xf32> to vector<38x128xf32>
    %819 = arith.mulf %807, %818 : vector<38x128xf32>
    %820 = arith.addf %815, %819 : vector<38x128xf32>
    %cst_649 = arith.constant 0.000000e+00 : f32
    %821 = vector.broadcast %cst_649 : f32 to vector<38x16xf32>
    %822 = vector.extract_strided_slice %807 {offsets = [0, 16], sizes = [38, 112], strides = [1, 1]} : vector<38x128xf32> to vector<38x112xf32>
    %823 = tpu.concatenate %822, %821 in 1 : vector<38x112xf32>, vector<38x16xf32> -> vector<38x128xf32>
    %c4_650 = arith.constant 4 : index
    %c2_651 = arith.constant 2 : index
    %c0_652 = arith.constant 0 : index
    %824 = vector.load %arg2[%c4_650, %c2_651, %c0_652] : memref<5x9x128xf32, #tpu.memory_space<vmem>>, vector<1x1x128xf32>
    %825 = vector.shape_cast %824 : vector<1x1x128xf32> to vector<1x128xf32>
    %826 = vector.broadcast %825 : vector<1x128xf32> to vector<38x128xf32>
    %827 = arith.mulf %823, %826 : vector<38x128xf32>
    %828 = arith.addf %820, %827 : vector<38x128xf32>
    %c1_653 = arith.constant 1 : index
    %c0_654 = arith.constant 0 : index
    %829 = vector.load %arg8[%c1_653, %c0_654] : memref<40x128xf32, #tpu.memory_space<vmem>>, vector<38x128xf32>
    %cst_655 = arith.constant 0.000000e+00 : f32
    %830 = vector.broadcast %cst_655 : f32 to vector<38x16xf32>
    %831 = vector.extract_strided_slice %829 {offsets = [0, 0], sizes = [38, 112], strides = [1, 1]} : vector<38x128xf32> to vector<38x112xf32>
    %832 = tpu.concatenate %830, %831 in 1 : vector<38x16xf32>, vector<38x112xf32> -> vector<38x128xf32>
    %c4_656 = arith.constant 4 : index
    %c3_657 = arith.constant 3 : index
    %c0_658 = arith.constant 0 : index
    %833 = vector.load %arg2[%c4_656, %c3_657, %c0_658] : memref<5x9x128xf32, #tpu.memory_space<vmem>>, vector<1x1x128xf32>
    %834 = vector.shape_cast %833 : vector<1x1x128xf32> to vector<1x128xf32>
    %835 = vector.broadcast %834 : vector<1x128xf32> to vector<38x128xf32>
    %836 = arith.mulf %832, %835 : vector<38x128xf32>
    %837 = arith.addf %828, %836 : vector<38x128xf32>
    %c4_659 = arith.constant 4 : index
    %c4_660 = arith.constant 4 : index
    %c0_661 = arith.constant 0 : index
    %838 = vector.load %arg2[%c4_659, %c4_660, %c0_661] : memref<5x9x128xf32, #tpu.memory_space<vmem>>, vector<1x1x128xf32>
    %839 = vector.shape_cast %838 : vector<1x1x128xf32> to vector<1x128xf32>
    %840 = vector.broadcast %839 : vector<1x128xf32> to vector<38x128xf32>
    %841 = arith.mulf %829, %840 : vector<38x128xf32>
    %842 = arith.addf %837, %841 : vector<38x128xf32>
    %cst_662 = arith.constant 0.000000e+00 : f32
    %843 = vector.broadcast %cst_662 : f32 to vector<38x16xf32>
    %844 = vector.extract_strided_slice %829 {offsets = [0, 16], sizes = [38, 112], strides = [1, 1]} : vector<38x128xf32> to vector<38x112xf32>
    %845 = tpu.concatenate %844, %843 in 1 : vector<38x112xf32>, vector<38x16xf32> -> vector<38x128xf32>
    %c4_663 = arith.constant 4 : index
    %c5_664 = arith.constant 5 : index
    %c0_665 = arith.constant 0 : index
    %846 = vector.load %arg2[%c4_663, %c5_664, %c0_665] : memref<5x9x128xf32, #tpu.memory_space<vmem>>, vector<1x1x128xf32>
    %847 = vector.shape_cast %846 : vector<1x1x128xf32> to vector<1x128xf32>
    %848 = vector.broadcast %847 : vector<1x128xf32> to vector<38x128xf32>
    %849 = arith.mulf %845, %848 : vector<38x128xf32>
    %850 = arith.addf %842, %849 : vector<38x128xf32>
    %c2_666 = arith.constant 2 : index
    %c0_667 = arith.constant 0 : index
    %851 = vector.load %arg8[%c2_666, %c0_667] : memref<40x128xf32, #tpu.memory_space<vmem>>, vector<38x128xf32>
    %cst_668 = arith.constant 0.000000e+00 : f32
    %852 = vector.broadcast %cst_668 : f32 to vector<38x16xf32>
    %853 = vector.extract_strided_slice %851 {offsets = [0, 0], sizes = [38, 112], strides = [1, 1]} : vector<38x128xf32> to vector<38x112xf32>
    %854 = tpu.concatenate %852, %853 in 1 : vector<38x16xf32>, vector<38x112xf32> -> vector<38x128xf32>
    %c4_669 = arith.constant 4 : index
    %c6_670 = arith.constant 6 : index
    %c0_671 = arith.constant 0 : index
    %855 = vector.load %arg2[%c4_669, %c6_670, %c0_671] : memref<5x9x128xf32, #tpu.memory_space<vmem>>, vector<1x1x128xf32>
    %856 = vector.shape_cast %855 : vector<1x1x128xf32> to vector<1x128xf32>
    %857 = vector.broadcast %856 : vector<1x128xf32> to vector<38x128xf32>
    %858 = arith.mulf %854, %857 : vector<38x128xf32>
    %859 = arith.addf %850, %858 : vector<38x128xf32>
    %c4_672 = arith.constant 4 : index
    %c7_673 = arith.constant 7 : index
    %c0_674 = arith.constant 0 : index
    %860 = vector.load %arg2[%c4_672, %c7_673, %c0_674] : memref<5x9x128xf32, #tpu.memory_space<vmem>>, vector<1x1x128xf32>
    %861 = vector.shape_cast %860 : vector<1x1x128xf32> to vector<1x128xf32>
    %862 = vector.broadcast %861 : vector<1x128xf32> to vector<38x128xf32>
    %863 = arith.mulf %851, %862 : vector<38x128xf32>
    %864 = arith.addf %859, %863 : vector<38x128xf32>
    %cst_675 = arith.constant 0.000000e+00 : f32
    %865 = vector.broadcast %cst_675 : f32 to vector<38x16xf32>
    %866 = vector.extract_strided_slice %851 {offsets = [0, 16], sizes = [38, 112], strides = [1, 1]} : vector<38x128xf32> to vector<38x112xf32>
    %867 = tpu.concatenate %866, %865 in 1 : vector<38x112xf32>, vector<38x16xf32> -> vector<38x128xf32>
    %c4_676 = arith.constant 4 : index
    %c8_677 = arith.constant 8 : index
    %c0_678 = arith.constant 0 : index
    %868 = vector.load %arg2[%c4_676, %c8_677, %c0_678] : memref<5x9x128xf32, #tpu.memory_space<vmem>>, vector<1x1x128xf32>
    %869 = vector.shape_cast %868 : vector<1x1x128xf32> to vector<1x128xf32>
    %870 = vector.broadcast %869 : vector<1x128xf32> to vector<38x128xf32>
    %871 = arith.mulf %867, %870 : vector<38x128xf32>
    %872 = arith.addf %864, %871 : vector<38x128xf32>
    %c4_679 = arith.constant 4 : index
    %c0_680 = arith.constant 0 : index
    %c0_681 = arith.constant 0 : index
    %873 = vector.load %arg3[%c4_679, %c0_680, %c0_681] : memref<5x5x128xf32, #tpu.memory_space<vmem>>, vector<1x1x128xf32>
    %874 = vector.shape_cast %873 : vector<1x1x128xf32> to vector<1x128xf32>
    %875 = vector.broadcast %874 : vector<1x128xf32> to vector<38x128xf32>
    %876 = arith.mulf %872, %875 : vector<38x128xf32>
    %c4_682 = arith.constant 4 : index
    %c1_683 = arith.constant 1 : index
    %c0_684 = arith.constant 0 : index
    %877 = vector.load %arg3[%c4_682, %c1_683, %c0_684] : memref<5x5x128xf32, #tpu.memory_space<vmem>>, vector<1x1x128xf32>
    %878 = vector.shape_cast %877 : vector<1x1x128xf32> to vector<1x128xf32>
    %879 = vector.broadcast %878 : vector<1x128xf32> to vector<38x128xf32>
    %880 = arith.addf %876, %879 : vector<38x128xf32>
    %cst_685 = arith.constant 0.000000e+00 : f32
    %881 = vector.broadcast %cst_685 : f32 to vector<38x128xf32>
    %882 = arith.cmpf ogt, %880, %881 : vector<38x128xf32>
    %c4_686 = arith.constant 4 : index
    %c2_687 = arith.constant 2 : index
    %c0_688 = arith.constant 0 : index
    %883 = vector.load %arg3[%c4_686, %c2_687, %c0_688] : memref<5x5x128xf32, #tpu.memory_space<vmem>>, vector<1x1x128xf32>
    %884 = vector.shape_cast %883 : vector<1x1x128xf32> to vector<1x128xf32>
    %885 = vector.broadcast %884 : vector<1x128xf32> to vector<38x128xf32>
    %886 = arith.mulf %880, %885 : vector<38x128xf32>
    %887 = arith.select %882, %880, %886 : vector<38x128xi1>, vector<38x128xf32>
    %c4_689 = arith.constant 4 : index
    %c0_690 = arith.constant 0 : index
    %c0_691 = arith.constant 0 : index
    %888 = vector.load %arg4[%c4_689, %c0_690, %c0_691] : memref<5x128x128xf32, #tpu.memory_space<vmem>>, vector<1x128x128xf32>
    %889 = vector.shape_cast %888 : vector<1x128x128xf32> to vector<128x128xf32>
    %cst_692 = arith.constant dense<0.000000e+00> : vector<38x128xf32>
    %890 = tpu.matmul %887, %889, %cst_692 {dimension_numbers = #tpu.dot_dimension_numbers<[1], [0], [0], [1], [0, 0, 1, 1], [], []>} : vector<38x128xf32>, vector<128x128xf32>, vector<38x128xf32> -> vector<38x128xf32>
    %c4_693 = arith.constant 4 : index
    %c3_694 = arith.constant 3 : index
    %c0_695 = arith.constant 0 : index
    %891 = vector.load %arg3[%c4_693, %c3_694, %c0_695] : memref<5x5x128xf32, #tpu.memory_space<vmem>>, vector<1x1x128xf32>
    %892 = vector.shape_cast %891 : vector<1x1x128xf32> to vector<1x128xf32>
    %893 = vector.broadcast %892 : vector<1x128xf32> to vector<38x128xf32>
    %894 = arith.addf %890, %893 : vector<38x128xf32>
    %cst_696 = arith.constant 0.000000e+00 : f32
    %895 = vector.broadcast %cst_696 : f32 to vector<38x128xf32>
    %896 = arith.cmpf ogt, %894, %895 : vector<38x128xf32>
    %c4_697 = arith.constant 4 : index
    %c4_698 = arith.constant 4 : index
    %c0_699 = arith.constant 0 : index
    %897 = vector.load %arg3[%c4_697, %c4_698, %c0_699] : memref<5x5x128xf32, #tpu.memory_space<vmem>>, vector<1x1x128xf32>
    %898 = vector.shape_cast %897 : vector<1x1x128xf32> to vector<1x128xf32>
    %899 = vector.broadcast %898 : vector<1x128xf32> to vector<38x128xf32>
    %900 = arith.mulf %894, %899 : vector<38x128xf32>
    %901 = arith.select %896, %894, %900 : vector<38x128xi1>, vector<38x128xf32>
    %902 = vector.extract_strided_slice %901 {offsets = [0, 0], sizes = [8, 128], strides = [1, 1]} : vector<38x128xf32> to vector<8x128xf32>
    %c0_700 = arith.constant 0 : index
    %c0_701 = arith.constant 0 : index
    %c0_702 = arith.constant 0 : index
    %903 = vector.load %arg7[%c0_700, %c0_701, %c0_702] : memref<1x32x128xf32, #tpu.memory_space<vmem>>, vector<1x8x128xf32>
    %904 = vector.shape_cast %903 : vector<1x8x128xf32> to vector<8x128xf32>
    %905 = vector.shape_cast %902 : vector<8x128xf32> to vector<1x8x128xf32>
    tpu.vector_store %arg7[%c0_700, %c0_701, %c0_702], %905 {strides = array<i32>} : memref<1x32x128xf32, #tpu.memory_space<vmem>>, vector<1x8x128xf32>,
    %906 = vector.extract_strided_slice %901 {offsets = [10, 0], sizes = [8, 128], strides = [1, 1]} : vector<38x128xf32> to vector<8x128xf32>
    %c0_703 = arith.constant 0 : index
    %c8_704 = arith.constant 8 : index
    %c0_705 = arith.constant 0 : index
    %907 = vector.load %arg7[%c0_703, %c8_704, %c0_705] : memref<1x32x128xf32, #tpu.memory_space<vmem>>, vector<1x8x128xf32>
    %908 = vector.shape_cast %907 : vector<1x8x128xf32> to vector<8x128xf32>
    %909 = vector.shape_cast %906 : vector<8x128xf32> to vector<1x8x128xf32>
    tpu.vector_store %arg7[%c0_703, %c8_704, %c0_705], %909 {strides = array<i32>} : memref<1x32x128xf32, #tpu.memory_space<vmem>>, vector<1x8x128xf32>,
    %910 = vector.extract_strided_slice %901 {offsets = [20, 0], sizes = [8, 128], strides = [1, 1]} : vector<38x128xf32> to vector<8x128xf32>
    %c0_706 = arith.constant 0 : index
    %c16 = arith.constant 16 : index
    %c0_707 = arith.constant 0 : index
    %911 = vector.load %arg7[%c0_706, %c16, %c0_707] : memref<1x32x128xf32, #tpu.memory_space<vmem>>, vector<1x8x128xf32>
    %912 = vector.shape_cast %911 : vector<1x8x128xf32> to vector<8x128xf32>
    %913 = vector.shape_cast %910 : vector<8x128xf32> to vector<1x8x128xf32>
    tpu.vector_store %arg7[%c0_706, %c16, %c0_707], %913 {strides = array<i32>} : memref<1x32x128xf32, #tpu.memory_space<vmem>>, vector<1x8x128xf32>,
    %914 = vector.extract_strided_slice %901 {offsets = [30, 0], sizes = [8, 128], strides = [1, 1]} : vector<38x128xf32> to vector<8x128xf32>
    %c0_708 = arith.constant 0 : index
    %c24 = arith.constant 24 : index
    %c0_709 = arith.constant 0 : index
    %915 = vector.load %arg7[%c0_708, %c24, %c0_709] : memref<1x32x128xf32, #tpu.memory_space<vmem>>, vector<1x8x128xf32>
    %916 = vector.shape_cast %915 : vector<1x8x128xf32> to vector<8x128xf32>
    %917 = vector.shape_cast %914 : vector<8x128xf32> to vector<1x8x128xf32>
    tpu.vector_store %arg7[%c0_708, %c24, %c0_709], %917 {strides = array<i32>} : memref<1x32x128xf32, #tpu.memory_space<vmem>>, vector<1x8x128xf32>,
    return
  }
  func.func @transform_0(%arg0: i32) -> (i32, i32, i32, i32) {
    %c0_i32 = arith.constant 0 : i32
    %c0_i32_0 = arith.constant 0 : i32
    %c0_i32_1 = arith.constant 0 : i32
    %c0_i32_2 = arith.constant 0 : i32
    return %arg0, %c0_i32, %c0_i32_0, %c0_i32_1 : i32, i32, i32, i32
  }
  func.func @transform_1(%arg0: i32) -> (i32, i32, i32) {
    %c0_i32 = arith.constant 0 : i32
    %c0_i32_0 = arith.constant 0 : i32
    %c0_i32_1 = arith.constant 0 : i32
    %c0_i32_2 = arith.constant 0 : i32
    return %c0_i32, %c0_i32_0, %c0_i32_1 : i32, i32, i32
  }
  func.func @transform_2(%arg0: i32) -> (i32, i32, i32) {
    %c0_i32 = arith.constant 0 : i32
    %c0_i32_0 = arith.constant 0 : i32
    %c0_i32_1 = arith.constant 0 : i32
    %c0_i32_2 = arith.constant 0 : i32
    return %c0_i32, %c0_i32_0, %c0_i32_1 : i32, i32, i32
  }
  func.func @transform_3(%arg0: i32) -> (i32, i32, i32) {
    %c0_i32 = arith.constant 0 : i32
    %c0_i32_0 = arith.constant 0 : i32
    %c0_i32_1 = arith.constant 0 : i32
    %c0_i32_2 = arith.constant 0 : i32
    return %c0_i32, %c0_i32_0, %c0_i32_1 : i32, i32, i32
  }
  func.func @transform_4(%arg0: i32) -> (i32, i32, i32) {
    %c0_i32 = arith.constant 0 : i32
    %c0_i32_0 = arith.constant 0 : i32
    %c0_i32_1 = arith.constant 0 : i32
    %c0_i32_2 = arith.constant 0 : i32
    return %c0_i32, %c0_i32_0, %c0_i32_1 : i32, i32, i32
  }
  func.func @transform_5(%arg0: i32) -> (i32, i32) {
    %c0_i32 = arith.constant 0 : i32
    %c0_i32_0 = arith.constant 0 : i32
    %c0_i32_1 = arith.constant 0 : i32
    return %c0_i32, %c0_i32_0 : i32, i32
  }
  func.func @transform_6(%arg0: i32) -> (i32, i32, i32) {
    %c0_i32 = arith.constant 0 : i32
    %c0_i32_0 = arith.constant 0 : i32
    %c0_i32_1 = arith.constant 0 : i32
    return %arg0, %c0_i32, %c0_i32_0 : i32, i32, i32
  }
}

</mosaic_0001>

<llo_original>
// kernel: tpu_custom_call.1
$region0: #{tpu_custom_call.1}
  #allocation0 [shape = 'u32[]', space=smem, size = 0x4, offset = 0x4, fixed_abs, tag = 'smem constant byte address 0x4 - core index']
  #allocation1 [shape = 'u32[144,128]{1,0:T(1,128)}', space=vmem, size = 0x12000, scoped, tag = 'internal scratch']
  #allocation2 [shape = 'f32[40,128]{1,0:T(8,128)}', space=vmem, size = 0x5000, scoped, tag = 'scratch operand']
  #allocation3 [shape = 'f32[3,38,128]{2,1,0:T(8,128)}', space=vmem, size = 0xf000, scoped, tag = 'scratch operand']
  %s0 = inlined_call_operand.hbm [shape: f32[2,4,40,128], index: 0, kind: input, shape index: {}]
  %s1 = inlined_call_operand.vmem [shape: f32[5,9,128], index: 1, kind: input, shape index: {}]
  %s2 = inlined_call_operand.vmem [shape: f32[5,5,128], index: 2, kind: input, shape index: {}]
  %s3 = inlined_call_operand.hbm [shape: f32[5,128,128], index: 3, kind: input, shape index: {}]
  %s4 = inlined_call_operand.hbm [shape: f32[10,128,128], index: 4, kind: input, shape index: {}]
  %s5 = inlined_call_operand.vmem [shape: f32[4,128], index: 5, kind: input, shape index: {}]
  %s6 = inlined_call_operand.hbm [shape: f32[2,32,128], index: 6, kind: output, shape index: {}]
  %s7 = sld [smem:[#allocation0]]
  $region69: #{tpu_custom_call.1} parent=0
    _
  %s9 = ssub.s32 1, %s7
  %s10 = scalar_select 0, %s9, %s7
  $region1: #{tpu_custom_call.1} parent=0
    #allocation4 [shape = 'u8[163840]{0}', space=vmem, size = 0x28000, scoped, tag = 'input window, operand 0']
    #allocation5 [shape = 's32[2]{0}', space=sflag, size = 0x8, scoped, tag = 'scoped memory for tpu_custom_call.1']
    #allocation6 [shape = 's32[2]{0}', space=sflag, size = 0x8, scoped, tag = 'scoped memory for tpu_custom_call.1']
    #allocation7 [shape = 'u8[327680]{0}', space=vmem, size = 0x50000, scoped, tag = 'input window, operand 3, single buffered']
    #allocation8 [shape = 's32[1]{0}', space=sflag, size = 0x4, scoped, tag = 'scoped memory for tpu_custom_call.1']
    #allocation9 [shape = 'u8[655360]{0}', space=vmem, size = 0xa0000, scoped, tag = 'input window, operand 4, single buffered']
    #allocation10 [shape = 'u8[32768]{0}', space=vmem, size = 0x8000, scoped, tag = 'output window, operand 0']
    %11 = vsyncpa [#allocation5], 0
    %s12 = scalar_lea.sflag [#allocation5], 1
    %13 = vsyncpa %s12, 0
    %14 = vsyncpa [#allocation8], 0
    %15 = vsyncpa [#allocation6], 0
    %s16 = scalar_lea.sflag [#allocation6], 1
    %17 = vsyncpa %s16, 0
    loop: start=0, step=1, limit=4
    $region2: #{tpu_custom_call.1} parent=1 // loop_pre_header
      _
    $region3: #{tpu_custom_call.1} parent=1 // loop_header
      %s19 = sphi 0, %s23
      %p20 = scmp.ge.s32.totalorder %s19, 4
      %s29 = sphi 0, %s31
      %s32 = sphi 0, %s29
      %s33 = sphi 0, %s32
      %s49 = sphi 0, %s33
      %s53 = sphi 0, %s53
      %s55 = sphi 0, %s53
      %s56 = sphi 0, %s55
      %s70 = sphi 0, %s56
      %s74 = sphi 0, %s74
      %s76 = sphi 0, %s74
      %s77 = sphi 0, %s76
      %s91 = sphi 0, %s77
      %s95 = sphi 0, %s95
      %s97 = sphi 0, %s95
      %s98 = sphi 0, %s97
      %s112 = sphi 0, %s98
      %s116 = sphi 0, %s116
      %s118 = sphi 0, %s116
      %s119 = sphi 0, %s118
      %s133 = sphi 0, %s119
      %s137 = sphi 0, %s137
      %s139 = sphi 0, %s137
      %s140 = sphi 0, %s139
      %s154 = sphi 0, %s140
      %s160 = sphi 0, %s162
      %s163 = sphi 0, %s160
      %s164 = sphi 0, %s163
      %s180 = sphi 0, %s164
    $region4: #{tpu_custom_call.1} parent=1 // loop_header_branch
      %22 = sbr.rel (%p20) target = $region8
    $region5: #{tpu_custom_call.1} parent=1 // loop_body
      %s24 = ssub.s32 %s19, 1
      %s25 = ssub.s32 %s19, 2
      %s26 = sadd.s32 %s19, 1
      %s27 = ssub.s32 %s19, %s26
      %p28 = scmp.eq.s32.totalorder %s27, 0
      %s30 = sadd.s32 %s29, 1
      %s31 = scalar_select %p28, %s29, %s30
      %p34 = pneg %p28
      %p35 = scmp.eq.s32.totalorder %s19, 1
      %p36 = por %p34, %p35
      %p37 = scmp.ne.s32.totalorder %s29, %s32
      %p38 = scmp.eq.s32.totalorder %s19, 0
      %p39 = por %p37, %p38
      %p40 = scmp.ne.s32.totalorder %s29, %s32
      %p41 = scmp.eq.s32.totalorder %s24, 1
      %p42 = por %p40, %p41
      %p43 = scmp.ne.s32.totalorder %s32, %s33
      %p44 = scmp.eq.s32.totalorder %s24, 0
      %p45 = por %p43, %p44
      %p46 = scmp.ne.s32.totalorder %s32, %s33
      %p47 = scmp.eq.s32.totalorder %s25, 1
      %p48 = por %p46, %p47
      %p50 = scmp.ne.s32.totalorder %s33, %s49
      %p51 = scmp.eq.s32.totalorder %s25, 0
      %p52 = por %p50, %p51
      %s54 = sadd.s32 %s53, 1
      %p57 = scmp.eq.s32.totalorder %s19, 1
      %p58 = scmp.ne.s32.totalorder %s53, %s55
      %p59 = scmp.eq.s32.totalorder %s19, 0
      %p60 = por %p58, %p59
      %p61 = scmp.ne.s32.totalorder %s53, %s55
      %p62 = scmp.eq.s32.totalorder %s24, 1
      %p63 = por %p61, %p62
      %p64 = scmp.ne.s32.totalorder %s55, %s56
      %p65 = scmp.eq.s32.totalorder %s24, 0
      %p66 = por %p64, %p65
      %p67 = scmp.ne.s32.totalorder %s55, %s56
      %p68 = scmp.eq.s32.totalorder %s25, 1
      %p69 = por %p67, %p68
      %p71 = scmp.ne.s32.totalorder %s56, %s70
      %p72 = scmp.eq.s32.totalorder %s25, 0
      %p73 = por %p71, %p72
      %s75 = sadd.s32 %s74, 1
      %p78 = scmp.eq.s32.totalorder %s19, 1
      %p79 = scmp.ne.s32.totalorder %s74, %s76
      %p80 = scmp.eq.s32.totalorder %s19, 0
      %p81 = por %p79, %p80
      %p82 = scmp.ne.s32.totalorder %s74, %s76
      %p83 = scmp.eq.s32.totalorder %s24, 1
      %p84 = por %p82, %p83
      %p85 = scmp.ne.s32.totalorder %s76, %s77
      %p86 = scmp.eq.s32.totalorder %s24, 0
      %p87 = por %p85, %p86
      %p88 = scmp.ne.s32.totalorder %s76, %s77
      %p89 = scmp.eq.s32.totalorder %s25, 1
      %p90 = por %p88, %p89
      %p92 = scmp.ne.s32.totalorder %s77, %s91
      %p93 = scmp.eq.s32.totalorder %s25, 0
      %p94 = por %p92, %p93
      %s96 = sadd.s32 %s95, 1
      %p99 = scmp.eq.s32.totalorder %s19, 1
      %p100 = scmp.ne.s32.totalorder %s95, %s97
      %p101 = scmp.eq.s32.totalorder %s19, 0
      %p102 = por %p100, %p101
      %p103 = scmp.ne.s32.totalorder %s95, %s97
      %p104 = scmp.eq.s32.totalorder %s24, 1
      %p105 = por %p103, %p104
      %p106 = scmp.ne.s32.totalorder %s97, %s98
      %p107 = scmp.eq.s32.totalorder %s24, 0
      %p108 = por %p106, %p107
      %p109 = scmp.ne.s32.totalorder %s97, %s98
      %p110 = scmp.eq.s32.totalorder %s25, 1
      %p111 = por %p109, %p110
      %p113 = scmp.ne.s32.totalorder %s98, %s112
      %p114 = scmp.eq.s32.totalorder %s25, 0
      %p115 = por %p113, %p114
      %s117 = sadd.s32 %s116, 1
      %p120 = scmp.eq.s32.totalorder %s19, 1
      %p121 = scmp.ne.s32.totalorder %s116, %s118
      %p122 = scmp.eq.s32.totalorder %s19, 0
      %p123 = por %p121, %p122
      %p124 = scmp.ne.s32.totalorder %s116, %s118
      %p125 = scmp.eq.s32.totalorder %s24, 1
      %p126 = por %p124, %p125
      %p127 = scmp.ne.s32.totalorder %s118, %s119
      %p128 = scmp.eq.s32.totalorder %s24, 0
      %p129 = por %p127, %p128
      %p130 = scmp.ne.s32.totalorder %s118, %s119
      %p131 = scmp.eq.s32.totalorder %s25, 1
      %p132 = por %p130, %p131
      %p134 = scmp.ne.s32.totalorder %s119, %s133
      %p135 = scmp.eq.s32.totalorder %s25, 0
      %p136 = por %p134, %p135
      %s138 = sadd.s32 %s137, 1
      %p141 = scmp.eq.s32.totalorder %s19, 1
      %p142 = scmp.ne.s32.totalorder %s137, %s139
      %p143 = scmp.eq.s32.totalorder %s19, 0
      %p144 = por %p142, %p143
      %p145 = scmp.ne.s32.totalorder %s137, %s139
      %p146 = scmp.eq.s32.totalorder %s24, 1
      %p147 = por %p145, %p146
      %p148 = scmp.ne.s32.totalorder %s139, %s140
      %p149 = scmp.eq.s32.totalorder %s24, 0
      %p150 = por %p148, %p149
      %p151 = scmp.ne.s32.totalorder %s139, %s140
      %p152 = scmp.eq.s32.totalorder %s25, 1
      %p153 = por %p151, %p152
      %p155 = scmp.ne.s32.totalorder %s140, %s154
      %p156 = scmp.eq.s32.totalorder %s25, 0
      %p157 = por %p155, %p156
      %s158 = ssub.s32 %s19, %s26
      %p159 = scmp.eq.s32.totalorder %s158, 0
      %s161 = sadd.s32 %s160, 1
      %s162 = scalar_select %p159, %s160, %s161
      %p165 = pneg %p159
      %p166 = scmp.eq.s32.totalorder %s19, 1
      %p167 = por %p165, %p166
      %p168 = scmp.ne.s32.totalorder %s160, %s163
      %p169 = scmp.eq.s32.totalorder %s19, 0
      %p170 = por %p168, %p169
      %p171 = scmp.ne.s32.totalorder %s160, %s163
      %p172 = scmp.eq.s32.totalorder %s24, 1
      %p173 = por %p171, %p172
      %p174 = scmp.ne.s32.totalorder %s163, %s164
      %p175 = scmp.eq.s32.totalorder %s24, 0
      %p176 = por %p174, %p175
      %p177 = scmp.ne.s32.totalorder %s163, %s164
      %p178 = scmp.eq.s32.totalorder %s25, 1
      %p179 = por %p177, %p178
      %p181 = scmp.ne.s32.totalorder %s164, %s180
      %p182 = scmp.eq.s32.totalorder %s25, 0
      %p183 = por %p181, %p182
      %p184 = scmp.le.s32.totalorder 1, %s19
      %p185 = scmp.lt.s32.totalorder %s19, 3
      %p186 = pnand %p184, %p185
      %p187 = pneg %p186
      // Predicated region
      $region9: #{tpu_custom_call.1} parent=5 // pred_check
        _
      $region10: #{tpu_custom_call.1} parent=5 // pred_check_branch
        %189 = sbr.rel (%p186) target = $region12
      $region11: #{tpu_custom_call.1} parent=5 // pred_region
        %s190 = ssub.s32 %s19, 1
        // Predicated region
        $region13: #{tpu_custom_call.1} parent=11 // pred_check
          %p191 = pneg %p66
        $region14: #{tpu_custom_call.1} parent=11 // pred_check_branch
          %193 = sbr.rel (%p191) target = $region16
        $region15: #{tpu_custom_call.1} parent=11 // pred_region
          _
        $region16: #{tpu_custom_call.1} parent=11 // pred_fallthru
          _
        // Predicated region
        $region17: #{tpu_custom_call.1} parent=11 // pred_check
          %p194 = pneg %p87
        $region18: #{tpu_custom_call.1} parent=11 // pred_check_branch
          %196 = sbr.rel (%p194) target = $region20
        $region19: #{tpu_custom_call.1} parent=11 // pred_region
          _
        $region20: #{tpu_custom_call.1} parent=11 // pred_fallthru
          _
        // Predicated region
        $region21: #{tpu_custom_call.1} parent=11 // pred_check
          %p197 = pneg %p108
        $region22: #{tpu_custom_call.1} parent=11 // pred_check_branch
          %199 = sbr.rel (%p197) target = $region24
        $region23: #{tpu_custom_call.1} parent=11 // pred_region
          %s201 = ssub.s32 10240, 10240
          %202 = vsyncadd [#allocation8], %s201
          %s203 = sshll.u32 [#allocation7], 4
          %s204 = int_to_ptr.vmem [resolvable:$true] %s203
          %209 = dma.hbm_to_vmem [thread:$0]  %s3, 10240, %s204, [#allocation8], 128, 128, 8
        $region24: #{tpu_custom_call.1} parent=11 // pred_fallthru
          _
        // Predicated region
        $region25: #{tpu_custom_call.1} parent=11 // pred_check
          %p210 = pneg %p129
        $region26: #{tpu_custom_call.1} parent=11 // pred_check_branch
          %212 = sbr.rel (%p210) target = $region28
        $region27: #{tpu_custom_call.1} parent=11 // pred_region
          %s214 = ssub.s32 20480, 20480
          %215 = vsyncadd [#allocation8], %s214
          %s216 = sshll.u32 [#allocation9], 4
          %s217 = int_to_ptr.vmem [resolvable:$true] %s216
          %222 = dma.hbm_to_vmem [thread:$0]  %s4, 20480, %s217, [#allocation8], 128, 128, 8
        $region28: #{tpu_custom_call.1} parent=11 // pred_fallthru
          _
        // Predicated region
        $region29: #{tpu_custom_call.1} parent=11 // pred_check
          %p223 = pneg %p150
        $region30: #{tpu_custom_call.1} parent=11 // pred_check_branch
          %225 = sbr.rel (%p223) target = $region32
        $region31: #{tpu_custom_call.1} parent=11 // pred_region
          _
        $region32: #{tpu_custom_call.1} parent=11 // pred_fallthru
          _
      $region12: #{tpu_custom_call.1} parent=5 // pred_fallthru
        _
      %p226 = scmp.lt.s32.totalorder %s19, 2
      // Predicated region
      $region33: #{tpu_custom_call.1} parent=5 // pred_check
        %p227 = pneg %p226
      $region34: #{tpu_custom_call.1} parent=5 // pred_check_branch
        %229 = sbr.rel (%p227) target = $region36
      $region35: #{tpu_custom_call.1} parent=5 // pred_region
        // Predicated region
        $region37: #{tpu_custom_call.1} parent=35 // pred_check
          %p230 = pneg %p39
        $region38: #{tpu_custom_call.1} parent=35 // pred_check_branch
          %232 = sbr.rel (%p230) target = $region40
        $region39: #{tpu_custom_call.1} parent=35 // pred_region
          %s233 = sand.u32 %s29, 1
          %s234 = scalar_lea.sflag [#allocation5], %s233
          %s235 = sand.u32 %s29, 1
          %s236 = smul.addr %s235, 160
          %s237 = scalar_lea.vmem [#allocation4], %s236
          %s239 = ssub.s32 2560, 2560
          %240 = vsyncadd %s234, %s239
          %s241 = smul.addr %s19, 20
          %s242 = smul.addr %s241, 128
          %s243 = scalar_lea.hbm %s0, %s242
          %s244 = sshll.u32 %s237, 4
          %s245 = int_to_ptr.vmem [resolvable:$true] %s244
          %250 = dma.hbm_to_vmem [thread:$0]  %s243, 2560, %s245, %s234, 128, 128, 8
        $region40: #{tpu_custom_call.1} parent=35 // pred_fallthru
          _
      $region36: #{tpu_custom_call.1} parent=5 // pred_fallthru
        _
      %p251 = scmp.le.s32.totalorder 1, %s19
      %p252 = scmp.lt.s32.totalorder %s19, 3
      %p253 = pnand %p251, %p252
      %p254 = pneg %p253
      // Predicated region
      $region41: #{tpu_custom_call.1} parent=5 // pred_check
        _
      $region42: #{tpu_custom_call.1} parent=5 // pred_check_branch
        %256 = sbr.rel (%p253) target = $region44
      $region43: #{tpu_custom_call.1} parent=5 // pred_region
        %s257 = ssub.s32 %s19, 1
        %s258 = sand.u32 %s32, 1
        %s259 = scalar_lea.sflag [#allocation5], %s258
        %s260 = sand.u32 %s32, 1
        %s261 = smul.addr %s260, 160
        %s262 = scalar_lea.vmem [#allocation4], %s261
        // Predicated region
        $region45: #{tpu_custom_call.1} parent=43 // pred_check
          %p263 = pneg %p45
        $region46: #{tpu_custom_call.1} parent=43 // pred_check_branch
          %265 = sbr.rel (%p263) target = $region48
        $region47: #{tpu_custom_call.1} parent=43 // pred_region
          %266 = dma.done %s259, 2560
        $region48: #{tpu_custom_call.1} parent=43 // pred_fallthru
          _
        // Predicated region
        $region49: #{tpu_custom_call.1} parent=43 // pred_check
          %p267 = pneg %p108
        $region50: #{tpu_custom_call.1} parent=43 // pred_check_branch
          %269 = sbr.rel (%p267) target = $region52
        $region51: #{tpu_custom_call.1} parent=43 // pred_region
          %270 = dma.done [#allocation8], 10240
        $region52: #{tpu_custom_call.1} parent=43 // pred_fallthru
          _
        // Predicated region
        $region53: #{tpu_custom_call.1} parent=43 // pred_check
          %p271 = pneg %p129
        $region54: #{tpu_custom_call.1} parent=43 // pred_check_branch
          %273 = sbr.rel (%p271) target = $region56
        $region55: #{tpu_custom_call.1} parent=43 // pred_region
          %274 = dma.done [#allocation8], 20480
        $region56: #{tpu_custom_call.1} parent=43 // pred_fallthru
          _
        %s275 = sand.u32 %s32, 1
        %s276 = scalar_lea.sflag [#allocation5], %s275
        %s277 = sand.u32 %s32, 1
        %s278 = smul.addr %s277, 160
        %s279 = scalar_lea.vmem [#allocation4], %s278
        %p280 = pneg %p45
        %p281 = pneg %p42
        %p282 = pneg %p66
        %p283 = pneg %p63
        %p284 = pneg %p87
        %p285 = pneg %p84
        %p286 = pneg %p108
        %p287 = pneg %p105
        %p288 = pneg %p129
        %p289 = pneg %p126
        %p290 = pneg %p150
        %p291 = pneg %p147
        %p292 = pneg %p176
        %p293 = pneg %p173
        %s294 = sand.u32 %s163, 1
        %s295 = scalar_lea.sflag [#allocation6], %s294
        %s296 = sand.u32 %s163, 1
        %s297 = smul.addr %s296, 32
        %s298 = scalar_lea.vmem [#allocation10], %s297
        %299 = vst [vmem:[#allocation2] sm:$0x1] 0.0
        %300 = vst [vmem:[#allocation2 + $0x9] sm:$0x1] 0.0
        %301 = vst [vmem:[#allocation2 + $0xa] sm:$0x1] 0.0
        %302 = vst [vmem:[#allocation2 + $0x13] sm:$0x1] 0.0
        %303 = vst [vmem:[#allocation2 + $0x14] sm:$0x1] 0.0
        %304 = vst [vmem:[#allocation2 + $0x1d] sm:$0x1] 0.0
        %305 = vst [vmem:[#allocation2 + $0x1e] sm:$0x1] 0.0
        %306 = vst [vmem:[#allocation2 + $0x27] sm:$0x1] 0.0
        %s307 = scalar_lea.vmem %s262, 120 [#allocation4]
        %v308 = vld [vmem:[%s307] sm:$0xff]
        %v309 = vld [vmem:[%s307 + $0x8] sm:$0xff]
        %v310 = vld [vmem:[%s307 + $0x10] sm:$0xff]
        %v311 = vld [vmem:[%s307 + $0x18] sm:$0xff]
        %v312 = vld [vmem:[%s307 + $0x20] sm:$0x3f]
        %318 = vrot.lane.b32.xlu0 %v308, 16
        %v319 = vpop.permute.xlu0 %318
        %320 = vrot.lane.b32.xlu0 %v309, 16
        %v321 = vpop.permute.xlu0 %320
        %322 = vrot.lane.b32.xlu0 %v310, 16
        %v323 = vpop.permute.xlu0 %322
        %324 = vrot.lane.b32.xlu0 %v311, 16
        %v325 = vpop.permute.xlu0 %324
        %326 = vrot.lane.b32.xlu0 %v312, 16
        %v327 = vpop.permute.xlu0 %326
        %vm333 = vcmask 130048
        %v334 = vsel %vm333, 0.0, %v319
        %v335 = vsel %vm333, 0.0, %v321
        %v336 = vsel %vm333, 0.0, %v323
        %v337 = vsel %vm333, 0.0, %v325
        %v338 = vsel %vm333, 0.0, %v327
        %v339 = vld [vmem:[%s1] sm:$0x1]
        %v340 = vlaneseq
        %v341 = vshrl.u32 %v340, 7
        %v342 = vsub.s32 0, %v341
        %v343 = vrot.slane %v339, %v342
        %v344 = vmul.f32 %v334, %v343
        %v345 = vmul.f32 %v335, %v343
        %v346 = vmul.f32 %v336, %v343
        %v347 = vmul.f32 %v337, %v343
        %v348 = vmul.f32 %v338, %v343
        %v349 = vadd.f32 %v344, 0.0
        %v350 = vadd.f32 %v345, 0.0
        %v351 = vadd.f32 %v346, 0.0
        %v352 = vadd.f32 %v347, 0.0
        %v353 = vadd.f32 %v348, 0.0
        %s354 = scalar_lea.vmem %s262, 80 [#allocation4]
        %v355 = vld [vmem:[%s354] sm:$0xff]
        %v356 = vld [vmem:[%s354 + $0x8] sm:$0xff]
        %v357 = vld [vmem:[%s354 + $0x10] sm:$0xff]
        %v358 = vld [vmem:[%s354 + $0x18] sm:$0xff]
        %v359 = vld [vmem:[%s354 + $0x20] sm:$0x3f]
        %v360 = vld [vmem:[%s1 + $0x1] sm:$0x1]
        %v361 = vlaneseq
        %v362 = vshrl.u32 %v361, 7
        %v363 = vsub.s32 0, %v362
        %v364 = vrot.slane %v360, %v363
        %v365 = vmul.f32 %v355, %v364
        %v366 = vmul.f32 %v356, %v364
        %v367 = vmul.f32 %v357, %v364
        %v368 = vmul.f32 %v358, %v364
        %v369 = vmul.f32 %v359, %v364
        %v370 = vadd.f32 %v349, %v365
        %v371 = vadd.f32 %v350, %v366
        %v372 = vadd.f32 %v351, %v367
        %v373 = vadd.f32 %v352, %v368
        %v374 = vadd.f32 %v353, %v369
        %v375 = vld [vmem:[%s1 + $0x2] sm:$0x1]
        %v376 = vlaneseq
        %v377 = vshrl.u32 %v376, 7
        %v378 = vsub.s32 0, %v377
        %v379 = vrot.slane %v375, %v378
        %v380 = vmul.f32 %v308, %v379
        %v381 = vmul.f32 %v309, %v379
        %v382 = vmul.f32 %v310, %v379
        %v383 = vmul.f32 %v311, %v379
        %v384 = vmul.f32 %v312, %v379
        %v385 = vadd.f32 %v370, %v380
        %v386 = vadd.f32 %v371, %v381
        %v387 = vadd.f32 %v372, %v382
        %v388 = vadd.f32 %v373, %v383
        %v389 = vadd.f32 %v374, %v384
        %s390 = scalar_lea.vmem %s262, 40 [#allocation4]
        %v391 = vld [vmem:[%s390 + $0x1] sm:$0xff]
        %v392 = vld [vmem:[%s390 + $0x9] sm:$0xff]
        %v393 = vld [vmem:[%s390 + $0x11] sm:$0xff]
        %v394 = vld [vmem:[%s390 + $0x19] sm:$0xff]
        %v395 = vld [vmem:[%s390 + $0x21] sm:$0x3f]
        %401 = vrot.lane.b32.xlu0 %v391, 16
        %v402 = vpop.permute.xlu0 %401
        %403 = vrot.lane.b32.xlu0 %v392, 16
        %v404 = vpop.permute.xlu0 %403
        %405 = vrot.lane.b32.xlu0 %v393, 16
        %v406 = vpop.permute.xlu0 %405
        %407 = vrot.lane.b32.xlu0 %v394, 16
        %v408 = vpop.permute.xlu0 %407
        %409 = vrot.lane.b32.xlu0 %v395, 16
        %v410 = vpop.permute.xlu0 %409
        %v416 = vsel %vm333, 0.0, %v402
        %v417 = vsel %vm333, 0.0, %v404
        %v418 = vsel %vm333, 0.0, %v406
        %v419 = vsel %vm333, 0.0, %v408
        %v420 = vsel %vm333, 0.0, %v410
        %v421 = vld [vmem:[%s1 + $0x3] sm:$0x1]
        %v422 = vlaneseq
        %v423 = vshrl.u32 %v422, 7
        %v424 = vsub.s32 0, %v423
        %v425 = vrot.slane %v421, %v424
        %v426 = vmul.f32 %v416, %v425
        %v427 = vmul.f32 %v417, %v425
        %v428 = vmul.f32 %v418, %v425
        %v429 = vmul.f32 %v419, %v425
        %v430 = vmul.f32 %v420, %v425
        %v431 = vadd.f32 %v385, %v426
        %v432 = vadd.f32 %v386, %v427
        %v433 = vadd.f32 %v387, %v428
        %v434 = vadd.f32 %v388, %v429
        %v435 = vadd.f32 %v389, %v430
        %v436 = vld [vmem:[%s262 + $0x1] sm:$0xff]
        %v437 = vld [vmem:[%s262 + $0x9] sm:$0xff]
        %v438 = vld [vmem:[%s262 + $0x11] sm:$0xff]
        %v439 = vld [vmem:[%s262 + $0x19] sm:$0xff]
        %v440 = vld [vmem:[%s262 + $0x21] sm:$0x3f]
        %v441 = vld [vmem:[%s1 + $0x4] sm:$0x1]
        %v442 = vlaneseq
        %v443 = vshrl.u32 %v442, 7
        %v444 = vsub.s32 0, %v443
        %v445 = vrot.slane %v441, %v444
        %v446 = vmul.f32 %v436, %v445
        %v447 = vmul.f32 %v437, %v445
        %v448 = vmul.f32 %v438, %v445
        %v449 = vmul.f32 %v439, %v445
        %v450 = vmul.f32 %v440, %v445
        %v451 = vadd.f32 %v431, %v446
        %v452 = vadd.f32 %v432, %v447
        %v453 = vadd.f32 %v433, %v448
        %v454 = vadd.f32 %v434, %v449
        %v455 = vadd.f32 %v435, %v450
        %v456 = vld [vmem:[%s1 + $0x5] sm:$0x1]
        %v457 = vlaneseq
        %v458 = vshrl.u32 %v457, 7
        %v459 = vsub.s32 0, %v458
        %v460 = vrot.slane %v456, %v459
        %v461 = vmul.f32 %v391, %v460
        %v462 = vmul.f32 %v392, %v460
        %v463 = vmul.f32 %v393, %v460
        %v464 = vmul.f32 %v394, %v460
        %v465 = vmul.f32 %v395, %v460
        %v466 = vadd.f32 %v451, %v461
        %v467 = vadd.f32 %v452, %v462
        %v468 = vadd.f32 %v453, %v463
        %v469 = vadd.f32 %v454, %v464
        %v470 = vadd.f32 %v455, %v465
        %v471 = vld [vmem:[%s307 + $0x1] sm:$0xff]
        %v472 = vld [vmem:[%s307 + $0x9] sm:$0xff]
        %v473 = vld [vmem:[%s307 + $0x11] sm:$0xff]
        %v474 = vld [vmem:[%s307 + $0x19] sm:$0xff]
        %v475 = vld [vmem:[%s307 + $0x21] sm:$0x3f]
        %481 = vrot.lane.b32.xlu0 %v471, 16
        %v482 = vpop.permute.xlu0 %481
        %483 = vrot.lane.b32.xlu0 %v472, 16
        %v484 = vpop.permute.xlu0 %483
        %485 = vrot.lane.b32.xlu0 %v473, 16
        %v486 = vpop.permute.xlu0 %485
        %487 = vrot.lane.b32.xlu0 %v474, 16
        %v488 = vpop.permute.xlu0 %487
        %489 = vrot.lane.b32.xlu0 %v475, 16
        %v490 = vpop.permute.xlu0 %489
        %v496 = vsel %vm333, 0.0, %v482
        %v497 = vsel %vm333, 0.0, %v484
        %v498 = vsel %vm333, 0.0, %v486
        %v499 = vsel %vm333, 0.0, %v488
        %v500 = vsel %vm333, 0.0, %v490
        %v501 = vld [vmem:[%s1 + $0x6] sm:$0x1]
        %v502 = vlaneseq
        %v503 = vshrl.u32 %v502, 7
        %v504 = vsub.s32 0, %v503
        %v505 = vrot.slane %v501, %v504
        %v506 = vmul.f32 %v496, %v505
        %v507 = vmul.f32 %v497, %v505
        %v508 = vmul.f32 %v498, %v505
        %v509 = vmul.f32 %v499, %v505
        %v510 = vmul.f32 %v500, %v505
        %v511 = vadd.f32 %v466, %v506
        %v512 = vadd.f32 %v467, %v507
        %v513 = vadd.f32 %v468, %v508
        %v514 = vadd.f32 %v469, %v509
        %v515 = vadd.f32 %v470, %v510
        %v516 = vld [vmem:[%s354 + $0x1] sm:$0xff]
        %v517 = vld [vmem:[%s354 + $0x9] sm:$0xff]
        %v518 = vld [vmem:[%s354 + $0x11] sm:$0xff]
        %v519 = vld [vmem:[%s354 + $0x19] sm:$0xff]
        %v520 = vld [vmem:[%s354 + $0x21] sm:$0x3f]
        %v521 = vld [vmem:[%s1 + $0x7] sm:$0x1]
        %v522 = vlaneseq
        %v523 = vshrl.u32 %v522, 7
        %v524 = vsub.s32 0, %v523
        %v525 = vrot.slane %v521, %v524
        %v526 = vmul.f32 %v516, %v525
        %v527 = vmul.f32 %v517, %v525
        %v528 = vmul.f32 %v518, %v525
        %v529 = vmul.f32 %v519, %v525
        %v530 = vmul.f32 %v520, %v525
        %v531 = vadd.f32 %v511, %v526
        %v532 = vadd.f32 %v512, %v527
        %v533 = vadd.f32 %v513, %v528
        %v534 = vadd.f32 %v514, %v529
        %v535 = vadd.f32 %v515, %v530
        %v536 = vld [vmem:[%s1 + $0x8] sm:$0x1]
        %v537 = vlaneseq
        %v538 = vshrl.u32 %v537, 7
        %v539 = vsub.s32 0, %v538
        %v540 = vrot.slane %v536, %v539
        %v541 = vmul.f32 %v471, %v540
        %v542 = vmul.f32 %v472, %v540
        %v543 = vmul.f32 %v473, %v540
        %v544 = vmul.f32 %v474, %v540
        %v545 = vmul.f32 %v475, %v540
        %v546 = vadd.f32 %v531, %v541
        %v547 = vadd.f32 %v532, %v542
        %v548 = vadd.f32 %v533, %v543
        %v549 = vadd.f32 %v534, %v544
        %v550 = vadd.f32 %v535, %v545
        %v551 = vld [vmem:[%s2] sm:$0x1]
        %v552 = vlaneseq
        %v553 = vshrl.u32 %v552, 7
        %v554 = vsub.s32 0, %v553
        %v555 = vrot.slane %v551, %v554
        %v556 = vmul.f32 %v546, %v555
        %v557 = vmul.f32 %v547, %v555
        %v558 = vmul.f32 %v548, %v555
        %v559 = vmul.f32 %v549, %v555
        %v560 = vmul.f32 %v550, %v555
        %v561 = vld [vmem:[%s2 + $0x1] sm:$0x1]
        %v562 = vlaneseq
        %v563 = vshrl.u32 %v562, 7
        %v564 = vsub.s32 0, %v563
        %v565 = vrot.slane %v561, %v564
        %v566 = vadd.f32 %v556, %v565
        %v567 = vadd.f32 %v557, %v565
        %v568 = vadd.f32 %v558, %v565
        %v569 = vadd.f32 %v559, %v565
        %v570 = vadd.f32 %v560, %v565
        %vm571 = vcmp.gt.f32.partialorder %v566, 0.0
        %vm572 = vcmp.gt.f32.partialorder %v567, 0.0
        %vm573 = vcmp.gt.f32.partialorder %v568, 0.0
        %vm574 = vcmp.gt.f32.partialorder %v569, 0.0
        %vm575 = vcmp.gt.f32.partialorder %v570, 0.0
        %v576 = vld [vmem:[%s2 + $0x2] sm:$0x1]
        %v577 = vlaneseq
        %v578 = vshrl.u32 %v577, 7
        %v579 = vsub.s32 0, %v578
        %v580 = vrot.slane %v576, %v579
        %v581 = vmul.f32 %v566, %v580
        %v582 = vmul.f32 %v567, %v580
        %v583 = vmul.f32 %v568, %v580
        %v584 = vmul.f32 %v569, %v580
        %v585 = vmul.f32 %v570, %v580
        %v586 = vsel %vm571, %v566, %v581
        %v587 = vsel %vm572, %v567, %v582
        %v588 = vsel %vm573, %v568, %v583
        %v589 = vsel %vm574, %v569, %v584
        %v590 = vsel %vm575, %v570, %v585
        %v591 = vld [vmem:[#allocation7] sm:$0xff]
        %v592 = vld [vmem:[#allocation7 + $0x8] sm:$0xff]
        %v593 = vld [vmem:[#allocation7 + $0x10] sm:$0xff]
        %v594 = vld [vmem:[#allocation7 + $0x18] sm:$0xff]
        %v595 = vld [vmem:[#allocation7 + $0x20] sm:$0xff]
        %v596 = vld [vmem:[#allocation7 + $0x28] sm:$0xff]
        %v597 = vld [vmem:[#allocation7 + $0x30] sm:$0xff]
        %v598 = vld [vmem:[#allocation7 + $0x38] sm:$0xff]
        %v599 = vld [vmem:[#allocation7 + $0x40] sm:$0xff]
        %v600 = vld [vmem:[#allocation7 + $0x48] sm:$0xff]
        %v601 = vld [vmem:[#allocation7 + $0x50] sm:$0xff]
        %v602 = vld [vmem:[#allocation7 + $0x58] sm:$0xff]
        %v603 = vld [vmem:[#allocation7 + $0x60] sm:$0xff]
        %v604 = vld [vmem:[#allocation7 + $0x68] sm:$0xff]
        %v605 = vld [vmem:[#allocation7 + $0x70] sm:$0xff]
        %v606 = vld [vmem:[#allocation7 + $0x78] sm:$0xff]
        %v607 = vld [vmem:[%s2 + $0x3] sm:$0x1]
        %v608 = vlaneseq
        %v609 = vshrl.u32 %v608, 7
        %v610 = vsub.s32 0, %v609
        %v611 = vrot.slane %v607, %v610
        %612 = vmatprep.subr.mxu0 0.0
        %613 = vmatpush1.msra.mxu0 %v591
        %614 = vmatprep.subr.mxu0 0.0
        %615 = vmatpush1.msra.mxu0 %v592
        %616 = vmatprep.subr.mxu0 0.0
        %617 = vmatpush1.msra.mxu0 %v593
        %618 = vmatprep.subr.mxu0 0.0
        %619 = vmatpush1.msra.mxu0 %v594
        %620 = vmatprep.subr.mxu0 0.0
        %621 = vmatpush1.msra.mxu0 %v595
        %622 = vmatprep.subr.mxu0 0.0
        %623 = vmatpush1.msra.mxu0 %v596
        %624 = vmatprep.subr.mxu0 0.0
        %625 = vmatpush1.msra.mxu0 %v597
        %626 = vmatprep.subr.mxu0 0.0
        %627 = vmatpush1.msra.mxu0 %v598
        %628 = vmatprep.subr.mxu0 0.0
        %629 = vmatpush1.msra.mxu0 %v599
        %630 = vmatprep.subr.mxu0 0.0
        %631 = vmatpush1.msra.mxu0 %v600
        %632 = vmatprep.subr.mxu0 0.0
        %633 = vmatpush1.msra.mxu0 %v601
        %634 = vmatprep.subr.mxu0 0.0
        %635 = vmatpush1.msra.mxu0 %v602
        %636 = vmatprep.subr.mxu0 0.0
        %637 = vmatpush1.msra.mxu0 %v603
        %638 = vmatprep.subr.mxu0 0.0
        %639 = vmatpush1.msra.mxu0 %v604
        %640 = vmatprep.subr.mxu0 0.0
        %641 = vmatpush1.msra.mxu0 %v605
        %642 = vmatprep.subr.mxu0 0.0
        %643 = vmatpush1.msra.mxu0 %v606
        %644 = vmatprep.subr.mxu0 0.0
        %645 = vmatpush1.msra.mxu0 0.0
        %646 = vmatprep.subr.mxu0 0.0
        %647 = vmatpush1.msra.mxu0 0.0
        %648 = vmatprep.subr.mxu0 0.0
        %649 = vmatpush1.msra.mxu0 0.0
        %650 = vmatprep.subr.mxu0 0.0
        %651 = vmatpush1.msra.mxu0 0.0
        %652 = vmatprep.subr.mxu0 0.0
        %653 = vmatpush1.msra.mxu0 0.0
        %654 = vmatprep.subr.mxu0 0.0
        %655 = vmatpush1.msra.mxu0 0.0
        %656 = vmatprep.subr.mxu0 0.0
        %657 = vmatpush1.msra.mxu0 0.0
        %658 = vmatprep.subr.mxu0 0.0
        %659 = vmatpush1.msra.mxu0 0.0
        %660 = vmatprep.subr.mxu0 0.0
        %661 = vmatpush1.msra.mxu0 0.0
        %662 = vmatprep.subr.mxu0 0.0
        %663 = vmatpush1.msra.mxu0 0.0
        %664 = vmatprep.subr.mxu0 0.0
        %665 = vmatpush1.msra.mxu0 0.0
        %666 = vmatprep.subr.mxu0 0.0
        %667 = vmatpush1.msra.mxu0 0.0
        %668 = vmatprep.subr.mxu0 0.0
        %669 = vmatpush1.msra.mxu0 0.0
        %670 = vmatprep.subr.mxu0 0.0
        %671 = vmatpush1.msra.mxu0 0.0
        %672 = vmatprep.subr.mxu0 0.0
        %673 = vmatpush1.msra.mxu0 0.0
        %674 = vmatprep.subr.mxu0 0.0
        %675 = vmatpush1.msra.mxu0 0.0
        %676 = vmatprep.mubr.f32.mxu0 0.0
        %677 = vmatmul.mubr.f32.gmra.mrb[0].mxu0 %v586
        %v678 = vpop.f32.mrb[0].mxu0
        %v679 = vadd.f32 %v611, %v678
        %v680 = vpop.f32.mrb[0].mxu0
        %681 = vmatprep.mubr.f32.mxu0 0.0
        %682 = vmatmul.mubr.f32.gmra.mrb[0].mxu0 %v587
        %v683 = vpop.f32.mrb[0].mxu0
        %v684 = vadd.f32 %v611, %v683
        %v685 = vpop.f32.mrb[0].mxu0
        %686 = vmatprep.mubr.f32.mxu0 0.0
        %687 = vmatmul.mubr.f32.gmra.mrb[0].mxu0 %v588
        %v688 = vpop.f32.mrb[0].mxu0
        %v689 = vadd.f32 %v611, %v688
        %v690 = vpop.f32.mrb[0].mxu0
        %691 = vmatprep.mubr.f32.mxu0 0.0
        %692 = vmatmul.mubr.f32.gmra.mrb[0].mxu0 %v589
        %v693 = vpop.f32.mrb[0].mxu0
        %v694 = vadd.f32 %v611, %v693
        %v695 = vpop.f32.mrb[0].mxu0
        %696 = vmatprep.mubr.f32.mxu0 0.0
        %697 = vmatmul.mubr.f32.gmra.mrb[0].mxu0 %v590
        %v698 = vpop.f32.mrb[0].mxu0
        %v699 = vadd.f32 %v611, %v698
        %v700 = vpop.f32.mrb[0].mxu0
        %701 = vdwg.mxu0
        %vm702 = vcmp.gt.f32.partialorder %v679, 0.0
        %vm703 = vcmp.gt.f32.partialorder %v684, 0.0
        %vm704 = vcmp.gt.f32.partialorder %v689, 0.0
        %vm705 = vcmp.gt.f32.partialorder %v694, 0.0
        %vm706 = vcmp.gt.f32.partialorder %v699, 0.0
        %v707 = vld [vmem:[%s2 + $0x4] sm:$0x1]
        %v708 = vlaneseq
        %v709 = vshrl.u32 %v708, 7
        %v710 = vsub.s32 0, %v709
        %v711 = vrot.slane %v707, %v710
        %v712 = vmul.f32 %v679, %v711
        %v713 = vmul.f32 %v684, %v711
        %v714 = vmul.f32 %v689, %v711
        %v715 = vmul.f32 %v694, %v711
        %v716 = vmul.f32 %v699, %v711
        %v717 = vsel %vm702, %v679, %v712
        %v718 = vsel %vm703, %v684, %v713
        %v719 = vsel %vm704, %v689, %v714
        %v720 = vsel %vm705, %v694, %v715
        %v721 = vsel %vm706, %v699, %v716
        %v722 = vmul.f32 %v416, %v343
        %v723 = vmul.f32 %v417, %v343
        %v724 = vmul.f32 %v418, %v343
        %v725 = vmul.f32 %v419, %v343
        %v726 = vmul.f32 %v420, %v343
        %v727 = vadd.f32 %v722, 0.0
        %v728 = vadd.f32 %v723, 0.0
        %v729 = vadd.f32 %v724, 0.0
        %v730 = vadd.f32 %v725, 0.0
        %v731 = vadd.f32 %v726, 0.0
        %v732 = vmul.f32 %v436, %v364
        %v733 = vmul.f32 %v437, %v364
        %v734 = vmul.f32 %v438, %v364
        %v735 = vmul.f32 %v439, %v364
        %v736 = vmul.f32 %v440, %v364
        %v737 = vadd.f32 %v727, %v732
        %v738 = vadd.f32 %v728, %v733
        %v739 = vadd.f32 %v729, %v734
        %v740 = vadd.f32 %v730, %v735
        %v741 = vadd.f32 %v731, %v736
        %v742 = vmul.f32 %v391, %v379
        %v743 = vmul.f32 %v392, %v379
        %v744 = vmul.f32 %v393, %v379
        %v745 = vmul.f32 %v394, %v379
        %v746 = vmul.f32 %v395, %v379
        %v747 = vadd.f32 %v737, %v742
        %v748 = vadd.f32 %v738, %v743
        %v749 = vadd.f32 %v739, %v744
        %v750 = vadd.f32 %v740, %v745
        %v751 = vadd.f32 %v741, %v746
        %v752 = vmul.f32 %v496, %v425
        %v753 = vmul.f32 %v497, %v425
        %v754 = vmul.f32 %v498, %v425
        %v755 = vmul.f32 %v499, %v425
        %v756 = vmul.f32 %v500, %v425
        %v757 = vadd.f32 %v747, %v752
        %v758 = vadd.f32 %v748, %v753
        %v759 = vadd.f32 %v749, %v754
        %v760 = vadd.f32 %v750, %v755
        %v761 = vadd.f32 %v751, %v756
        %v762 = vmul.f32 %v516, %v445
        %v763 = vmul.f32 %v517, %v445
        %v764 = vmul.f32 %v518, %v445
        %v765 = vmul.f32 %v519, %v445
        %v766 = vmul.f32 %v520, %v445
        %v767 = vadd.f32 %v757, %v762
        %v768 = vadd.f32 %v758, %v763
        %v769 = vadd.f32 %v759, %v764
        %v770 = vadd.f32 %v760, %v765
        %v771 = vadd.f32 %v761, %v766
        %v772 = vmul.f32 %v471, %v460
        %v773 = vmul.f32 %v472, %v460
        %v774 = vmul.f32 %v473, %v460
        %v775 = vmul.f32 %v474, %v460
        %v776 = vmul.f32 %v475, %v460
        %v777 = vadd.f32 %v767, %v772
        %v778 = vadd.f32 %v768, %v773
        %v779 = vadd.f32 %v769, %v774
        %v780 = vadd.f32 %v770, %v775
        %v781 = vadd.f32 %v771, %v776
        %v782 = vld [vmem:[%s390 + $0x2] sm:$0xff]
        %v783 = vld [vmem:[%s390 + $0xa] sm:$0xff]
        %v784 = vld [vmem:[%s390 + $0x12] sm:$0xff]
        %v785 = vld [vmem:[%s390 + $0x1a] sm:$0xff]
        %v786 = vld [vmem:[%s390 + $0x22] sm:$0x3f]
        %792 = vrot.lane.b32.xlu0 %v782, 16
        %v793 = vpop.permute.xlu0 %792
        %794 = vrot.lane.b32.xlu0 %v783, 16
        %v795 = vpop.permute.xlu0 %794
        %796 = vrot.lane.b32.xlu0 %v784, 16
        %v797 = vpop.permute.xlu0 %796
        %798 = vrot.lane.b32.xlu0 %v785, 16
        %v799 = vpop.permute.xlu0 %798
        %800 = vrot.lane.b32.xlu0 %v786, 16
        %v801 = vpop.permute.xlu0 %800
        %v807 = vsel %vm333, 0.0, %v793
        %v808 = vsel %vm333, 0.0, %v795
        %v809 = vsel %vm333, 0.0, %v797
        %v810 = vsel %vm333, 0.0, %v799
        %v811 = vsel %vm333, 0.0, %v801
        %v812 = vmul.f32 %v807, %v505
        %v813 = vmul.f32 %v808, %v505
        %v814 = vmul.f32 %v809, %v505
        %v815 = vmul.f32 %v810, %v505
        %v816 = vmul.f32 %v811, %v505
        %v817 = vadd.f32 %v777, %v812
        %v818 = vadd.f32 %v778, %v813
        %v819 = vadd.f32 %v779, %v814
        %v820 = vadd.f32 %v780, %v815
        %v821 = vadd.f32 %v781, %v816
        %v822 = vld [vmem:[%s262 + $0x2] sm:$0xff]
        %v823 = vld [vmem:[%s262 + $0xa] sm:$0xff]
        %v824 = vld [vmem:[%s262 + $0x12] sm:$0xff]
        %v825 = vld [vmem:[%s262 + $0x1a] sm:$0xff]
        %v826 = vld [vmem:[%s262 + $0x22] sm:$0x3f]
        %v827 = vmul.f32 %v822, %v525
        %v828 = vmul.f32 %v823, %v525
        %v829 = vmul.f32 %v824, %v525
        %v830 = vmul.f32 %v825, %v525
        %v831 = vmul.f32 %v826, %v525
        %v832 = vadd.f32 %v817, %v827
        %v833 = vadd.f32 %v818, %v828
        %v834 = vadd.f32 %v819, %v829
        %v835 = vadd.f32 %v820, %v830
        %v836 = vadd.f32 %v821, %v831
        %v837 = vmul.f32 %v782, %v540
        %v838 = vmul.f32 %v783, %v540
        %v839 = vmul.f32 %v784, %v540
        %v840 = vmul.f32 %v785, %v540
        %v841 = vmul.f32 %v786, %v540
        %v842 = vadd.f32 %v832, %v837
        %v843 = vadd.f32 %v833, %v838
        %v844 = vadd.f32 %v834, %v839
        %v845 = vadd.f32 %v835, %v840
        %v846 = vadd.f32 %v836, %v841
        %v847 = vmul.f32 %v842, %v555
        %v848 = vmul.f32 %v843, %v555
        %v849 = vmul.f32 %v844, %v555
        %v850 = vmul.f32 %v845, %v555
        %v851 = vmul.f32 %v846, %v555
        %v852 = vadd.f32 %v847, %v565
        %v853 = vadd.f32 %v848, %v565
        %v854 = vadd.f32 %v849, %v565
        %v855 = vadd.f32 %v850, %v565
        %v856 = vadd.f32 %v851, %v565
        %vm857 = vcmp.gt.f32.partialorder %v852, 0.0
        %vm858 = vcmp.gt.f32.partialorder %v853, 0.0
        %vm859 = vcmp.gt.f32.partialorder %v854, 0.0
        %vm860 = vcmp.gt.f32.partialorder %v855, 0.0
        %vm861 = vcmp.gt.f32.partialorder %v856, 0.0
        %v862 = vmul.f32 %v852, %v580
        %v863 = vmul.f32 %v853, %v580
        %v864 = vmul.f32 %v854, %v580
        %v865 = vmul.f32 %v855, %v580
        %v866 = vmul.f32 %v856, %v580
        %v867 = vsel %vm857, %v852, %v862
        %v868 = vsel %vm858, %v853, %v863
        %v869 = vsel %vm859, %v854, %v864
        %v870 = vsel %vm860, %v855, %v865
        %v871 = vsel %vm861, %v856, %v866
        %872 = vmatprep.subr.mxu0 0.0
        %873 = vmatpush1.msra.mxu0 %v591
        %874 = vmatprep.subr.mxu0 0.0
        %875 = vmatpush1.msra.mxu0 %v592
        %876 = vmatprep.subr.mxu0 0.0
        %877 = vmatpush1.msra.mxu0 %v593
        %878 = vmatprep.subr.mxu0 0.0
        %879 = vmatpush1.msra.mxu0 %v594
        %880 = vmatprep.subr.mxu0 0.0
        %881 = vmatpush1.msra.mxu0 %v595
        %882 = vmatprep.subr.mxu0 0.0
        %883 = vmatpush1.msra.mxu0 %v596
        %884 = vmatprep.subr.mxu0 0.0
        %885 = vmatpush1.msra.mxu0 %v597
        %886 = vmatprep.subr.mxu0 0.0
        %887 = vmatpush1.msra.mxu0 %v598
        %888 = vmatprep.subr.mxu0 0.0
        %889 = vmatpush1.msra.mxu0 %v599
        %890 = vmatprep.subr.mxu0 0.0
        %891 = vmatpush1.msra.mxu0 %v600
        %892 = vmatprep.subr.mxu0 0.0
        %893 = vmatpush1.msra.mxu0 %v601
        %894 = vmatprep.subr.mxu0 0.0
        %895 = vmatpush1.msra.mxu0 %v602
        %896 = vmatprep.subr.mxu0 0.0
        %897 = vmatpush1.msra.mxu0 %v603
        %898 = vmatprep.subr.mxu0 0.0
        %899 = vmatpush1.msra.mxu0 %v604
        %900 = vmatprep.subr.mxu0 0.0
        %901 = vmatpush1.msra.mxu0 %v605
        %902 = vmatprep.subr.mxu0 0.0
        %903 = vmatpush1.msra.mxu0 %v606
        %904 = vmatprep.subr.mxu0 0.0
        %905 = vmatpush1.msra.mxu0 0.0
        %906 = vmatprep.subr.mxu0 0.0
        %907 = vmatpush1.msra.mxu0 0.0
        %908 = vmatprep.subr.mxu0 0.0
        %909 = vmatpush1.msra.mxu0 0.0
        %910 = vmatprep.subr.mxu0 0.0
        %911 = vmatpush1.msra.mxu0 0.0
        %912 = vmatprep.subr.mxu0 0.0
        %913 = vmatpush1.msra.mxu0 0.0
        %914 = vmatprep.subr.mxu0 0.0
        %915 = vmatpush1.msra.mxu0 0.0
        %916 = vmatprep.subr.mxu0 0.0
        %917 = vmatpush1.msra.mxu0 0.0
        %918 = vmatprep.subr.mxu0 0.0
        %919 = vmatpush1.msra.mxu0 0.0
        %920 = vmatprep.subr.mxu0 0.0
        %921 = vmatpush1.msra.mxu0 0.0
        %922 = vmatprep.subr.mxu0 0.0
        %923 = vmatpush1.msra.mxu0 0.0
        %924 = vmatprep.subr.mxu0 0.0
        %925 = vmatpush1.msra.mxu0 0.0
        %926 = vmatprep.subr.mxu0 0.0
        %927 = vmatpush1.msra.mxu0 0.0
        %928 = vmatprep.subr.mxu0 0.0
        %929 = vmatpush1.msra.mxu0 0.0
        %930 = vmatprep.subr.mxu0 0.0
        %931 = vmatpush1.msra.mxu0 0.0
        %932 = vmatprep.subr.mxu0 0.0
        %933 = vmatpush1.msra.mxu0 0.0
        %934 = vmatprep.subr.mxu0 0.0
        %935 = vmatpush1.msra.mxu0 0.0
        %936 = vmatprep.mubr.f32.mxu0 0.0
        %937 = vmatmul.mubr.f32.gmra.mrb[0].mxu0 %v867
        %v938 = vpop.f32.mrb[0].mxu0
        %v939 = vadd.f32 %v611, %v938
        %v940 = vpop.f32.mrb[0].mxu0
        %941 = vmatprep.mubr.f32.mxu0 0.0
        %942 = vmatmul.mubr.f32.gmra.mrb[0].mxu0 %v868
        %v943 = vpop.f32.mrb[0].mxu0
        %v944 = vadd.f32 %v611, %v943
        %v945 = vpop.f32.mrb[0].mxu0
        %946 = vmatprep.mubr.f32.mxu0 0.0
        %947 = vmatmul.mubr.f32.gmra.mrb[0].mxu0 %v869
        %v948 = vpop.f32.mrb[0].mxu0
        %v949 = vadd.f32 %v611, %v948
        %v950 = vpop.f32.mrb[0].mxu0
        %951 = vmatprep.mubr.f32.mxu0 0.0
        %952 = vmatmul.mubr.f32.gmra.mrb[0].mxu0 %v870
        %v953 = vpop.f32.mrb[0].mxu0
        %v954 = vadd.f32 %v611, %v953
        %v955 = vpop.f32.mrb[0].mxu0
        %956 = vmatprep.mubr.f32.mxu0 0.0
        %957 = vmatmul.mubr.f32.gmra.mrb[0].mxu0 %v871
        %v958 = vpop.f32.mrb[0].mxu0
        %v959 = vadd.f32 %v611, %v958
        %v960 = vpop.f32.mrb[0].mxu0
        %961 = vdwg.mxu0
        %vm962 = vcmp.gt.f32.partialorder %v939, 0.0
        %vm963 = vcmp.gt.f32.partialorder %v944, 0.0
        %vm964 = vcmp.gt.f32.partialorder %v949, 0.0
        %vm965 = vcmp.gt.f32.partialorder %v954, 0.0
        %vm966 = vcmp.gt.f32.partialorder %v959, 0.0
        %v967 = vmul.f32 %v939, %v711
        %v968 = vmul.f32 %v944, %v711
        %v969 = vmul.f32 %v949, %v711
        %v970 = vmul.f32 %v954, %v711
        %v971 = vmul.f32 %v959, %v711
        %v972 = vsel %vm962, %v939, %v967
        %v973 = vsel %vm963, %v944, %v968
        %v974 = vsel %vm964, %v949, %v969
        %v975 = vsel %vm965, %v954, %v970
        %v976 = vsel %vm966, %v959, %v971
        %977 = vst [vmem:[#allocation3] sm:$0xff] %v972
        %978 = vst [vmem:[#allocation3 + $0x8] sm:$0xff] %v973
        %979 = vst [vmem:[#allocation3 + $0x10] sm:$0xff] %v974
        %980 = vst [vmem:[#allocation3 + $0x18] sm:$0xff] %v975
        %981 = vst [vmem:[#allocation3 + $0x20] sm:$0x3f] %v976
        %v982 = vld [vmem:[%s354] sm:$0xff]
        %v983 = vld [vmem:[%s354 + $0x8] sm:$0xff]
        %v984 = vld [vmem:[%s354 + $0x10] sm:$0xff]
        %v985 = vld [vmem:[%s354 + $0x18] sm:$0xff]
        %v986 = vld [vmem:[%s354 + $0x20] sm:$0x3f]
        %v987 = vld [vmem:[%s1] sm:$0x1]
        %v988 = vlaneseq
        %v989 = vshrl.u32 %v988, 7
        %v990 = vsub.s32 0, %v989
        %v991 = vrot.slane %v987, %v990
        %v992 = vmul.f32 %v982, %v991
        %v993 = vmul.f32 %v983, %v991
        %v994 = vmul.f32 %v984, %v991
        %v995 = vmul.f32 %v985, %v991
        %v996 = vmul.f32 %v986, %v991
        %v997 = vadd.f32 %v992, 0.0
        %v998 = vadd.f32 %v993, 0.0
        %v999 = vadd.f32 %v994, 0.0
        %v1000 = vadd.f32 %v995, 0.0
        %v1001 = vadd.f32 %v996, 0.0
        %v1002 = vld [vmem:[%s307] sm:$0xff]
        %v1003 = vld [vmem:[%s307 + $0x8] sm:$0xff]
        %v1004 = vld [vmem:[%s307 + $0x10] sm:$0xff]
        %v1005 = vld [vmem:[%s307 + $0x18] sm:$0xff]
        %v1006 = vld [vmem:[%s307 + $0x20] sm:$0x3f]
        %v1007 = vld [vmem:[%s1 + $0x1] sm:$0x1]
        %v1008 = vlaneseq
        %v1009 = vshrl.u32 %v1008, 7
        %v1010 = vsub.s32 0, %v1009
        %v1011 = vrot.slane %v1007, %v1010
        %v1012 = vmul.f32 %v1002, %v1011
        %v1013 = vmul.f32 %v1003, %v1011
        %v1014 = vmul.f32 %v1004, %v1011
        %v1015 = vmul.f32 %v1005, %v1011
        %v1016 = vmul.f32 %v1006, %v1011
        %v1017 = vadd.f32 %v997, %v1012
        %v1018 = vadd.f32 %v998, %v1013
        %v1019 = vadd.f32 %v999, %v1014
        %v1020 = vadd.f32 %v1000, %v1015
        %v1021 = vadd.f32 %v1001, %v1016
        %1027 = vrot.lane.b32.xlu0 %v982, 112
        %v1028 = vpop.permute.xlu0 %1027
        %1029 = vrot.lane.b32.xlu0 %v983, 112
        %v1030 = vpop.permute.xlu0 %1029
        %1031 = vrot.lane.b32.xlu0 %v984, 112
        %v1032 = vpop.permute.xlu0 %1031
        %1033 = vrot.lane.b32.xlu0 %v985, 112
        %v1034 = vpop.permute.xlu0 %1033
        %1035 = vrot.lane.b32.xlu0 %v986, 112
        %v1036 = vpop.permute.xlu0 %1035
        %vm1042 = vcmask 916480
        %v1043 = vsel %vm1042, %v1028, 0.0
        %v1044 = vsel %vm1042, %v1030, 0.0
        %v1045 = vsel %vm1042, %v1032, 0.0
        %v1046 = vsel %vm1042, %v1034, 0.0
        %v1047 = vsel %vm1042, %v1036, 0.0
        %v1048 = vld [vmem:[%s1 + $0x2] sm:$0x1]
        %v1049 = vlaneseq
        %v1050 = vshrl.u32 %v1049, 7
        %v1051 = vsub.s32 0, %v1050
        %v1052 = vrot.slane %v1048, %v1051
        %v1053 = vmul.f32 %v1043, %v1052
        %v1054 = vmul.f32 %v1044, %v1052
        %v1055 = vmul.f32 %v1045, %v1052
        %v1056 = vmul.f32 %v1046, %v1052
        %v1057 = vmul.f32 %v1047, %v1052
        %v1058 = vadd.f32 %v1017, %v1053
        %v1059 = vadd.f32 %v1018, %v1054
        %v1060 = vadd.f32 %v1019, %v1055
        %v1061 = vadd.f32 %v1020, %v1056
        %v1062 = vadd.f32 %v1021, %v1057
        %v1063 = vld [vmem:[%s262 + $0x1] sm:$0xff]
        %v1064 = vld [vmem:[%s262 + $0x9] sm:$0xff]
        %v1065 = vld [vmem:[%s262 + $0x11] sm:$0xff]
        %v1066 = vld [vmem:[%s262 + $0x19] sm:$0xff]
        %v1067 = vld [vmem:[%s262 + $0x21] sm:$0x3f]
        %v1068 = vld [vmem:[%s1 + $0x3] sm:$0x1]
        %v1069 = vlaneseq
        %v1070 = vshrl.u32 %v1069, 7
        %v1071 = vsub.s32 0, %v1070
        %v1072 = vrot.slane %v1068, %v1071
        %v1073 = vmul.f32 %v1063, %v1072
        %v1074 = vmul.f32 %v1064, %v1072
        %v1075 = vmul.f32 %v1065, %v1072
        %v1076 = vmul.f32 %v1066, %v1072
        %v1077 = vmul.f32 %v1067, %v1072
        %v1078 = vadd.f32 %v1058, %v1073
        %v1079 = vadd.f32 %v1059, %v1074
        %v1080 = vadd.f32 %v1060, %v1075
        %v1081 = vadd.f32 %v1061, %v1076
        %v1082 = vadd.f32 %v1062, %v1077
        %v1083 = vld [vmem:[%s390 + $0x1] sm:$0xff]
        %v1084 = vld [vmem:[%s390 + $0x9] sm:$0xff]
        %v1085 = vld [vmem:[%s390 + $0x11] sm:$0xff]
        %v1086 = vld [vmem:[%s390 + $0x19] sm:$0xff]
        %v1087 = vld [vmem:[%s390 + $0x21] sm:$0x3f]
        %v1088 = vld [vmem:[%s1 + $0x4] sm:$0x1]
        %v1089 = vlaneseq
        %v1090 = vshrl.u32 %v1089, 7
        %v1091 = vsub.s32 0, %v1090
        %v1092 = vrot.slane %v1088, %v1091
        %v1093 = vmul.f32 %v1083, %v1092
        %v1094 = vmul.f32 %v1084, %v1092
        %v1095 = vmul.f32 %v1085, %v1092
        %v1096 = vmul.f32 %v1086, %v1092
        %v1097 = vmul.f32 %v1087, %v1092
        %v1098 = vadd.f32 %v1078, %v1093
        %v1099 = vadd.f32 %v1079, %v1094
        %v1100 = vadd.f32 %v1080, %v1095
        %v1101 = vadd.f32 %v1081, %v1096
        %v1102 = vadd.f32 %v1082, %v1097
        %1108 = vrot.lane.b32.xlu0 %v1063, 112
        %v1109 = vpop.permute.xlu0 %1108
        %1110 = vrot.lane.b32.xlu0 %v1064, 112
        %v1111 = vpop.permute.xlu0 %1110
        %1112 = vrot.lane.b32.xlu0 %v1065, 112
        %v1113 = vpop.permute.xlu0 %1112
        %1114 = vrot.lane.b32.xlu0 %v1066, 112
        %v1115 = vpop.permute.xlu0 %1114
        %1116 = vrot.lane.b32.xlu0 %v1067, 112
        %v1117 = vpop.permute.xlu0 %1116
        %v1123 = vsel %vm1042, %v1109, 0.0
        %v1124 = vsel %vm1042, %v1111, 0.0
        %v1125 = vsel %vm1042, %v1113, 0.0
        %v1126 = vsel %vm1042, %v1115, 0.0
        %v1127 = vsel %vm1042, %v1117, 0.0
        %v1128 = vld [vmem:[%s1 + $0x5] sm:$0x1]
        %v1129 = vlaneseq
        %v1130 = vshrl.u32 %v1129, 7
        %v1131 = vsub.s32 0, %v1130
        %v1132 = vrot.slane %v1128, %v1131
        %v1133 = vmul.f32 %v1123, %v1132
        %v1134 = vmul.f32 %v1124, %v1132
        %v1135 = vmul.f32 %v1125, %v1132
        %v1136 = vmul.f32 %v1126, %v1132
        %v1137 = vmul.f32 %v1127, %v1132
        %v1138 = vadd.f32 %v1098, %v1133
        %v1139 = vadd.f32 %v1099, %v1134
        %v1140 = vadd.f32 %v1100, %v1135
        %v1141 = vadd.f32 %v1101, %v1136
        %v1142 = vadd.f32 %v1102, %v1137
        %v1143 = vld [vmem:[%s354 + $0x1] sm:$0xff]
        %v1144 = vld [vmem:[%s354 + $0x9] sm:$0xff]
        %v1145 = vld [vmem:[%s354 + $0x11] sm:$0xff]
        %v1146 = vld [vmem:[%s354 + $0x19] sm:$0xff]
        %v1147 = vld [vmem:[%s354 + $0x21] sm:$0x3f]
        %v1148 = vld [vmem:[%s1 + $0x6] sm:$0x1]
        %v1149 = vlaneseq
        %v1150 = vshrl.u32 %v1149, 7
        %v1151 = vsub.s32 0, %v1150
        %v1152 = vrot.slane %v1148, %v1151
        %v1153 = vmul.f32 %v1143, %v1152
        %v1154 = vmul.f32 %v1144, %v1152
        %v1155 = vmul.f32 %v1145, %v1152
        %v1156 = vmul.f32 %v1146, %v1152
        %v1157 = vmul.f32 %v1147, %v1152
        %v1158 = vadd.f32 %v1138, %v1153
        %v1159 = vadd.f32 %v1139, %v1154
        %v1160 = vadd.f32 %v1140, %v1155
        %v1161 = vadd.f32 %v1141, %v1156
        %v1162 = vadd.f32 %v1142, %v1157
        %v1163 = vld [vmem:[%s307 + $0x1] sm:$0xff]
        %v1164 = vld [vmem:[%s307 + $0x9] sm:$0xff]
        %v1165 = vld [vmem:[%s307 + $0x11] sm:$0xff]
        %v1166 = vld [vmem:[%s307 + $0x19] sm:$0xff]
        %v1167 = vld [vmem:[%s307 + $0x21] sm:$0x3f]
        %v1168 = vld [vmem:[%s1 + $0x7] sm:$0x1]
        %v1169 = vlaneseq
        %v1170 = vshrl.u32 %v1169, 7
        %v1171 = vsub.s32 0, %v1170
        %v1172 = vrot.slane %v1168, %v1171
        %v1173 = vmul.f32 %v1163, %v1172
        %v1174 = vmul.f32 %v1164, %v1172
        %v1175 = vmul.f32 %v1165, %v1172
        %v1176 = vmul.f32 %v1166, %v1172
        %v1177 = vmul.f32 %v1167, %v1172
        %v1178 = vadd.f32 %v1158, %v1173
        %v1179 = vadd.f32 %v1159, %v1174
        %v1180 = vadd.f32 %v1160, %v1175
        %v1181 = vadd.f32 %v1161, %v1176
        %v1182 = vadd.f32 %v1162, %v1177
        %1188 = vrot.lane.b32.xlu0 %v1143, 112
        %v1189 = vpop.permute.xlu0 %1188
        %1190 = vrot.lane.b32.xlu0 %v1144, 112
        %v1191 = vpop.permute.xlu0 %1190
        %1192 = vrot.lane.b32.xlu0 %v1145, 112
        %v1193 = vpop.permute.xlu0 %1192
        %1194 = vrot.lane.b32.xlu0 %v1146, 112
        %v1195 = vpop.permute.xlu0 %1194
        %1196 = vrot.lane.b32.xlu0 %v1147, 112
        %v1197 = vpop.permute.xlu0 %1196
        %v1203 = vsel %vm1042, %v1189, 0.0
        %v1204 = vsel %vm1042, %v1191, 0.0
        %v1205 = vsel %vm1042, %v1193, 0.0
        %v1206 = vsel %vm1042, %v1195, 0.0
        %v1207 = vsel %vm1042, %v1197, 0.0
        %v1208 = vld [vmem:[%s1 + $0x8] sm:$0x1]
        %v1209 = vlaneseq
        %v1210 = vshrl.u32 %v1209, 7
        %v1211 = vsub.s32 0, %v1210
        %v1212 = vrot.slane %v1208, %v1211
        %v1213 = vmul.f32 %v1203, %v1212
        %v1214 = vmul.f32 %v1204, %v1212
        %v1215 = vmul.f32 %v1205, %v1212
        %v1216 = vmul.f32 %v1206, %v1212
        %v1217 = vmul.f32 %v1207, %v1212
        %v1218 = vadd.f32 %v1178, %v1213
        %v1219 = vadd.f32 %v1179, %v1214
        %v1220 = vadd.f32 %v1180, %v1215
        %v1221 = vadd.f32 %v1181, %v1216
        %v1222 = vadd.f32 %v1182, %v1217
        %v1223 = vld [vmem:[%s2] sm:$0x1]
        %v1224 = vlaneseq
        %v1225 = vshrl.u32 %v1224, 7
        %v1226 = vsub.s32 0, %v1225
        %v1227 = vrot.slane %v1223, %v1226
        %v1228 = vmul.f32 %v1218, %v1227
        %v1229 = vmul.f32 %v1219, %v1227
        %v1230 = vmul.f32 %v1220, %v1227
        %v1231 = vmul.f32 %v1221, %v1227
        %v1232 = vmul.f32 %v1222, %v1227
        %v1233 = vld [vmem:[%s2 + $0x1] sm:$0x1]
        %v1234 = vlaneseq
        %v1235 = vshrl.u32 %v1234, 7
        %v1236 = vsub.s32 0, %v1235
        %v1237 = vrot.slane %v1233, %v1236
        %v1238 = vadd.f32 %v1228, %v1237
        %v1239 = vadd.f32 %v1229, %v1237
        %v1240 = vadd.f32 %v1230, %v1237
        %v1241 = vadd.f32 %v1231, %v1237
        %v1242 = vadd.f32 %v1232, %v1237
        %vm1243 = vcmp.gt.f32.partialorder %v1238, 0.0
        %vm1244 = vcmp.gt.f32.partialorder %v1239, 0.0
        %vm1245 = vcmp.gt.f32.partialorder %v1240, 0.0
        %vm1246 = vcmp.gt.f32.partialorder %v1241, 0.0
        %vm1247 = vcmp.gt.f32.partialorder %v1242, 0.0
        %v1248 = vld [vmem:[%s2 + $0x2] sm:$0x1]
        %v1249 = vlaneseq
        %v1250 = vshrl.u32 %v1249, 7
        %v1251 = vsub.s32 0, %v1250
        %v1252 = vrot.slane %v1248, %v1251
        %v1253 = vmul.f32 %v1238, %v1252
        %v1254 = vmul.f32 %v1239, %v1252
        %v1255 = vmul.f32 %v1240, %v1252
        %v1256 = vmul.f32 %v1241, %v1252
        %v1257 = vmul.f32 %v1242, %v1252
        %v1258 = vsel %vm1243, %v1238, %v1253
        %v1259 = vsel %vm1244, %v1239, %v1254
        %v1260 = vsel %vm1245, %v1240, %v1255
        %v1261 = vsel %vm1246, %v1241, %v1256
        %v1262 = vsel %vm1247, %v1242, %v1257
        %v1263 = vld [vmem:[#allocation7] sm:$0xff]
        %v1264 = vld [vmem:[#allocation7 + $0x8] sm:$0xff]
        %v1265 = vld [vmem:[#allocation7 + $0x10] sm:$0xff]
        %v1266 = vld [vmem:[#allocation7 + $0x18] sm:$0xff]
        %v1267 = vld [vmem:[#allocation7 + $0x20] sm:$0xff]
        %v1268 = vld [vmem:[#allocation7 + $0x28] sm:$0xff]
        %v1269 = vld [vmem:[#allocation7 + $0x30] sm:$0xff]
        %v1270 = vld [vmem:[#allocation7 + $0x38] sm:$0xff]
        %v1271 = vld [vmem:[#allocation7 + $0x40] sm:$0xff]
        %v1272 = vld [vmem:[#allocation7 + $0x48] sm:$0xff]
        %v1273 = vld [vmem:[#allocation7 + $0x50] sm:$0xff]
        %v1274 = vld [vmem:[#allocation7 + $0x58] sm:$0xff]
        %v1275 = vld [vmem:[#allocation7 + $0x60] sm:$0xff]
        %v1276 = vld [vmem:[#allocation7 + $0x68] sm:$0xff]
        %v1277 = vld [vmem:[#allocation7 + $0x70] sm:$0xff]
        %v1278 = vld [vmem:[#allocation7 + $0x78] sm:$0xff]
        %v1279 = vld [vmem:[%s2 + $0x3] sm:$0x1]
        %v1280 = vlaneseq
        %v1281 = vshrl.u32 %v1280, 7
        %v1282 = vsub.s32 0, %v1281
        %v1283 = vrot.slane %v1279, %v1282
        %1284 = vmatprep.subr.mxu0 0.0
        %1285 = vmatpush1.msra.mxu0 %v1263
        %1286 = vmatprep.subr.mxu0 0.0
        %1287 = vmatpush1.msra.mxu0 %v1264
        %1288 = vmatprep.subr.mxu0 0.0
        %1289 = vmatpush1.msra.mxu0 %v1265
        %1290 = vmatprep.subr.mxu0 0.0
        %1291 = vmatpush1.msra.mxu0 %v1266
        %1292 = vmatprep.subr.mxu0 0.0
        %1293 = vmatpush1.msra.mxu0 %v1267
        %1294 = vmatprep.subr.mxu0 0.0
        %1295 = vmatpush1.msra.mxu0 %v1268
        %1296 = vmatprep.subr.mxu0 0.0
        %1297 = vmatpush1.msra.mxu0 %v1269
        %1298 = vmatprep.subr.mxu0 0.0
        %1299 = vmatpush1.msra.mxu0 %v1270
        %1300 = vmatprep.subr.mxu0 0.0
        %1301 = vmatpush1.msra.mxu0 %v1271
        %1302 = vmatprep.subr.mxu0 0.0
        %1303 = vmatpush1.msra.mxu0 %v1272
        %1304 = vmatprep.subr.mxu0 0.0
        %1305 = vmatpush1.msra.mxu0 %v1273
        %1306 = vmatprep.subr.mxu0 0.0
        %1307 = vmatpush1.msra.mxu0 %v1274
        %1308 = vmatprep.subr.mxu0 0.0
        %1309 = vmatpush1.msra.mxu0 %v1275
        %1310 = vmatprep.subr.mxu0 0.0
        %1311 = vmatpush1.msra.mxu0 %v1276
        %1312 = vmatprep.subr.mxu0 0.0
        %1313 = vmatpush1.msra.mxu0 %v1277
        %1314 = vmatprep.subr.mxu0 0.0
        %1315 = vmatpush1.msra.mxu0 %v1278
        %1316 = vmatprep.subr.mxu0 0.0
        %1317 = vmatpush1.msra.mxu0 0.0
        %1318 = vmatprep.subr.mxu0 0.0
        %1319 = vmatpush1.msra.mxu0 0.0
        %1320 = vmatprep.subr.mxu0 0.0
        %1321 = vmatpush1.msra.mxu0 0.0
        %1322 = vmatprep.subr.mxu0 0.0
        %1323 = vmatpush1.msra.mxu0 0.0
        %1324 = vmatprep.subr.mxu0 0.0
        %1325 = vmatpush1.msra.mxu0 0.0
        %1326 = vmatprep.subr.mxu0 0.0
        %1327 = vmatpush1.msra.mxu0 0.0
        %1328 = vmatprep.subr.mxu0 0.0
        %1329 = vmatpush1.msra.mxu0 0.0
        %1330 = vmatprep.subr.mxu0 0.0
        %1331 = vmatpush1.msra.mxu0 0.0
        %1332 = vmatprep.subr.mxu0 0.0
        %1333 = vmatpush1.msra.mxu0 0.0
        %1334 = vmatprep.subr.mxu0 0.0
        %1335 = vmatpush1.msra.mxu0 0.0
        %1336 = vmatprep.subr.mxu0 0.0
        %1337 = vmatpush1.msra.mxu0 0.0
        %1338 = vmatprep.subr.mxu0 0.0
        %1339 = vmatpush1.msra.mxu0 0.0
        %1340 = vmatprep.subr.mxu0 0.0
        %1341 = vmatpush1.msra.mxu0 0.0
        %1342 = vmatprep.subr.mxu0 0.0
        %1343 = vmatpush1.msra.mxu0 0.0
        %1344 = vmatprep.subr.mxu0 0.0
        %1345 = vmatpush1.msra.mxu0 0.0
        %1346 = vmatprep.subr.mxu0 0.0
        %1347 = vmatpush1.msra.mxu0 0.0
        %1348 = vmatprep.mubr.f32.mxu0 0.0
        %1349 = vmatmul.mubr.f32.gmra.mrb[0].mxu0 %v1258
        %v1350 = vpop.f32.mrb[0].mxu0
        %v1351 = vadd.f32 %v1283, %v1350
        %v1352 = vpop.f32.mrb[0].mxu0
        %1353 = vmatprep.mubr.f32.mxu0 0.0
        %1354 = vmatmul.mubr.f32.gmra.mrb[0].mxu0 %v1259
        %v1355 = vpop.f32.mrb[0].mxu0
        %v1356 = vadd.f32 %v1283, %v1355
        %v1357 = vpop.f32.mrb[0].mxu0
        %1358 = vmatprep.mubr.f32.mxu0 0.0
        %1359 = vmatmul.mubr.f32.gmra.mrb[0].mxu0 %v1260
        %v1360 = vpop.f32.mrb[0].mxu0
        %v1361 = vadd.f32 %v1283, %v1360
        %v1362 = vpop.f32.mrb[0].mxu0
        %1363 = vmatprep.mubr.f32.mxu0 0.0
        %1364 = vmatmul.mubr.f32.gmra.mrb[0].mxu0 %v1261
        %v1365 = vpop.f32.mrb[0].mxu0
        %v1366 = vadd.f32 %v1283, %v1365
        %v1367 = vpop.f32.mrb[0].mxu0
        %1368 = vmatprep.mubr.f32.mxu0 0.0
        %1369 = vmatmul.mubr.f32.gmra.mrb[0].mxu0 %v1262
        %v1370 = vpop.f32.mrb[0].mxu0
        %v1371 = vadd.f32 %v1283, %v1370
        %v1372 = vpop.f32.mrb[0].mxu0
        %1373 = vdwg.mxu0
        %vm1374 = vcmp.gt.f32.partialorder %v1351, 0.0
        %vm1375 = vcmp.gt.f32.partialorder %v1356, 0.0
        %vm1376 = vcmp.gt.f32.partialorder %v1361, 0.0
        %vm1377 = vcmp.gt.f32.partialorder %v1366, 0.0
        %vm1378 = vcmp.gt.f32.partialorder %v1371, 0.0
        %v1379 = vld [vmem:[%s2 + $0x4] sm:$0x1]
        %v1380 = vlaneseq
        %v1381 = vshrl.u32 %v1380, 7
        %v1382 = vsub.s32 0, %v1381
        %v1383 = vrot.slane %v1379, %v1382
        %v1384 = vmul.f32 %v1351, %v1383
        %v1385 = vmul.f32 %v1356, %v1383
        %v1386 = vmul.f32 %v1361, %v1383
        %v1387 = vmul.f32 %v1366, %v1383
        %v1388 = vmul.f32 %v1371, %v1383
        %v1389 = vsel %vm1374, %v1351, %v1384
        %v1390 = vsel %vm1375, %v1356, %v1385
        %v1391 = vsel %vm1376, %v1361, %v1386
        %v1392 = vsel %vm1377, %v1366, %v1387
        %v1393 = vsel %vm1378, %v1371, %v1388
        %s1394 = scalar_lea.vmem [#allocation3], 40
        %1395 = vst [vmem:[%s1394] sm:$0xff] %v1389
        %1396 = vst [vmem:[%s1394 + $0x8] sm:$0xff] %v1390
        %1397 = vst [vmem:[%s1394 + $0x10] sm:$0xff] %v1391
        %1398 = vst [vmem:[%s1394 + $0x18] sm:$0xff] %v1392
        %1399 = vst [vmem:[%s1394 + $0x20] sm:$0x3f] %v1393
        %v1400 = vld [vmem:[%s262 + $0x1] sm:$0xff]
        %v1401 = vld [vmem:[%s262 + $0x9] sm:$0xff]
        %v1402 = vld [vmem:[%s262 + $0x11] sm:$0xff]
        %v1403 = vld [vmem:[%s262 + $0x19] sm:$0xff]
        %v1404 = vld [vmem:[%s262 + $0x21] sm:$0x3f]
        %v1405 = vld [vmem:[%s1] sm:$0x1]
        %v1406 = vlaneseq
        %v1407 = vshrl.u32 %v1406, 7
        %v1408 = vsub.s32 0, %v1407
        %v1409 = vrot.slane %v1405, %v1408
        %v1410 = vmul.f32 %v1400, %v1409
        %v1411 = vmul.f32 %v1401, %v1409
        %v1412 = vmul.f32 %v1402, %v1409
        %v1413 = vmul.f32 %v1403, %v1409
        %v1414 = vmul.f32 %v1404, %v1409
        %v1415 = vadd.f32 %v1410, 0.0
        %v1416 = vadd.f32 %v1411, 0.0
        %v1417 = vadd.f32 %v1412, 0.0
        %v1418 = vadd.f32 %v1413, 0.0
        %v1419 = vadd.f32 %v1414, 0.0
        %v1420 = vld [vmem:[%s390 + $0x1] sm:$0xff]
        %v1421 = vld [vmem:[%s390 + $0x9] sm:$0xff]
        %v1422 = vld [vmem:[%s390 + $0x11] sm:$0xff]
        %v1423 = vld [vmem:[%s390 + $0x19] sm:$0xff]
        %v1424 = vld [vmem:[%s390 + $0x21] sm:$0x3f]
        %v1425 = vld [vmem:[%s1 + $0x1] sm:$0x1]
        %v1426 = vlaneseq
        %v1427 = vshrl.u32 %v1426, 7
        %v1428 = vsub.s32 0, %v1427
        %v1429 = vrot.slane %v1425, %v1428
        %v1430 = vmul.f32 %v1420, %v1429
        %v1431 = vmul.f32 %v1421, %v1429
        %v1432 = vmul.f32 %v1422, %v1429
        %v1433 = vmul.f32 %v1423, %v1429
        %v1434 = vmul.f32 %v1424, %v1429
        %v1435 = vadd.f32 %v1415, %v1430
        %v1436 = vadd.f32 %v1416, %v1431
        %v1437 = vadd.f32 %v1417, %v1432
        %v1438 = vadd.f32 %v1418, %v1433
        %v1439 = vadd.f32 %v1419, %v1434
        %1445 = vrot.lane.b32.xlu0 %v1400, 112
        %v1446 = vpop.permute.xlu0 %1445
        %1447 = vrot.lane.b32.xlu0 %v1401, 112
        %v1448 = vpop.permute.xlu0 %1447
        %1449 = vrot.lane.b32.xlu0 %v1402, 112
        %v1450 = vpop.permute.xlu0 %1449
        %1451 = vrot.lane.b32.xlu0 %v1403, 112
        %v1452 = vpop.permute.xlu0 %1451
        %1453 = vrot.lane.b32.xlu0 %v1404, 112
        %v1454 = vpop.permute.xlu0 %1453
        %v1460 = vsel %vm1042, %v1446, 0.0
        %v1461 = vsel %vm1042, %v1448, 0.0
        %v1462 = vsel %vm1042, %v1450, 0.0
        %v1463 = vsel %vm1042, %v1452, 0.0
        %v1464 = vsel %vm1042, %v1454, 0.0
        %v1465 = vld [vmem:[%s1 + $0x2] sm:$0x1]
        %v1466 = vlaneseq
        %v1467 = vshrl.u32 %v1466, 7
        %v1468 = vsub.s32 0, %v1467
        %v1469 = vrot.slane %v1465, %v1468
        %v1470 = vmul.f32 %v1460, %v1469
        %v1471 = vmul.f32 %v1461, %v1469
        %v1472 = vmul.f32 %v1462, %v1469
        %v1473 = vmul.f32 %v1463, %v1469
        %v1474 = vmul.f32 %v1464, %v1469
        %v1475 = vadd.f32 %v1435, %v1470
        %v1476 = vadd.f32 %v1436, %v1471
        %v1477 = vadd.f32 %v1437, %v1472
        %v1478 = vadd.f32 %v1438, %v1473
        %v1479 = vadd.f32 %v1439, %v1474
        %v1480 = vld [vmem:[%s354 + $0x1] sm:$0xff]
        %v1481 = vld [vmem:[%s354 + $0x9] sm:$0xff]
        %v1482 = vld [vmem:[%s354 + $0x11] sm:$0xff]
        %v1483 = vld [vmem:[%s354 + $0x19] sm:$0xff]
        %v1484 = vld [vmem:[%s354 + $0x21] sm:$0x3f]
        %v1485 = vld [vmem:[%s1 + $0x3] sm:$0x1]
        %v1486 = vlaneseq
        %v1487 = vshrl.u32 %v1486, 7
        %v1488 = vsub.s32 0, %v1487
        %v1489 = vrot.slane %v1485, %v1488
        %v1490 = vmul.f32 %v1480, %v1489
        %v1491 = vmul.f32 %v1481, %v1489
        %v1492 = vmul.f32 %v1482, %v1489
        %v1493 = vmul.f32 %v1483, %v1489
        %v1494 = vmul.f32 %v1484, %v1489
        %v1495 = vadd.f32 %v1475, %v1490
        %v1496 = vadd.f32 %v1476, %v1491
        %v1497 = vadd.f32 %v1477, %v1492
        %v1498 = vadd.f32 %v1478, %v1493
        %v1499 = vadd.f32 %v1479, %v1494
        %v1500 = vld [vmem:[%s307 + $0x1] sm:$0xff]
        %v1501 = vld [vmem:[%s307 + $0x9] sm:$0xff]
        %v1502 = vld [vmem:[%s307 + $0x11] sm:$0xff]
        %v1503 = vld [vmem:[%s307 + $0x19] sm:$0xff]
        %v1504 = vld [vmem:[%s307 + $0x21] sm:$0x3f]
        %v1505 = vld [vmem:[%s1 + $0x4] sm:$0x1]
        %v1506 = vlaneseq
        %v1507 = vshrl.u32 %v1506, 7
        %v1508 = vsub.s32 0, %v1507
        %v1509 = vrot.slane %v1505, %v1508
        %v1510 = vmul.f32 %v1500, %v1509
        %v1511 = vmul.f32 %v1501, %v1509
        %v1512 = vmul.f32 %v1502, %v1509
        %v1513 = vmul.f32 %v1503, %v1509
        %v1514 = vmul.f32 %v1504, %v1509
        %v1515 = vadd.f32 %v1495, %v1510
        %v1516 = vadd.f32 %v1496, %v1511
        %v1517 = vadd.f32 %v1497, %v1512
        %v1518 = vadd.f32 %v1498, %v1513
        %v1519 = vadd.f32 %v1499, %v1514
        %1525 = vrot.lane.b32.xlu0 %v1480, 112
        %v1526 = vpop.permute.xlu0 %1525
        %1527 = vrot.lane.b32.xlu0 %v1481, 112
        %v1528 = vpop.permute.xlu0 %1527
        %1529 = vrot.lane.b32.xlu0 %v1482, 112
        %v1530 = vpop.permute.xlu0 %1529
        %1531 = vrot.lane.b32.xlu0 %v1483, 112
        %v1532 = vpop.permute.xlu0 %1531
        %1533 = vrot.lane.b32.xlu0 %v1484, 112
        %v1534 = vpop.permute.xlu0 %1533
        %v1540 = vsel %vm1042, %v1526, 0.0
        %v1541 = vsel %vm1042, %v1528, 0.0
        %v1542 = vsel %vm1042, %v1530, 0.0
        %v1543 = vsel %vm1042, %v1532, 0.0
        %v1544 = vsel %vm1042, %v1534, 0.0
        %v1545 = vld [vmem:[%s1 + $0x5] sm:$0x1]
        %v1546 = vlaneseq
        %v1547 = vshrl.u32 %v1546, 7
        %v1548 = vsub.s32 0, %v1547
        %v1549 = vrot.slane %v1545, %v1548
        %v1550 = vmul.f32 %v1540, %v1549
        %v1551 = vmul.f32 %v1541, %v1549
        %v1552 = vmul.f32 %v1542, %v1549
        %v1553 = vmul.f32 %v1543, %v1549
        %v1554 = vmul.f32 %v1544, %v1549
        %v1555 = vadd.f32 %v1515, %v1550
        %v1556 = vadd.f32 %v1516, %v1551
        %v1557 = vadd.f32 %v1517, %v1552
        %v1558 = vadd.f32 %v1518, %v1553
        %v1559 = vadd.f32 %v1519, %v1554
        %v1560 = vld [vmem:[%s262 + $0x2] sm:$0xff]
        %v1561 = vld [vmem:[%s262 + $0xa] sm:$0xff]
        %v1562 = vld [vmem:[%s262 + $0x12] sm:$0xff]
        %v1563 = vld [vmem:[%s262 + $0x1a] sm:$0xff]
        %v1564 = vld [vmem:[%s262 + $0x22] sm:$0x3f]
        %v1565 = vld [vmem:[%s1 + $0x6] sm:$0x1]
        %v1566 = vlaneseq
        %v1567 = vshrl.u32 %v1566, 7
        %v1568 = vsub.s32 0, %v1567
        %v1569 = vrot.slane %v1565, %v1568
        %v1570 = vmul.f32 %v1560, %v1569
        %v1571 = vmul.f32 %v1561, %v1569
        %v1572 = vmul.f32 %v1562, %v1569
        %v1573 = vmul.f32 %v1563, %v1569
        %v1574 = vmul.f32 %v1564, %v1569
        %v1575 = vadd.f32 %v1555, %v1570
        %v1576 = vadd.f32 %v1556, %v1571
        %v1577 = vadd.f32 %v1557, %v1572
        %v1578 = vadd.f32 %v1558, %v1573
        %v1579 = vadd.f32 %v1559, %v1574
        %v1580 = vld [vmem:[%s390 + $0x2] sm:$0xff]
        %v1581 = vld [vmem:[%s390 + $0xa] sm:$0xff]
        %v1582 = vld [vmem:[%s390 + $0x12] sm:$0xff]
        %v1583 = vld [vmem:[%s390 + $0x1a] sm:$0xff]
        %v1584 = vld [vmem:[%s390 + $0x22] sm:$0x3f]
        %v1585 = vld [vmem:[%s1 + $0x7] sm:$0x1]
        %v1586 = vlaneseq
        %v1587 = vshrl.u32 %v1586, 7
        %v1588 = vsub.s32 0, %v1587
        %v1589 = vrot.slane %v1585, %v1588
        %v1590 = vmul.f32 %v1580, %v1589
        %v1591 = vmul.f32 %v1581, %v1589
        %v1592 = vmul.f32 %v1582, %v1589
        %v1593 = vmul.f32 %v1583, %v1589
        %v1594 = vmul.f32 %v1584, %v1589
        %v1595 = vadd.f32 %v1575, %v1590
        %v1596 = vadd.f32 %v1576, %v1591
        %v1597 = vadd.f32 %v1577, %v1592
        %v1598 = vadd.f32 %v1578, %v1593
        %v1599 = vadd.f32 %v1579, %v1594
        %1605 = vrot.lane.b32.xlu0 %v1560, 112
        %v1606 = vpop.permute.xlu0 %1605
        %1607 = vrot.lane.b32.xlu0 %v1561, 112
        %v1608 = vpop.permute.xlu0 %1607
        %1609 = vrot.lane.b32.xlu0 %v1562, 112
        %v1610 = vpop.permute.xlu0 %1609
        %1611 = vrot.lane.b32.xlu0 %v1563, 112
        %v1612 = vpop.permute.xlu0 %1611
        %1613 = vrot.lane.b32.xlu0 %v1564, 112
        %v1614 = vpop.permute.xlu0 %1613
        %v1620 = vsel %vm1042, %v1606, 0.0
        %v1621 = vsel %vm1042, %v1608, 0.0
        %v1622 = vsel %vm1042, %v1610, 0.0
        %v1623 = vsel %vm1042, %v1612, 0.0
        %v1624 = vsel %vm1042, %v1614, 0.0
        %v1625 = vld [vmem:[%s1 + $0x8] sm:$0x1]
        %v1626 = vlaneseq
        %v1627 = vshrl.u32 %v1626, 7
        %v1628 = vsub.s32 0, %v1627
        %v1629 = vrot.slane %v1625, %v1628
        %v1630 = vmul.f32 %v1620, %v1629
        %v1631 = vmul.f32 %v1621, %v1629
        %v1632 = vmul.f32 %v1622, %v1629
        %v1633 = vmul.f32 %v1623, %v1629
        %v1634 = vmul.f32 %v1624, %v1629
        %v1635 = vadd.f32 %v1595, %v1630
        %v1636 = vadd.f32 %v1596, %v1631
        %v1637 = vadd.f32 %v1597, %v1632
        %v1638 = vadd.f32 %v1598, %v1633
        %v1639 = vadd.f32 %v1599, %v1634
        %v1640 = vld [vmem:[%s2] sm:$0x1]
        %v1641 = vlaneseq
        %v1642 = vshrl.u32 %v1641, 7
        %v1643 = vsub.s32 0, %v1642
        %v1644 = vrot.slane %v1640, %v1643
        %v1645 = vmul.f32 %v1635, %v1644
        %v1646 = vmul.f32 %v1636, %v1644
        %v1647 = vmul.f32 %v1637, %v1644
        %v1648 = vmul.f32 %v1638, %v1644
        %v1649 = vmul.f32 %v1639, %v1644
        %v1650 = vld [vmem:[%s2 + $0x1] sm:$0x1]
        %v1651 = vlaneseq
        %v1652 = vshrl.u32 %v1651, 7
        %v1653 = vsub.s32 0, %v1652
        %v1654 = vrot.slane %v1650, %v1653
        %v1655 = vadd.f32 %v1645, %v1654
        %v1656 = vadd.f32 %v1646, %v1654
        %v1657 = vadd.f32 %v1647, %v1654
        %v1658 = vadd.f32 %v1648, %v1654
        %v1659 = vadd.f32 %v1649, %v1654
        %vm1660 = vcmp.gt.f32.partialorder %v1655, 0.0
        %vm1661 = vcmp.gt.f32.partialorder %v1656, 0.0
        %vm1662 = vcmp.gt.f32.partialorder %v1657, 0.0
        %vm1663 = vcmp.gt.f32.partialorder %v1658, 0.0
        %vm1664 = vcmp.gt.f32.partialorder %v1659, 0.0
        %v1665 = vld [vmem:[%s2 + $0x2] sm:$0x1]
        %v1666 = vlaneseq
        %v1667 = vshrl.u32 %v1666, 7
        %v1668 = vsub.s32 0, %v1667
        %v1669 = vrot.slane %v1665, %v1668
        %v1670 = vmul.f32 %v1655, %v1669
        %v1671 = vmul.f32 %v1656, %v1669
        %v1672 = vmul.f32 %v1657, %v1669
        %v1673 = vmul.f32 %v1658, %v1669
        %v1674 = vmul.f32 %v1659, %v1669
        %v1675 = vsel %vm1660, %v1655, %v1670
        %v1676 = vsel %vm1661, %v1656, %v1671
        %v1677 = vsel %vm1662, %v1657, %v1672
        %v1678 = vsel %vm1663, %v1658, %v1673
        %v1679 = vsel %vm1664, %v1659, %v1674
        %v1680 = vld [vmem:[#allocation7] sm:$0xff]
        %v1681 = vld [vmem:[#allocation7 + $0x8] sm:$0xff]
        %v1682 = vld [vmem:[#allocation7 + $0x10] sm:$0xff]
        %v1683 = vld [vmem:[#allocation7 + $0x18] sm:$0xff]
        %v1684 = vld [vmem:[#allocation7 + $0x20] sm:$0xff]
        %v1685 = vld [vmem:[#allocation7 + $0x28] sm:$0xff]
        %v1686 = vld [vmem:[#allocation7 + $0x30] sm:$0xff]
        %v1687 = vld [vmem:[#allocation7 + $0x38] sm:$0xff]
        %v1688 = vld [vmem:[#allocation7 + $0x40] sm:$0xff]
        %v1689 = vld [vmem:[#allocation7 + $0x48] sm:$0xff]
        %v1690 = vld [vmem:[#allocation7 + $0x50] sm:$0xff]
        %v1691 = vld [vmem:[#allocation7 + $0x58] sm:$0xff]
        %v1692 = vld [vmem:[#allocation7 + $0x60] sm:$0xff]
        %v1693 = vld [vmem:[#allocation7 + $0x68] sm:$0xff]
        %v1694 = vld [vmem:[#allocation7 + $0x70] sm:$0xff]
        %v1695 = vld [vmem:[#allocation7 + $0x78] sm:$0xff]
        %v1696 = vld [vmem:[%s2 + $0x3] sm:$0x1]
        %v1697 = vlaneseq
        %v1698 = vshrl.u32 %v1697, 7
        %v1699 = vsub.s32 0, %v1698
        %v1700 = vrot.slane %v1696, %v1699
        %1701 = vmatprep.subr.mxu0 0.0
        %1702 = vmatpush1.msra.mxu0 %v1680
        %1703 = vmatprep.subr.mxu0 0.0
        %1704 = vmatpush1.msra.mxu0 %v1681
        %1705 = vmatprep.subr.mxu0 0.0
        %1706 = vmatpush1.msra.mxu0 %v1682
        %1707 = vmatprep.subr.mxu0 0.0
        %1708 = vmatpush1.msra.mxu0 %v1683
        %1709 = vmatprep.subr.mxu0 0.0
        %1710 = vmatpush1.msra.mxu0 %v1684
        %1711 = vmatprep.subr.mxu0 0.0
        %1712 = vmatpush1.msra.mxu0 %v1685
        %1713 = vmatprep.subr.mxu0 0.0
        %1714 = vmatpush1.msra.mxu0 %v1686
        %1715 = vmatprep.subr.mxu0 0.0
        %1716 = vmatpush1.msra.mxu0 %v1687
        %1717 = vmatprep.subr.mxu0 0.0
        %1718 = vmatpush1.msra.mxu0 %v1688
        %1719 = vmatprep.subr.mxu0 0.0
        %1720 = vmatpush1.msra.mxu0 %v1689
        %1721 = vmatprep.subr.mxu0 0.0
        %1722 = vmatpush1.msra.mxu0 %v1690
        %1723 = vmatprep.subr.mxu0 0.0
        %1724 = vmatpush1.msra.mxu0 %v1691
        %1725 = vmatprep.subr.mxu0 0.0
        %1726 = vmatpush1.msra.mxu0 %v1692
        %1727 = vmatprep.subr.mxu0 0.0
        %1728 = vmatpush1.msra.mxu0 %v1693
        %1729 = vmatprep.subr.mxu0 0.0
        %1730 = vmatpush1.msra.mxu0 %v1694
        %1731 = vmatprep.subr.mxu0 0.0
        %1732 = vmatpush1.msra.mxu0 %v1695
        %1733 = vmatprep.subr.mxu0 0.0
        %1734 = vmatpush1.msra.mxu0 0.0
        %1735 = vmatprep.subr.mxu0 0.0
        %1736 = vmatpush1.msra.mxu0 0.0
        %1737 = vmatprep.subr.mxu0 0.0
        %1738 = vmatpush1.msra.mxu0 0.0
        %1739 = vmatprep.subr.mxu0 0.0
        %1740 = vmatpush1.msra.mxu0 0.0
        %1741 = vmatprep.subr.mxu0 0.0
        %1742 = vmatpush1.msra.mxu0 0.0
        %1743 = vmatprep.subr.mxu0 0.0
        %1744 = vmatpush1.msra.mxu0 0.0
        %1745 = vmatprep.subr.mxu0 0.0
        %1746 = vmatpush1.msra.mxu0 0.0
        %1747 = vmatprep.subr.mxu0 0.0
        %1748 = vmatpush1.msra.mxu0 0.0
        %1749 = vmatprep.subr.mxu0 0.0
        %1750 = vmatpush1.msra.mxu0 0.0
        %1751 = vmatprep.subr.mxu0 0.0
        %1752 = vmatpush1.msra.mxu0 0.0
        %1753 = vmatprep.subr.mxu0 0.0
        %1754 = vmatpush1.msra.mxu0 0.0
        %1755 = vmatprep.subr.mxu0 0.0
        %1756 = vmatpush1.msra.mxu0 0.0
        %1757 = vmatprep.subr.mxu0 0.0
        %1758 = vmatpush1.msra.mxu0 0.0
        %1759 = vmatprep.subr.mxu0 0.0
        %1760 = vmatpush1.msra.mxu0 0.0
        %1761 = vmatprep.subr.mxu0 0.0
        %1762 = vmatpush1.msra.mxu0 0.0
        %1763 = vmatprep.subr.mxu0 0.0
        %1764 = vmatpush1.msra.mxu0 0.0
        %1765 = vmatprep.mubr.f32.mxu0 0.0
        %1766 = vmatmul.mubr.f32.gmra.mrb[0].mxu0 %v1675
        %v1767 = vpop.f32.mrb[0].mxu0
        %v1768 = vadd.f32 %v1700, %v1767
        %v1769 = vpop.f32.mrb[0].mxu0
        %1770 = vmatprep.mubr.f32.mxu0 0.0
        %1771 = vmatmul.mubr.f32.gmra.mrb[0].mxu0 %v1676
        %v1772 = vpop.f32.mrb[0].mxu0
        %v1773 = vadd.f32 %v1700, %v1772
        %v1774 = vpop.f32.mrb[0].mxu0
        %1775 = vmatprep.mubr.f32.mxu0 0.0
        %1776 = vmatmul.mubr.f32.gmra.mrb[0].mxu0 %v1677
        %v1777 = vpop.f32.mrb[0].mxu0
        %v1778 = vadd.f32 %v1700, %v1777
        %v1779 = vpop.f32.mrb[0].mxu0
        %1780 = vmatprep.mubr.f32.mxu0 0.0
        %1781 = vmatmul.mubr.f32.gmra.mrb[0].mxu0 %v1678
        %v1782 = vpop.f32.mrb[0].mxu0
        %v1783 = vadd.f32 %v1700, %v1782
        %v1784 = vpop.f32.mrb[0].mxu0
        %1785 = vmatprep.mubr.f32.mxu0 0.0
        %1786 = vmatmul.mubr.f32.gmra.mrb[0].mxu0 %v1679
        %v1787 = vpop.f32.mrb[0].mxu0
        %v1788 = vadd.f32 %v1700, %v1787
        %v1789 = vpop.f32.mrb[0].mxu0
        %1790 = vdwg.mxu0
        %vm1791 = vcmp.gt.f32.partialorder %v1768, 0.0
        %vm1792 = vcmp.gt.f32.partialorder %v1773, 0.0
        %vm1793 = vcmp.gt.f32.partialorder %v1778, 0.0
        %vm1794 = vcmp.gt.f32.partialorder %v1783, 0.0
        %vm1795 = vcmp.gt.f32.partialorder %v1788, 0.0
        %v1796 = vld [vmem:[%s2 + $0x4] sm:$0x1]
        %v1797 = vlaneseq
        %v1798 = vshrl.u32 %v1797, 7
        %v1799 = vsub.s32 0, %v1798
        %v1800 = vrot.slane %v1796, %v1799
        %v1801 = vmul.f32 %v1768, %v1800
        %v1802 = vmul.f32 %v1773, %v1800
        %v1803 = vmul.f32 %v1778, %v1800
        %v1804 = vmul.f32 %v1783, %v1800
        %v1805 = vmul.f32 %v1788, %v1800
        %v1806 = vsel %vm1791, %v1768, %v1801
        %v1807 = vsel %vm1792, %v1773, %v1802
        %v1808 = vsel %vm1793, %v1778, %v1803
        %v1809 = vsel %vm1794, %v1783, %v1804
        %v1810 = vsel %vm1795, %v1788, %v1805
        %s1811 = scalar_lea.vmem [#allocation3], 80
        %1812 = vst [vmem:[%s1811] sm:$0xff] %v1806
        %1813 = vst [vmem:[%s1811 + $0x8] sm:$0xff] %v1807
        %1814 = vst [vmem:[%s1811 + $0x10] sm:$0xff] %v1808
        %1815 = vst [vmem:[%s1811 + $0x18] sm:$0xff] %v1809
        %1816 = vst [vmem:[%s1811 + $0x20] sm:$0x3f] %v1810
        %v1817 = vld [vmem:[#allocation9] sm:$0xff]
        %v1818 = vld [vmem:[#allocation9 + $0x8] sm:$0xff]
        %v1819 = vld [vmem:[#allocation9 + $0x10] sm:$0xff]
        %v1820 = vld [vmem:[#allocation9 + $0x18] sm:$0xff]
        %v1821 = vld [vmem:[#allocation9 + $0x20] sm:$0xff]
        %v1822 = vld [vmem:[#allocation9 + $0x28] sm:$0xff]
        %v1823 = vld [vmem:[#allocation9 + $0x30] sm:$0xff]
        %v1824 = vld [vmem:[#allocation9 + $0x38] sm:$0xff]
        %v1825 = vld [vmem:[#allocation9 + $0x40] sm:$0xff]
        %v1826 = vld [vmem:[#allocation9 + $0x48] sm:$0xff]
        %v1827 = vld [vmem:[#allocation9 + $0x50] sm:$0xff]
        %v1828 = vld [vmem:[#allocation9 + $0x58] sm:$0xff]
        %v1829 = vld [vmem:[#allocation9 + $0x60] sm:$0xff]
        %v1830 = vld [vmem:[#allocation9 + $0x68] sm:$0xff]
        %v1831 = vld [vmem:[#allocation9 + $0x70] sm:$0xff]
        %v1832 = vld [vmem:[#allocation9 + $0x78] sm:$0xff]
        %v1833 = vld [vmem:[#allocation3] sm:$0xff]
        %v1834 = vld [vmem:[#allocation3 + $0x8] sm:$0xff]
        %v1835 = vld [vmem:[#allocation3 + $0x10] sm:$0xff]
        %v1836 = vld [vmem:[#allocation3 + $0x18] sm:$0xff]
        %v1837 = vld [vmem:[#allocation3 + $0x20] sm:$0x3f]
        %s1838 = scalar_lea.vmem [#allocation9], 128
        %v1839 = vld [vmem:[%s1838] sm:$0xff]
        %v1840 = vld [vmem:[%s1838 + $0x8] sm:$0xff]
        %v1841 = vld [vmem:[%s1838 + $0x10] sm:$0xff]
        %v1842 = vld [vmem:[%s1838 + $0x18] sm:$0xff]
        %v1843 = vld [vmem:[%s1838 + $0x20] sm:$0xff]
        %v1844 = vld [vmem:[%s1838 + $0x28] sm:$0xff]
        %v1845 = vld [vmem:[%s1838 + $0x30] sm:$0xff]
        %v1846 = vld [vmem:[%s1838 + $0x38] sm:$0xff]
        %v1847 = vld [vmem:[%s1838 + $0x40] sm:$0xff]
        %v1848 = vld [vmem:[%s1838 + $0x48] sm:$0xff]
        %v1849 = vld [vmem:[%s1838 + $0x50] sm:$0xff]
        %v1850 = vld [vmem:[%s1838 + $0x58] sm:$0xff]
        %v1851 = vld [vmem:[%s1838 + $0x60] sm:$0xff]
        %v1852 = vld [vmem:[%s1838 + $0x68] sm:$0xff]
        %v1853 = vld [vmem:[%s1838 + $0x70] sm:$0xff]
        %v1854 = vld [vmem:[%s1838 + $0x78] sm:$0xff]
        %1855 = vmatprep.subr.mxu0 0.0
        %1856 = vmatpush1.msra.mxu0 %v1839
        %1857 = vmatprep.subr.mxu0 0.0
        %1858 = vmatpush1.msra.mxu0 %v1840
        %1859 = vmatprep.subr.mxu0 0.0
        %1860 = vmatpush1.msra.mxu0 %v1841
        %1861 = vmatprep.subr.mxu0 0.0
        %1862 = vmatpush1.msra.mxu0 %v1842
        %1863 = vmatprep.subr.mxu0 0.0
        %1864 = vmatpush1.msra.mxu0 %v1843
        %1865 = vmatprep.subr.mxu0 0.0
        %1866 = vmatpush1.msra.mxu0 %v1844
        %1867 = vmatprep.subr.mxu0 0.0
        %1868 = vmatpush1.msra.mxu0 %v1845
        %1869 = vmatprep.subr.mxu0 0.0
        %1870 = vmatpush1.msra.mxu0 %v1846
        %1871 = vmatprep.subr.mxu0 0.0
        %1872 = vmatpush1.msra.mxu0 %v1847
        %1873 = vmatprep.subr.mxu0 0.0
        %1874 = vmatpush1.msra.mxu0 %v1848
        %1875 = vmatprep.subr.mxu0 0.0
        %1876 = vmatpush1.msra.mxu0 %v1849
        %1877 = vmatprep.subr.mxu0 0.0
        %1878 = vmatpush1.msra.mxu0 %v1850
        %1879 = vmatprep.subr.mxu0 0.0
        %1880 = vmatpush1.msra.mxu0 %v1851
        %1881 = vmatprep.subr.mxu0 0.0
        %1882 = vmatpush1.msra.mxu0 %v1852
        %1883 = vmatprep.subr.mxu0 0.0
        %1884 = vmatpush1.msra.mxu0 %v1853
        %1885 = vmatprep.subr.mxu0 0.0
        %1886 = vmatpush1.msra.mxu0 %v1854
        %1887 = vmatprep.subr.mxu0 0.0
        %1888 = vmatpush1.msra.mxu0 0.0
        %1889 = vmatprep.subr.mxu0 0.0
        %1890 = vmatpush1.msra.mxu0 0.0
        %1891 = vmatprep.subr.mxu0 0.0
        %1892 = vmatpush1.msra.mxu0 0.0
        %1893 = vmatprep.subr.mxu0 0.0
        %1894 = vmatpush1.msra.mxu0 0.0
        %1895 = vmatprep.subr.mxu0 0.0
        %1896 = vmatpush1.msra.mxu0 0.0
        %1897 = vmatprep.subr.mxu0 0.0
        %1898 = vmatpush1.msra.mxu0 0.0
        %1899 = vmatprep.subr.mxu0 0.0
        %1900 = vmatpush1.msra.mxu0 0.0
        %1901 = vmatprep.subr.mxu0 0.0
        %1902 = vmatpush1.msra.mxu0 0.0
        %1903 = vmatprep.subr.mxu0 0.0
        %1904 = vmatpush1.msra.mxu0 0.0
        %1905 = vmatprep.subr.mxu0 0.0
        %1906 = vmatpush1.msra.mxu0 0.0
        %1907 = vmatprep.subr.mxu0 0.0
        %1908 = vmatpush1.msra.mxu0 0.0
        %1909 = vmatprep.subr.mxu0 0.0
        %1910 = vmatpush1.msra.mxu0 0.0
        %1911 = vmatprep.subr.mxu0 0.0
        %1912 = vmatpush1.msra.mxu0 0.0
        %1913 = vmatprep.subr.mxu0 0.0
        %1914 = vmatpush1.msra.mxu0 0.0
        %1915 = vmatprep.subr.mxu0 0.0
        %1916 = vmatpush1.msra.mxu0 0.0
        %1917 = vmatprep.subr.mxu0 0.0
        %1918 = vmatpush1.msra.mxu0 0.0
        %1919 = vmatprep.mubr.f32.mxu0 0.0
        %1920 = vmatmul.mubr.f32.gmra.mrb[0].mxu0 %v1833
        %v1921 = vpop.f32.mrb[0].mxu0
        %v1922 = vadd.f32 0.0, %v1921
        %v1923 = vpop.f32.mrb[0].mxu0
        %1924 = vmatprep.mubr.f32.mxu0 0.0
        %1925 = vmatmul.mubr.f32.gmra.mrb[0].mxu0 %v1834
        %v1926 = vpop.f32.mrb[0].mxu0
        %v1927 = vadd.f32 0.0, %v1926
        %v1928 = vpop.f32.mrb[0].mxu0
        %1929 = vmatprep.mubr.f32.mxu0 0.0
        %1930 = vmatmul.mubr.f32.gmra.mrb[0].mxu0 %v1835
        %v1931 = vpop.f32.mrb[0].mxu0
        %v1932 = vadd.f32 0.0, %v1931
        %v1933 = vpop.f32.mrb[0].mxu0
        %1934 = vmatprep.mubr.f32.mxu0 0.0
        %1935 = vmatmul.mubr.f32.gmra.mrb[0].mxu0 %v1836
        %v1936 = vpop.f32.mrb[0].mxu0
        %v1937 = vadd.f32 0.0, %v1936
        %v1938 = vpop.f32.mrb[0].mxu0
        %1939 = vmatprep.mubr.f32.mxu0 0.0
        %1940 = vmatmul.mubr.f32.gmra.mrb[0].mxu0 %v1837
        %v1941 = vpop.f32.mrb[0].mxu0
        %v1942 = vadd.f32 0.0, %v1941
        %v1943 = vpop.f32.mrb[0].mxu0
        %1944 = vdwg.mxu0
        %1945 = vmatprep.subr.mxu0 0.0
        %1946 = vmatpush1.msra.mxu0 %v1817
        %1947 = vmatprep.subr.mxu0 0.0
        %1948 = vmatpush1.msra.mxu0 %v1818
        %1949 = vmatprep.subr.mxu0 0.0
        %1950 = vmatpush1.msra.mxu0 %v1819
        %1951 = vmatprep.subr.mxu0 0.0
        %1952 = vmatpush1.msra.mxu0 %v1820
        %1953 = vmatprep.subr.mxu0 0.0
        %1954 = vmatpush1.msra.mxu0 %v1821
        %1955 = vmatprep.subr.mxu0 0.0
        %1956 = vmatpush1.msra.mxu0 %v1822
        %1957 = vmatprep.subr.mxu0 0.0
        %1958 = vmatpush1.msra.mxu0 %v1823
        %1959 = vmatprep.subr.mxu0 0.0
        %1960 = vmatpush1.msra.mxu0 %v1824
        %1961 = vmatprep.subr.mxu0 0.0
        %1962 = vmatpush1.msra.mxu0 %v1825
        %1963 = vmatprep.subr.mxu0 0.0
        %1964 = vmatpush1.msra.mxu0 %v1826
        %1965 = vmatprep.subr.mxu0 0.0
        %1966 = vmatpush1.msra.mxu0 %v1827
        %1967 = vmatprep.subr.mxu0 0.0
        %1968 = vmatpush1.msra.mxu0 %v1828
        %1969 = vmatprep.subr.mxu0 0.0
        %1970 = vmatpush1.msra.mxu0 %v1829
        %1971 = vmatprep.subr.mxu0 0.0
        %1972 = vmatpush1.msra.mxu0 %v1830
        %1973 = vmatprep.subr.mxu0 0.0
        %1974 = vmatpush1.msra.mxu0 %v1831
        %1975 = vmatprep.subr.mxu0 0.0
        %1976 = vmatpush1.msra.mxu0 %v1832
        %1977 = vmatprep.subr.mxu0 0.0
        %1978 = vmatpush1.msra.mxu0 0.0
        %1979 = vmatprep.subr.mxu0 0.0
        %1980 = vmatpush1.msra.mxu0 0.0
        %1981 = vmatprep.subr.mxu0 0.0
        %1982 = vmatpush1.msra.mxu0 0.0
        %1983 = vmatprep.subr.mxu0 0.0
        %1984 = vmatpush1.msra.mxu0 0.0
        %1985 = vmatprep.subr.mxu0 0.0
        %1986 = vmatpush1.msra.mxu0 0.0
        %1987 = vmatprep.subr.mxu0 0.0
        %1988 = vmatpush1.msra.mxu0 0.0
        %1989 = vmatprep.subr.mxu0 0.0
        %1990 = vmatpush1.msra.mxu0 0.0
        %1991 = vmatprep.subr.mxu0 0.0
        %1992 = vmatpush1.msra.mxu0 0.0
        %1993 = vmatprep.subr.mxu0 0.0
        %1994 = vmatpush1.msra.mxu0 0.0
        %1995 = vmatprep.subr.mxu0 0.0
        %1996 = vmatpush1.msra.mxu0 0.0
        %1997 = vmatprep.subr.mxu0 0.0
        %1998 = vmatpush1.msra.mxu0 0.0
        %1999 = vmatprep.subr.mxu0 0.0
        %2000 = vmatpush1.msra.mxu0 0.0
        %2001 = vmatprep.subr.mxu0 0.0
        %2002 = vmatpush1.msra.mxu0 0.0
        %2003 = vmatprep.subr.mxu0 0.0
        %2004 = vmatpush1.msra.mxu0 0.0
        %2005 = vmatprep.subr.mxu0 0.0
        %2006 = vmatpush1.msra.mxu0 0.0
        %2007 = vmatprep.subr.mxu0 0.0
        %2008 = vmatpush1.msra.mxu0 0.0
        %2009 = vmatprep.mubr.f32.mxu0 0.0
        %2010 = vmatmul.mubr.f32.gmra.mrb[0].mxu0 %v717
        %v2011 = vpop.f32.mrb[0].mxu0
        %v2012 = vadd.f32 %v1922, %v2011
        %v2013 = vpop.f32.mrb[0].mxu0
        %2014 = vmatprep.mubr.f32.mxu0 0.0
        %2015 = vmatmul.mubr.f32.gmra.mrb[0].mxu0 %v718
        %v2016 = vpop.f32.mrb[0].mxu0
        %v2017 = vadd.f32 %v1927, %v2016
        %v2018 = vpop.f32.mrb[0].mxu0
        %2019 = vmatprep.mubr.f32.mxu0 0.0
        %2020 = vmatmul.mubr.f32.gmra.mrb[0].mxu0 %v719
        %v2021 = vpop.f32.mrb[0].mxu0
        %v2022 = vadd.f32 %v1932, %v2021
        %v2023 = vpop.f32.mrb[0].mxu0
        %2024 = vmatprep.mubr.f32.mxu0 0.0
        %2025 = vmatmul.mubr.f32.gmra.mrb[0].mxu0 %v720
        %v2026 = vpop.f32.mrb[0].mxu0
        %v2027 = vadd.f32 %v1937, %v2026
        %v2028 = vpop.f32.mrb[0].mxu0
        %2029 = vmatprep.mubr.f32.mxu0 0.0
        %2030 = vmatmul.mubr.f32.gmra.mrb[0].mxu0 %v721
        %v2031 = vpop.f32.mrb[0].mxu0
        %v2032 = vadd.f32 %v1942, %v2031
        %v2033 = vpop.f32.mrb[0].mxu0
        %2034 = vdwg.mxu0
        %v2035 = vld [vmem:[%s1394] sm:$0xff]
        %v2036 = vld [vmem:[%s1394 + $0x8] sm:$0xff]
        %v2037 = vld [vmem:[%s1394 + $0x10] sm:$0xff]
        %v2038 = vld [vmem:[%s1394 + $0x18] sm:$0xff]
        %v2039 = vld [vmem:[%s1394 + $0x20] sm:$0x3f]
        %s2040 = scalar_lea.vmem [#allocation9], 256
        %v2041 = vld [vmem:[%s2040] sm:$0xff]
        %v2042 = vld [vmem:[%s2040 + $0x8] sm:$0xff]
        %v2043 = vld [vmem:[%s2040 + $0x10] sm:$0xff]
        %v2044 = vld [vmem:[%s2040 + $0x18] sm:$0xff]
        %v2045 = vld [vmem:[%s2040 + $0x20] sm:$0xff]
        %v2046 = vld [vmem:[%s2040 + $0x28] sm:$0xff]
        %v2047 = vld [vmem:[%s2040 + $0x30] sm:$0xff]
        %v2048 = vld [vmem:[%s2040 + $0x38] sm:$0xff]
        %v2049 = vld [vmem:[%s2040 + $0x40] sm:$0xff]
        %v2050 = vld [vmem:[%s2040 + $0x48] sm:$0xff]
        %v2051 = vld [vmem:[%s2040 + $0x50] sm:$0xff]
        %v2052 = vld [vmem:[%s2040 + $0x58] sm:$0xff]
        %v2053 = vld [vmem:[%s2040 + $0x60] sm:$0xff]
        %v2054 = vld [vmem:[%s2040 + $0x68] sm:$0xff]
        %v2055 = vld [vmem:[%s2040 + $0x70] sm:$0xff]
        %v2056 = vld [vmem:[%s2040 + $0x78] sm:$0xff]
        %2057 = vmatprep.subr.mxu0 0.0
        %2058 = vmatpush1.msra.mxu0 %v2041
        %2059 = vmatprep.subr.mxu0 0.0
        %2060 = vmatpush1.msra.mxu0 %v2042
        %2061 = vmatprep.subr.mxu0 0.0
        %2062 = vmatpush1.msra.mxu0 %v2043
        %2063 = vmatprep.subr.mxu0 0.0
        %2064 = vmatpush1.msra.mxu0 %v2044
        %2065 = vmatprep.subr.mxu0 0.0
        %2066 = vmatpush1.msra.mxu0 %v2045
        %2067 = vmatprep.subr.mxu0 0.0
        %2068 = vmatpush1.msra.mxu0 %v2046
        %2069 = vmatprep.subr.mxu0 0.0
        %2070 = vmatpush1.msra.mxu0 %v2047
        %2071 = vmatprep.subr.mxu0 0.0
        %2072 = vmatpush1.msra.mxu0 %v2048
        %2073 = vmatprep.subr.mxu0 0.0
        %2074 = vmatpush1.msra.mxu0 %v2049
        %2075 = vmatprep.subr.mxu0 0.0
        %2076 = vmatpush1.msra.mxu0 %v2050
        %2077 = vmatprep.subr.mxu0 0.0
        %2078 = vmatpush1.msra.mxu0 %v2051
        %2079 = vmatprep.subr.mxu0 0.0
        %2080 = vmatpush1.msra.mxu0 %v2052
        %2081 = vmatprep.subr.mxu0 0.0
        %2082 = vmatpush1.msra.mxu0 %v2053
        %2083 = vmatprep.subr.mxu0 0.0
        %2084 = vmatpush1.msra.mxu0 %v2054
        %2085 = vmatprep.subr.mxu0 0.0
        %2086 = vmatpush1.msra.mxu0 %v2055
        %2087 = vmatprep.subr.mxu0 0.0
        %2088 = vmatpush1.msra.mxu0 %v2056
        %2089 = vmatprep.subr.mxu0 0.0
        %2090 = vmatpush1.msra.mxu0 0.0
        %2091 = vmatprep.subr.mxu0 0.0
        %2092 = vmatpush1.msra.mxu0 0.0
        %2093 = vmatprep.subr.mxu0 0.0
        %2094 = vmatpush1.msra.mxu0 0.0
        %2095 = vmatprep.subr.mxu0 0.0
        %2096 = vmatpush1.msra.mxu0 0.0
        %2097 = vmatprep.subr.mxu0 0.0
        %2098 = vmatpush1.msra.mxu0 0.0
        %2099 = vmatprep.subr.mxu0 0.0
        %2100 = vmatpush1.msra.mxu0 0.0
        %2101 = vmatprep.subr.mxu0 0.0
        %2102 = vmatpush1.msra.mxu0 0.0
        %2103 = vmatprep.subr.mxu0 0.0
        %2104 = vmatpush1.msra.mxu0 0.0
        %2105 = vmatprep.subr.mxu0 0.0
        %2106 = vmatpush1.msra.mxu0 0.0
        %2107 = vmatprep.subr.mxu0 0.0
        %2108 = vmatpush1.msra.mxu0 0.0
        %2109 = vmatprep.subr.mxu0 0.0
        %2110 = vmatpush1.msra.mxu0 0.0
        %2111 = vmatprep.subr.mxu0 0.0
        %2112 = vmatpush1.msra.mxu0 0.0
        %2113 = vmatprep.subr.mxu0 0.0
        %2114 = vmatpush1.msra.mxu0 0.0
        %2115 = vmatprep.subr.mxu0 0.0
        %2116 = vmatpush1.msra.mxu0 0.0
        %2117 = vmatprep.subr.mxu0 0.0
        %2118 = vmatpush1.msra.mxu0 0.0
        %2119 = vmatprep.subr.mxu0 0.0
        %2120 = vmatpush1.msra.mxu0 0.0
        %2121 = vmatprep.mubr.f32.mxu0 0.0
        %2122 = vmatmul.mubr.f32.gmra.mrb[0].mxu0 %v2035
        %v2123 = vpop.f32.mrb[0].mxu0
        %v2124 = vadd.f32 0.0, %v2123
        %v2125 = vpop.f32.mrb[0].mxu0
        %2126 = vmatprep.mubr.f32.mxu0 0.0
        %2127 = vmatmul.mubr.f32.gmra.mrb[0].mxu0 %v2036
        %v2128 = vpop.f32.mrb[0].mxu0
        %v2129 = vadd.f32 0.0, %v2128
        %v2130 = vpop.f32.mrb[0].mxu0
        %2131 = vmatprep.mubr.f32.mxu0 0.0
        %2132 = vmatmul.mubr.f32.gmra.mrb[0].mxu0 %v2037
        %v2133 = vpop.f32.mrb[0].mxu0
        %v2134 = vadd.f32 0.0, %v2133
        %v2135 = vpop.f32.mrb[0].mxu0
        %2136 = vmatprep.mubr.f32.mxu0 0.0
        %2137 = vmatmul.mubr.f32.gmra.mrb[0].mxu0 %v2038
        %v2138 = vpop.f32.mrb[0].mxu0
        %v2139 = vadd.f32 0.0, %v2138
        %v2140 = vpop.f32.mrb[0].mxu0
        %2141 = vmatprep.mubr.f32.mxu0 0.0
        %2142 = vmatmul.mubr.f32.gmra.mrb[0].mxu0 %v2039
        %v2143 = vpop.f32.mrb[0].mxu0
        %v2144 = vadd.f32 0.0, %v2143
        %v2145 = vpop.f32.mrb[0].mxu0
        %2146 = vdwg.mxu0
        %v2147 = vadd.f32 %v2012, %v2124
        %v2148 = vadd.f32 %v2017, %v2129
        %v2149 = vadd.f32 %v2022, %v2134
        %v2150 = vadd.f32 %v2027, %v2139
        %v2151 = vadd.f32 %v2032, %v2144
        %v2152 = vld [vmem:[%s1811] sm:$0xff]
        %v2153 = vld [vmem:[%s1811 + $0x8] sm:$0xff]
        %v2154 = vld [vmem:[%s1811 + $0x10] sm:$0xff]
        %v2155 = vld [vmem:[%s1811 + $0x18] sm:$0xff]
        %v2156 = vld [vmem:[%s1811 + $0x20] sm:$0x3f]
        %s2157 = scalar_lea.vmem [#allocation9], 384
        %v2158 = vld [vmem:[%s2157] sm:$0xff]
        %v2159 = vld [vmem:[%s2157 + $0x8] sm:$0xff]
        %v2160 = vld [vmem:[%s2157 + $0x10] sm:$0xff]
        %v2161 = vld [vmem:[%s2157 + $0x18] sm:$0xff]
        %v2162 = vld [vmem:[%s2157 + $0x20] sm:$0xff]
        %v2163 = vld [vmem:[%s2157 + $0x28] sm:$0xff]
        %v2164 = vld [vmem:[%s2157 + $0x30] sm:$0xff]
        %v2165 = vld [vmem:[%s2157 + $0x38] sm:$0xff]
        %v2166 = vld [vmem:[%s2157 + $0x40] sm:$0xff]
        %v2167 = vld [vmem:[%s2157 + $0x48] sm:$0xff]
        %v2168 = vld [vmem:[%s2157 + $0x50] sm:$0xff]
        %v2169 = vld [vmem:[%s2157 + $0x58] sm:$0xff]
        %v2170 = vld [vmem:[%s2157 + $0x60] sm:$0xff]
        %v2171 = vld [vmem:[%s2157 + $0x68] sm:$0xff]
        %v2172 = vld [vmem:[%s2157 + $0x70] sm:$0xff]
        %v2173 = vld [vmem:[%s2157 + $0x78] sm:$0xff]
        %2174 = vmatprep.subr.mxu0 0.0
        %2175 = vmatpush1.msra.mxu0 %v2158
        %2176 = vmatprep.subr.mxu0 0.0
        %2177 = vmatpush1.msra.mxu0 %v2159
        %2178 = vmatprep.subr.mxu0 0.0
        %2179 = vmatpush1.msra.mxu0 %v2160
        %2180 = vmatprep.subr.mxu0 0.0
        %2181 = vmatpush1.msra.mxu0 %v2161
        %2182 = vmatprep.subr.mxu0 0.0
        %2183 = vmatpush1.msra.mxu0 %v2162
        %2184 = vmatprep.subr.mxu0 0.0
        %2185 = vmatpush1.msra.mxu0 %v2163
        %2186 = vmatprep.subr.mxu0 0.0
        %2187 = vmatpush1.msra.mxu0 %v2164
        %2188 = vmatprep.subr.mxu0 0.0
        %2189 = vmatpush1.msra.mxu0 %v2165
        %2190 = vmatprep.subr.mxu0 0.0
        %2191 = vmatpush1.msra.mxu0 %v2166
        %2192 = vmatprep.subr.mxu0 0.0
        %2193 = vmatpush1.msra.mxu0 %v2167
        %2194 = vmatprep.subr.mxu0 0.0
        %2195 = vmatpush1.msra.mxu0 %v2168
        %2196 = vmatprep.subr.mxu0 0.0
        %2197 = vmatpush1.msra.mxu0 %v2169
        %2198 = vmatprep.subr.mxu0 0.0
        %2199 = vmatpush1.msra.mxu0 %v2170
        %2200 = vmatprep.subr.mxu0 0.0
        %2201 = vmatpush1.msra.mxu0 %v2171
        %2202 = vmatprep.subr.mxu0 0.0
        %2203 = vmatpush1.msra.mxu0 %v2172
        %2204 = vmatprep.subr.mxu0 0.0
        %2205 = vmatpush1.msra.mxu0 %v2173
        %2206 = vmatprep.subr.mxu0 0.0
        %2207 = vmatpush1.msra.mxu0 0.0
        %2208 = vmatprep.subr.mxu0 0.0
        %2209 = vmatpush1.msra.mxu0 0.0
        %2210 = vmatprep.subr.mxu0 0.0
        %2211 = vmatpush1.msra.mxu0 0.0
        %2212 = vmatprep.subr.mxu0 0.0
        %2213 = vmatpush1.msra.mxu0 0.0
        %2214 = vmatprep.subr.mxu0 0.0
        %2215 = vmatpush1.msra.mxu0 0.0
        %2216 = vmatprep.subr.mxu0 0.0
        %2217 = vmatpush1.msra.mxu0 0.0
        %2218 = vmatprep.subr.mxu0 0.0
        %2219 = vmatpush1.msra.mxu0 0.0
        %2220 = vmatprep.subr.mxu0 0.0
        %2221 = vmatpush1.msra.mxu0 0.0
        %2222 = vmatprep.subr.mxu0 0.0
        %2223 = vmatpush1.msra.mxu0 0.0
        %2224 = vmatprep.subr.mxu0 0.0
        %2225 = vmatpush1.msra.mxu0 0.0
        %2226 = vmatprep.subr.mxu0 0.0
        %2227 = vmatpush1.msra.mxu0 0.0
        %2228 = vmatprep.subr.mxu0 0.0
        %2229 = vmatpush1.msra.mxu0 0.0
        %2230 = vmatprep.subr.mxu0 0.0
        %2231 = vmatpush1.msra.mxu0 0.0
        %2232 = vmatprep.subr.mxu0 0.0
        %2233 = vmatpush1.msra.mxu0 0.0
        %2234 = vmatprep.subr.mxu0 0.0
        %2235 = vmatpush1.msra.mxu0 0.0
        %2236 = vmatprep.subr.mxu0 0.0
        %2237 = vmatpush1.msra.mxu0 0.0
        %2238 = vmatprep.mubr.f32.mxu0 0.0
        %2239 = vmatmul.mubr.f32.gmra.mrb[0].mxu0 %v2152
        %v2240 = vpop.f32.mrb[0].mxu0
        %v2241 = vadd.f32 0.0, %v2240
        %v2242 = vpop.f32.mrb[0].mxu0
        %2243 = vmatprep.mubr.f32.mxu0 0.0
        %2244 = vmatmul.mubr.f32.gmra.mrb[0].mxu0 %v2153
        %v2245 = vpop.f32.mrb[0].mxu0
        %v2246 = vadd.f32 0.0, %v2245
        %v2247 = vpop.f32.mrb[0].mxu0
        %2248 = vmatprep.mubr.f32.mxu0 0.0
        %2249 = vmatmul.mubr.f32.gmra.mrb[0].mxu0 %v2154
        %v2250 = vpop.f32.mrb[0].mxu0
        %v2251 = vadd.f32 0.0, %v2250
        %v2252 = vpop.f32.mrb[0].mxu0
        %2253 = vmatprep.mubr.f32.mxu0 0.0
        %2254 = vmatmul.mubr.f32.gmra.mrb[0].mxu0 %v2155
        %v2255 = vpop.f32.mrb[0].mxu0
        %v2256 = vadd.f32 0.0, %v2255
        %v2257 = vpop.f32.mrb[0].mxu0
        %2258 = vmatprep.mubr.f32.mxu0 0.0
        %2259 = vmatmul.mubr.f32.gmra.mrb[0].mxu0 %v2156
        %v2260 = vpop.f32.mrb[0].mxu0
        %v2261 = vadd.f32 0.0, %v2260
        %v2262 = vpop.f32.mrb[0].mxu0
        %2263 = vdwg.mxu0
        %v2264 = vadd.f32 %v2147, %v2241
        %v2265 = vadd.f32 %v2148, %v2246
        %v2266 = vadd.f32 %v2149, %v2251
        %v2267 = vadd.f32 %v2150, %v2256
        %v2268 = vadd.f32 %v2151, %v2261
        %v2269 = vld [vmem:[%s5] sm:$0x1]
        %v2270 = vlaneseq
        %v2271 = vshrl.u32 %v2270, 7
        %v2272 = vsub.s32 0, %v2271
        %v2273 = vrot.slane %v2269, %v2272
        %v2274 = vadd.f32 %v2264, %v2273
        %v2275 = vadd.f32 %v2265, %v2273
        %v2276 = vadd.f32 %v2266, %v2273
        %v2277 = vadd.f32 %v2267, %v2273
        %v2278 = vadd.f32 %v2268, %v2273
        %2279 = vst [vmem:[#allocation2 + $0x1] sm:$0xff] %v2274
        %2280 = vst [vmem:[#allocation2 + $0x9] sm:$0xfc] %v2275
        %2281 = vst [vmem:[#allocation2 + $0x11] sm:$0x3] %v2276
        %2282 = vst [vmem:[#allocation2 + $0x11] sm:$0xf0] %v2276
        %2283 = vst [vmem:[#allocation2 + $0x19] sm:$0xf] %v2277
        %2284 = vst [vmem:[#allocation2 + $0x19] sm:$0xc0] %v2277
        %2285 = vst [vmem:[#allocation2 + $0x21] sm:$0x3f] %v2278
        %v2286 = vld [vmem:[#allocation2] sm:$0xff]
        %v2287 = vld [vmem:[#allocation2 + $0x8] sm:$0xff]
        %v2288 = vld [vmem:[#allocation2 + $0x10] sm:$0xff]
        %v2289 = vld [vmem:[#allocation2 + $0x18] sm:$0xff]
        %v2290 = vld [vmem:[#allocation2 + $0x20] sm:$0x3f]
        %2296 = vrot.lane.b32.xlu0 %v2286, 16
        %v2297 = vpop.permute.xlu0 %2296
        %2298 = vrot.lane.b32.xlu0 %v2287, 16
        %v2299 = vpop.permute.xlu0 %2298
        %2300 = vrot.lane.b32.xlu0 %v2288, 16
        %v2301 = vpop.permute.xlu0 %2300
        %2302 = vrot.lane.b32.xlu0 %v2289, 16
        %v2303 = vpop.permute.xlu0 %2302
        %2304 = vrot.lane.b32.xlu0 %v2290, 16
        %v2305 = vpop.permute.xlu0 %2304
        %v2311 = vsel %vm333, 0.0, %v2297
        %v2312 = vsel %vm333, 0.0, %v2299
        %v2313 = vsel %vm333, 0.0, %v2301
        %v2314 = vsel %vm333, 0.0, %v2303
        %v2315 = vsel %vm333, 0.0, %v2305
        %s2316 = scalar_lea.vmem %s1, 16
        %v2317 = vld [vmem:[%s2316] sm:$0x1]
        %v2318 = vlaneseq
        %v2319 = vshrl.u32 %v2318, 7
        %v2320 = vsub.s32 0, %v2319
        %v2321 = vrot.slane %v2317, %v2320
        %v2322 = vmul.f32 %v2311, %v2321
        %v2323 = vmul.f32 %v2312, %v2321
        %v2324 = vmul.f32 %v2313, %v2321
        %v2325 = vmul.f32 %v2314, %v2321
        %v2326 = vmul.f32 %v2315, %v2321
        %v2327 = vadd.f32 %v2322, 0.0
        %v2328 = vadd.f32 %v2323, 0.0
        %v2329 = vadd.f32 %v2324, 0.0
        %v2330 = vadd.f32 %v2325, 0.0
        %v2331 = vadd.f32 %v2326, 0.0
        %v2332 = vld [vmem:[%s2316 + $0x1] sm:$0x1]
        %v2333 = vlaneseq
        %v2334 = vshrl.u32 %v2333, 7
        %v2335 = vsub.s32 0, %v2334
        %v2336 = vrot.slane %v2332, %v2335
        %v2337 = vmul.f32 %v2286, %v2336
        %v2338 = vmul.f32 %v2287, %v2336
        %v2339 = vmul.f32 %v2288, %v2336
        %v2340 = vmul.f32 %v2289, %v2336
        %v2341 = vmul.f32 %v2290, %v2336
        %v2342 = vadd.f32 %v2327, %v2337
        %v2343 = vadd.f32 %v2328, %v2338
        %v2344 = vadd.f32 %v2329, %v2339
        %v2345 = vadd.f32 %v2330, %v2340
        %v2346 = vadd.f32 %v2331, %v2341
        %2347 = vrot.lane.b32.xlu0 %v2286, 112
        %v2348 = vpop.permute.xlu0 %2347
        %2349 = vrot.lane.b32.xlu0 %v2287, 112
        %v2350 = vpop.permute.xlu0 %2349
        %2351 = vrot.lane.b32.xlu0 %v2288, 112
        %v2352 = vpop.permute.xlu0 %2351
        %2353 = vrot.lane.b32.xlu0 %v2289, 112
        %v2354 = vpop.permute.xlu0 %2353
        %2355 = vrot.lane.b32.xlu0 %v2290, 112
        %v2356 = vpop.permute.xlu0 %2355
        %v2362 = vsel %vm1042, %v2348, 0.0
        %v2363 = vsel %vm1042, %v2350, 0.0
        %v2364 = vsel %vm1042, %v2352, 0.0
        %v2365 = vsel %vm1042, %v2354, 0.0
        %v2366 = vsel %vm1042, %v2356, 0.0
        %v2367 = vld [vmem:[%s2316 + $0x2] sm:$0x1]
        %v2368 = vlaneseq
        %v2369 = vshrl.u32 %v2368, 7
        %v2370 = vsub.s32 0, %v2369
        %v2371 = vrot.slane %v2367, %v2370
        %v2372 = vmul.f32 %v2362, %v2371
        %v2373 = vmul.f32 %v2363, %v2371
        %v2374 = vmul.f32 %v2364, %v2371
        %v2375 = vmul.f32 %v2365, %v2371
        %v2376 = vmul.f32 %v2366, %v2371
        %v2377 = vadd.f32 %v2342, %v2372
        %v2378 = vadd.f32 %v2343, %v2373
        %v2379 = vadd.f32 %v2344, %v2374
        %v2380 = vadd.f32 %v2345, %v2375
        %v2381 = vadd.f32 %v2346, %v2376
        %v2382 = vld [vmem:[#allocation2 + $0x1] sm:$0xff]
        %v2383 = vld [vmem:[#allocation2 + $0x9] sm:$0xff]
        %v2384 = vld [vmem:[#allocation2 + $0x11] sm:$0xff]
        %v2385 = vld [vmem:[#allocation2 + $0x19] sm:$0xff]
        %v2386 = vld [vmem:[#allocation2 + $0x21] sm:$0x3f]
        %2392 = vrot.lane.b32.xlu0 %v2382, 16
        %v2393 = vpop.permute.xlu0 %2392
        %2394 = vrot.lane.b32.xlu0 %v2383, 16
        %v2395 = vpop.permute.xlu0 %2394
        %2396 = vrot.lane.b32.xlu0 %v2384, 16
        %v2397 = vpop.permute.xlu0 %2396
        %2398 = vrot.lane.b32.xlu0 %v2385, 16
        %v2399 = vpop.permute.xlu0 %2398
        %2400 = vrot.lane.b32.xlu0 %v2386, 16
        %v2401 = vpop.permute.xlu0 %2400
        %v2407 = vsel %vm333, 0.0, %v2393
        %v2408 = vsel %vm333, 0.0, %v2395
        %v2409 = vsel %vm333, 0.0, %v2397
        %v2410 = vsel %vm333, 0.0, %v2399
        %v2411 = vsel %vm333, 0.0, %v2401
        %v2412 = vld [vmem:[%s2316 + $0x3] sm:$0x1]
        %v2413 = vlaneseq
        %v2414 = vshrl.u32 %v2413, 7
        %v2415 = vsub.s32 0, %v2414
        %v2416 = vrot.slane %v2412, %v2415
        %v2417 = vmul.f32 %v2407, %v2416
        %v2418 = vmul.f32 %v2408, %v2416
        %v2419 = vmul.f32 %v2409, %v2416
        %v2420 = vmul.f32 %v2410, %v2416
        %v2421 = vmul.f32 %v2411, %v2416
        %v2422 = vadd.f32 %v2377, %v2417
        %v2423 = vadd.f32 %v2378, %v2418
        %v2424 = vadd.f32 %v2379, %v2419
        %v2425 = vadd.f32 %v2380, %v2420
        %v2426 = vadd.f32 %v2381, %v2421
        %v2427 = vld [vmem:[%s2316 + $0x4] sm:$0x1]
        %v2428 = vlaneseq
        %v2429 = vshrl.u32 %v2428, 7
        %v2430 = vsub.s32 0, %v2429
        %v2431 = vrot.slane %v2427, %v2430
        %v2432 = vmul.f32 %v2382, %v2431
        %v2433 = vmul.f32 %v2383, %v2431
        %v2434 = vmul.f32 %v2384, %v2431
        %v2435 = vmul.f32 %v2385, %v2431
        %v2436 = vmul.f32 %v2386, %v2431
        %v2437 = vadd.f32 %v2422, %v2432
        %v2438 = vadd.f32 %v2423, %v2433
        %v2439 = vadd.f32 %v2424, %v2434
        %v2440 = vadd.f32 %v2425, %v2435
        %v2441 = vadd.f32 %v2426, %v2436
        %2442 = vrot.lane.b32.xlu0 %v2382, 112
        %v2443 = vpop.permute.xlu0 %2442
        %2444 = vrot.lane.b32.xlu0 %v2383, 112
        %v2445 = vpop.permute.xlu0 %2444
        %2446 = vrot.lane.b32.xlu0 %v2384, 112
        %v2447 = vpop.permute.xlu0 %2446
        %2448 = vrot.lane.b32.xlu0 %v2385, 112
        %v2449 = vpop.permute.xlu0 %2448
        %2450 = vrot.lane.b32.xlu0 %v2386, 112
        %v2451 = vpop.permute.xlu0 %2450
        %v2457 = vsel %vm1042, %v2443, 0.0
        %v2458 = vsel %vm1042, %v2445, 0.0
        %v2459 = vsel %vm1042, %v2447, 0.0
        %v2460 = vsel %vm1042, %v2449, 0.0
        %v2461 = vsel %vm1042, %v2451, 0.0
        %v2462 = vld [vmem:[%s2316 + $0x5] sm:$0x1]
        %v2463 = vlaneseq
        %v2464 = vshrl.u32 %v2463, 7
        %v2465 = vsub.s32 0, %v2464
        %v2466 = vrot.slane %v2462, %v2465
        %v2467 = vmul.f32 %v2457, %v2466
        %v2468 = vmul.f32 %v2458, %v2466
        %v2469 = vmul.f32 %v2459, %v2466
        %v2470 = vmul.f32 %v2460, %v2466
        %v2471 = vmul.f32 %v2461, %v2466
        %v2472 = vadd.f32 %v2437, %v2467
        %v2473 = vadd.f32 %v2438, %v2468
        %v2474 = vadd.f32 %v2439, %v2469
        %v2475 = vadd.f32 %v2440, %v2470
        %v2476 = vadd.f32 %v2441, %v2471
        %v2477 = vld [vmem:[#allocation2 + $0x2] sm:$0xff]
        %v2478 = vld [vmem:[#allocation2 + $0xa] sm:$0xff]
        %v2479 = vld [vmem:[#allocation2 + $0x12] sm:$0xff]
        %v2480 = vld [vmem:[#allocation2 + $0x1a] sm:$0xff]
        %v2481 = vld [vmem:[#allocation2 + $0x22] sm:$0x3f]
        %2487 = vrot.lane.b32.xlu0 %v2477, 16
        %v2488 = vpop.permute.xlu0 %2487
        %2489 = vrot.lane.b32.xlu0 %v2478, 16
        %v2490 = vpop.permute.xlu0 %2489
        %2491 = vrot.lane.b32.xlu0 %v2479, 16
        %v2492 = vpop.permute.xlu0 %2491
        %2493 = vrot.lane.b32.xlu0 %v2480, 16
        %v2494 = vpop.permute.xlu0 %2493
        %2495 = vrot.lane.b32.xlu0 %v2481, 16
        %v2496 = vpop.permute.xlu0 %2495
        %v2502 = vsel %vm333, 0.0, %v2488
        %v2503 = vsel %vm333, 0.0, %v2490
        %v2504 = vsel %vm333, 0.0, %v2492
        %v2505 = vsel %vm333, 0.0, %v2494
        %v2506 = vsel %vm333, 0.0, %v2496
        %v2507 = vld [vmem:[%s2316 + $0x6] sm:$0x1]
        %v2508 = vlaneseq
        %v2509 = vshrl.u32 %v2508, 7
        %v2510 = vsub.s32 0, %v2509
        %v2511 = vrot.slane %v2507, %v2510
        %v2512 = vmul.f32 %v2502, %v2511
        %v2513 = vmul.f32 %v2503, %v2511
        %v2514 = vmul.f32 %v2504, %v2511
        %v2515 = vmul.f32 %v2505, %v2511
        %v2516 = vmul.f32 %v2506, %v2511
        %v2517 = vadd.f32 %v2472, %v2512
        %v2518 = vadd.f32 %v2473, %v2513
        %v2519 = vadd.f32 %v2474, %v2514
        %v2520 = vadd.f32 %v2475, %v2515
        %v2521 = vadd.f32 %v2476, %v2516
        %v2522 = vld [vmem:[%s2316 + $0x7] sm:$0x1]
        %v2523 = vlaneseq
        %v2524 = vshrl.u32 %v2523, 7
        %v2525 = vsub.s32 0, %v2524
        %v2526 = vrot.slane %v2522, %v2525
        %v2527 = vmul.f32 %v2477, %v2526
        %v2528 = vmul.f32 %v2478, %v2526
        %v2529 = vmul.f32 %v2479, %v2526
        %v2530 = vmul.f32 %v2480, %v2526
        %v2531 = vmul.f32 %v2481, %v2526
        %v2532 = vadd.f32 %v2517, %v2527
        %v2533 = vadd.f32 %v2518, %v2528
        %v2534 = vadd.f32 %v2519, %v2529
        %v2535 = vadd.f32 %v2520, %v2530
        %v2536 = vadd.f32 %v2521, %v2531
        %2537 = vrot.lane.b32.xlu0 %v2477, 112
        %v2538 = vpop.permute.xlu0 %2537
        %2539 = vrot.lane.b32.xlu0 %v2478, 112
        %v2540 = vpop.permute.xlu0 %2539
        %2541 = vrot.lane.b32.xlu0 %v2479, 112
        %v2542 = vpop.permute.xlu0 %2541
        %2543 = vrot.lane.b32.xlu0 %v2480, 112
        %v2544 = vpop.permute.xlu0 %2543
        %2545 = vrot.lane.b32.xlu0 %v2481, 112
        %v2546 = vpop.permute.xlu0 %2545
        %v2552 = vsel %vm1042, %v2538, 0.0
        %v2553 = vsel %vm1042, %v2540, 0.0
        %v2554 = vsel %vm1042, %v2542, 0.0
        %v2555 = vsel %vm1042, %v2544, 0.0
        %v2556 = vsel %vm1042, %v2546, 0.0
        %v2557 = vld [vmem:[%s2316 + $0x8] sm:$0x1]
        %v2558 = vlaneseq
        %v2559 = vshrl.u32 %v2558, 7
        %v2560 = vsub.s32 0, %v2559
        %v2561 = vrot.slane %v2557, %v2560
        %v2562 = vmul.f32 %v2552, %v2561
        %v2563 = vmul.f32 %v2553, %v2561
        %v2564 = vmul.f32 %v2554, %v2561
        %v2565 = vmul.f32 %v2555, %v2561
        %v2566 = vmul.f32 %v2556, %v2561
        %v2567 = vadd.f32 %v2532, %v2562
        %v2568 = vadd.f32 %v2533, %v2563
        %v2569 = vadd.f32 %v2534, %v2564
        %v2570 = vadd.f32 %v2535, %v2565
        %v2571 = vadd.f32 %v2536, %v2566
        %s2572 = scalar_lea.vmem %s2, 8
        %v2573 = vld [vmem:[%s2572] sm:$0x1]
        %v2574 = vlaneseq
        %v2575 = vshrl.u32 %v2574, 7
        %v2576 = vsub.s32 0, %v2575
        %v2577 = vrot.slane %v2573, %v2576
        %v2578 = vmul.f32 %v2567, %v2577
        %v2579 = vmul.f32 %v2568, %v2577
        %v2580 = vmul.f32 %v2569, %v2577
        %v2581 = vmul.f32 %v2570, %v2577
        %v2582 = vmul.f32 %v2571, %v2577
        %v2583 = vld [vmem:[%s2572 + $0x1] sm:$0x1]
        %v2584 = vlaneseq
        %v2585 = vshrl.u32 %v2584, 7
        %v2586 = vsub.s32 0, %v2585
        %v2587 = vrot.slane %v2583, %v2586
        %v2588 = vadd.f32 %v2578, %v2587
        %v2589 = vadd.f32 %v2579, %v2587
        %v2590 = vadd.f32 %v2580, %v2587
        %v2591 = vadd.f32 %v2581, %v2587
        %v2592 = vadd.f32 %v2582, %v2587
        %vm2593 = vcmp.gt.f32.partialorder %v2588, 0.0
        %vm2594 = vcmp.gt.f32.partialorder %v2589, 0.0
        %vm2595 = vcmp.gt.f32.partialorder %v2590, 0.0
        %vm2596 = vcmp.gt.f32.partialorder %v2591, 0.0
        %vm2597 = vcmp.gt.f32.partialorder %v2592, 0.0
        %v2598 = vld [vmem:[%s2572 + $0x2] sm:$0x1]
        %v2599 = vlaneseq
        %v2600 = vshrl.u32 %v2599, 7
        %v2601 = vsub.s32 0, %v2600
        %v2602 = vrot.slane %v2598, %v2601
        %v2603 = vmul.f32 %v2588, %v2602
        %v2604 = vmul.f32 %v2589, %v2602
        %v2605 = vmul.f32 %v2590, %v2602
        %v2606 = vmul.f32 %v2591, %v2602
        %v2607 = vmul.f32 %v2592, %v2602
        %v2608 = vsel %vm2593, %v2588, %v2603
        %v2609 = vsel %vm2594, %v2589, %v2604
        %v2610 = vsel %vm2595, %v2590, %v2605
        %v2611 = vsel %vm2596, %v2591, %v2606
        %v2612 = vsel %vm2597, %v2592, %v2607
        %s2613 = scalar_lea.vmem [#allocation7], 128
        %v2614 = vld [vmem:[%s2613] sm:$0xff]
        %v2615 = vld [vmem:[%s2613 + $0x8] sm:$0xff]
        %v2616 = vld [vmem:[%s2613 + $0x10] sm:$0xff]
        %v2617 = vld [vmem:[%s2613 + $0x18] sm:$0xff]
        %v2618 = vld [vmem:[%s2613 + $0x20] sm:$0xff]
        %v2619 = vld [vmem:[%s2613 + $0x28] sm:$0xff]
        %v2620 = vld [vmem:[%s2613 + $0x30] sm:$0xff]
        %v2621 = vld [vmem:[%s2613 + $0x38] sm:$0xff]
        %v2622 = vld [vmem:[%s2613 + $0x40] sm:$0xff]
        %v2623 = vld [vmem:[%s2613 + $0x48] sm:$0xff]
        %v2624 = vld [vmem:[%s2613 + $0x50] sm:$0xff]
        %v2625 = vld [vmem:[%s2613 + $0x58] sm:$0xff]
        %v2626 = vld [vmem:[%s2613 + $0x60] sm:$0xff]
        %v2627 = vld [vmem:[%s2613 + $0x68] sm:$0xff]
        %v2628 = vld [vmem:[%s2613 + $0x70] sm:$0xff]
        %v2629 = vld [vmem:[%s2613 + $0x78] sm:$0xff]
        %v2630 = vld [vmem:[%s2572 + $0x3] sm:$0x1]
        %v2631 = vlaneseq
        %v2632 = vshrl.u32 %v2631, 7
        %v2633 = vsub.s32 0, %v2632
        %v2634 = vrot.slane %v2630, %v2633
        %2635 = vmatprep.subr.mxu0 0.0
        %2636 = vmatpush1.msra.mxu0 %v2614
        %2637 = vmatprep.subr.mxu0 0.0
        %2638 = vmatpush1.msra.mxu0 %v2615
        %2639 = vmatprep.subr.mxu0 0.0
        %2640 = vmatpush1.msra.mxu0 %v2616
        %2641 = vmatprep.subr.mxu0 0.0
        %2642 = vmatpush1.msra.mxu0 %v2617
        %2643 = vmatprep.subr.mxu0 0.0
        %2644 = vmatpush1.msra.mxu0 %v2618
        %2645 = vmatprep.subr.mxu0 0.0
        %2646 = vmatpush1.msra.mxu0 %v2619
        %2647 = vmatprep.subr.mxu0 0.0
        %2648 = vmatpush1.msra.mxu0 %v2620
        %2649 = vmatprep.subr.mxu0 0.0
        %2650 = vmatpush1.msra.mxu0 %v2621
        %2651 = vmatprep.subr.mxu0 0.0
        %2652 = vmatpush1.msra.mxu0 %v2622
        %2653 = vmatprep.subr.mxu0 0.0
        %2654 = vmatpush1.msra.mxu0 %v2623
        %2655 = vmatprep.subr.mxu0 0.0
        %2656 = vmatpush1.msra.mxu0 %v2624
        %2657 = vmatprep.subr.mxu0 0.0
        %2658 = vmatpush1.msra.mxu0 %v2625
        %2659 = vmatprep.subr.mxu0 0.0
        %2660 = vmatpush1.msra.mxu0 %v2626
        %2661 = vmatprep.subr.mxu0 0.0
        %2662 = vmatpush1.msra.mxu0 %v2627
        %2663 = vmatprep.subr.mxu0 0.0
        %2664 = vmatpush1.msra.mxu0 %v2628
        %2665 = vmatprep.subr.mxu0 0.0
        %2666 = vmatpush1.msra.mxu0 %v2629
        %2667 = vmatprep.subr.mxu0 0.0
        %2668 = vmatpush1.msra.mxu0 0.0
        %2669 = vmatprep.subr.mxu0 0.0
        %2670 = vmatpush1.msra.mxu0 0.0
        %2671 = vmatprep.subr.mxu0 0.0
        %2672 = vmatpush1.msra.mxu0 0.0
        %2673 = vmatprep.subr.mxu0 0.0
        %2674 = vmatpush1.msra.mxu0 0.0
        %2675 = vmatprep.subr.mxu0 0.0
        %2676 = vmatpush1.msra.mxu0 0.0
        %2677 = vmatprep.subr.mxu0 0.0
        %2678 = vmatpush1.msra.mxu0 0.0
        %2679 = vmatprep.subr.mxu0 0.0
        %2680 = vmatpush1.msra.mxu0 0.0
        %2681 = vmatprep.subr.mxu0 0.0
        %2682 = vmatpush1.msra.mxu0 0.0
        %2683 = vmatprep.subr.mxu0 0.0
        %2684 = vmatpush1.msra.mxu0 0.0
        %2685 = vmatprep.subr.mxu0 0.0
        %2686 = vmatpush1.msra.mxu0 0.0
        %2687 = vmatprep.subr.mxu0 0.0
        %2688 = vmatpush1.msra.mxu0 0.0
        %2689 = vmatprep.subr.mxu0 0.0
        %2690 = vmatpush1.msra.mxu0 0.0
        %2691 = vmatprep.subr.mxu0 0.0
        %2692 = vmatpush1.msra.mxu0 0.0
        %2693 = vmatprep.subr.mxu0 0.0
        %2694 = vmatpush1.msra.mxu0 0.0
        %2695 = vmatprep.subr.mxu0 0.0
        %2696 = vmatpush1.msra.mxu0 0.0
        %2697 = vmatprep.subr.mxu0 0.0
        %2698 = vmatpush1.msra.mxu0 0.0
        %2699 = vmatprep.mubr.f32.mxu0 0.0
        %2700 = vmatmul.mubr.f32.gmra.mrb[0].mxu0 %v2608
        %v2701 = vpop.f32.mrb[0].mxu0
        %v2702 = vadd.f32 %v2634, %v2701
        %v2703 = vpop.f32.mrb[0].mxu0
        %2704 = vmatprep.mubr.f32.mxu0 0.0
        %2705 = vmatmul.mubr.f32.gmra.mrb[0].mxu0 %v2609
        %v2706 = vpop.f32.mrb[0].mxu0
        %v2707 = vadd.f32 %v2634, %v2706
        %v2708 = vpop.f32.mrb[0].mxu0
        %2709 = vmatprep.mubr.f32.mxu0 0.0
        %2710 = vmatmul.mubr.f32.gmra.mrb[0].mxu0 %v2610
        %v2711 = vpop.f32.mrb[0].mxu0
        %v2712 = vadd.f32 %v2634, %v2711
        %v2713 = vpop.f32.mrb[0].mxu0
        %2714 = vmatprep.mubr.f32.mxu0 0.0
        %2715 = vmatmul.mubr.f32.gmra.mrb[0].mxu0 %v2611
        %v2716 = vpop.f32.mrb[0].mxu0
        %v2717 = vadd.f32 %v2634, %v2716
        %v2718 = vpop.f32.mrb[0].mxu0
        %2719 = vmatprep.mubr.f32.mxu0 0.0
        %2720 = vmatmul.mubr.f32.gmra.mrb[0].mxu0 %v2612
        %v2721 = vpop.f32.mrb[0].mxu0
        %v2722 = vadd.f32 %v2634, %v2721
        %v2723 = vpop.f32.mrb[0].mxu0
        %2724 = vdwg.mxu0
        %vm2725 = vcmp.gt.f32.partialorder %v2702, 0.0
        %vm2726 = vcmp.gt.f32.partialorder %v2707, 0.0
        %vm2727 = vcmp.gt.f32.partialorder %v2712, 0.0
        %vm2728 = vcmp.gt.f32.partialorder %v2717, 0.0
        %vm2729 = vcmp.gt.f32.partialorder %v2722, 0.0
        %v2730 = vld [vmem:[%s2572 + $0x4] sm:$0x1]
        %v2731 = vlaneseq
        %v2732 = vshrl.u32 %v2731, 7
        %v2733 = vsub.s32 0, %v2732
        %v2734 = vrot.slane %v2730, %v2733
        %v2735 = vmul.f32 %v2702, %v2734
        %v2736 = vmul.f32 %v2707, %v2734
        %v2737 = vmul.f32 %v2712, %v2734
        %v2738 = vmul.f32 %v2717, %v2734
        %v2739 = vmul.f32 %v2722, %v2734
        %v2740 = vsel %vm2725, %v2702, %v2735
        %v2741 = vsel %vm2726, %v2707, %v2736
        %v2742 = vsel %vm2727, %v2712, %v2737
        %v2743 = vsel %vm2728, %v2717, %v2738
        %v2744 = vsel %vm2729, %v2722, %v2739
        %s2745 = scalar_lea.vmem [#allocation9], 512
        %v2746 = vld [vmem:[%s2745] sm:$0xff]
        %v2747 = vld [vmem:[%s2745 + $0x8] sm:$0xff]
        %v2748 = vld [vmem:[%s2745 + $0x10] sm:$0xff]
        %v2749 = vld [vmem:[%s2745 + $0x18] sm:$0xff]
        %v2750 = vld [vmem:[%s2745 + $0x20] sm:$0xff]
        %v2751 = vld [vmem:[%s2745 + $0x28] sm:$0xff]
        %v2752 = vld [vmem:[%s2745 + $0x30] sm:$0xff]
        %v2753 = vld [vmem:[%s2745 + $0x38] sm:$0xff]
        %v2754 = vld [vmem:[%s2745 + $0x40] sm:$0xff]
        %v2755 = vld [vmem:[%s2745 + $0x48] sm:$0xff]
        %v2756 = vld [vmem:[%s2745 + $0x50] sm:$0xff]
        %v2757 = vld [vmem:[%s2745 + $0x58] sm:$0xff]
        %v2758 = vld [vmem:[%s2745 + $0x60] sm:$0xff]
        %v2759 = vld [vmem:[%s2745 + $0x68] sm:$0xff]
        %v2760 = vld [vmem:[%s2745 + $0x70] sm:$0xff]
        %v2761 = vld [vmem:[%s2745 + $0x78] sm:$0xff]
        %v2762 = vld [vmem:[#allocation3] sm:$0xff]
        %v2763 = vld [vmem:[#allocation3 + $0x8] sm:$0xff]
        %v2764 = vld [vmem:[#allocation3 + $0x10] sm:$0xff]
        %v2765 = vld [vmem:[#allocation3 + $0x18] sm:$0xff]
        %v2766 = vld [vmem:[#allocation3 + $0x20] sm:$0x3f]
        %s2767 = scalar_lea.vmem [#allocation9], 640
        %v2768 = vld [vmem:[%s2767] sm:$0xff]
        %v2769 = vld [vmem:[%s2767 + $0x8] sm:$0xff]
        %v2770 = vld [vmem:[%s2767 + $0x10] sm:$0xff]
        %v2771 = vld [vmem:[%s2767 + $0x18] sm:$0xff]
        %v2772 = vld [vmem:[%s2767 + $0x20] sm:$0xff]
        %v2773 = vld [vmem:[%s2767 + $0x28] sm:$0xff]
        %v2774 = vld [vmem:[%s2767 + $0x30] sm:$0xff]
        %v2775 = vld [vmem:[%s2767 + $0x38] sm:$0xff]
        %v2776 = vld [vmem:[%s2767 + $0x40] sm:$0xff]
        %v2777 = vld [vmem:[%s2767 + $0x48] sm:$0xff]
        %v2778 = vld [vmem:[%s2767 + $0x50] sm:$0xff]
        %v2779 = vld [vmem:[%s2767 + $0x58] sm:$0xff]
        %v2780 = vld [vmem:[%s2767 + $0x60] sm:$0xff]
        %v2781 = vld [vmem:[%s2767 + $0x68] sm:$0xff]
        %v2782 = vld [vmem:[%s2767 + $0x70] sm:$0xff]
        %v2783 = vld [vmem:[%s2767 + $0x78] sm:$0xff]
        %2784 = vmatprep.subr.mxu0 0.0
        %2785 = vmatpush1.msra.mxu0 %v2768
        %2786 = vmatprep.subr.mxu0 0.0
        %2787 = vmatpush1.msra.mxu0 %v2769
        %2788 = vmatprep.subr.mxu0 0.0
        %2789 = vmatpush1.msra.mxu0 %v2770
        %2790 = vmatprep.subr.mxu0 0.0
        %2791 = vmatpush1.msra.mxu0 %v2771
        %2792 = vmatprep.subr.mxu0 0.0
        %2793 = vmatpush1.msra.mxu0 %v2772
        %2794 = vmatprep.subr.mxu0 0.0
        %2795 = vmatpush1.msra.mxu0 %v2773
        %2796 = vmatprep.subr.mxu0 0.0
        %2797 = vmatpush1.msra.mxu0 %v2774
        %2798 = vmatprep.subr.mxu0 0.0
        %2799 = vmatpush1.msra.mxu0 %v2775
        %2800 = vmatprep.subr.mxu0 0.0
        %2801 = vmatpush1.msra.mxu0 %v2776
        %2802 = vmatprep.subr.mxu0 0.0
        %2803 = vmatpush1.msra.mxu0 %v2777
        %2804 = vmatprep.subr.mxu0 0.0
        %2805 = vmatpush1.msra.mxu0 %v2778
        %2806 = vmatprep.subr.mxu0 0.0
        %2807 = vmatpush1.msra.mxu0 %v2779
        %2808 = vmatprep.subr.mxu0 0.0
        %2809 = vmatpush1.msra.mxu0 %v2780
        %2810 = vmatprep.subr.mxu0 0.0
        %2811 = vmatpush1.msra.mxu0 %v2781
        %2812 = vmatprep.subr.mxu0 0.0
        %2813 = vmatpush1.msra.mxu0 %v2782
        %2814 = vmatprep.subr.mxu0 0.0
        %2815 = vmatpush1.msra.mxu0 %v2783
        %2816 = vmatprep.subr.mxu0 0.0
        %2817 = vmatpush1.msra.mxu0 0.0
        %2818 = vmatprep.subr.mxu0 0.0
        %2819 = vmatpush1.msra.mxu0 0.0
        %2820 = vmatprep.subr.mxu0 0.0
        %2821 = vmatpush1.msra.mxu0 0.0
        %2822 = vmatprep.subr.mxu0 0.0
        %2823 = vmatpush1.msra.mxu0 0.0
        %2824 = vmatprep.subr.mxu0 0.0
        %2825 = vmatpush1.msra.mxu0 0.0
        %2826 = vmatprep.subr.mxu0 0.0
        %2827 = vmatpush1.msra.mxu0 0.0
        %2828 = vmatprep.subr.mxu0 0.0
        %2829 = vmatpush1.msra.mxu0 0.0
        %2830 = vmatprep.subr.mxu0 0.0
        %2831 = vmatpush1.msra.mxu0 0.0
        %2832 = vmatprep.subr.mxu0 0.0
        %2833 = vmatpush1.msra.mxu0 0.0
        %2834 = vmatprep.subr.mxu0 0.0
        %2835 = vmatpush1.msra.mxu0 0.0
        %2836 = vmatprep.subr.mxu0 0.0
        %2837 = vmatpush1.msra.mxu0 0.0
        %2838 = vmatprep.subr.mxu0 0.0
        %2839 = vmatpush1.msra.mxu0 0.0
        %2840 = vmatprep.subr.mxu0 0.0
        %2841 = vmatpush1.msra.mxu0 0.0
        %2842 = vmatprep.subr.mxu0 0.0
        %2843 = vmatpush1.msra.mxu0 0.0
        %2844 = vmatprep.subr.mxu0 0.0
        %2845 = vmatpush1.msra.mxu0 0.0
        %2846 = vmatprep.subr.mxu0 0.0
        %2847 = vmatpush1.msra.mxu0 0.0
        %2848 = vmatprep.mubr.f32.mxu0 0.0
        %2849 = vmatmul.mubr.f32.gmra.mrb[0].mxu0 %v2762
        %v2850 = vpop.f32.mrb[0].mxu0
        %v2851 = vadd.f32 0.0, %v2850
        %v2852 = vpop.f32.mrb[0].mxu0
        %2853 = vmatprep.mubr.f32.mxu0 0.0
        %2854 = vmatmul.mubr.f32.gmra.mrb[0].mxu0 %v2763
        %v2855 = vpop.f32.mrb[0].mxu0
        %v2856 = vadd.f32 0.0, %v2855
        %v2857 = vpop.f32.mrb[0].mxu0
        %2858 = vmatprep.mubr.f32.mxu0 0.0
        %2859 = vmatmul.mubr.f32.gmra.mrb[0].mxu0 %v2764
        %v2860 = vpop.f32.mrb[0].mxu0
        %v2861 = vadd.f32 0.0, %v2860
        %v2862 = vpop.f32.mrb[0].mxu0
        %2863 = vmatprep.mubr.f32.mxu0 0.0
        %2864 = vmatmul.mubr.f32.gmra.mrb[0].mxu0 %v2765
        %v2865 = vpop.f32.mrb[0].mxu0
        %v2866 = vadd.f32 0.0, %v2865
        %v2867 = vpop.f32.mrb[0].mxu0
        %2868 = vmatprep.mubr.f32.mxu0 0.0
        %2869 = vmatmul.mubr.f32.gmra.mrb[0].mxu0 %v2766
        %v2870 = vpop.f32.mrb[0].mxu0
        %v2871 = vadd.f32 0.0, %v2870
        %v2872 = vpop.f32.mrb[0].mxu0
        %2873 = vdwg.mxu0
        %2874 = vmatprep.subr.mxu0 0.0
        %2875 = vmatpush1.msra.mxu0 %v2746
        %2876 = vmatprep.subr.mxu0 0.0
        %2877 = vmatpush1.msra.mxu0 %v2747
        %2878 = vmatprep.subr.mxu0 0.0
        %2879 = vmatpush1.msra.mxu0 %v2748
        %2880 = vmatprep.subr.mxu0 0.0
        %2881 = vmatpush1.msra.mxu0 %v2749
        %2882 = vmatprep.subr.mxu0 0.0
        %2883 = vmatpush1.msra.mxu0 %v2750
        %2884 = vmatprep.subr.mxu0 0.0
        %2885 = vmatpush1.msra.mxu0 %v2751
        %2886 = vmatprep.subr.mxu0 0.0
        %2887 = vmatpush1.msra.mxu0 %v2752
        %2888 = vmatprep.subr.mxu0 0.0
        %2889 = vmatpush1.msra.mxu0 %v2753
        %2890 = vmatprep.subr.mxu0 0.0
        %2891 = vmatpush1.msra.mxu0 %v2754
        %2892 = vmatprep.subr.mxu0 0.0
        %2893 = vmatpush1.msra.mxu0 %v2755
        %2894 = vmatprep.subr.mxu0 0.0
        %2895 = vmatpush1.msra.mxu0 %v2756
        %2896 = vmatprep.subr.mxu0 0.0
        %2897 = vmatpush1.msra.mxu0 %v2757
        %2898 = vmatprep.subr.mxu0 0.0
        %2899 = vmatpush1.msra.mxu0 %v2758
        %2900 = vmatprep.subr.mxu0 0.0
        %2901 = vmatpush1.msra.mxu0 %v2759
        %2902 = vmatprep.subr.mxu0 0.0
        %2903 = vmatpush1.msra.mxu0 %v2760
        %2904 = vmatprep.subr.mxu0 0.0
        %2905 = vmatpush1.msra.mxu0 %v2761
        %2906 = vmatprep.subr.mxu0 0.0
        %2907 = vmatpush1.msra.mxu0 0.0
        %2908 = vmatprep.subr.mxu0 0.0
        %2909 = vmatpush1.msra.mxu0 0.0
        %2910 = vmatprep.subr.mxu0 0.0
        %2911 = vmatpush1.msra.mxu0 0.0
        %2912 = vmatprep.subr.mxu0 0.0
        %2913 = vmatpush1.msra.mxu0 0.0
        %2914 = vmatprep.subr.mxu0 0.0
        %2915 = vmatpush1.msra.mxu0 0.0
        %2916 = vmatprep.subr.mxu0 0.0
        %2917 = vmatpush1.msra.mxu0 0.0
        %2918 = vmatprep.subr.mxu0 0.0
        %2919 = vmatpush1.msra.mxu0 0.0
        %2920 = vmatprep.subr.mxu0 0.0
        %2921 = vmatpush1.msra.mxu0 0.0
        %2922 = vmatprep.subr.mxu0 0.0
        %2923 = vmatpush1.msra.mxu0 0.0
        %2924 = vmatprep.subr.mxu0 0.0
        %2925 = vmatpush1.msra.mxu0 0.0
        %2926 = vmatprep.subr.mxu0 0.0
        %2927 = vmatpush1.msra.mxu0 0.0
        %2928 = vmatprep.subr.mxu0 0.0
        %2929 = vmatpush1.msra.mxu0 0.0
        %2930 = vmatprep.subr.mxu0 0.0
        %2931 = vmatpush1.msra.mxu0 0.0
        %2932 = vmatprep.subr.mxu0 0.0
        %2933 = vmatpush1.msra.mxu0 0.0
        %2934 = vmatprep.subr.mxu0 0.0
        %2935 = vmatpush1.msra.mxu0 0.0
        %2936 = vmatprep.subr.mxu0 0.0
        %2937 = vmatpush1.msra.mxu0 0.0
        %2938 = vmatprep.mubr.f32.mxu0 0.0
        %2939 = vmatmul.mubr.f32.gmra.mrb[0].mxu0 %v2740
        %v2940 = vpop.f32.mrb[0].mxu0
        %v2941 = vadd.f32 %v2851, %v2940
        %v2942 = vpop.f32.mrb[0].mxu0
        %2943 = vmatprep.mubr.f32.mxu0 0.0
        %2944 = vmatmul.mubr.f32.gmra.mrb[0].mxu0 %v2741
        %v2945 = vpop.f32.mrb[0].mxu0
        %v2946 = vadd.f32 %v2856, %v2945
        %v2947 = vpop.f32.mrb[0].mxu0
        %2948 = vmatprep.mubr.f32.mxu0 0.0
        %2949 = vmatmul.mubr.f32.gmra.mrb[0].mxu0 %v2742
        %v2950 = vpop.f32.mrb[0].mxu0
        %v2951 = vadd.f32 %v2861, %v2950
        %v2952 = vpop.f32.mrb[0].mxu0
        %2953 = vmatprep.mubr.f32.mxu0 0.0
        %2954 = vmatmul.mubr.f32.gmra.mrb[0].mxu0 %v2743
        %v2955 = vpop.f32.mrb[0].mxu0
        %v2956 = vadd.f32 %v2866, %v2955
        %v2957 = vpop.f32.mrb[0].mxu0
        %2958 = vmatprep.mubr.f32.mxu0 0.0
        %2959 = vmatmul.mubr.f32.gmra.mrb[0].mxu0 %v2744
        %v2960 = vpop.f32.mrb[0].mxu0
        %v2961 = vadd.f32 %v2871, %v2960
        %v2962 = vpop.f32.mrb[0].mxu0
        %2963 = vdwg.mxu0
        %v2964 = vld [vmem:[%s5 + $0x1] sm:$0x1]
        %v2965 = vlaneseq
        %v2966 = vshrl.u32 %v2965, 7
        %v2967 = vsub.s32 0, %v2966
        %v2968 = vrot.slane %v2964, %v2967
        %v2969 = vadd.f32 %v2941, %v2968
        %v2970 = vadd.f32 %v2946, %v2968
        %v2971 = vadd.f32 %v2951, %v2968
        %v2972 = vadd.f32 %v2956, %v2968
        %v2973 = vadd.f32 %v2961, %v2968
        %2974 = vst [vmem:[#allocation2 + $0x1] sm:$0xff] %v2969
        %2975 = vst [vmem:[#allocation2 + $0x9] sm:$0xfc] %v2970
        %2976 = vst [vmem:[#allocation2 + $0x11] sm:$0x3] %v2971
        %2977 = vst [vmem:[#allocation2 + $0x11] sm:$0xf0] %v2971
        %2978 = vst [vmem:[#allocation2 + $0x19] sm:$0xf] %v2972
        %2979 = vst [vmem:[#allocation2 + $0x19] sm:$0xc0] %v2972
        %2980 = vst [vmem:[#allocation2 + $0x21] sm:$0x3f] %v2973
        %v2981 = vld [vmem:[#allocation2] sm:$0xff]
        %v2982 = vld [vmem:[#allocation2 + $0x8] sm:$0xff]
        %v2983 = vld [vmem:[#allocation2 + $0x10] sm:$0xff]
        %v2984 = vld [vmem:[#allocation2 + $0x18] sm:$0xff]
        %v2985 = vld [vmem:[#allocation2 + $0x20] sm:$0x3f]
        %2991 = vrot.lane.b32.xlu0 %v2981, 16
        %v2992 = vpop.permute.xlu0 %2991
        %2993 = vrot.lane.b32.xlu0 %v2982, 16
        %v2994 = vpop.permute.xlu0 %2993
        %2995 = vrot.lane.b32.xlu0 %v2983, 16
        %v2996 = vpop.permute.xlu0 %2995
        %2997 = vrot.lane.b32.xlu0 %v2984, 16
        %v2998 = vpop.permute.xlu0 %2997
        %2999 = vrot.lane.b32.xlu0 %v2985, 16
        %v3000 = vpop.permute.xlu0 %2999
        %v3006 = vsel %vm333, 0.0, %v2992
        %v3007 = vsel %vm333, 0.0, %v2994
        %v3008 = vsel %vm333, 0.0, %v2996
        %v3009 = vsel %vm333, 0.0, %v2998
        %v3010 = vsel %vm333, 0.0, %v3000
        %s3011 = scalar_lea.vmem %s1, 32
        %v3012 = vld [vmem:[%s3011] sm:$0x1]
        %v3013 = vlaneseq
        %v3014 = vshrl.u32 %v3013, 7
        %v3015 = vsub.s32 0, %v3014
        %v3016 = vrot.slane %v3012, %v3015
        %v3017 = vmul.f32 %v3006, %v3016
        %v3018 = vmul.f32 %v3007, %v3016
        %v3019 = vmul.f32 %v3008, %v3016
        %v3020 = vmul.f32 %v3009, %v3016
        %v3021 = vmul.f32 %v3010, %v3016
        %v3022 = vadd.f32 %v3017, 0.0
        %v3023 = vadd.f32 %v3018, 0.0
        %v3024 = vadd.f32 %v3019, 0.0
        %v3025 = vadd.f32 %v3020, 0.0
        %v3026 = vadd.f32 %v3021, 0.0
        %v3027 = vld [vmem:[%s3011 + $0x1] sm:$0x1]
        %v3028 = vlaneseq
        %v3029 = vshrl.u32 %v3028, 7
        %v3030 = vsub.s32 0, %v3029
        %v3031 = vrot.slane %v3027, %v3030
        %v3032 = vmul.f32 %v2981, %v3031
        %v3033 = vmul.f32 %v2982, %v3031
        %v3034 = vmul.f32 %v2983, %v3031
        %v3035 = vmul.f32 %v2984, %v3031
        %v3036 = vmul.f32 %v2985, %v3031
        %v3037 = vadd.f32 %v3022, %v3032
        %v3038 = vadd.f32 %v3023, %v3033
        %v3039 = vadd.f32 %v3024, %v3034
        %v3040 = vadd.f32 %v3025, %v3035
        %v3041 = vadd.f32 %v3026, %v3036
        %3042 = vrot.lane.b32.xlu0 %v2981, 112
        %v3043 = vpop.permute.xlu0 %3042
        %3044 = vrot.lane.b32.xlu0 %v2982, 112
        %v3045 = vpop.permute.xlu0 %3044
        %3046 = vrot.lane.b32.xlu0 %v2983, 112
        %v3047 = vpop.permute.xlu0 %3046
        %3048 = vrot.lane.b32.xlu0 %v2984, 112
        %v3049 = vpop.permute.xlu0 %3048
        %3050 = vrot.lane.b32.xlu0 %v2985, 112
        %v3051 = vpop.permute.xlu0 %3050
        %v3057 = vsel %vm1042, %v3043, 0.0
        %v3058 = vsel %vm1042, %v3045, 0.0
        %v3059 = vsel %vm1042, %v3047, 0.0
        %v3060 = vsel %vm1042, %v3049, 0.0
        %v3061 = vsel %vm1042, %v3051, 0.0
        %v3062 = vld [vmem:[%s3011 + $0x2] sm:$0x1]
        %v3063 = vlaneseq
        %v3064 = vshrl.u32 %v3063, 7
        %v3065 = vsub.s32 0, %v3064
        %v3066 = vrot.slane %v3062, %v3065
        %v3067 = vmul.f32 %v3057, %v3066
        %v3068 = vmul.f32 %v3058, %v3066
        %v3069 = vmul.f32 %v3059, %v3066
        %v3070 = vmul.f32 %v3060, %v3066
        %v3071 = vmul.f32 %v3061, %v3066
        %v3072 = vadd.f32 %v3037, %v3067
        %v3073 = vadd.f32 %v3038, %v3068
        %v3074 = vadd.f32 %v3039, %v3069
        %v3075 = vadd.f32 %v3040, %v3070
        %v3076 = vadd.f32 %v3041, %v3071
        %v3077 = vld [vmem:[#allocation2 + $0x1] sm:$0xff]
        %v3078 = vld [vmem:[#allocation2 + $0x9] sm:$0xff]
        %v3079 = vld [vmem:[#allocation2 + $0x11] sm:$0xff]
        %v3080 = vld [vmem:[#allocation2 + $0x19] sm:$0xff]
        %v3081 = vld [vmem:[#allocation2 + $0x21] sm:$0x3f]
        %3087 = vrot.lane.b32.xlu0 %v3077, 16
        %v3088 = vpop.permute.xlu0 %3087
        %3089 = vrot.lane.b32.xlu0 %v3078, 16
        %v3090 = vpop.permute.xlu0 %3089
        %3091 = vrot.lane.b32.xlu0 %v3079, 16
        %v3092 = vpop.permute.xlu0 %3091
        %3093 = vrot.lane.b32.xlu0 %v3080, 16
        %v3094 = vpop.permute.xlu0 %3093
        %3095 = vrot.lane.b32.xlu0 %v3081, 16
        %v3096 = vpop.permute.xlu0 %3095
        %v3102 = vsel %vm333, 0.0, %v3088
        %v3103 = vsel %vm333, 0.0, %v3090
        %v3104 = vsel %vm333, 0.0, %v3092
        %v3105 = vsel %vm333, 0.0, %v3094
        %v3106 = vsel %vm333, 0.0, %v3096
        %v3107 = vld [vmem:[%s3011 + $0x3] sm:$0x1]
        %v3108 = vlaneseq
        %v3109 = vshrl.u32 %v3108, 7
        %v3110 = vsub.s32 0, %v3109
        %v3111 = vrot.slane %v3107, %v3110
        %v3112 = vmul.f32 %v3102, %v3111
        %v3113 = vmul.f32 %v3103, %v3111
        %v3114 = vmul.f32 %v3104, %v3111
        %v3115 = vmul.f32 %v3105, %v3111
        %v3116 = vmul.f32 %v3106, %v3111
        %v3117 = vadd.f32 %v3072, %v3112
        %v3118 = vadd.f32 %v3073, %v3113
        %v3119 = vadd.f32 %v3074, %v3114
        %v3120 = vadd.f32 %v3075, %v3115
        %v3121 = vadd.f32 %v3076, %v3116
        %v3122 = vld [vmem:[%s3011 + $0x4] sm:$0x1]
        %v3123 = vlaneseq
        %v3124 = vshrl.u32 %v3123, 7
        %v3125 = vsub.s32 0, %v3124
        %v3126 = vrot.slane %v3122, %v3125
        %v3127 = vmul.f32 %v3077, %v3126
        %v3128 = vmul.f32 %v3078, %v3126
        %v3129 = vmul.f32 %v3079, %v3126
        %v3130 = vmul.f32 %v3080, %v3126
        %v3131 = vmul.f32 %v3081, %v3126
        %v3132 = vadd.f32 %v3117, %v3127
        %v3133 = vadd.f32 %v3118, %v3128
        %v3134 = vadd.f32 %v3119, %v3129
        %v3135 = vadd.f32 %v3120, %v3130
        %v3136 = vadd.f32 %v3121, %v3131
        %3137 = vrot.lane.b32.xlu0 %v3077, 112
        %v3138 = vpop.permute.xlu0 %3137
        %3139 = vrot.lane.b32.xlu0 %v3078, 112
        %v3140 = vpop.permute.xlu0 %3139
        %3141 = vrot.lane.b32.xlu0 %v3079, 112
        %v3142 = vpop.permute.xlu0 %3141
        %3143 = vrot.lane.b32.xlu0 %v3080, 112
        %v3144 = vpop.permute.xlu0 %3143
        %3145 = vrot.lane.b32.xlu0 %v3081, 112
        %v3146 = vpop.permute.xlu0 %3145
        %v3152 = vsel %vm1042, %v3138, 0.0
        %v3153 = vsel %vm1042, %v3140, 0.0
        %v3154 = vsel %vm1042, %v3142, 0.0
        %v3155 = vsel %vm1042, %v3144, 0.0
        %v3156 = vsel %vm1042, %v3146, 0.0
        %v3157 = vld [vmem:[%s3011 + $0x5] sm:$0x1]
        %v3158 = vlaneseq
        %v3159 = vshrl.u32 %v3158, 7
        %v3160 = vsub.s32 0, %v3159
        %v3161 = vrot.slane %v3157, %v3160
        %v3162 = vmul.f32 %v3152, %v3161
        %v3163 = vmul.f32 %v3153, %v3161
        %v3164 = vmul.f32 %v3154, %v3161
        %v3165 = vmul.f32 %v3155, %v3161
        %v3166 = vmul.f32 %v3156, %v3161
        %v3167 = vadd.f32 %v3132, %v3162
        %v3168 = vadd.f32 %v3133, %v3163
        %v3169 = vadd.f32 %v3134, %v3164
        %v3170 = vadd.f32 %v3135, %v3165
        %v3171 = vadd.f32 %v3136, %v3166
        %v3172 = vld [vmem:[#allocation2 + $0x2] sm:$0xff]
        %v3173 = vld [vmem:[#allocation2 + $0xa] sm:$0xff]
        %v3174 = vld [vmem:[#allocation2 + $0x12] sm:$0xff]
        %v3175 = vld [vmem:[#allocation2 + $0x1a] sm:$0xff]
        %v3176 = vld [vmem:[#allocation2 + $0x22] sm:$0x3f]
        %3182 = vrot.lane.b32.xlu0 %v3172, 16
        %v3183 = vpop.permute.xlu0 %3182
        %3184 = vrot.lane.b32.xlu0 %v3173, 16
        %v3185 = vpop.permute.xlu0 %3184
        %3186 = vrot.lane.b32.xlu0 %v3174, 16
        %v3187 = vpop.permute.xlu0 %3186
        %3188 = vrot.lane.b32.xlu0 %v3175, 16
        %v3189 = vpop.permute.xlu0 %3188
        %3190 = vrot.lane.b32.xlu0 %v3176, 16
        %v3191 = vpop.permute.xlu0 %3190
        %v3197 = vsel %vm333, 0.0, %v3183
        %v3198 = vsel %vm333, 0.0, %v3185
        %v3199 = vsel %vm333, 0.0, %v3187
        %v3200 = vsel %vm333, 0.0, %v3189
        %v3201 = vsel %vm333, 0.0, %v3191
        %v3202 = vld [vmem:[%s3011 + $0x6] sm:$0x1]
        %v3203 = vlaneseq
        %v3204 = vshrl.u32 %v3203, 7
        %v3205 = vsub.s32 0, %v3204
        %v3206 = vrot.slane %v3202, %v3205
        %v3207 = vmul.f32 %v3197, %v3206
        %v3208 = vmul.f32 %v3198, %v3206
        %v3209 = vmul.f32 %v3199, %v3206
        %v3210 = vmul.f32 %v3200, %v3206
        %v3211 = vmul.f32 %v3201, %v3206
        %v3212 = vadd.f32 %v3167, %v3207
        %v3213 = vadd.f32 %v3168, %v3208
        %v3214 = vadd.f32 %v3169, %v3209
        %v3215 = vadd.f32 %v3170, %v3210
        %v3216 = vadd.f32 %v3171, %v3211
        %v3217 = vld [vmem:[%s3011 + $0x7] sm:$0x1]
        %v3218 = vlaneseq
        %v3219 = vshrl.u32 %v3218, 7
        %v3220 = vsub.s32 0, %v3219
        %v3221 = vrot.slane %v3217, %v3220
        %v3222 = vmul.f32 %v3172, %v3221
        %v3223 = vmul.f32 %v3173, %v3221
        %v3224 = vmul.f32 %v3174, %v3221
        %v3225 = vmul.f32 %v3175, %v3221
        %v3226 = vmul.f32 %v3176, %v3221
        %v3227 = vadd.f32 %v3212, %v3222
        %v3228 = vadd.f32 %v3213, %v3223
        %v3229 = vadd.f32 %v3214, %v3224
        %v3230 = vadd.f32 %v3215, %v3225
        %v3231 = vadd.f32 %v3216, %v3226
        %3232 = vrot.lane.b32.xlu0 %v3172, 112
        %v3233 = vpop.permute.xlu0 %3232
        %3234 = vrot.lane.b32.xlu0 %v3173, 112
        %v3235 = vpop.permute.xlu0 %3234
        %3236 = vrot.lane.b32.xlu0 %v3174, 112
        %v3237 = vpop.permute.xlu0 %3236
        %3238 = vrot.lane.b32.xlu0 %v3175, 112
        %v3239 = vpop.permute.xlu0 %3238
        %3240 = vrot.lane.b32.xlu0 %v3176, 112
        %v3241 = vpop.permute.xlu0 %3240
        %v3247 = vsel %vm1042, %v3233, 0.0
        %v3248 = vsel %vm1042, %v3235, 0.0
        %v3249 = vsel %vm1042, %v3237, 0.0
        %v3250 = vsel %vm1042, %v3239, 0.0
        %v3251 = vsel %vm1042, %v3241, 0.0
        %v3252 = vld [vmem:[%s3011 + $0x8] sm:$0x1]
        %v3253 = vlaneseq
        %v3254 = vshrl.u32 %v3253, 7
        %v3255 = vsub.s32 0, %v3254
        %v3256 = vrot.slane %v3252, %v3255
        %v3257 = vmul.f32 %v3247, %v3256
        %v3258 = vmul.f32 %v3248, %v3256
        %v3259 = vmul.f32 %v3249, %v3256
        %v3260 = vmul.f32 %v3250, %v3256
        %v3261 = vmul.f32 %v3251, %v3256
        %v3262 = vadd.f32 %v3227, %v3257
        %v3263 = vadd.f32 %v3228, %v3258
        %v3264 = vadd.f32 %v3229, %v3259
        %v3265 = vadd.f32 %v3230, %v3260
        %v3266 = vadd.f32 %v3231, %v3261
        %s3267 = scalar_lea.vmem %s2, 16
        %v3268 = vld [vmem:[%s3267] sm:$0x1]
        %v3269 = vlaneseq
        %v3270 = vshrl.u32 %v3269, 7
        %v3271 = vsub.s32 0, %v3270
        %v3272 = vrot.slane %v3268, %v3271
        %v3273 = vmul.f32 %v3262, %v3272
        %v3274 = vmul.f32 %v3263, %v3272
        %v3275 = vmul.f32 %v3264, %v3272
        %v3276 = vmul.f32 %v3265, %v3272
        %v3277 = vmul.f32 %v3266, %v3272
        %v3278 = vld [vmem:[%s3267 + $0x1] sm:$0x1]
        %v3279 = vlaneseq
        %v3280 = vshrl.u32 %v3279, 7
        %v3281 = vsub.s32 0, %v3280
        %v3282 = vrot.slane %v3278, %v3281
        %v3283 = vadd.f32 %v3273, %v3282
        %v3284 = vadd.f32 %v3274, %v3282
        %v3285 = vadd.f32 %v3275, %v3282
        %v3286 = vadd.f32 %v3276, %v3282
        %v3287 = vadd.f32 %v3277, %v3282
        %vm3288 = vcmp.gt.f32.partialorder %v3283, 0.0
        %vm3289 = vcmp.gt.f32.partialorder %v3284, 0.0
        %vm3290 = vcmp.gt.f32.partialorder %v3285, 0.0
        %vm3291 = vcmp.gt.f32.partialorder %v3286, 0.0
        %vm3292 = vcmp.gt.f32.partialorder %v3287, 0.0
        %v3293 = vld [vmem:[%s3267 + $0x2] sm:$0x1]
        %v3294 = vlaneseq
        %v3295 = vshrl.u32 %v3294, 7
        %v3296 = vsub.s32 0, %v3295
        %v3297 = vrot.slane %v3293, %v3296
        %v3298 = vmul.f32 %v3283, %v3297
        %v3299 = vmul.f32 %v3284, %v3297
        %v3300 = vmul.f32 %v3285, %v3297
        %v3301 = vmul.f32 %v3286, %v3297
        %v3302 = vmul.f32 %v3287, %v3297
        %v3303 = vsel %vm3288, %v3283, %v3298
        %v3304 = vsel %vm3289, %v3284, %v3299
        %v3305 = vsel %vm3290, %v3285, %v3300
        %v3306 = vsel %vm3291, %v3286, %v3301
        %v3307 = vsel %vm3292, %v3287, %v3302
        %s3308 = scalar_lea.vmem [#allocation7], 256
        %v3309 = vld [vmem:[%s3308] sm:$0xff]
        %v3310 = vld [vmem:[%s3308 + $0x8] sm:$0xff]
        %v3311 = vld [vmem:[%s3308 + $0x10] sm:$0xff]
        %v3312 = vld [vmem:[%s3308 + $0x18] sm:$0xff]
        %v3313 = vld [vmem:[%s3308 + $0x20] sm:$0xff]
        %v3314 = vld [vmem:[%s3308 + $0x28] sm:$0xff]
        %v3315 = vld [vmem:[%s3308 + $0x30] sm:$0xff]
        %v3316 = vld [vmem:[%s3308 + $0x38] sm:$0xff]
        %v3317 = vld [vmem:[%s3308 + $0x40] sm:$0xff]
        %v3318 = vld [vmem:[%s3308 + $0x48] sm:$0xff]
        %v3319 = vld [vmem:[%s3308 + $0x50] sm:$0xff]
        %v3320 = vld [vmem:[%s3308 + $0x58] sm:$0xff]
        %v3321 = vld [vmem:[%s3308 + $0x60] sm:$0xff]
        %v3322 = vld [vmem:[%s3308 + $0x68] sm:$0xff]
        %v3323 = vld [vmem:[%s3308 + $0x70] sm:$0xff]
        %v3324 = vld [vmem:[%s3308 + $0x78] sm:$0xff]
        %v3325 = vld [vmem:[%s3267 + $0x3] sm:$0x1]
        %v3326 = vlaneseq
        %v3327 = vshrl.u32 %v3326, 7
        %v3328 = vsub.s32 0, %v3327
        %v3329 = vrot.slane %v3325, %v3328
        %3330 = vmatprep.subr.mxu0 0.0
        %3331 = vmatpush1.msra.mxu0 %v3309
        %3332 = vmatprep.subr.mxu0 0.0
        %3333 = vmatpush1.msra.mxu0 %v3310
        %3334 = vmatprep.subr.mxu0 0.0
        %3335 = vmatpush1.msra.mxu0 %v3311
        %3336 = vmatprep.subr.mxu0 0.0
        %3337 = vmatpush1.msra.mxu0 %v3312
        %3338 = vmatprep.subr.mxu0 0.0
        %3339 = vmatpush1.msra.mxu0 %v3313
        %3340 = vmatprep.subr.mxu0 0.0
        %3341 = vmatpush1.msra.mxu0 %v3314
        %3342 = vmatprep.subr.mxu0 0.0
        %3343 = vmatpush1.msra.mxu0 %v3315
        %3344 = vmatprep.subr.mxu0 0.0
        %3345 = vmatpush1.msra.mxu0 %v3316
        %3346 = vmatprep.subr.mxu0 0.0
        %3347 = vmatpush1.msra.mxu0 %v3317
        %3348 = vmatprep.subr.mxu0 0.0
        %3349 = vmatpush1.msra.mxu0 %v3318
        %3350 = vmatprep.subr.mxu0 0.0
        %3351 = vmatpush1.msra.mxu0 %v3319
        %3352 = vmatprep.subr.mxu0 0.0
        %3353 = vmatpush1.msra.mxu0 %v3320
        %3354 = vmatprep.subr.mxu0 0.0
        %3355 = vmatpush1.msra.mxu0 %v3321
        %3356 = vmatprep.subr.mxu0 0.0
        %3357 = vmatpush1.msra.mxu0 %v3322
        %3358 = vmatprep.subr.mxu0 0.0
        %3359 = vmatpush1.msra.mxu0 %v3323
        %3360 = vmatprep.subr.mxu0 0.0
        %3361 = vmatpush1.msra.mxu0 %v3324
        %3362 = vmatprep.subr.mxu0 0.0
        %3363 = vmatpush1.msra.mxu0 0.0
        %3364 = vmatprep.subr.mxu0 0.0
        %3365 = vmatpush1.msra.mxu0 0.0
        %3366 = vmatprep.subr.mxu0 0.0
        %3367 = vmatpush1.msra.mxu0 0.0
        %3368 = vmatprep.subr.mxu0 0.0
        %3369 = vmatpush1.msra.mxu0 0.0
        %3370 = vmatprep.subr.mxu0 0.0
        %3371 = vmatpush1.msra.mxu0 0.0
        %3372 = vmatprep.subr.mxu0 0.0
        %3373 = vmatpush1.msra.mxu0 0.0
        %3374 = vmatprep.subr.mxu0 0.0
        %3375 = vmatpush1.msra.mxu0 0.0
        %3376 = vmatprep.subr.mxu0 0.0
        %3377 = vmatpush1.msra.mxu0 0.0
        %3378 = vmatprep.subr.mxu0 0.0
        %3379 = vmatpush1.msra.mxu0 0.0
        %3380 = vmatprep.subr.mxu0 0.0
        %3381 = vmatpush1.msra.mxu0 0.0
        %3382 = vmatprep.subr.mxu0 0.0
        %3383 = vmatpush1.msra.mxu0 0.0
        %3384 = vmatprep.subr.mxu0 0.0
        %3385 = vmatpush1.msra.mxu0 0.0
        %3386 = vmatprep.subr.mxu0 0.0
        %3387 = vmatpush1.msra.mxu0 0.0
        %3388 = vmatprep.subr.mxu0 0.0
        %3389 = vmatpush1.msra.mxu0 0.0
        %3390 = vmatprep.subr.mxu0 0.0
        %3391 = vmatpush1.msra.mxu0 0.0
        %3392 = vmatprep.subr.mxu0 0.0
        %3393 = vmatpush1.msra.mxu0 0.0
        %3394 = vmatprep.mubr.f32.mxu0 0.0
        %3395 = vmatmul.mubr.f32.gmra.mrb[0].mxu0 %v3303
        %v3396 = vpop.f32.mrb[0].mxu0
        %v3397 = vadd.f32 %v3329, %v3396
        %v3398 = vpop.f32.mrb[0].mxu0
        %3399 = vmatprep.mubr.f32.mxu0 0.0
        %3400 = vmatmul.mubr.f32.gmra.mrb[0].mxu0 %v3304
        %v3401 = vpop.f32.mrb[0].mxu0
        %v3402 = vadd.f32 %v3329, %v3401
        %v3403 = vpop.f32.mrb[0].mxu0
        %3404 = vmatprep.mubr.f32.mxu0 0.0
        %3405 = vmatmul.mubr.f32.gmra.mrb[0].mxu0 %v3305
        %v3406 = vpop.f32.mrb[0].mxu0
        %v3407 = vadd.f32 %v3329, %v3406
        %v3408 = vpop.f32.mrb[0].mxu0
        %3409 = vmatprep.mubr.f32.mxu0 0.0
        %3410 = vmatmul.mubr.f32.gmra.mrb[0].mxu0 %v3306
        %v3411 = vpop.f32.mrb[0].mxu0
        %v3412 = vadd.f32 %v3329, %v3411
        %v3413 = vpop.f32.mrb[0].mxu0
        %3414 = vmatprep.mubr.f32.mxu0 0.0
        %3415 = vmatmul.mubr.f32.gmra.mrb[0].mxu0 %v3307
        %v3416 = vpop.f32.mrb[0].mxu0
        %v3417 = vadd.f32 %v3329, %v3416
        %v3418 = vpop.f32.mrb[0].mxu0
        %3419 = vdwg.mxu0
        %vm3420 = vcmp.gt.f32.partialorder %v3397, 0.0
        %vm3421 = vcmp.gt.f32.partialorder %v3402, 0.0
        %vm3422 = vcmp.gt.f32.partialorder %v3407, 0.0
        %vm3423 = vcmp.gt.f32.partialorder %v3412, 0.0
        %vm3424 = vcmp.gt.f32.partialorder %v3417, 0.0
        %v3425 = vld [vmem:[%s3267 + $0x4] sm:$0x1]
        %v3426 = vlaneseq
        %v3427 = vshrl.u32 %v3426, 7
        %v3428 = vsub.s32 0, %v3427
        %v3429 = vrot.slane %v3425, %v3428
        %v3430 = vmul.f32 %v3397, %v3429
        %v3431 = vmul.f32 %v3402, %v3429
        %v3432 = vmul.f32 %v3407, %v3429
        %v3433 = vmul.f32 %v3412, %v3429
        %v3434 = vmul.f32 %v3417, %v3429
        %v3435 = vsel %vm3420, %v3397, %v3430
        %v3436 = vsel %vm3421, %v3402, %v3431
        %v3437 = vsel %vm3422, %v3407, %v3432
        %v3438 = vsel %vm3423, %v3412, %v3433
        %v3439 = vsel %vm3424, %v3417, %v3434
        %s3440 = scalar_lea.vmem [#allocation9], 768
        %v3441 = vld [vmem:[%s3440] sm:$0xff]
        %v3442 = vld [vmem:[%s3440 + $0x8] sm:$0xff]
        %v3443 = vld [vmem:[%s3440 + $0x10] sm:$0xff]
        %v3444 = vld [vmem:[%s3440 + $0x18] sm:$0xff]
        %v3445 = vld [vmem:[%s3440 + $0x20] sm:$0xff]
        %v3446 = vld [vmem:[%s3440 + $0x28] sm:$0xff]
        %v3447 = vld [vmem:[%s3440 + $0x30] sm:$0xff]
        %v3448 = vld [vmem:[%s3440 + $0x38] sm:$0xff]
        %v3449 = vld [vmem:[%s3440 + $0x40] sm:$0xff]
        %v3450 = vld [vmem:[%s3440 + $0x48] sm:$0xff]
        %v3451 = vld [vmem:[%s3440 + $0x50] sm:$0xff]
        %v3452 = vld [vmem:[%s3440 + $0x58] sm:$0xff]
        %v3453 = vld [vmem:[%s3440 + $0x60] sm:$0xff]
        %v3454 = vld [vmem:[%s3440 + $0x68] sm:$0xff]
        %v3455 = vld [vmem:[%s3440 + $0x70] sm:$0xff]
        %v3456 = vld [vmem:[%s3440 + $0x78] sm:$0xff]
        %v3457 = vld [vmem:[%s1394] sm:$0xff]
        %v3458 = vld [vmem:[%s1394 + $0x8] sm:$0xff]
        %v3459 = vld [vmem:[%s1394 + $0x10] sm:$0xff]
        %v3460 = vld [vmem:[%s1394 + $0x18] sm:$0xff]
        %v3461 = vld [vmem:[%s1394 + $0x20] sm:$0x3f]
        %s3462 = scalar_lea.vmem [#allocation9], 896
        %v3463 = vld [vmem:[%s3462] sm:$0xff]
        %v3464 = vld [vmem:[%s3462 + $0x8] sm:$0xff]
        %v3465 = vld [vmem:[%s3462 + $0x10] sm:$0xff]
        %v3466 = vld [vmem:[%s3462 + $0x18] sm:$0xff]
        %v3467 = vld [vmem:[%s3462 + $0x20] sm:$0xff]
        %v3468 = vld [vmem:[%s3462 + $0x28] sm:$0xff]
        %v3469 = vld [vmem:[%s3462 + $0x30] sm:$0xff]
        %v3470 = vld [vmem:[%s3462 + $0x38] sm:$0xff]
        %v3471 = vld [vmem:[%s3462 + $0x40] sm:$0xff]
        %v3472 = vld [vmem:[%s3462 + $0x48] sm:$0xff]
        %v3473 = vld [vmem:[%s3462 + $0x50] sm:$0xff]
        %v3474 = vld [vmem:[%s3462 + $0x58] sm:$0xff]
        %v3475 = vld [vmem:[%s3462 + $0x60] sm:$0xff]
        %v3476 = vld [vmem:[%s3462 + $0x68] sm:$0xff]
        %v3477 = vld [vmem:[%s3462 + $0x70] sm:$0xff]
        %v3478 = vld [vmem:[%s3462 + $0x78] sm:$0xff]
        %3479 = vmatprep.subr.mxu0 0.0
        %3480 = vmatpush1.msra.mxu0 %v3463
        %3481 = vmatprep.subr.mxu0 0.0
        %3482 = vmatpush1.msra.mxu0 %v3464
        %3483 = vmatprep.subr.mxu0 0.0
        %3484 = vmatpush1.msra.mxu0 %v3465
        %3485 = vmatprep.subr.mxu0 0.0
        %3486 = vmatpush1.msra.mxu0 %v3466
        %3487 = vmatprep.subr.mxu0 0.0
        %3488 = vmatpush1.msra.mxu0 %v3467
        %3489 = vmatprep.subr.mxu0 0.0
        %3490 = vmatpush1.msra.mxu0 %v3468
        %3491 = vmatprep.subr.mxu0 0.0
        %3492 = vmatpush1.msra.mxu0 %v3469
        %3493 = vmatprep.subr.mxu0 0.0
        %3494 = vmatpush1.msra.mxu0 %v3470
        %3495 = vmatprep.subr.mxu0 0.0
        %3496 = vmatpush1.msra.mxu0 %v3471
        %3497 = vmatprep.subr.mxu0 0.0
        %3498 = vmatpush1.msra.mxu0 %v3472
        %3499 = vmatprep.subr.mxu0 0.0
        %3500 = vmatpush1.msra.mxu0 %v3473
        %3501 = vmatprep.subr.mxu0 0.0
        %3502 = vmatpush1.msra.mxu0 %v3474
        %3503 = vmatprep.subr.mxu0 0.0
        %3504 = vmatpush1.msra.mxu0 %v3475
        %3505 = vmatprep.subr.mxu0 0.0
        %3506 = vmatpush1.msra.mxu0 %v3476
        %3507 = vmatprep.subr.mxu0 0.0
        %3508 = vmatpush1.msra.mxu0 %v3477
        %3509 = vmatprep.subr.mxu0 0.0
        %3510 = vmatpush1.msra.mxu0 %v3478
        %3511 = vmatprep.subr.mxu0 0.0
        %3512 = vmatpush1.msra.mxu0 0.0
        %3513 = vmatprep.subr.mxu0 0.0
        %3514 = vmatpush1.msra.mxu0 0.0
        %3515 = vmatprep.subr.mxu0 0.0
        %3516 = vmatpush1.msra.mxu0 0.0
        %3517 = vmatprep.subr.mxu0 0.0
        %3518 = vmatpush1.msra.mxu0 0.0
        %3519 = vmatprep.subr.mxu0 0.0
        %3520 = vmatpush1.msra.mxu0 0.0
        %3521 = vmatprep.subr.mxu0 0.0
        %3522 = vmatpush1.msra.mxu0 0.0
        %3523 = vmatprep.subr.mxu0 0.0
        %3524 = vmatpush1.msra.mxu0 0.0
        %3525 = vmatprep.subr.mxu0 0.0
        %3526 = vmatpush1.msra.mxu0 0.0
        %3527 = vmatprep.subr.mxu0 0.0
        %3528 = vmatpush1.msra.mxu0 0.0
        %3529 = vmatprep.subr.mxu0 0.0
        %3530 = vmatpush1.msra.mxu0 0.0
        %3531 = vmatprep.subr.mxu0 0.0
        %3532 = vmatpush1.msra.mxu0 0.0
        %3533 = vmatprep.subr.mxu0 0.0
        %3534 = vmatpush1.msra.mxu0 0.0
        %3535 = vmatprep.subr.mxu0 0.0
        %3536 = vmatpush1.msra.mxu0 0.0
        %3537 = vmatprep.subr.mxu0 0.0
        %3538 = vmatpush1.msra.mxu0 0.0
        %3539 = vmatprep.subr.mxu0 0.0
        %3540 = vmatpush1.msra.mxu0 0.0
        %3541 = vmatprep.subr.mxu0 0.0
        %3542 = vmatpush1.msra.mxu0 0.0
        %3543 = vmatprep.mubr.f32.mxu0 0.0
        %3544 = vmatmul.mubr.f32.gmra.mrb[0].mxu0 %v3457
        %v3545 = vpop.f32.mrb[0].mxu0
        %v3546 = vadd.f32 0.0, %v3545
        %v3547 = vpop.f32.mrb[0].mxu0
        %3548 = vmatprep.mubr.f32.mxu0 0.0
        %3549 = vmatmul.mubr.f32.gmra.mrb[0].mxu0 %v3458
        %v3550 = vpop.f32.mrb[0].mxu0
        %v3551 = vadd.f32 0.0, %v3550
        %v3552 = vpop.f32.mrb[0].mxu0
        %3553 = vmatprep.mubr.f32.mxu0 0.0
        %3554 = vmatmul.mubr.f32.gmra.mrb[0].mxu0 %v3459
        %v3555 = vpop.f32.mrb[0].mxu0
        %v3556 = vadd.f32 0.0, %v3555
        %v3557 = vpop.f32.mrb[0].mxu0
        %3558 = vmatprep.mubr.f32.mxu0 0.0
        %3559 = vmatmul.mubr.f32.gmra.mrb[0].mxu0 %v3460
        %v3560 = vpop.f32.mrb[0].mxu0
        %v3561 = vadd.f32 0.0, %v3560
        %v3562 = vpop.f32.mrb[0].mxu0
        %3563 = vmatprep.mubr.f32.mxu0 0.0
        %3564 = vmatmul.mubr.f32.gmra.mrb[0].mxu0 %v3461
        %v3565 = vpop.f32.mrb[0].mxu0
        %v3566 = vadd.f32 0.0, %v3565
        %v3567 = vpop.f32.mrb[0].mxu0
        %3568 = vdwg.mxu0
        %3569 = vmatprep.subr.mxu0 0.0
        %3570 = vmatpush1.msra.mxu0 %v3441
        %3571 = vmatprep.subr.mxu0 0.0
        %3572 = vmatpush1.msra.mxu0 %v3442
        %3573 = vmatprep.subr.mxu0 0.0
        %3574 = vmatpush1.msra.mxu0 %v3443
        %3575 = vmatprep.subr.mxu0 0.0
        %3576 = vmatpush1.msra.mxu0 %v3444
        %3577 = vmatprep.subr.mxu0 0.0
        %3578 = vmatpush1.msra.mxu0 %v3445
        %3579 = vmatprep.subr.mxu0 0.0
        %3580 = vmatpush1.msra.mxu0 %v3446
        %3581 = vmatprep.subr.mxu0 0.0
        %3582 = vmatpush1.msra.mxu0 %v3447
        %3583 = vmatprep.subr.mxu0 0.0
        %3584 = vmatpush1.msra.mxu0 %v3448
        %3585 = vmatprep.subr.mxu0 0.0
        %3586 = vmatpush1.msra.mxu0 %v3449
        %3587 = vmatprep.subr.mxu0 0.0
        %3588 = vmatpush1.msra.mxu0 %v3450
        %3589 = vmatprep.subr.mxu0 0.0
        %3590 = vmatpush1.msra.mxu0 %v3451
        %3591 = vmatprep.subr.mxu0 0.0
        %3592 = vmatpush1.msra.mxu0 %v3452
        %3593 = vmatprep.subr.mxu0 0.0
        %3594 = vmatpush1.msra.mxu0 %v3453
        %3595 = vmatprep.subr.mxu0 0.0
        %3596 = vmatpush1.msra.mxu0 %v3454
        %3597 = vmatprep.subr.mxu0 0.0
        %3598 = vmatpush1.msra.mxu0 %v3455
        %3599 = vmatprep.subr.mxu0 0.0
        %3600 = vmatpush1.msra.mxu0 %v3456
        %3601 = vmatprep.subr.mxu0 0.0
        %3602 = vmatpush1.msra.mxu0 0.0
        %3603 = vmatprep.subr.mxu0 0.0
        %3604 = vmatpush1.msra.mxu0 0.0
        %3605 = vmatprep.subr.mxu0 0.0
        %3606 = vmatpush1.msra.mxu0 0.0
        %3607 = vmatprep.subr.mxu0 0.0
        %3608 = vmatpush1.msra.mxu0 0.0
        %3609 = vmatprep.subr.mxu0 0.0
        %3610 = vmatpush1.msra.mxu0 0.0
        %3611 = vmatprep.subr.mxu0 0.0
        %3612 = vmatpush1.msra.mxu0 0.0
        %3613 = vmatprep.subr.mxu0 0.0
        %3614 = vmatpush1.msra.mxu0 0.0
        %3615 = vmatprep.subr.mxu0 0.0
        %3616 = vmatpush1.msra.mxu0 0.0
        %3617 = vmatprep.subr.mxu0 0.0
        %3618 = vmatpush1.msra.mxu0 0.0
        %3619 = vmatprep.subr.mxu0 0.0
        %3620 = vmatpush1.msra.mxu0 0.0
        %3621 = vmatprep.subr.mxu0 0.0
        %3622 = vmatpush1.msra.mxu0 0.0
        %3623 = vmatprep.subr.mxu0 0.0
        %3624 = vmatpush1.msra.mxu0 0.0
        %3625 = vmatprep.subr.mxu0 0.0
        %3626 = vmatpush1.msra.mxu0 0.0
        %3627 = vmatprep.subr.mxu0 0.0
        %3628 = vmatpush1.msra.mxu0 0.0
        %3629 = vmatprep.subr.mxu0 0.0
        %3630 = vmatpush1.msra.mxu0 0.0
        %3631 = vmatprep.subr.mxu0 0.0
        %3632 = vmatpush1.msra.mxu0 0.0
        %3633 = vmatprep.mubr.f32.mxu0 0.0
        %3634 = vmatmul.mubr.f32.gmra.mrb[0].mxu0 %v3435
        %v3635 = vpop.f32.mrb[0].mxu0
        %v3636 = vadd.f32 %v3546, %v3635
        %v3637 = vpop.f32.mrb[0].mxu0
        %3638 = vmatprep.mubr.f32.mxu0 0.0
        %3639 = vmatmul.mubr.f32.gmra.mrb[0].mxu0 %v3436
        %v3640 = vpop.f32.mrb[0].mxu0
        %v3641 = vadd.f32 %v3551, %v3640
        %v3642 = vpop.f32.mrb[0].mxu0
        %3643 = vmatprep.mubr.f32.mxu0 0.0
        %3644 = vmatmul.mubr.f32.gmra.mrb[0].mxu0 %v3437
        %v3645 = vpop.f32.mrb[0].mxu0
        %v3646 = vadd.f32 %v3556, %v3645
        %v3647 = vpop.f32.mrb[0].mxu0
        %3648 = vmatprep.mubr.f32.mxu0 0.0
        %3649 = vmatmul.mubr.f32.gmra.mrb[0].mxu0 %v3438
        %v3650 = vpop.f32.mrb[0].mxu0
        %v3651 = vadd.f32 %v3561, %v3650
        %v3652 = vpop.f32.mrb[0].mxu0
        %3653 = vmatprep.mubr.f32.mxu0 0.0
        %3654 = vmatmul.mubr.f32.gmra.mrb[0].mxu0 %v3439
        %v3655 = vpop.f32.mrb[0].mxu0
        %v3656 = vadd.f32 %v3566, %v3655
        %v3657 = vpop.f32.mrb[0].mxu0
        %3658 = vdwg.mxu0
        %v3659 = vld [vmem:[%s5 + $0x2] sm:$0x1]
        %v3660 = vlaneseq
        %v3661 = vshrl.u32 %v3660, 7
        %v3662 = vsub.s32 0, %v3661
        %v3663 = vrot.slane %v3659, %v3662
        %v3664 = vadd.f32 %v3636, %v3663
        %v3665 = vadd.f32 %v3641, %v3663
        %v3666 = vadd.f32 %v3646, %v3663
        %v3667 = vadd.f32 %v3651, %v3663
        %v3668 = vadd.f32 %v3656, %v3663
        %3669 = vst [vmem:[#allocation2 + $0x1] sm:$0xff] %v3664
        %3670 = vst [vmem:[#allocation2 + $0x9] sm:$0xfc] %v3665
        %3671 = vst [vmem:[#allocation2 + $0x11] sm:$0x3] %v3666
        %3672 = vst [vmem:[#allocation2 + $0x11] sm:$0xf0] %v3666
        %3673 = vst [vmem:[#allocation2 + $0x19] sm:$0xf] %v3667
        %3674 = vst [vmem:[#allocation2 + $0x19] sm:$0xc0] %v3667
        %3675 = vst [vmem:[#allocation2 + $0x21] sm:$0x3f] %v3668
        %v3676 = vld [vmem:[#allocation2] sm:$0xff]
        %v3677 = vld [vmem:[#allocation2 + $0x8] sm:$0xff]
        %v3678 = vld [vmem:[#allocation2 + $0x10] sm:$0xff]
        %v3679 = vld [vmem:[#allocation2 + $0x18] sm:$0xff]
        %v3680 = vld [vmem:[#allocation2 + $0x20] sm:$0x3f]
        %3686 = vrot.lane.b32.xlu0 %v3676, 16
        %v3687 = vpop.permute.xlu0 %3686
        %3688 = vrot.lane.b32.xlu0 %v3677, 16
        %v3689 = vpop.permute.xlu0 %3688
        %3690 = vrot.lane.b32.xlu0 %v3678, 16
        %v3691 = vpop.permute.xlu0 %3690
        %3692 = vrot.lane.b32.xlu0 %v3679, 16
        %v3693 = vpop.permute.xlu0 %3692
        %3694 = vrot.lane.b32.xlu0 %v3680, 16
        %v3695 = vpop.permute.xlu0 %3694
        %v3701 = vsel %vm333, 0.0, %v3687
        %v3702 = vsel %vm333, 0.0, %v3689
        %v3703 = vsel %vm333, 0.0, %v3691
        %v3704 = vsel %vm333, 0.0, %v3693
        %v3705 = vsel %vm333, 0.0, %v3695
        %s3706 = scalar_lea.vmem %s1, 48
        %v3707 = vld [vmem:[%s3706] sm:$0x1]
        %v3708 = vlaneseq
        %v3709 = vshrl.u32 %v3708, 7
        %v3710 = vsub.s32 0, %v3709
        %v3711 = vrot.slane %v3707, %v3710
        %v3712 = vmul.f32 %v3701, %v3711
        %v3713 = vmul.f32 %v3702, %v3711
        %v3714 = vmul.f32 %v3703, %v3711
        %v3715 = vmul.f32 %v3704, %v3711
        %v3716 = vmul.f32 %v3705, %v3711
        %v3717 = vadd.f32 %v3712, 0.0
        %v3718 = vadd.f32 %v3713, 0.0
        %v3719 = vadd.f32 %v3714, 0.0
        %v3720 = vadd.f32 %v3715, 0.0
        %v3721 = vadd.f32 %v3716, 0.0
        %v3722 = vld [vmem:[%s3706 + $0x1] sm:$0x1]
        %v3723 = vlaneseq
        %v3724 = vshrl.u32 %v3723, 7
        %v3725 = vsub.s32 0, %v3724
        %v3726 = vrot.slane %v3722, %v3725
        %v3727 = vmul.f32 %v3676, %v3726
        %v3728 = vmul.f32 %v3677, %v3726
        %v3729 = vmul.f32 %v3678, %v3726
        %v3730 = vmul.f32 %v3679, %v3726
        %v3731 = vmul.f32 %v3680, %v3726
        %v3732 = vadd.f32 %v3717, %v3727
        %v3733 = vadd.f32 %v3718, %v3728
        %v3734 = vadd.f32 %v3719, %v3729
        %v3735 = vadd.f32 %v3720, %v3730
        %v3736 = vadd.f32 %v3721, %v3731
        %3737 = vrot.lane.b32.xlu0 %v3676, 112
        %v3738 = vpop.permute.xlu0 %3737
        %3739 = vrot.lane.b32.xlu0 %v3677, 112
        %v3740 = vpop.permute.xlu0 %3739
        %3741 = vrot.lane.b32.xlu0 %v3678, 112
        %v3742 = vpop.permute.xlu0 %3741
        %3743 = vrot.lane.b32.xlu0 %v3679, 112
        %v3744 = vpop.permute.xlu0 %3743
        %3745 = vrot.lane.b32.xlu0 %v3680, 112
        %v3746 = vpop.permute.xlu0 %3745
        %v3752 = vsel %vm1042, %v3738, 0.0
        %v3753 = vsel %vm1042, %v3740, 0.0
        %v3754 = vsel %vm1042, %v3742, 0.0
        %v3755 = vsel %vm1042, %v3744, 0.0
        %v3756 = vsel %vm1042, %v3746, 0.0
        %v3757 = vld [vmem:[%s3706 + $0x2] sm:$0x1]
        %v3758 = vlaneseq
        %v3759 = vshrl.u32 %v3758, 7
        %v3760 = vsub.s32 0, %v3759
        %v3761 = vrot.slane %v3757, %v3760
        %v3762 = vmul.f32 %v3752, %v3761
        %v3763 = vmul.f32 %v3753, %v3761
        %v3764 = vmul.f32 %v3754, %v3761
        %v3765 = vmul.f32 %v3755, %v3761
        %v3766 = vmul.f32 %v3756, %v3761
        %v3767 = vadd.f32 %v3732, %v3762
        %v3768 = vadd.f32 %v3733, %v3763
        %v3769 = vadd.f32 %v3734, %v3764
        %v3770 = vadd.f32 %v3735, %v3765
        %v3771 = vadd.f32 %v3736, %v3766
        %v3772 = vld [vmem:[#allocation2 + $0x1] sm:$0xff]
        %v3773 = vld [vmem:[#allocation2 + $0x9] sm:$0xff]
        %v3774 = vld [vmem:[#allocation2 + $0x11] sm:$0xff]
        %v3775 = vld [vmem:[#allocation2 + $0x19] sm:$0xff]
        %v3776 = vld [vmem:[#allocation2 + $0x21] sm:$0x3f]
        %3782 = vrot.lane.b32.xlu0 %v3772, 16
        %v3783 = vpop.permute.xlu0 %3782
        %3784 = vrot.lane.b32.xlu0 %v3773, 16
        %v3785 = vpop.permute.xlu0 %3784
        %3786 = vrot.lane.b32.xlu0 %v3774, 16
        %v3787 = vpop.permute.xlu0 %3786
        %3788 = vrot.lane.b32.xlu0 %v3775, 16
        %v3789 = vpop.permute.xlu0 %3788
        %3790 = vrot.lane.b32.xlu0 %v3776, 16
        %v3791 = vpop.permute.xlu0 %3790
        %v3797 = vsel %vm333, 0.0, %v3783
        %v3798 = vsel %vm333, 0.0, %v3785
        %v3799 = vsel %vm333, 0.0, %v3787
        %v3800 = vsel %vm333, 0.0, %v3789
        %v3801 = vsel %vm333, 0.0, %v3791
        %v3802 = vld [vmem:[%s3706 + $0x3] sm:$0x1]
        %v3803 = vlaneseq
        %v3804 = vshrl.u32 %v3803, 7
        %v3805 = vsub.s32 0, %v3804
        %v3806 = vrot.slane %v3802, %v3805
        %v3807 = vmul.f32 %v3797, %v3806
        %v3808 = vmul.f32 %v3798, %v3806
        %v3809 = vmul.f32 %v3799, %v3806
        %v3810 = vmul.f32 %v3800, %v3806
        %v3811 = vmul.f32 %v3801, %v3806
        %v3812 = vadd.f32 %v3767, %v3807
        %v3813 = vadd.f32 %v3768, %v3808
        %v3814 = vadd.f32 %v3769, %v3809
        %v3815 = vadd.f32 %v3770, %v3810
        %v3816 = vadd.f32 %v3771, %v3811
        %v3817 = vld [vmem:[%s3706 + $0x4] sm:$0x1]
        %v3818 = vlaneseq
        %v3819 = vshrl.u32 %v3818, 7
        %v3820 = vsub.s32 0, %v3819
        %v3821 = vrot.slane %v3817, %v3820
        %v3822 = vmul.f32 %v3772, %v3821
        %v3823 = vmul.f32 %v3773, %v3821
        %v3824 = vmul.f32 %v3774, %v3821
        %v3825 = vmul.f32 %v3775, %v3821
        %v3826 = vmul.f32 %v3776, %v3821
        %v3827 = vadd.f32 %v3812, %v3822
        %v3828 = vadd.f32 %v3813, %v3823
        %v3829 = vadd.f32 %v3814, %v3824
        %v3830 = vadd.f32 %v3815, %v3825
        %v3831 = vadd.f32 %v3816, %v3826
        %3832 = vrot.lane.b32.xlu0 %v3772, 112
        %v3833 = vpop.permute.xlu0 %3832
        %3834 = vrot.lane.b32.xlu0 %v3773, 112
        %v3835 = vpop.permute.xlu0 %3834
        %3836 = vrot.lane.b32.xlu0 %v3774, 112
        %v3837 = vpop.permute.xlu0 %3836
        %3838 = vrot.lane.b32.xlu0 %v3775, 112
        %v3839 = vpop.permute.xlu0 %3838
        %3840 = vrot.lane.b32.xlu0 %v3776, 112
        %v3841 = vpop.permute.xlu0 %3840
        %v3847 = vsel %vm1042, %v3833, 0.0
        %v3848 = vsel %vm1042, %v3835, 0.0
        %v3849 = vsel %vm1042, %v3837, 0.0
        %v3850 = vsel %vm1042, %v3839, 0.0
        %v3851 = vsel %vm1042, %v3841, 0.0
        %v3852 = vld [vmem:[%s3706 + $0x5] sm:$0x1]
        %v3853 = vlaneseq
        %v3854 = vshrl.u32 %v3853, 7
        %v3855 = vsub.s32 0, %v3854
        %v3856 = vrot.slane %v3852, %v3855
        %v3857 = vmul.f32 %v3847, %v3856
        %v3858 = vmul.f32 %v3848, %v3856
        %v3859 = vmul.f32 %v3849, %v3856
        %v3860 = vmul.f32 %v3850, %v3856
        %v3861 = vmul.f32 %v3851, %v3856
        %v3862 = vadd.f32 %v3827, %v3857
        %v3863 = vadd.f32 %v3828, %v3858
        %v3864 = vadd.f32 %v3829, %v3859
        %v3865 = vadd.f32 %v3830, %v3860
        %v3866 = vadd.f32 %v3831, %v3861
        %v3867 = vld [vmem:[#allocation2 + $0x2] sm:$0xff]
        %v3868 = vld [vmem:[#allocation2 + $0xa] sm:$0xff]
        %v3869 = vld [vmem:[#allocation2 + $0x12] sm:$0xff]
        %v3870 = vld [vmem:[#allocation2 + $0x1a] sm:$0xff]
        %v3871 = vld [vmem:[#allocation2 + $0x22] sm:$0x3f]
        %3877 = vrot.lane.b32.xlu0 %v3867, 16
        %v3878 = vpop.permute.xlu0 %3877
        %3879 = vrot.lane.b32.xlu0 %v3868, 16
        %v3880 = vpop.permute.xlu0 %3879
        %3881 = vrot.lane.b32.xlu0 %v3869, 16
        %v3882 = vpop.permute.xlu0 %3881
        %3883 = vrot.lane.b32.xlu0 %v3870, 16
        %v3884 = vpop.permute.xlu0 %3883
        %3885 = vrot.lane.b32.xlu0 %v3871, 16
        %v3886 = vpop.permute.xlu0 %3885
        %v3892 = vsel %vm333, 0.0, %v3878
        %v3893 = vsel %vm333, 0.0, %v3880
        %v3894 = vsel %vm333, 0.0, %v3882
        %v3895 = vsel %vm333, 0.0, %v3884
        %v3896 = vsel %vm333, 0.0, %v3886
        %v3897 = vld [vmem:[%s3706 + $0x6] sm:$0x1]
        %v3898 = vlaneseq
        %v3899 = vshrl.u32 %v3898, 7
        %v3900 = vsub.s32 0, %v3899
        %v3901 = vrot.slane %v3897, %v3900
        %v3902 = vmul.f32 %v3892, %v3901
        %v3903 = vmul.f32 %v3893, %v3901
        %v3904 = vmul.f32 %v3894, %v3901
        %v3905 = vmul.f32 %v3895, %v3901
        %v3906 = vmul.f32 %v3896, %v3901
        %v3907 = vadd.f32 %v3862, %v3902
        %v3908 = vadd.f32 %v3863, %v3903
        %v3909 = vadd.f32 %v3864, %v3904
        %v3910 = vadd.f32 %v3865, %v3905
        %v3911 = vadd.f32 %v3866, %v3906
        %v3912 = vld [vmem:[%s3706 + $0x7] sm:$0x1]
        %v3913 = vlaneseq
        %v3914 = vshrl.u32 %v3913, 7
        %v3915 = vsub.s32 0, %v3914
        %v3916 = vrot.slane %v3912, %v3915
        %v3917 = vmul.f32 %v3867, %v3916
        %v3918 = vmul.f32 %v3868, %v3916
        %v3919 = vmul.f32 %v3869, %v3916
        %v3920 = vmul.f32 %v3870, %v3916
        %v3921 = vmul.f32 %v3871, %v3916
        %v3922 = vadd.f32 %v3907, %v3917
        %v3923 = vadd.f32 %v3908, %v3918
        %v3924 = vadd.f32 %v3909, %v3919
        %v3925 = vadd.f32 %v3910, %v3920
        %v3926 = vadd.f32 %v3911, %v3921
        %3927 = vrot.lane.b32.xlu0 %v3867, 112
        %v3928 = vpop.permute.xlu0 %3927
        %3929 = vrot.lane.b32.xlu0 %v3868, 112
        %v3930 = vpop.permute.xlu0 %3929
        %3931 = vrot.lane.b32.xlu0 %v3869, 112
        %v3932 = vpop.permute.xlu0 %3931
        %3933 = vrot.lane.b32.xlu0 %v3870, 112
        %v3934 = vpop.permute.xlu0 %3933
        %3935 = vrot.lane.b32.xlu0 %v3871, 112
        %v3936 = vpop.permute.xlu0 %3935
        %v3942 = vsel %vm1042, %v3928, 0.0
        %v3943 = vsel %vm1042, %v3930, 0.0
        %v3944 = vsel %vm1042, %v3932, 0.0
        %v3945 = vsel %vm1042, %v3934, 0.0
        %v3946 = vsel %vm1042, %v3936, 0.0
        %v3947 = vld [vmem:[%s3706 + $0x8] sm:$0x1]
        %v3948 = vlaneseq
        %v3949 = vshrl.u32 %v3948, 7
        %v3950 = vsub.s32 0, %v3949
        %v3951 = vrot.slane %v3947, %v3950
        %v3952 = vmul.f32 %v3942, %v3951
        %v3953 = vmul.f32 %v3943, %v3951
        %v3954 = vmul.f32 %v3944, %v3951
        %v3955 = vmul.f32 %v3945, %v3951
        %v3956 = vmul.f32 %v3946, %v3951
        %v3957 = vadd.f32 %v3922, %v3952
        %v3958 = vadd.f32 %v3923, %v3953
        %v3959 = vadd.f32 %v3924, %v3954
        %v3960 = vadd.f32 %v3925, %v3955
        %v3961 = vadd.f32 %v3926, %v3956
        %s3962 = scalar_lea.vmem %s2, 24
        %v3963 = vld [vmem:[%s3962] sm:$0x1]
        %v3964 = vlaneseq
        %v3965 = vshrl.u32 %v3964, 7
        %v3966 = vsub.s32 0, %v3965
        %v3967 = vrot.slane %v3963, %v3966
        %v3968 = vmul.f32 %v3957, %v3967
        %v3969 = vmul.f32 %v3958, %v3967
        %v3970 = vmul.f32 %v3959, %v3967
        %v3971 = vmul.f32 %v3960, %v3967
        %v3972 = vmul.f32 %v3961, %v3967
        %v3973 = vld [vmem:[%s3962 + $0x1] sm:$0x1]
        %v3974 = vlaneseq
        %v3975 = vshrl.u32 %v3974, 7
        %v3976 = vsub.s32 0, %v3975
        %v3977 = vrot.slane %v3973, %v3976
        %v3978 = vadd.f32 %v3968, %v3977
        %v3979 = vadd.f32 %v3969, %v3977
        %v3980 = vadd.f32 %v3970, %v3977
        %v3981 = vadd.f32 %v3971, %v3977
        %v3982 = vadd.f32 %v3972, %v3977
        %vm3983 = vcmp.gt.f32.partialorder %v3978, 0.0
        %vm3984 = vcmp.gt.f32.partialorder %v3979, 0.0
        %vm3985 = vcmp.gt.f32.partialorder %v3980, 0.0
        %vm3986 = vcmp.gt.f32.partialorder %v3981, 0.0
        %vm3987 = vcmp.gt.f32.partialorder %v3982, 0.0
        %v3988 = vld [vmem:[%s3962 + $0x2] sm:$0x1]
        %v3989 = vlaneseq
        %v3990 = vshrl.u32 %v3989, 7
        %v3991 = vsub.s32 0, %v3990
        %v3992 = vrot.slane %v3988, %v3991
        %v3993 = vmul.f32 %v3978, %v3992
        %v3994 = vmul.f32 %v3979, %v3992
        %v3995 = vmul.f32 %v3980, %v3992
        %v3996 = vmul.f32 %v3981, %v3992
        %v3997 = vmul.f32 %v3982, %v3992
        %v3998 = vsel %vm3983, %v3978, %v3993
        %v3999 = vsel %vm3984, %v3979, %v3994
        %v4000 = vsel %vm3985, %v3980, %v3995
        %v4001 = vsel %vm3986, %v3981, %v3996
        %v4002 = vsel %vm3987, %v3982, %v3997
        %s4003 = scalar_lea.vmem [#allocation7], 384
        %v4004 = vld [vmem:[%s4003] sm:$0xff]
        %v4005 = vld [vmem:[%s4003 + $0x8] sm:$0xff]
        %v4006 = vld [vmem:[%s4003 + $0x10] sm:$0xff]
        %v4007 = vld [vmem:[%s4003 + $0x18] sm:$0xff]
        %v4008 = vld [vmem:[%s4003 + $0x20] sm:$0xff]
        %v4009 = vld [vmem:[%s4003 + $0x28] sm:$0xff]
        %v4010 = vld [vmem:[%s4003 + $0x30] sm:$0xff]
        %v4011 = vld [vmem:[%s4003 + $0x38] sm:$0xff]
        %v4012 = vld [vmem:[%s4003 + $0x40] sm:$0xff]
        %v4013 = vld [vmem:[%s4003 + $0x48] sm:$0xff]
        %v4014 = vld [vmem:[%s4003 + $0x50] sm:$0xff]
        %v4015 = vld [vmem:[%s4003 + $0x58] sm:$0xff]
        %v4016 = vld [vmem:[%s4003 + $0x60] sm:$0xff]
        %v4017 = vld [vmem:[%s4003 + $0x68] sm:$0xff]
        %v4018 = vld [vmem:[%s4003 + $0x70] sm:$0xff]
        %v4019 = vld [vmem:[%s4003 + $0x78] sm:$0xff]
        %v4020 = vld [vmem:[%s3962 + $0x3] sm:$0x1]
        %v4021 = vlaneseq
        %v4022 = vshrl.u32 %v4021, 7
        %v4023 = vsub.s32 0, %v4022
        %v4024 = vrot.slane %v4020, %v4023
        %4025 = vmatprep.subr.mxu0 0.0
        %4026 = vmatpush1.msra.mxu0 %v4004
        %4027 = vmatprep.subr.mxu0 0.0
        %4028 = vmatpush1.msra.mxu0 %v4005
        %4029 = vmatprep.subr.mxu0 0.0
        %4030 = vmatpush1.msra.mxu0 %v4006
        %4031 = vmatprep.subr.mxu0 0.0
        %4032 = vmatpush1.msra.mxu0 %v4007
        %4033 = vmatprep.subr.mxu0 0.0
        %4034 = vmatpush1.msra.mxu0 %v4008
        %4035 = vmatprep.subr.mxu0 0.0
        %4036 = vmatpush1.msra.mxu0 %v4009
        %4037 = vmatprep.subr.mxu0 0.0
        %4038 = vmatpush1.msra.mxu0 %v4010
        %4039 = vmatprep.subr.mxu0 0.0
        %4040 = vmatpush1.msra.mxu0 %v4011
        %4041 = vmatprep.subr.mxu0 0.0
        %4042 = vmatpush1.msra.mxu0 %v4012
        %4043 = vmatprep.subr.mxu0 0.0
        %4044 = vmatpush1.msra.mxu0 %v4013
        %4045 = vmatprep.subr.mxu0 0.0
        %4046 = vmatpush1.msra.mxu0 %v4014
        %4047 = vmatprep.subr.mxu0 0.0
        %4048 = vmatpush1.msra.mxu0 %v4015
        %4049 = vmatprep.subr.mxu0 0.0
        %4050 = vmatpush1.msra.mxu0 %v4016
        %4051 = vmatprep.subr.mxu0 0.0
        %4052 = vmatpush1.msra.mxu0 %v4017
        %4053 = vmatprep.subr.mxu0 0.0
        %4054 = vmatpush1.msra.mxu0 %v4018
        %4055 = vmatprep.subr.mxu0 0.0
        %4056 = vmatpush1.msra.mxu0 %v4019
        %4057 = vmatprep.subr.mxu0 0.0
        %4058 = vmatpush1.msra.mxu0 0.0
        %4059 = vmatprep.subr.mxu0 0.0
        %4060 = vmatpush1.msra.mxu0 0.0
        %4061 = vmatprep.subr.mxu0 0.0
        %4062 = vmatpush1.msra.mxu0 0.0
        %4063 = vmatprep.subr.mxu0 0.0
        %4064 = vmatpush1.msra.mxu0 0.0
        %4065 = vmatprep.subr.mxu0 0.0
        %4066 = vmatpush1.msra.mxu0 0.0
        %4067 = vmatprep.subr.mxu0 0.0
        %4068 = vmatpush1.msra.mxu0 0.0
        %4069 = vmatprep.subr.mxu0 0.0
        %4070 = vmatpush1.msra.mxu0 0.0
        %4071 = vmatprep.subr.mxu0 0.0
        %4072 = vmatpush1.msra.mxu0 0.0
        %4073 = vmatprep.subr.mxu0 0.0
        %4074 = vmatpush1.msra.mxu0 0.0
        %4075 = vmatprep.subr.mxu0 0.0
        %4076 = vmatpush1.msra.mxu0 0.0
        %4077 = vmatprep.subr.mxu0 0.0
        %4078 = vmatpush1.msra.mxu0 0.0
        %4079 = vmatprep.subr.mxu0 0.0
        %4080 = vmatpush1.msra.mxu0 0.0
        %4081 = vmatprep.subr.mxu0 0.0
        %4082 = vmatpush1.msra.mxu0 0.0
        %4083 = vmatprep.subr.mxu0 0.0
        %4084 = vmatpush1.msra.mxu0 0.0
        %4085 = vmatprep.subr.mxu0 0.0
        %4086 = vmatpush1.msra.mxu0 0.0
        %4087 = vmatprep.subr.mxu0 0.0
        %4088 = vmatpush1.msra.mxu0 0.0
        %4089 = vmatprep.mubr.f32.mxu0 0.0
        %4090 = vmatmul.mubr.f32.gmra.mrb[0].mxu0 %v3998
        %v4091 = vpop.f32.mrb[0].mxu0
        %v4092 = vadd.f32 %v4024, %v4091
        %v4093 = vpop.f32.mrb[0].mxu0
        %4094 = vmatprep.mubr.f32.mxu0 0.0
        %4095 = vmatmul.mubr.f32.gmra.mrb[0].mxu0 %v3999
        %v4096 = vpop.f32.mrb[0].mxu0
        %v4097 = vadd.f32 %v4024, %v4096
        %v4098 = vpop.f32.mrb[0].mxu0
        %4099 = vmatprep.mubr.f32.mxu0 0.0
        %4100 = vmatmul.mubr.f32.gmra.mrb[0].mxu0 %v4000
        %v4101 = vpop.f32.mrb[0].mxu0
        %v4102 = vadd.f32 %v4024, %v4101
        %v4103 = vpop.f32.mrb[0].mxu0
        %4104 = vmatprep.mubr.f32.mxu0 0.0
        %4105 = vmatmul.mubr.f32.gmra.mrb[0].mxu0 %v4001
        %v4106 = vpop.f32.mrb[0].mxu0
        %v4107 = vadd.f32 %v4024, %v4106
        %v4108 = vpop.f32.mrb[0].mxu0
        %4109 = vmatprep.mubr.f32.mxu0 0.0
        %4110 = vmatmul.mubr.f32.gmra.mrb[0].mxu0 %v4002
        %v4111 = vpop.f32.mrb[0].mxu0
        %v4112 = vadd.f32 %v4024, %v4111
        %v4113 = vpop.f32.mrb[0].mxu0
        %4114 = vdwg.mxu0
        %vm4115 = vcmp.gt.f32.partialorder %v4092, 0.0
        %vm4116 = vcmp.gt.f32.partialorder %v4097, 0.0
        %vm4117 = vcmp.gt.f32.partialorder %v4102, 0.0
        %vm4118 = vcmp.gt.f32.partialorder %v4107, 0.0
        %vm4119 = vcmp.gt.f32.partialorder %v4112, 0.0
        %v4120 = vld [vmem:[%s3962 + $0x4] sm:$0x1]
        %v4121 = vlaneseq
        %v4122 = vshrl.u32 %v4121, 7
        %v4123 = vsub.s32 0, %v4122
        %v4124 = vrot.slane %v4120, %v4123
        %v4125 = vmul.f32 %v4092, %v4124
        %v4126 = vmul.f32 %v4097, %v4124
        %v4127 = vmul.f32 %v4102, %v4124
        %v4128 = vmul.f32 %v4107, %v4124
        %v4129 = vmul.f32 %v4112, %v4124
        %v4130 = vsel %vm4115, %v4092, %v4125
        %v4131 = vsel %vm4116, %v4097, %v4126
        %v4132 = vsel %vm4117, %v4102, %v4127
        %v4133 = vsel %vm4118, %v4107, %v4128
        %v4134 = vsel %vm4119, %v4112, %v4129
        %s4135 = scalar_lea.vmem [#allocation9], 1024
        %v4136 = vld [vmem:[%s4135] sm:$0xff]
        %v4137 = vld [vmem:[%s4135 + $0x8] sm:$0xff]
        %v4138 = vld [vmem:[%s4135 + $0x10] sm:$0xff]
        %v4139 = vld [vmem:[%s4135 + $0x18] sm:$0xff]
        %v4140 = vld [vmem:[%s4135 + $0x20] sm:$0xff]
        %v4141 = vld [vmem:[%s4135 + $0x28] sm:$0xff]
        %v4142 = vld [vmem:[%s4135 + $0x30] sm:$0xff]
        %v4143 = vld [vmem:[%s4135 + $0x38] sm:$0xff]
        %v4144 = vld [vmem:[%s4135 + $0x40] sm:$0xff]
        %v4145 = vld [vmem:[%s4135 + $0x48] sm:$0xff]
        %v4146 = vld [vmem:[%s4135 + $0x50] sm:$0xff]
        %v4147 = vld [vmem:[%s4135 + $0x58] sm:$0xff]
        %v4148 = vld [vmem:[%s4135 + $0x60] sm:$0xff]
        %v4149 = vld [vmem:[%s4135 + $0x68] sm:$0xff]
        %v4150 = vld [vmem:[%s4135 + $0x70] sm:$0xff]
        %v4151 = vld [vmem:[%s4135 + $0x78] sm:$0xff]
        %v4152 = vld [vmem:[%s1811] sm:$0xff]
        %v4153 = vld [vmem:[%s1811 + $0x8] sm:$0xff]
        %v4154 = vld [vmem:[%s1811 + $0x10] sm:$0xff]
        %v4155 = vld [vmem:[%s1811 + $0x18] sm:$0xff]
        %v4156 = vld [vmem:[%s1811 + $0x20] sm:$0x3f]
        %s4157 = scalar_lea.vmem [#allocation9], 1152
        %v4158 = vld [vmem:[%s4157] sm:$0xff]
        %v4159 = vld [vmem:[%s4157 + $0x8] sm:$0xff]
        %v4160 = vld [vmem:[%s4157 + $0x10] sm:$0xff]
        %v4161 = vld [vmem:[%s4157 + $0x18] sm:$0xff]
        %v4162 = vld [vmem:[%s4157 + $0x20] sm:$0xff]
        %v4163 = vld [vmem:[%s4157 + $0x28] sm:$0xff]
        %v4164 = vld [vmem:[%s4157 + $0x30] sm:$0xff]
        %v4165 = vld [vmem:[%s4157 + $0x38] sm:$0xff]
        %v4166 = vld [vmem:[%s4157 + $0x40] sm:$0xff]
        %v4167 = vld [vmem:[%s4157 + $0x48] sm:$0xff]
        %v4168 = vld [vmem:[%s4157 + $0x50] sm:$0xff]
        %v4169 = vld [vmem:[%s4157 + $0x58] sm:$0xff]
        %v4170 = vld [vmem:[%s4157 + $0x60] sm:$0xff]
        %v4171 = vld [vmem:[%s4157 + $0x68] sm:$0xff]
        %v4172 = vld [vmem:[%s4157 + $0x70] sm:$0xff]
        %v4173 = vld [vmem:[%s4157 + $0x78] sm:$0xff]
        %4174 = vmatprep.subr.mxu0 0.0
        %4175 = vmatpush1.msra.mxu0 %v4158
        %4176 = vmatprep.subr.mxu0 0.0
        %4177 = vmatpush1.msra.mxu0 %v4159
        %4178 = vmatprep.subr.mxu0 0.0
        %4179 = vmatpush1.msra.mxu0 %v4160
        %4180 = vmatprep.subr.mxu0 0.0
        %4181 = vmatpush1.msra.mxu0 %v4161
        %4182 = vmatprep.subr.mxu0 0.0
        %4183 = vmatpush1.msra.mxu0 %v4162
        %4184 = vmatprep.subr.mxu0 0.0
        %4185 = vmatpush1.msra.mxu0 %v4163
        %4186 = vmatprep.subr.mxu0 0.0
        %4187 = vmatpush1.msra.mxu0 %v4164
        %4188 = vmatprep.subr.mxu0 0.0
        %4189 = vmatpush1.msra.mxu0 %v4165
        %4190 = vmatprep.subr.mxu0 0.0
        %4191 = vmatpush1.msra.mxu0 %v4166
        %4192 = vmatprep.subr.mxu0 0.0
        %4193 = vmatpush1.msra.mxu0 %v4167
        %4194 = vmatprep.subr.mxu0 0.0
        %4195 = vmatpush1.msra.mxu0 %v4168
        %4196 = vmatprep.subr.mxu0 0.0
        %4197 = vmatpush1.msra.mxu0 %v4169
        %4198 = vmatprep.subr.mxu0 0.0
        %4199 = vmatpush1.msra.mxu0 %v4170
        %4200 = vmatprep.subr.mxu0 0.0
        %4201 = vmatpush1.msra.mxu0 %v4171
        %4202 = vmatprep.subr.mxu0 0.0
        %4203 = vmatpush1.msra.mxu0 %v4172
        %4204 = vmatprep.subr.mxu0 0.0
        %4205 = vmatpush1.msra.mxu0 %v4173
        %4206 = vmatprep.subr.mxu0 0.0
        %4207 = vmatpush1.msra.mxu0 0.0
        %4208 = vmatprep.subr.mxu0 0.0
        %4209 = vmatpush1.msra.mxu0 0.0
        %4210 = vmatprep.subr.mxu0 0.0
        %4211 = vmatpush1.msra.mxu0 0.0
        %4212 = vmatprep.subr.mxu0 0.0
        %4213 = vmatpush1.msra.mxu0 0.0
        %4214 = vmatprep.subr.mxu0 0.0
        %4215 = vmatpush1.msra.mxu0 0.0
        %4216 = vmatprep.subr.mxu0 0.0
        %4217 = vmatpush1.msra.mxu0 0.0
        %4218 = vmatprep.subr.mxu0 0.0
        %4219 = vmatpush1.msra.mxu0 0.0
        %4220 = vmatprep.subr.mxu0 0.0
        %4221 = vmatpush1.msra.mxu0 0.0
        %4222 = vmatprep.subr.mxu0 0.0
        %4223 = vmatpush1.msra.mxu0 0.0
        %4224 = vmatprep.subr.mxu0 0.0
        %4225 = vmatpush1.msra.mxu0 0.0
        %4226 = vmatprep.subr.mxu0 0.0
        %4227 = vmatpush1.msra.mxu0 0.0
        %4228 = vmatprep.subr.mxu0 0.0
        %4229 = vmatpush1.msra.mxu0 0.0
        %4230 = vmatprep.subr.mxu0 0.0
        %4231 = vmatpush1.msra.mxu0 0.0
        %4232 = vmatprep.subr.mxu0 0.0
        %4233 = vmatpush1.msra.mxu0 0.0
        %4234 = vmatprep.subr.mxu0 0.0
        %4235 = vmatpush1.msra.mxu0 0.0
        %4236 = vmatprep.subr.mxu0 0.0
        %4237 = vmatpush1.msra.mxu0 0.0
        %4238 = vmatprep.mubr.f32.mxu0 0.0
        %4239 = vmatmul.mubr.f32.gmra.mrb[0].mxu0 %v4152
        %v4240 = vpop.f32.mrb[0].mxu0
        %v4241 = vadd.f32 0.0, %v4240
        %v4242 = vpop.f32.mrb[0].mxu0
        %4243 = vmatprep.mubr.f32.mxu0 0.0
        %4244 = vmatmul.mubr.f32.gmra.mrb[0].mxu0 %v4153
        %v4245 = vpop.f32.mrb[0].mxu0
        %v4246 = vadd.f32 0.0, %v4245
        %v4247 = vpop.f32.mrb[0].mxu0
        %4248 = vmatprep.mubr.f32.mxu0 0.0
        %4249 = vmatmul.mubr.f32.gmra.mrb[0].mxu0 %v4154
        %v4250 = vpop.f32.mrb[0].mxu0
        %v4251 = vadd.f32 0.0, %v4250
        %v4252 = vpop.f32.mrb[0].mxu0
        %4253 = vmatprep.mubr.f32.mxu0 0.0
        %4254 = vmatmul.mubr.f32.gmra.mrb[0].mxu0 %v4155
        %v4255 = vpop.f32.mrb[0].mxu0
        %v4256 = vadd.f32 0.0, %v4255
        %v4257 = vpop.f32.mrb[0].mxu0
        %4258 = vmatprep.mubr.f32.mxu0 0.0
        %4259 = vmatmul.mubr.f32.gmra.mrb[0].mxu0 %v4156
        %v4260 = vpop.f32.mrb[0].mxu0
        %v4261 = vadd.f32 0.0, %v4260
        %v4262 = vpop.f32.mrb[0].mxu0
        %4263 = vdwg.mxu0
        %4264 = vmatprep.subr.mxu0 0.0
        %4265 = vmatpush1.msra.mxu0 %v4136
        %4266 = vmatprep.subr.mxu0 0.0
        %4267 = vmatpush1.msra.mxu0 %v4137
        %4268 = vmatprep.subr.mxu0 0.0
        %4269 = vmatpush1.msra.mxu0 %v4138
        %4270 = vmatprep.subr.mxu0 0.0
        %4271 = vmatpush1.msra.mxu0 %v4139
        %4272 = vmatprep.subr.mxu0 0.0
        %4273 = vmatpush1.msra.mxu0 %v4140
        %4274 = vmatprep.subr.mxu0 0.0
        %4275 = vmatpush1.msra.mxu0 %v4141
        %4276 = vmatprep.subr.mxu0 0.0
        %4277 = vmatpush1.msra.mxu0 %v4142
        %4278 = vmatprep.subr.mxu0 0.0
        %4279 = vmatpush1.msra.mxu0 %v4143
        %4280 = vmatprep.subr.mxu0 0.0
        %4281 = vmatpush1.msra.mxu0 %v4144
        %4282 = vmatprep.subr.mxu0 0.0
        %4283 = vmatpush1.msra.mxu0 %v4145
        %4284 = vmatprep.subr.mxu0 0.0
        %4285 = vmatpush1.msra.mxu0 %v4146
        %4286 = vmatprep.subr.mxu0 0.0
        %4287 = vmatpush1.msra.mxu0 %v4147
        %4288 = vmatprep.subr.mxu0 0.0
        %4289 = vmatpush1.msra.mxu0 %v4148
        %4290 = vmatprep.subr.mxu0 0.0
        %4291 = vmatpush1.msra.mxu0 %v4149
        %4292 = vmatprep.subr.mxu0 0.0
        %4293 = vmatpush1.msra.mxu0 %v4150
        %4294 = vmatprep.subr.mxu0 0.0
        %4295 = vmatpush1.msra.mxu0 %v4151
        %4296 = vmatprep.subr.mxu0 0.0
        %4297 = vmatpush1.msra.mxu0 0.0
        %4298 = vmatprep.subr.mxu0 0.0
        %4299 = vmatpush1.msra.mxu0 0.0
        %4300 = vmatprep.subr.mxu0 0.0
        %4301 = vmatpush1.msra.mxu0 0.0
        %4302 = vmatprep.subr.mxu0 0.0
        %4303 = vmatpush1.msra.mxu0 0.0
        %4304 = vmatprep.subr.mxu0 0.0
        %4305 = vmatpush1.msra.mxu0 0.0
        %4306 = vmatprep.subr.mxu0 0.0
        %4307 = vmatpush1.msra.mxu0 0.0
        %4308 = vmatprep.subr.mxu0 0.0
        %4309 = vmatpush1.msra.mxu0 0.0
        %4310 = vmatprep.subr.mxu0 0.0
        %4311 = vmatpush1.msra.mxu0 0.0
        %4312 = vmatprep.subr.mxu0 0.0
        %4313 = vmatpush1.msra.mxu0 0.0
        %4314 = vmatprep.subr.mxu0 0.0
        %4315 = vmatpush1.msra.mxu0 0.0
        %4316 = vmatprep.subr.mxu0 0.0
        %4317 = vmatpush1.msra.mxu0 0.0
        %4318 = vmatprep.subr.mxu0 0.0
        %4319 = vmatpush1.msra.mxu0 0.0
        %4320 = vmatprep.subr.mxu0 0.0
        %4321 = vmatpush1.msra.mxu0 0.0
        %4322 = vmatprep.subr.mxu0 0.0
        %4323 = vmatpush1.msra.mxu0 0.0
        %4324 = vmatprep.subr.mxu0 0.0
        %4325 = vmatpush1.msra.mxu0 0.0
        %4326 = vmatprep.subr.mxu0 0.0
        %4327 = vmatpush1.msra.mxu0 0.0
        %4328 = vmatprep.mubr.f32.mxu0 0.0
        %4329 = vmatmul.mubr.f32.gmra.mrb[0].mxu0 %v4130
        %v4330 = vpop.f32.mrb[0].mxu0
        %v4331 = vadd.f32 %v4241, %v4330
        %v4332 = vpop.f32.mrb[0].mxu0
        %4333 = vmatprep.mubr.f32.mxu0 0.0
        %4334 = vmatmul.mubr.f32.gmra.mrb[0].mxu0 %v4131
        %v4335 = vpop.f32.mrb[0].mxu0
        %v4336 = vadd.f32 %v4246, %v4335
        %v4337 = vpop.f32.mrb[0].mxu0
        %4338 = vmatprep.mubr.f32.mxu0 0.0
        %4339 = vmatmul.mubr.f32.gmra.mrb[0].mxu0 %v4132
        %v4340 = vpop.f32.mrb[0].mxu0
        %v4341 = vadd.f32 %v4251, %v4340
        %v4342 = vpop.f32.mrb[0].mxu0
        %4343 = vmatprep.mubr.f32.mxu0 0.0
        %4344 = vmatmul.mubr.f32.gmra.mrb[0].mxu0 %v4133
        %v4345 = vpop.f32.mrb[0].mxu0
        %v4346 = vadd.f32 %v4256, %v4345
        %v4347 = vpop.f32.mrb[0].mxu0
        %4348 = vmatprep.mubr.f32.mxu0 0.0
        %4349 = vmatmul.mubr.f32.gmra.mrb[0].mxu0 %v4134
        %v4350 = vpop.f32.mrb[0].mxu0
        %v4351 = vadd.f32 %v4261, %v4350
        %v4352 = vpop.f32.mrb[0].mxu0
        %4353 = vdwg.mxu0
        %v4354 = vld [vmem:[%s5 + $0x3] sm:$0x1]
        %v4355 = vlaneseq
        %v4356 = vshrl.u32 %v4355, 7
        %v4357 = vsub.s32 0, %v4356
        %v4358 = vrot.slane %v4354, %v4357
        %v4359 = vadd.f32 %v4331, %v4358
        %v4360 = vadd.f32 %v4336, %v4358
        %v4361 = vadd.f32 %v4341, %v4358
        %v4362 = vadd.f32 %v4346, %v4358
        %v4363 = vadd.f32 %v4351, %v4358
        %4364 = vst [vmem:[#allocation2 + $0x1] sm:$0xff] %v4359
        %4365 = vst [vmem:[#allocation2 + $0x9] sm:$0xfc] %v4360
        %4366 = vst [vmem:[#allocation2 + $0x11] sm:$0x3] %v4361
        %4367 = vst [vmem:[#allocation2 + $0x11] sm:$0xf0] %v4361
        %4368 = vst [vmem:[#allocation2 + $0x19] sm:$0xf] %v4362
        %4369 = vst [vmem:[#allocation2 + $0x19] sm:$0xc0] %v4362
        %4370 = vst [vmem:[#allocation2 + $0x21] sm:$0x3f] %v4363
        %v4371 = vld [vmem:[#allocation2] sm:$0xff]
        %v4372 = vld [vmem:[#allocation2 + $0x8] sm:$0xff]
        %v4373 = vld [vmem:[#allocation2 + $0x10] sm:$0xff]
        %v4374 = vld [vmem:[#allocation2 + $0x18] sm:$0xff]
        %v4375 = vld [vmem:[#allocation2 + $0x20] sm:$0x3f]
        %4381 = vrot.lane.b32.xlu0 %v4371, 16
        %v4382 = vpop.permute.xlu0 %4381
        %4383 = vrot.lane.b32.xlu0 %v4372, 16
        %v4384 = vpop.permute.xlu0 %4383
        %4385 = vrot.lane.b32.xlu0 %v4373, 16
        %v4386 = vpop.permute.xlu0 %4385
        %4387 = vrot.lane.b32.xlu0 %v4374, 16
        %v4388 = vpop.permute.xlu0 %4387
        %4389 = vrot.lane.b32.xlu0 %v4375, 16
        %v4390 = vpop.permute.xlu0 %4389
        %v4396 = vsel %vm333, 0.0, %v4382
        %v4397 = vsel %vm333, 0.0, %v4384
        %v4398 = vsel %vm333, 0.0, %v4386
        %v4399 = vsel %vm333, 0.0, %v4388
        %v4400 = vsel %vm333, 0.0, %v4390
        %s4401 = scalar_lea.vmem %s1, 64
        %v4402 = vld [vmem:[%s4401] sm:$0x1]
        %v4403 = vlaneseq
        %v4404 = vshrl.u32 %v4403, 7
        %v4405 = vsub.s32 0, %v4404
        %v4406 = vrot.slane %v4402, %v4405
        %v4407 = vmul.f32 %v4396, %v4406
        %v4408 = vmul.f32 %v4397, %v4406
        %v4409 = vmul.f32 %v4398, %v4406
        %v4410 = vmul.f32 %v4399, %v4406
        %v4411 = vmul.f32 %v4400, %v4406
        %v4412 = vadd.f32 %v4407, 0.0
        %v4413 = vadd.f32 %v4408, 0.0
        %v4414 = vadd.f32 %v4409, 0.0
        %v4415 = vadd.f32 %v4410, 0.0
        %v4416 = vadd.f32 %v4411, 0.0
        %v4417 = vld [vmem:[%s4401 + $0x1] sm:$0x1]
        %v4418 = vlaneseq
        %v4419 = vshrl.u32 %v4418, 7
        %v4420 = vsub.s32 0, %v4419
        %v4421 = vrot.slane %v4417, %v4420
        %v4422 = vmul.f32 %v4371, %v4421
        %v4423 = vmul.f32 %v4372, %v4421
        %v4424 = vmul.f32 %v4373, %v4421
        %v4425 = vmul.f32 %v4374, %v4421
        %v4426 = vmul.f32 %v4375, %v4421
        %v4427 = vadd.f32 %v4412, %v4422
        %v4428 = vadd.f32 %v4413, %v4423
        %v4429 = vadd.f32 %v4414, %v4424
        %v4430 = vadd.f32 %v4415, %v4425
        %v4431 = vadd.f32 %v4416, %v4426
        %4432 = vrot.lane.b32.xlu0 %v4371, 112
        %v4433 = vpop.permute.xlu0 %4432
        %4434 = vrot.lane.b32.xlu0 %v4372, 112
        %v4435 = vpop.permute.xlu0 %4434
        %4436 = vrot.lane.b32.xlu0 %v4373, 112
        %v4437 = vpop.permute.xlu0 %4436
        %4438 = vrot.lane.b32.xlu0 %v4374, 112
        %v4439 = vpop.permute.xlu0 %4438
        %4440 = vrot.lane.b32.xlu0 %v4375, 112
        %v4441 = vpop.permute.xlu0 %4440
        %v4447 = vsel %vm1042, %v4433, 0.0
        %v4448 = vsel %vm1042, %v4435, 0.0
        %v4449 = vsel %vm1042, %v4437, 0.0
        %v4450 = vsel %vm1042, %v4439, 0.0
        %v4451 = vsel %vm1042, %v4441, 0.0
        %v4452 = vld [vmem:[%s4401 + $0x2] sm:$0x1]
        %v4453 = vlaneseq
        %v4454 = vshrl.u32 %v4453, 7
        %v4455 = vsub.s32 0, %v4454
        %v4456 = vrot.slane %v4452, %v4455
        %v4457 = vmul.f32 %v4447, %v4456
        %v4458 = vmul.f32 %v4448, %v4456
        %v4459 = vmul.f32 %v4449, %v4456
        %v4460 = vmul.f32 %v4450, %v4456
        %v4461 = vmul.f32 %v4451, %v4456
        %v4462 = vadd.f32 %v4427, %v4457
        %v4463 = vadd.f32 %v4428, %v4458
        %v4464 = vadd.f32 %v4429, %v4459
        %v4465 = vadd.f32 %v4430, %v4460
        %v4466 = vadd.f32 %v4431, %v4461
        %v4467 = vld [vmem:[#allocation2 + $0x1] sm:$0xff]
        %v4468 = vld [vmem:[#allocation2 + $0x9] sm:$0xff]
        %v4469 = vld [vmem:[#allocation2 + $0x11] sm:$0xff]
        %v4470 = vld [vmem:[#allocation2 + $0x19] sm:$0xff]
        %v4471 = vld [vmem:[#allocation2 + $0x21] sm:$0x3f]
        %4477 = vrot.lane.b32.xlu0 %v4467, 16
        %v4478 = vpop.permute.xlu0 %4477
        %4479 = vrot.lane.b32.xlu0 %v4468, 16
        %v4480 = vpop.permute.xlu0 %4479
        %4481 = vrot.lane.b32.xlu0 %v4469, 16
        %v4482 = vpop.permute.xlu0 %4481
        %4483 = vrot.lane.b32.xlu0 %v4470, 16
        %v4484 = vpop.permute.xlu0 %4483
        %4485 = vrot.lane.b32.xlu0 %v4471, 16
        %v4486 = vpop.permute.xlu0 %4485
        %v4492 = vsel %vm333, 0.0, %v4478
        %v4493 = vsel %vm333, 0.0, %v4480
        %v4494 = vsel %vm333, 0.0, %v4482
        %v4495 = vsel %vm333, 0.0, %v4484
        %v4496 = vsel %vm333, 0.0, %v4486
        %v4497 = vld [vmem:[%s4401 + $0x3] sm:$0x1]
        %v4498 = vlaneseq
        %v4499 = vshrl.u32 %v4498, 7
        %v4500 = vsub.s32 0, %v4499
        %v4501 = vrot.slane %v4497, %v4500
        %v4502 = vmul.f32 %v4492, %v4501
        %v4503 = vmul.f32 %v4493, %v4501
        %v4504 = vmul.f32 %v4494, %v4501
        %v4505 = vmul.f32 %v4495, %v4501
        %v4506 = vmul.f32 %v4496, %v4501
        %v4507 = vadd.f32 %v4462, %v4502
        %v4508 = vadd.f32 %v4463, %v4503
        %v4509 = vadd.f32 %v4464, %v4504
        %v4510 = vadd.f32 %v4465, %v4505
        %v4511 = vadd.f32 %v4466, %v4506
        %v4512 = vld [vmem:[%s4401 + $0x4] sm:$0x1]
        %v4513 = vlaneseq
        %v4514 = vshrl.u32 %v4513, 7
        %v4515 = vsub.s32 0, %v4514
        %v4516 = vrot.slane %v4512, %v4515
        %v4517 = vmul.f32 %v4467, %v4516
        %v4518 = vmul.f32 %v4468, %v4516
        %v4519 = vmul.f32 %v4469, %v4516
        %v4520 = vmul.f32 %v4470, %v4516
        %v4521 = vmul.f32 %v4471, %v4516
        %v4522 = vadd.f32 %v4507, %v4517
        %v4523 = vadd.f32 %v4508, %v4518
        %v4524 = vadd.f32 %v4509, %v4519
        %v4525 = vadd.f32 %v4510, %v4520
        %v4526 = vadd.f32 %v4511, %v4521
        %4527 = vrot.lane.b32.xlu0 %v4467, 112
        %v4528 = vpop.permute.xlu0 %4527
        %4529 = vrot.lane.b32.xlu0 %v4468, 112
        %v4530 = vpop.permute.xlu0 %4529
        %4531 = vrot.lane.b32.xlu0 %v4469, 112
        %v4532 = vpop.permute.xlu0 %4531
        %4533 = vrot.lane.b32.xlu0 %v4470, 112
        %v4534 = vpop.permute.xlu0 %4533
        %4535 = vrot.lane.b32.xlu0 %v4471, 112
        %v4536 = vpop.permute.xlu0 %4535
        %v4542 = vsel %vm1042, %v4528, 0.0
        %v4543 = vsel %vm1042, %v4530, 0.0
        %v4544 = vsel %vm1042, %v4532, 0.0
        %v4545 = vsel %vm1042, %v4534, 0.0
        %v4546 = vsel %vm1042, %v4536, 0.0
        %v4547 = vld [vmem:[%s4401 + $0x5] sm:$0x1]
        %v4548 = vlaneseq
        %v4549 = vshrl.u32 %v4548, 7
        %v4550 = vsub.s32 0, %v4549
        %v4551 = vrot.slane %v4547, %v4550
        %v4552 = vmul.f32 %v4542, %v4551
        %v4553 = vmul.f32 %v4543, %v4551
        %v4554 = vmul.f32 %v4544, %v4551
        %v4555 = vmul.f32 %v4545, %v4551
        %v4556 = vmul.f32 %v4546, %v4551
        %v4557 = vadd.f32 %v4522, %v4552
        %v4558 = vadd.f32 %v4523, %v4553
        %v4559 = vadd.f32 %v4524, %v4554
        %v4560 = vadd.f32 %v4525, %v4555
        %v4561 = vadd.f32 %v4526, %v4556
        %v4562 = vld [vmem:[#allocation2 + $0x2] sm:$0xff]
        %v4563 = vld [vmem:[#allocation2 + $0xa] sm:$0xff]
        %v4564 = vld [vmem:[#allocation2 + $0x12] sm:$0xff]
        %v4565 = vld [vmem:[#allocation2 + $0x1a] sm:$0xff]
        %v4566 = vld [vmem:[#allocation2 + $0x22] sm:$0x3f]
        %4572 = vrot.lane.b32.xlu0 %v4562, 16
        %v4573 = vpop.permute.xlu0 %4572
        %4574 = vrot.lane.b32.xlu0 %v4563, 16
        %v4575 = vpop.permute.xlu0 %4574
        %4576 = vrot.lane.b32.xlu0 %v4564, 16
        %v4577 = vpop.permute.xlu0 %4576
        %4578 = vrot.lane.b32.xlu0 %v4565, 16
        %v4579 = vpop.permute.xlu0 %4578
        %4580 = vrot.lane.b32.xlu0 %v4566, 16
        %v4581 = vpop.permute.xlu0 %4580
        %v4587 = vsel %vm333, 0.0, %v4573
        %v4588 = vsel %vm333, 0.0, %v4575
        %v4589 = vsel %vm333, 0.0, %v4577
        %v4590 = vsel %vm333, 0.0, %v4579
        %v4591 = vsel %vm333, 0.0, %v4581
        %v4592 = vld [vmem:[%s4401 + $0x6] sm:$0x1]
        %v4593 = vlaneseq
        %v4594 = vshrl.u32 %v4593, 7
        %v4595 = vsub.s32 0, %v4594
        %v4596 = vrot.slane %v4592, %v4595
        %v4597 = vmul.f32 %v4587, %v4596
        %v4598 = vmul.f32 %v4588, %v4596
        %v4599 = vmul.f32 %v4589, %v4596
        %v4600 = vmul.f32 %v4590, %v4596
        %v4601 = vmul.f32 %v4591, %v4596
        %v4602 = vadd.f32 %v4557, %v4597
        %v4603 = vadd.f32 %v4558, %v4598
        %v4604 = vadd.f32 %v4559, %v4599
        %v4605 = vadd.f32 %v4560, %v4600
        %v4606 = vadd.f32 %v4561, %v4601
        %v4607 = vld [vmem:[%s4401 + $0x7] sm:$0x1]
        %v4608 = vlaneseq
        %v4609 = vshrl.u32 %v4608, 7
        %v4610 = vsub.s32 0, %v4609
        %v4611 = vrot.slane %v4607, %v4610
        %v4612 = vmul.f32 %v4562, %v4611
        %v4613 = vmul.f32 %v4563, %v4611
        %v4614 = vmul.f32 %v4564, %v4611
        %v4615 = vmul.f32 %v4565, %v4611
        %v4616 = vmul.f32 %v4566, %v4611
        %v4617 = vadd.f32 %v4602, %v4612
        %v4618 = vadd.f32 %v4603, %v4613
        %v4619 = vadd.f32 %v4604, %v4614
        %v4620 = vadd.f32 %v4605, %v4615
        %v4621 = vadd.f32 %v4606, %v4616
        %4622 = vrot.lane.b32.xlu0 %v4562, 112
        %v4623 = vpop.permute.xlu0 %4622
        %4624 = vrot.lane.b32.xlu0 %v4563, 112
        %v4625 = vpop.permute.xlu0 %4624
        %4626 = vrot.lane.b32.xlu0 %v4564, 112
        %v4627 = vpop.permute.xlu0 %4626
        %4628 = vrot.lane.b32.xlu0 %v4565, 112
        %v4629 = vpop.permute.xlu0 %4628
        %4630 = vrot.lane.b32.xlu0 %v4566, 112
        %v4631 = vpop.permute.xlu0 %4630
        %v4637 = vsel %vm1042, %v4623, 0.0
        %v4638 = vsel %vm1042, %v4625, 0.0
        %v4639 = vsel %vm1042, %v4627, 0.0
        %v4640 = vsel %vm1042, %v4629, 0.0
        %v4641 = vsel %vm1042, %v4631, 0.0
        %v4642 = vld [vmem:[%s4401 + $0x8] sm:$0x1]
        %v4643 = vlaneseq
        %v4644 = vshrl.u32 %v4643, 7
        %v4645 = vsub.s32 0, %v4644
        %v4646 = vrot.slane %v4642, %v4645
        %v4647 = vmul.f32 %v4637, %v4646
        %v4648 = vmul.f32 %v4638, %v4646
        %v4649 = vmul.f32 %v4639, %v4646
        %v4650 = vmul.f32 %v4640, %v4646
        %v4651 = vmul.f32 %v4641, %v4646
        %v4652 = vadd.f32 %v4617, %v4647
        %v4653 = vadd.f32 %v4618, %v4648
        %v4654 = vadd.f32 %v4619, %v4649
        %v4655 = vadd.f32 %v4620, %v4650
        %v4656 = vadd.f32 %v4621, %v4651
        %s4657 = scalar_lea.vmem %s2, 32
        %v4658 = vld [vmem:[%s4657] sm:$0x1]
        %v4659 = vlaneseq
        %v4660 = vshrl.u32 %v4659, 7
        %v4661 = vsub.s32 0, %v4660
        %v4662 = vrot.slane %v4658, %v4661
        %v4663 = vmul.f32 %v4652, %v4662
        %v4664 = vmul.f32 %v4653, %v4662
        %v4665 = vmul.f32 %v4654, %v4662
        %v4666 = vmul.f32 %v4655, %v4662
        %v4667 = vmul.f32 %v4656, %v4662
        %v4668 = vld [vmem:[%s4657 + $0x1] sm:$0x1]
        %v4669 = vlaneseq
        %v4670 = vshrl.u32 %v4669, 7
        %v4671 = vsub.s32 0, %v4670
        %v4672 = vrot.slane %v4668, %v4671
        %v4673 = vadd.f32 %v4663, %v4672
        %v4674 = vadd.f32 %v4664, %v4672
        %v4675 = vadd.f32 %v4665, %v4672
        %v4676 = vadd.f32 %v4666, %v4672
        %v4677 = vadd.f32 %v4667, %v4672
        %vm4678 = vcmp.gt.f32.partialorder %v4673, 0.0
        %vm4679 = vcmp.gt.f32.partialorder %v4674, 0.0
        %vm4680 = vcmp.gt.f32.partialorder %v4675, 0.0
        %vm4681 = vcmp.gt.f32.partialorder %v4676, 0.0
        %vm4682 = vcmp.gt.f32.partialorder %v4677, 0.0
        %v4683 = vld [vmem:[%s4657 + $0x2] sm:$0x1]
        %v4684 = vlaneseq
        %v4685 = vshrl.u32 %v4684, 7
        %v4686 = vsub.s32 0, %v4685
        %v4687 = vrot.slane %v4683, %v4686
        %v4688 = vmul.f32 %v4673, %v4687
        %v4689 = vmul.f32 %v4674, %v4687
        %v4690 = vmul.f32 %v4675, %v4687
        %v4691 = vmul.f32 %v4676, %v4687
        %v4692 = vmul.f32 %v4677, %v4687
        %v4693 = vsel %vm4678, %v4673, %v4688
        %v4694 = vsel %vm4679, %v4674, %v4689
        %v4695 = vsel %vm4680, %v4675, %v4690
        %v4696 = vsel %vm4681, %v4676, %v4691
        %v4697 = vsel %vm4682, %v4677, %v4692
        %s4698 = scalar_lea.vmem [#allocation7], 512
        %v4699 = vld [vmem:[%s4698] sm:$0xff]
        %v4700 = vld [vmem:[%s4698 + $0x8] sm:$0xff]
        %v4701 = vld [vmem:[%s4698 + $0x10] sm:$0xff]
        %v4702 = vld [vmem:[%s4698 + $0x18] sm:$0xff]
        %v4703 = vld [vmem:[%s4698 + $0x20] sm:$0xff]
        %v4704 = vld [vmem:[%s4698 + $0x28] sm:$0xff]
        %v4705 = vld [vmem:[%s4698 + $0x30] sm:$0xff]
        %v4706 = vld [vmem:[%s4698 + $0x38] sm:$0xff]
        %v4707 = vld [vmem:[%s4698 + $0x40] sm:$0xff]
        %v4708 = vld [vmem:[%s4698 + $0x48] sm:$0xff]
        %v4709 = vld [vmem:[%s4698 + $0x50] sm:$0xff]
        %v4710 = vld [vmem:[%s4698 + $0x58] sm:$0xff]
        %v4711 = vld [vmem:[%s4698 + $0x60] sm:$0xff]
        %v4712 = vld [vmem:[%s4698 + $0x68] sm:$0xff]
        %v4713 = vld [vmem:[%s4698 + $0x70] sm:$0xff]
        %v4714 = vld [vmem:[%s4698 + $0x78] sm:$0xff]
        %v4715 = vld [vmem:[%s4657 + $0x3] sm:$0x1]
        %v4716 = vlaneseq
        %v4717 = vshrl.u32 %v4716, 7
        %v4718 = vsub.s32 0, %v4717
        %v4719 = vrot.slane %v4715, %v4718
        %4720 = vmatprep.subr.mxu0 0.0
        %4721 = vmatpush1.msra.mxu0 %v4699
        %4722 = vmatprep.subr.mxu0 0.0
        %4723 = vmatpush1.msra.mxu0 %v4700
        %4724 = vmatprep.subr.mxu0 0.0
        %4725 = vmatpush1.msra.mxu0 %v4701
        %4726 = vmatprep.subr.mxu0 0.0
        %4727 = vmatpush1.msra.mxu0 %v4702
        %4728 = vmatprep.subr.mxu0 0.0
        %4729 = vmatpush1.msra.mxu0 %v4703
        %4730 = vmatprep.subr.mxu0 0.0
        %4731 = vmatpush1.msra.mxu0 %v4704
        %4732 = vmatprep.subr.mxu0 0.0
        %4733 = vmatpush1.msra.mxu0 %v4705
        %4734 = vmatprep.subr.mxu0 0.0
        %4735 = vmatpush1.msra.mxu0 %v4706
        %4736 = vmatprep.subr.mxu0 0.0
        %4737 = vmatpush1.msra.mxu0 %v4707
        %4738 = vmatprep.subr.mxu0 0.0
        %4739 = vmatpush1.msra.mxu0 %v4708
        %4740 = vmatprep.subr.mxu0 0.0
        %4741 = vmatpush1.msra.mxu0 %v4709
        %4742 = vmatprep.subr.mxu0 0.0
        %4743 = vmatpush1.msra.mxu0 %v4710
        %4744 = vmatprep.subr.mxu0 0.0
        %4745 = vmatpush1.msra.mxu0 %v4711
        %4746 = vmatprep.subr.mxu0 0.0
        %4747 = vmatpush1.msra.mxu0 %v4712
        %4748 = vmatprep.subr.mxu0 0.0
        %4749 = vmatpush1.msra.mxu0 %v4713
        %4750 = vmatprep.subr.mxu0 0.0
        %4751 = vmatpush1.msra.mxu0 %v4714
        %4752 = vmatprep.subr.mxu0 0.0
        %4753 = vmatpush1.msra.mxu0 0.0
        %4754 = vmatprep.subr.mxu0 0.0
        %4755 = vmatpush1.msra.mxu0 0.0
        %4756 = vmatprep.subr.mxu0 0.0
        %4757 = vmatpush1.msra.mxu0 0.0
        %4758 = vmatprep.subr.mxu0 0.0
        %4759 = vmatpush1.msra.mxu0 0.0
        %4760 = vmatprep.subr.mxu0 0.0
        %4761 = vmatpush1.msra.mxu0 0.0
        %4762 = vmatprep.subr.mxu0 0.0
        %4763 = vmatpush1.msra.mxu0 0.0
        %4764 = vmatprep.subr.mxu0 0.0
        %4765 = vmatpush1.msra.mxu0 0.0
        %4766 = vmatprep.subr.mxu0 0.0
        %4767 = vmatpush1.msra.mxu0 0.0
        %4768 = vmatprep.subr.mxu0 0.0
        %4769 = vmatpush1.msra.mxu0 0.0
        %4770 = vmatprep.subr.mxu0 0.0
        %4771 = vmatpush1.msra.mxu0 0.0
        %4772 = vmatprep.subr.mxu0 0.0
        %4773 = vmatpush1.msra.mxu0 0.0
        %4774 = vmatprep.subr.mxu0 0.0
        %4775 = vmatpush1.msra.mxu0 0.0
        %4776 = vmatprep.subr.mxu0 0.0
        %4777 = vmatpush1.msra.mxu0 0.0
        %4778 = vmatprep.subr.mxu0 0.0
        %4779 = vmatpush1.msra.mxu0 0.0
        %4780 = vmatprep.subr.mxu0 0.0
        %4781 = vmatpush1.msra.mxu0 0.0
        %4782 = vmatprep.subr.mxu0 0.0
        %4783 = vmatpush1.msra.mxu0 0.0
        %4784 = vmatprep.mubr.f32.mxu0 0.0
        %4785 = vmatmul.mubr.f32.gmra.mrb[0].mxu0 %v4693
        %v4786 = vpop.f32.mrb[0].mxu0
        %v4787 = vadd.f32 %v4719, %v4786
        %v4788 = vpop.f32.mrb[0].mxu0
        %4789 = vmatprep.mubr.f32.mxu0 0.0
        %4790 = vmatmul.mubr.f32.gmra.mrb[0].mxu0 %v4694
        %v4791 = vpop.f32.mrb[0].mxu0
        %v4792 = vadd.f32 %v4719, %v4791
        %v4793 = vpop.f32.mrb[0].mxu0
        %4794 = vmatprep.mubr.f32.mxu0 0.0
        %4795 = vmatmul.mubr.f32.gmra.mrb[0].mxu0 %v4695
        %v4796 = vpop.f32.mrb[0].mxu0
        %v4797 = vadd.f32 %v4719, %v4796
        %v4798 = vpop.f32.mrb[0].mxu0
        %4799 = vmatprep.mubr.f32.mxu0 0.0
        %4800 = vmatmul.mubr.f32.gmra.mrb[0].mxu0 %v4696
        %v4801 = vpop.f32.mrb[0].mxu0
        %v4802 = vadd.f32 %v4719, %v4801
        %v4803 = vpop.f32.mrb[0].mxu0
        %4804 = vmatprep.mubr.f32.mxu0 0.0
        %4805 = vmatmul.mubr.f32.gmra.mrb[0].mxu0 %v4697
        %v4806 = vpop.f32.mrb[0].mxu0
        %v4807 = vadd.f32 %v4719, %v4806
        %v4808 = vpop.f32.mrb[0].mxu0
        %4809 = vdwg.mxu0
        %vm4810 = vcmp.gt.f32.partialorder %v4787, 0.0
        %vm4811 = vcmp.gt.f32.partialorder %v4792, 0.0
        %vm4812 = vcmp.gt.f32.partialorder %v4797, 0.0
        %vm4813 = vcmp.gt.f32.partialorder %v4802, 0.0
        %vm4814 = vcmp.gt.f32.partialorder %v4807, 0.0
        %v4815 = vld [vmem:[%s4657 + $0x4] sm:$0x1]
        %v4816 = vlaneseq
        %v4817 = vshrl.u32 %v4816, 7
        %v4818 = vsub.s32 0, %v4817
        %v4819 = vrot.slane %v4815, %v4818
        %v4820 = vmul.f32 %v4787, %v4819
        %v4821 = vmul.f32 %v4792, %v4819
        %v4822 = vmul.f32 %v4797, %v4819
        %v4823 = vmul.f32 %v4802, %v4819
        %v4824 = vmul.f32 %v4807, %v4819
        %v4825 = vsel %vm4810, %v4787, %v4820
        %v4826 = vsel %vm4811, %v4792, %v4821
        %v4827 = vsel %vm4812, %v4797, %v4822
        %v4828 = vsel %vm4813, %v4802, %v4823
        %v4829 = vsel %vm4814, %v4807, %v4824
        %4830 = vst [vmem:[%s298] sm:$0xff] %v4825
        %4831 = vst [vmem:[%s298 + $0x6] sm:$0xfc] %v4826
        %4832 = vst [vmem:[%s298 + $0xe] sm:$0x3] %v4827
        %4833 = vst [vmem:[%s298 + $0xc] sm:$0xf0] %v4827
        %4834 = vst [vmem:[%s298 + $0x14] sm:$0xf] %v4828
        %4835 = vst [vmem:[%s298 + $0x12] sm:$0xc0] %v4828
        %4836 = vst [vmem:[%s298 + $0x1a] sm:$0x3f] %v4829
        %s4837 = sand.u32 %s163, 1
        %s4838 = scalar_lea.sflag [#allocation6], %s4837
        %s4839 = sand.u32 %s163, 1
        %s4840 = smul.addr %s4839, 32
        %s4841 = scalar_lea.vmem [#allocation10], %s4840
        // Predicated region
        $region57: #{tpu_custom_call.1} parent=43 // pred_check
          %p4842 = pneg %p173
        $region58: #{tpu_custom_call.1} parent=43 // pred_check_branch
          %4844 = sbr.rel (%p4842) target = $region60
        $region59: #{tpu_custom_call.1} parent=43 // pred_region
          %s4846 = ssub.s32 512, 512
          %4847 = vsyncadd %s4838, %s4846
          %s4848 = smul.addr %s24, 4
          %s4849 = smul.addr %s4848, 128
          %s4850 = scalar_lea.hbm %s6, %s4849
          %s4851 = sshll.u32 %s4841, 4
          %s4852 = int_to_ptr.vmem [resolvable:$true] %s4851
          %4857 = dma.vmem_to_hbm [thread:$0]  %s4852, 512, %s4850, %s4838, 128, 128, 8
        $region60: #{tpu_custom_call.1} parent=43 // pred_fallthru
          _
      $region44: #{tpu_custom_call.1} parent=5 // pred_fallthru
        _
      %p4858 = scmp.le.s32.totalorder 2, %s19
      // Predicated region
      $region61: #{tpu_custom_call.1} parent=5 // pred_check
        %p4859 = pneg %p4858
      $region62: #{tpu_custom_call.1} parent=5 // pred_check_branch
        %4861 = sbr.rel (%p4859) target = $region64
      $region63: #{tpu_custom_call.1} parent=5 // pred_region
        %s4862 = ssub.s32 %s19, 2
        // Predicated region
        $region65: #{tpu_custom_call.1} parent=63 // pred_check
          %p4863 = pneg %p179
        $region66: #{tpu_custom_call.1} parent=63 // pred_check_branch
          %4865 = sbr.rel (%p4863) target = $region68
        $region67: #{tpu_custom_call.1} parent=63 // pred_region
          %s4866 = sand.u32 %s164, 1
          %s4867 = scalar_lea.sflag [#allocation6], %s4866
          %s4868 = sand.u32 %s164, 1
          %s4869 = smul.addr %s4868, 32
          %s4870 = scalar_lea.vmem [#allocation10], %s4869
          %4871 = dma.done %s4867, 512
        $region68: #{tpu_custom_call.1} parent=63 // pred_fallthru
          _
      $region64: #{tpu_custom_call.1} parent=5 // pred_fallthru
        _
    $region6: #{tpu_custom_call.1} parent=1 // loop_footer
      %s23 = sadd.s32 1, %s19
    $region7: #{tpu_custom_call.1} parent=1 // loop_footer_branch
      %18 = sbr.rel target = $region3
    $region8: #{tpu_custom_call.1} parent=1 // loop_exit
      _
    %4872 = vsyncpa [#allocation5], 1
    %s4873 = scalar_lea.sflag [#allocation5], 1
    %4874 = vsyncpa %s4873, 1
    %4875 = vsyncpa [#allocation8], 1
    %4876 = vsyncpa [#allocation6], 1
    %s4877 = scalar_lea.sflag [#allocation6], 1
    %4878 = vsyncpa %s4877, 1

</llo_original>
